<compile_context>
chip_gen: v5e
topology: v5e:2x2
jax: 0.10.0
libtpu: 0.0.40
codegen_flags: <defaults>
</compile_context>

<pallas_src>
import functools

import numpy as np

import jax
import jax.numpy as jnp
from jax.experimental import pallas as pl
from jax.experimental.pallas import tpu as pltpu


_BN_EPS = 1e-5


def _pad8(n):
    return ((n + 7) // 8) * 8


# ----------------------------------------------------------------------------
# In-kernel helpers.  Activation layout everywhere: (C, N*H*W), channels on
# sublanes, flattened (image, row, col) on lanes.
# ----------------------------------------------------------------------------
def _level_masks(h_l, w_l, length):
    """Per-tap 0/1 boundary masks (f32, shape (1, length)), built once per
    pyramid level.  Periodic in h_l*w_l, so they are correct for the whole
    folded batch and also kill any cross-image leakage of the lane shifts."""
    pos = jax.lax.broadcasted_iota(jnp.int32, (1, length), 1)
    q = pos & (h_l * w_l - 1)                 # flat position within one image
    col = pos & (w_l - 1)                     # column within one row
    up = (q >= w_l).astype(jnp.float32)               # dh = -1 taps valid
    down = (q < (h_l - 1) * w_l).astype(jnp.float32)  # dh = +1 taps valid
    left = (col >= 1).astype(jnp.float32)              # dw = -1 taps valid
    right = (col <= w_l - 2).astype(jnp.float32)       # dw = +1 taps valid
    masks = {}
    for dh in (-1, 0, 1):
        for dw in (-1, 0, 1):
            m = None
            if dh == -1:
                m = up
            elif dh == 1:
                m = down
            if dw == -1:
                m = left if m is None else m * left
            elif dw == 1:
                m = right if m is None else m * right
            masks[(dh, dw)] = m               # None for the (0, 0) tap
    return masks


def _conv3x3_T(x, w_l, masks, w9t, b, relu=True):
    """Same-padded 3x3 conv (+ folded BN + optional ReLU), transposed layout.

    x   : (cin, L) f32, L = N*h_l*w_l, lane = n*h*w + row*w_l + col
    w9t : (cout, 9*cin) bf16, columns ordered (kh, kw, cin) row-major
    b   : (cout, 1) f32
    """
    cin, ln = x.shape
    p = w_l + 1
    z = jnp.zeros((cin, p), jnp.float32)
    xp = jnp.concatenate([z, x, z], axis=1)            # (cin, L + 2p)

    taps = []
    for dh in (-1, 0, 1):
        for dw in (-1, 0, 1):
            s = dh * w_l + dw
            t = xp[:, p + s:p + s + ln]                # static lane window
            m = masks[(dh, dw)]
            if m is not None:
                t = t * m                              # f32 mask (v5e-safe)
            taps.append(t)
    # Taps stack along the sublane / contraction axis (cheap), single bf16
    # cast, one lane-dense MXU matmul.
    patches = jnp.concatenate(taps, axis=0).astype(jnp.bfloat16)  # (9cin, L)

    y = jnp.dot(w9t, patches, preferred_element_type=jnp.float32) + b
    if relu:
        y = jnp.maximum(y, 0.0)
    return y


def _maxpool2x2_T(x, w_l, sel_t):
    """2x2 / stride-2 max pool: 4-way max via lane-window slices, anchor
    selection via a small bf16 0/1 matmul (lane-dense output L/4)."""
    c, ln = x.shape
    pad = jnp.zeros((c, w_l + 1), jnp.float32)
    xp = jnp.concatenate([x, pad], axis=1)
    m = jnp.maximum(
        jnp.maximum(x, xp[:, 1:ln + 1]),
        jnp.maximum(xp[:, w_l:ln + w_l], xp[:, w_l + 1:ln + w_l + 1]),
    )
    return jnp.dot(m.astype(jnp.bfloat16), sel_t,
                   preferred_element_type=jnp.float32)


def _upsample2x_T(x, rep_t):
    """Nearest-neighbor 2x upsample as a bf16 0/1 replication matmul."""
    return jnp.dot(x.astype(jnp.bfloat16), rep_t,
                   preferred_element_type=jnp.float32)


# ----------------------------------------------------------------------------
# The fused UNet++ kernel (whole batch in one grid step).
# ----------------------------------------------------------------------------
def _unetpp_fused_kernel(
    x_ref,
    w00a, b00a, w00b, b00b,
    w10a, b10a, w10b, b10b,
    w20a, b20a, w20b, b20b,
    w01a, b01a, w01b, b01b,
    w11a, b11a, w11b, b11b,
    w02a, b02a, w02b, b02b,
    head_w, head_b,
    pool_a, pool_b, up_b, up_c,
    o_ref,
    *, height, width, n_img,
):
    wd0, wd1, wd2 = width, width // 2, width // 4
    hd0, hd1, hd2 = height, height // 2, height // 4
    l0 = n_img * height * width
    l1 = l0 // 4
    l2 = l0 // 16

    # Hoisted boundary masks: built once per level, shared by all conv calls.
    m0 = _level_masks(hd0, wd0, l0)
    m1 = _level_masks(hd1, wd1, l1)
    m2 = _level_masks(hd2, wd2, l2)

    def conv_block(h, w_l, masks, wa, ba, wb, bb):
        h = _conv3x3_T(h, w_l, masks, wa[...], ba[...])
        return _conv3x3_T(h, w_l, masks, wb[...], bb[...])

    x_in = x_ref[...]                                          # (cin, L0) f32

    # Encoder column.
    x00 = conv_block(x_in, wd0, m0, w00a, b00a, w00b, b00b)    # (f0, L0)
    x10 = conv_block(_maxpool2x2_T(x00, wd0, pool_a[...]),
                     wd1, m1, w10a, b10a, w10b, b10b)          # (f1, L1)
    x20 = conv_block(_maxpool2x2_T(x10, wd1, pool_b[...]),
                     wd2, m2, w20a, b20a, w20b, b20b)          # (f2, L2)

    # Nested skip columns (nearest-neighbor upsample).
    u10 = _upsample2x_T(x10, up_b[...])                        # (f1, L0)
    x01 = conv_block(jnp.concatenate([x00, u10], axis=0),
                     wd0, m0, w01a, b01a, w01b, b01b)          # (f0, L0)

    u20 = _upsample2x_T(x20, up_c[...])                        # (f2, L1)
    x11 = conv_block(jnp.concatenate([x10, u20], axis=0),
                     wd1, m1, w11a, b11a, w11b, b11b)          # (f1, L1)

    u11 = _upsample2x_T(x11, up_b[...])                        # (f1, L0)
    x02 = conv_block(jnp.concatenate([x00, x01, u11], axis=0),
                     wd0, m0, w02a, b02a, w02b, b02b)          # (f0, L0)

    # 1x1 conv head: (n_pad, f0) @ (f0, L0) -> lane-dense (n_pad, L0) store.
    logits = jnp.dot(head_w[...], x02.astype(jnp.bfloat16),
                     preferred_element_type=jnp.float32) + head_b[...]
    o_ref[...] = logits


_PARAM_ORDER = [
    "x00_w1", "x00_b1", "x00_w2", "x00_b2",
    "x10_w1", "x10_b1", "x10_w2", "x10_b2",
    "x20_w1", "x20_b1", "x20_w2", "x20_b2",
    "x01_w1", "x01_b1", "x01_w2", "x01_b2",
    "x11_w1", "x11_b1", "x11_w2", "x11_b2",
    "x02_w1", "x02_b1", "x02_w2", "x02_b2",
    "head_w", "head_b",
    "pool_a", "pool_b", "up_b", "up_c",
]


# ----------------------------------------------------------------------------
# Parameter / operator construction (deterministic, synthetic).
# Each conv layer = conv3x3(bias=False) -> BN(eval, init stats) -> ReLU,
# with BN folded into an effective (weight, bias) pair.
# ----------------------------------------------------------------------------
def _he_conv3x3_T(key, cin, cout):
    fan_in = 9 * cin
    w = jax.random.normal(key, (3, 3, cin, cout), jnp.float32) * np.sqrt(
        2.0 / fan_in
    )
    scale = 1.0 / np.sqrt(1.0 + _BN_EPS)    # BN fold: gamma=1, beta=0, var=1
    w9t = jnp.transpose((w * scale).reshape(9 * cin, cout))    # (cout, 9cin)
    return w9t.astype(jnp.bfloat16), jnp.zeros((cout, 1), jnp.float32)


def _head_conv1x1_T(key, cin, n_classes):
    n_pad = _pad8(n_classes)
    w = jax.random.normal(key, (n_classes, cin), jnp.float32) * np.sqrt(1.0 / cin)
    w_pad = jnp.zeros((n_pad, cin), jnp.float32).at[:n_classes].set(w)
    return w_pad.astype(jnp.bfloat16), jnp.zeros((n_pad, 1), jnp.float32)


def _pool_sel_T(n, h, w):
    """(N*h*w, N*h*w/4) bf16 0/1 anchor-selection matrix (block-diag per image)."""
    ho, wo = h // 2, w // 2
    m = np.zeros((n * h * w, n * ho * wo), np.float32)
    for b in range(n):
        for oh in range(ho):
            for ow in range(wo):
                m[b * h * w + (2 * oh) * w + 2 * ow,
                  b * ho * wo + oh * wo + ow] = 1.0
    return jnp.asarray(m, dtype=jnp.bfloat16)


def _up_rep_T(n, h_in, w_in):
    """(N*h*w, 4*N*h*w) bf16 0/1 nearest-neighbor replication matrix."""
    ho, wo = 2 * h_in, 2 * w_in
    m = np.zeros((n * h_in * w_in, n * ho * wo), np.float32)
    for b in range(n):
        for qh in range(ho):
            for qw in range(wo):
                m[b * h_in * w_in + (qh // 2) * w_in + (qw // 2),
                  b * ho * wo + qh * wo + qw] = 1.0
    return jnp.asarray(m, dtype=jnp.bfloat16)


def make_unetpp_params(key, in_ch, n_classes, n_img, H, W, filters=(8, 16, 32)):
    # The shift/mask/pool scheme assumes even, power-of-two spatial dims with
    # two pooling levels; assert rather than silently mis-compute.
    assert H % 4 == 0 and W % 4 == 0 and H >= 4 and W >= 4
    assert (H & (H - 1)) == 0 and (W & (W - 1)) == 0, "H, W must be powers of two"

    f0, f1, f2 = filters
    keys = iter(jax.random.split(key, 16))
    p = {}

    def block(name, cin, cout):
        p[name + "_w1"], p[name + "_b1"] = _he_conv3x3_T(next(keys), cin, cout)
        p[name + "_w2"], p[name + "_b2"] = _he_conv3x3_T(next(keys), cout, cout)

    block("x00", in_ch, f0)
    block("x10", f0, f1)
    block("x20", f1, f2)
    block("x01", f0 + f1, f0)
    block("x11", f1 + f2, f1)
    block("x02", f0 + f0 + f1, f0)
    p["head_w"], p["head_b"] = _head_conv1x1_T(next(keys), f0, n_classes)

    # Fixed pooling / nearest-upsampling operators (bf16 0/1 matrices).
    p["pool_a"] = _pool_sel_T(n_img, H, W)               # (N*HW,    N*HW/4)
    p["pool_b"] = _pool_sel_T(n_img, H // 2, W // 2)     # (N*HW/4,  N*HW/16)
    p["up_b"] = _up_rep_T(n_img, H // 2, W // 2)         # (N*HW/4,  N*HW)
    p["up_c"] = _up_rep_T(n_img, H // 4, W // 4)         # (N*HW/16, N*HW/4)
    return p


# ----------------------------------------------------------------------------
# Forward pass: single fused pallas_call, one grid step for the whole batch.
# ----------------------------------------------------------------------------
def food_segmentation_forward(params, x_nchw, *, n_classes):
    n_img, cin, H, W = x_nchw.shape
    L = n_img * H * W
    n_pad = params["head_w"].shape[0]

    # NCHW -> (cin, N*H*W): channels on sublanes, flattened batch+spatial on
    # lanes (lane-dense input DMA; this transpose is of a few KB only).
    x = jnp.transpose(x_nchw, (1, 0, 2, 3)).reshape(cin, L).astype(jnp.float32)

    flat = [params[k] for k in _PARAM_ORDER]
    # All blocks are full arrays (single grid step), so no per-step re-DMA;
    # constant-index parameter blocks stay resident in VMEM.
    in_specs = [pl.BlockSpec(x.shape, lambda n: (0, 0))]
    in_specs += [pl.BlockSpec(a.shape, lambda n: (0, 0)) for a in flat]

    out = pl.pallas_call(
        functools.partial(_unetpp_fused_kernel, height=H, width=W, n_img=n_img),
        out_shape=jax.ShapeDtypeStruct((n_pad, L), jnp.float32),
        grid=(1,),
        in_specs=in_specs,
        out_specs=pl.BlockSpec((n_pad, L), lambda n: (0, 0)),
        compiler_params=pltpu.CompilerParams(
            dimension_semantics=("arbitrary",),
            vmem_limit_bytes=32 * 1024 * 1024,
        ),
    )(x, *flat)

    # (n_pad, N*HW) -> (N, n_classes, H, W)
    logits = out[:n_classes].reshape(n_classes, n_img, H, W)
    return jnp.transpose(logits, (1, 0, 2, 3))


# ----------------------------------------------------------------------------
if __name__ == "__main__":
    N_CLASSES = 104
    BATCH, IN_CH, H, W = 2, 3, 16, 16  # RGB food images, small spatial size

    key = jax.random.PRNGKey(0)
    k_x, k_p = jax.random.split(key)
    x = jax.random.normal(k_x, (BATCH, IN_CH, H, W), jnp.float32)
    params = make_unetpp_params(k_p, IN_CH, N_CLASSES, BATCH, H, W)

    fwd = jax.jit(functools.partial(food_segmentation_forward, n_classes=N_CLASSES))
    out = fwd(params, x)
    out = jax.block_until_ready(out)

    assert out.shape == (BATCH, N_CLASSES, H, W), out.shape
    assert out.dtype == jnp.float32
    assert bool(jnp.all(jnp.isfinite(out)))
    print("KERNEL_OK")
</pallas_src>

<mosaic_0001>
module attributes {stable_mosaic.version = 11 : i64} {
  func.func @_unetpp_fused_kernel(%arg0: i32, %arg1: memref<3x512xf32, #tpu.memory_space<vmem>>, %arg2: memref<8x27xbf16, #tpu.memory_space<vmem>>, %arg3: memref<8x1xf32, #tpu.memory_space<vmem>>, %arg4: memref<8x72xbf16, #tpu.memory_space<vmem>>, %arg5: memref<8x1xf32, #tpu.memory_space<vmem>>, %arg6: memref<16x72xbf16, #tpu.memory_space<vmem>>, %arg7: memref<16x1xf32, #tpu.memory_space<vmem>>, %arg8: memref<16x144xbf16, #tpu.memory_space<vmem>>, %arg9: memref<16x1xf32, #tpu.memory_space<vmem>>, %arg10: memref<32x144xbf16, #tpu.memory_space<vmem>>, %arg11: memref<32x1xf32, #tpu.memory_space<vmem>>, %arg12: memref<32x288xbf16, #tpu.memory_space<vmem>>, %arg13: memref<32x1xf32, #tpu.memory_space<vmem>>, %arg14: memref<8x216xbf16, #tpu.memory_space<vmem>>, %arg15: memref<8x1xf32, #tpu.memory_space<vmem>>, %arg16: memref<8x72xbf16, #tpu.memory_space<vmem>>, %arg17: memref<8x1xf32, #tpu.memory_space<vmem>>, %arg18: memref<16x432xbf16, #tpu.memory_space<vmem>>, %arg19: memref<16x1xf32, #tpu.memory_space<vmem>>, %arg20: memref<16x144xbf16, #tpu.memory_space<vmem>>, %arg21: memref<16x1xf32, #tpu.memory_space<vmem>>, %arg22: memref<8x288xbf16, #tpu.memory_space<vmem>>, %arg23: memref<8x1xf32, #tpu.memory_space<vmem>>, %arg24: memref<8x72xbf16, #tpu.memory_space<vmem>>, %arg25: memref<8x1xf32, #tpu.memory_space<vmem>>, %arg26: memref<104x8xbf16, #tpu.memory_space<vmem>>, %arg27: memref<104x1xf32, #tpu.memory_space<vmem>>, %arg28: memref<512x128xbf16, #tpu.memory_space<vmem>>, %arg29: memref<128x32xbf16, #tpu.memory_space<vmem>>, %arg30: memref<128x512xbf16, #tpu.memory_space<vmem>>, %arg31: memref<32x128xbf16, #tpu.memory_space<vmem>>, %arg32: memref<104x512xf32, #tpu.memory_space<vmem>>) attributes {dimension_semantics = [#tpu.dimension_semantics<arbitrary>], iteration_bounds = array<i64: 1>, scalar_prefetch = 0 : i64, scratch_operands = 0 : i64, tpu.core_type = #tpu.core_type<tc>, window_params = [{pipeline_mode = #tpu.pipeline_mode<synchronous>, transform_indices = @transform_0, window_bounds = array<i64: 3, 512>}, {pipeline_mode = #tpu.pipeline_mode<synchronous>, transform_indices = @transform_1, window_bounds = array<i64: 8, 27>}, {pipeline_mode = #tpu.pipeline_mode<synchronous>, transform_indices = @transform_2, window_bounds = array<i64: 8, 1>}, {pipeline_mode = #tpu.pipeline_mode<synchronous>, transform_indices = @transform_3, window_bounds = array<i64: 8, 72>}, {pipeline_mode = #tpu.pipeline_mode<synchronous>, transform_indices = @transform_4, window_bounds = array<i64: 8, 1>}, {pipeline_mode = #tpu.pipeline_mode<synchronous>, transform_indices = @transform_5, window_bounds = array<i64: 16, 72>}, {pipeline_mode = #tpu.pipeline_mode<synchronous>, transform_indices = @transform_6, window_bounds = array<i64: 16, 1>}, {pipeline_mode = #tpu.pipeline_mode<synchronous>, transform_indices = @transform_7, window_bounds = array<i64: 16, 144>}, {pipeline_mode = #tpu.pipeline_mode<synchronous>, transform_indices = @transform_8, window_bounds = array<i64: 16, 1>}, {pipeline_mode = #tpu.pipeline_mode<synchronous>, transform_indices = @transform_9, window_bounds = array<i64: 32, 144>}, {pipeline_mode = #tpu.pipeline_mode<synchronous>, transform_indices = @transform_10, window_bounds = array<i64: 32, 1>}, {pipeline_mode = #tpu.pipeline_mode<synchronous>, transform_indices = @transform_11, window_bounds = array<i64: 32, 288>}, {pipeline_mode = #tpu.pipeline_mode<synchronous>, transform_indices = @transform_12, window_bounds = array<i64: 32, 1>}, {pipeline_mode = #tpu.pipeline_mode<synchronous>, transform_indices = @transform_13, window_bounds = array<i64: 8, 216>}, {pipeline_mode = #tpu.pipeline_mode<synchronous>, transform_indices = @transform_14, window_bounds = array<i64: 8, 1>}, {pipeline_mode = #tpu.pipeline_mode<synchronous>, transform_indices = @transform_15, window_bounds = array<i64: 8, 72>}, {pipeline_mode = #tpu.pipeline_mode<synchronous>, transform_indices = @transform_16, window_bounds = array<i64: 8, 1>}, {pipeline_mode = #tpu.pipeline_mode<synchronous>, transform_indices = @transform_17, window_bounds = array<i64: 16, 432>}, {pipeline_mode = #tpu.pipeline_mode<synchronous>, transform_indices = @transform_18, window_bounds = array<i64: 16, 1>}, {pipeline_mode = #tpu.pipeline_mode<synchronous>, transform_indices = @transform_19, window_bounds = array<i64: 16, 144>}, {pipeline_mode = #tpu.pipeline_mode<synchronous>, transform_indices = @transform_20, window_bounds = array<i64: 16, 1>}, {pipeline_mode = #tpu.pipeline_mode<synchronous>, transform_indices = @transform_21, window_bounds = array<i64: 8, 288>}, {pipeline_mode = #tpu.pipeline_mode<synchronous>, transform_indices = @transform_22, window_bounds = array<i64: 8, 1>}, {pipeline_mode = #tpu.pipeline_mode<synchronous>, transform_indices = @transform_23, window_bounds = array<i64: 8, 72>}, {pipeline_mode = #tpu.pipeline_mode<synchronous>, transform_indices = @transform_24, window_bounds = array<i64: 8, 1>}, {pipeline_mode = #tpu.pipeline_mode<synchronous>, transform_indices = @transform_25, window_bounds = array<i64: 104, 8>}, {pipeline_mode = #tpu.pipeline_mode<synchronous>, transform_indices = @transform_26, window_bounds = array<i64: 104, 1>}, {pipeline_mode = #tpu.pipeline_mode<synchronous>, transform_indices = @transform_27, window_bounds = array<i64: 512, 128>}, {pipeline_mode = #tpu.pipeline_mode<synchronous>, transform_indices = @transform_28, window_bounds = array<i64: 128, 32>}, {pipeline_mode = #tpu.pipeline_mode<synchronous>, transform_indices = @transform_29, window_bounds = array<i64: 128, 512>}, {pipeline_mode = #tpu.pipeline_mode<synchronous>, transform_indices = @transform_30, window_bounds = array<i64: 32, 128>}, {pipeline_mode = #tpu.pipeline_mode<synchronous>, transform_indices = @transform_31, window_bounds = array<i64: 104, 512>}]} {
    %0 = tpu.iota {dimensions = array<i32: 1>} : vector<1x512xi32>
    %c255_i32 = arith.constant 255 : i32
    %1 = vector.broadcast %c255_i32 : i32 to vector<1x512xi32>
    %2 = arith.andi %0, %1 : vector<1x512xi32>
    %c15_i32 = arith.constant 15 : i32
    %3 = vector.broadcast %c15_i32 : i32 to vector<1x512xi32>
    %4 = arith.andi %0, %3 : vector<1x512xi32>
    %c16_i32 = arith.constant 16 : i32
    %5 = vector.broadcast %c16_i32 : i32 to vector<1x512xi32>
    %6 = arith.cmpi sge, %2, %5 : vector<1x512xi32>
    %7 = arith.extui %6 : vector<1x512xi1> to vector<1x512xi32>
    %8 = arith.sitofp %7 : vector<1x512xi32> to vector<1x512xf32>
    %c240_i32 = arith.constant 240 : i32
    %9 = vector.broadcast %c240_i32 : i32 to vector<1x512xi32>
    %10 = arith.cmpi slt, %2, %9 : vector<1x512xi32>
    %11 = arith.extui %10 : vector<1x512xi1> to vector<1x512xi32>
    %12 = arith.sitofp %11 : vector<1x512xi32> to vector<1x512xf32>
    %c1_i32 = arith.constant 1 : i32
    %13 = vector.broadcast %c1_i32 : i32 to vector<1x512xi32>
    %14 = arith.cmpi sge, %4, %13 : vector<1x512xi32>
    %15 = arith.extui %14 : vector<1x512xi1> to vector<1x512xi32>
    %16 = arith.sitofp %15 : vector<1x512xi32> to vector<1x512xf32>
    %c14_i32 = arith.constant 14 : i32
    %17 = vector.broadcast %c14_i32 : i32 to vector<1x512xi32>
    %18 = arith.cmpi sle, %4, %17 : vector<1x512xi32>
    %19 = arith.extui %18 : vector<1x512xi1> to vector<1x512xi32>
    %20 = arith.sitofp %19 : vector<1x512xi32> to vector<1x512xf32>
    %21 = arith.mulf %8, %16 : vector<1x512xf32>
    %22 = arith.mulf %8, %20 : vector<1x512xf32>
    %23 = arith.mulf %12, %16 : vector<1x512xf32>
    %24 = arith.mulf %12, %20 : vector<1x512xf32>
    %25 = tpu.iota {dimensions = array<i32: 1>} : vector<1x128xi32>
    %c63_i32 = arith.constant 63 : i32
    %26 = vector.broadcast %c63_i32 : i32 to vector<1x128xi32>
    %27 = arith.andi %25, %26 : vector<1x128xi32>
    %c7_i32 = arith.constant 7 : i32
    %28 = vector.broadcast %c7_i32 : i32 to vector<1x128xi32>
    %29 = arith.andi %25, %28 : vector<1x128xi32>
    %c8_i32 = arith.constant 8 : i32
    %30 = vector.broadcast %c8_i32 : i32 to vector<1x128xi32>
    %31 = arith.cmpi sge, %27, %30 : vector<1x128xi32>
    %32 = arith.extui %31 : vector<1x128xi1> to vector<1x128xi32>
    %33 = arith.sitofp %32 : vector<1x128xi32> to vector<1x128xf32>
    %c56_i32 = arith.constant 56 : i32
    %34 = vector.broadcast %c56_i32 : i32 to vector<1x128xi32>
    %35 = arith.cmpi slt, %27, %34 : vector<1x128xi32>
    %36 = arith.extui %35 : vector<1x128xi1> to vector<1x128xi32>
    %37 = arith.sitofp %36 : vector<1x128xi32> to vector<1x128xf32>
    %c1_i32_0 = arith.constant 1 : i32
    %38 = vector.broadcast %c1_i32_0 : i32 to vector<1x128xi32>
    %39 = arith.cmpi sge, %29, %38 : vector<1x128xi32>
    %40 = arith.extui %39 : vector<1x128xi1> to vector<1x128xi32>
    %41 = arith.sitofp %40 : vector<1x128xi32> to vector<1x128xf32>
    %c6_i32 = arith.constant 6 : i32
    %42 = vector.broadcast %c6_i32 : i32 to vector<1x128xi32>
    %43 = arith.cmpi sle, %29, %42 : vector<1x128xi32>
    %44 = arith.extui %43 : vector<1x128xi1> to vector<1x128xi32>
    %45 = arith.sitofp %44 : vector<1x128xi32> to vector<1x128xf32>
    %46 = arith.mulf %33, %41 : vector<1x128xf32>
    %47 = arith.mulf %33, %45 : vector<1x128xf32>
    %48 = arith.mulf %37, %41 : vector<1x128xf32>
    %49 = arith.mulf %37, %45 : vector<1x128xf32>
    %50 = tpu.iota {dimensions = array<i32: 1>} : vector<1x32xi32>
    %c15_i32_1 = arith.constant 15 : i32
    %51 = vector.broadcast %c15_i32_1 : i32 to vector<1x32xi32>
    %52 = arith.andi %50, %51 : vector<1x32xi32>
    %c3_i32 = arith.constant 3 : i32
    %53 = vector.broadcast %c3_i32 : i32 to vector<1x32xi32>
    %54 = arith.andi %50, %53 : vector<1x32xi32>
    %c4_i32 = arith.constant 4 : i32
    %55 = vector.broadcast %c4_i32 : i32 to vector<1x32xi32>
    %56 = arith.cmpi sge, %52, %55 : vector<1x32xi32>
    %57 = arith.extui %56 : vector<1x32xi1> to vector<1x32xi32>
    %58 = arith.sitofp %57 : vector<1x32xi32> to vector<1x32xf32>
    %c12_i32 = arith.constant 12 : i32
    %59 = vector.broadcast %c12_i32 : i32 to vector<1x32xi32>
    %60 = arith.cmpi slt, %52, %59 : vector<1x32xi32>
    %61 = arith.extui %60 : vector<1x32xi1> to vector<1x32xi32>
    %62 = arith.sitofp %61 : vector<1x32xi32> to vector<1x32xf32>
    %c1_i32_2 = arith.constant 1 : i32
    %63 = vector.broadcast %c1_i32_2 : i32 to vector<1x32xi32>
    %64 = arith.cmpi sge, %54, %63 : vector<1x32xi32>
    %65 = arith.extui %64 : vector<1x32xi1> to vector<1x32xi32>
    %66 = arith.sitofp %65 : vector<1x32xi32> to vector<1x32xf32>
    %c2_i32 = arith.constant 2 : i32
    %67 = vector.broadcast %c2_i32 : i32 to vector<1x32xi32>
    %68 = arith.cmpi sle, %54, %67 : vector<1x32xi32>
    %69 = arith.extui %68 : vector<1x32xi1> to vector<1x32xi32>
    %70 = arith.sitofp %69 : vector<1x32xi32> to vector<1x32xf32>
    %71 = arith.mulf %58, %66 : vector<1x32xf32>
    %72 = arith.mulf %58, %70 : vector<1x32xf32>
    %73 = arith.mulf %62, %66 : vector<1x32xf32>
    %74 = arith.mulf %62, %70 : vector<1x32xf32>
    %c0 = arith.constant 0 : index
    %c0_3 = arith.constant 0 : index
    %75 = vector.load %arg1[%c0, %c0_3] : memref<3x512xf32, #tpu.memory_space<vmem>>, vector<3x512xf32>
    %c0_4 = arith.constant 0 : index
    %c0_5 = arith.constant 0 : index
    %76 = vector.load %arg2[%c0_4, %c0_5] : memref<8x27xbf16, #tpu.memory_space<vmem>>, vector<8x27xbf16>
    %c0_6 = arith.constant 0 : index
    %c0_7 = arith.constant 0 : index
    %77 = vector.load %arg3[%c0_6, %c0_7] : memref<8x1xf32, #tpu.memory_space<vmem>>, vector<8x1xf32>
    %cst = arith.constant 0.000000e+00 : f32
    %78 = vector.broadcast %cst : f32 to vector<3x17xf32>
    %79 = tpu.concatenate %78, %75, %78 in 1 : vector<3x17xf32>, vector<3x512xf32>, vector<3x17xf32> -> vector<3x546xf32>
    %80 = vector.extract_strided_slice %79 {offsets = [0, 0], sizes = [3, 512], strides = [1, 1]} : vector<3x546xf32> to vector<3x512xf32>
    %81 = vector.broadcast %21 : vector<1x512xf32> to vector<3x512xf32>
    %82 = arith.mulf %80, %81 : vector<3x512xf32>
    %83 = vector.extract_strided_slice %79 {offsets = [0, 1], sizes = [3, 512], strides = [1, 1]} : vector<3x546xf32> to vector<3x512xf32>
    %84 = vector.broadcast %8 : vector<1x512xf32> to vector<3x512xf32>
    %85 = arith.mulf %83, %84 : vector<3x512xf32>
    %86 = vector.extract_strided_slice %79 {offsets = [0, 2], sizes = [3, 512], strides = [1, 1]} : vector<3x546xf32> to vector<3x512xf32>
    %87 = vector.broadcast %22 : vector<1x512xf32> to vector<3x512xf32>
    %88 = arith.mulf %86, %87 : vector<3x512xf32>
    %89 = vector.extract_strided_slice %79 {offsets = [0, 16], sizes = [3, 512], strides = [1, 1]} : vector<3x546xf32> to vector<3x512xf32>
    %90 = vector.broadcast %16 : vector<1x512xf32> to vector<3x512xf32>
    %91 = arith.mulf %89, %90 : vector<3x512xf32>
    %92 = vector.extract_strided_slice %79 {offsets = [0, 17], sizes = [3, 512], strides = [1, 1]} : vector<3x546xf32> to vector<3x512xf32>
    %93 = vector.extract_strided_slice %79 {offsets = [0, 18], sizes = [3, 512], strides = [1, 1]} : vector<3x546xf32> to vector<3x512xf32>
    %94 = vector.broadcast %20 : vector<1x512xf32> to vector<3x512xf32>
    %95 = arith.mulf %93, %94 : vector<3x512xf32>
    %96 = vector.extract_strided_slice %79 {offsets = [0, 32], sizes = [3, 512], strides = [1, 1]} : vector<3x546xf32> to vector<3x512xf32>
    %97 = vector.broadcast %23 : vector<1x512xf32> to vector<3x512xf32>
    %98 = arith.mulf %96, %97 : vector<3x512xf32>
    %99 = vector.extract_strided_slice %79 {offsets = [0, 33], sizes = [3, 512], strides = [1, 1]} : vector<3x546xf32> to vector<3x512xf32>
    %100 = vector.broadcast %12 : vector<1x512xf32> to vector<3x512xf32>
    %101 = arith.mulf %99, %100 : vector<3x512xf32>
    %102 = vector.extract_strided_slice %79 {offsets = [0, 34], sizes = [3, 512], strides = [1, 1]} : vector<3x546xf32> to vector<3x512xf32>
    %103 = vector.broadcast %24 : vector<1x512xf32> to vector<3x512xf32>
    %104 = arith.mulf %102, %103 : vector<3x512xf32>
    %105 = tpu.concatenate %82, %85, %88, %91, %92, %95, %98, %101, %104 in 0 : vector<3x512xf32>, vector<3x512xf32>, vector<3x512xf32>, vector<3x512xf32>, vector<3x512xf32>, vector<3x512xf32>, vector<3x512xf32>, vector<3x512xf32>, vector<3x512xf32> -> vector<27x512xf32>
    %106 = arith.truncf %105 : vector<27x512xf32> to vector<27x512xbf16>
    %cst_8 = arith.constant dense<0.000000e+00> : vector<8x512xf32>
    %107 = tpu.matmul %76, %106, %cst_8 {dimension_numbers = #tpu.dot_dimension_numbers<[1], [0], [0], [1], [0, 0, 1, 1], [], []>} : vector<8x27xbf16>, vector<27x512xbf16>, vector<8x512xf32> -> vector<8x512xf32>
    %108 = vector.broadcast %77 : vector<8x1xf32> to vector<8x512xf32>
    %109 = arith.addf %107, %108 : vector<8x512xf32>
    %cst_9 = arith.constant 0.000000e+00 : f32
    %110 = vector.broadcast %cst_9 : f32 to vector<8x512xf32>
    %111 = arith.maximumf %109, %110 : vector<8x512xf32>
    %c0_10 = arith.constant 0 : index
    %c0_11 = arith.constant 0 : index
    %112 = vector.load %arg4[%c0_10, %c0_11] : memref<8x72xbf16, #tpu.memory_space<vmem>>, vector<8x72xbf16>
    %c0_12 = arith.constant 0 : index
    %c0_13 = arith.constant 0 : index
    %113 = vector.load %arg5[%c0_12, %c0_13] : memref<8x1xf32, #tpu.memory_space<vmem>>, vector<8x1xf32>
    %cst_14 = arith.constant 0.000000e+00 : f32
    %114 = vector.broadcast %cst_14 : f32 to vector<8x17xf32>
    %115 = tpu.concatenate %114, %111, %114 in 1 : vector<8x17xf32>, vector<8x512xf32>, vector<8x17xf32> -> vector<8x546xf32>
    %116 = vector.extract_strided_slice %115 {offsets = [0, 0], sizes = [8, 512], strides = [1, 1]} : vector<8x546xf32> to vector<8x512xf32>
    %117 = vector.broadcast %21 : vector<1x512xf32> to vector<8x512xf32>
    %118 = arith.mulf %116, %117 : vector<8x512xf32>
    %119 = vector.extract_strided_slice %115 {offsets = [0, 1], sizes = [8, 512], strides = [1, 1]} : vector<8x546xf32> to vector<8x512xf32>
    %120 = vector.broadcast %8 : vector<1x512xf32> to vector<8x512xf32>
    %121 = arith.mulf %119, %120 : vector<8x512xf32>
    %122 = vector.extract_strided_slice %115 {offsets = [0, 2], sizes = [8, 512], strides = [1, 1]} : vector<8x546xf32> to vector<8x512xf32>
    %123 = vector.broadcast %22 : vector<1x512xf32> to vector<8x512xf32>
    %124 = arith.mulf %122, %123 : vector<8x512xf32>
    %125 = vector.extract_strided_slice %115 {offsets = [0, 16], sizes = [8, 512], strides = [1, 1]} : vector<8x546xf32> to vector<8x512xf32>
    %126 = vector.broadcast %16 : vector<1x512xf32> to vector<8x512xf32>
    %127 = arith.mulf %125, %126 : vector<8x512xf32>
    %128 = vector.extract_strided_slice %115 {offsets = [0, 17], sizes = [8, 512], strides = [1, 1]} : vector<8x546xf32> to vector<8x512xf32>
    %129 = vector.extract_strided_slice %115 {offsets = [0, 18], sizes = [8, 512], strides = [1, 1]} : vector<8x546xf32> to vector<8x512xf32>
    %130 = vector.broadcast %20 : vector<1x512xf32> to vector<8x512xf32>
    %131 = arith.mulf %129, %130 : vector<8x512xf32>
    %132 = vector.extract_strided_slice %115 {offsets = [0, 32], sizes = [8, 512], strides = [1, 1]} : vector<8x546xf32> to vector<8x512xf32>
    %133 = vector.broadcast %23 : vector<1x512xf32> to vector<8x512xf32>
    %134 = arith.mulf %132, %133 : vector<8x512xf32>
    %135 = vector.extract_strided_slice %115 {offsets = [0, 33], sizes = [8, 512], strides = [1, 1]} : vector<8x546xf32> to vector<8x512xf32>
    %136 = vector.broadcast %12 : vector<1x512xf32> to vector<8x512xf32>
    %137 = arith.mulf %135, %136 : vector<8x512xf32>
    %138 = vector.extract_strided_slice %115 {offsets = [0, 34], sizes = [8, 512], strides = [1, 1]} : vector<8x546xf32> to vector<8x512xf32>
    %139 = vector.broadcast %24 : vector<1x512xf32> to vector<8x512xf32>
    %140 = arith.mulf %138, %139 : vector<8x512xf32>
    %141 = tpu.concatenate %118, %121, %124, %127, %128, %131, %134, %137, %140 in 0 : vector<8x512xf32>, vector<8x512xf32>, vector<8x512xf32>, vector<8x512xf32>, vector<8x512xf32>, vector<8x512xf32>, vector<8x512xf32>, vector<8x512xf32>, vector<8x512xf32> -> vector<72x512xf32>
    %142 = arith.truncf %141 : vector<72x512xf32> to vector<72x512xbf16>
    %cst_15 = arith.constant dense<0.000000e+00> : vector<8x512xf32>
    %143 = tpu.matmul %112, %142, %cst_15 {dimension_numbers = #tpu.dot_dimension_numbers<[1], [0], [0], [1], [0, 0, 1, 1], [], []>} : vector<8x72xbf16>, vector<72x512xbf16>, vector<8x512xf32> -> vector<8x512xf32>
    %144 = vector.broadcast %113 : vector<8x1xf32> to vector<8x512xf32>
    %145 = arith.addf %143, %144 : vector<8x512xf32>
    %cst_16 = arith.constant 0.000000e+00 : f32
    %146 = vector.broadcast %cst_16 : f32 to vector<8x512xf32>
    %147 = arith.maximumf %145, %146 : vector<8x512xf32>
    %c0_17 = arith.constant 0 : index
    %c0_18 = arith.constant 0 : index
    %148 = vector.load %arg28[%c0_17, %c0_18] : memref<512x128xbf16, #tpu.memory_space<vmem>>, vector<512x128xbf16>
    %cst_19 = arith.constant 0.000000e+00 : f32
    %149 = vector.broadcast %cst_19 : f32 to vector<8x17xf32>
    %150 = tpu.concatenate %147, %149 in 1 : vector<8x512xf32>, vector<8x17xf32> -> vector<8x529xf32>
    %151 = vector.extract_strided_slice %150 {offsets = [0, 1], sizes = [8, 512], strides = [1, 1]} : vector<8x529xf32> to vector<8x512xf32>
    %152 = arith.maximumf %147, %151 : vector<8x512xf32>
    %153 = vector.extract_strided_slice %150 {offsets = [0, 16], sizes = [8, 512], strides = [1, 1]} : vector<8x529xf32> to vector<8x512xf32>
    %154 = vector.extract_strided_slice %150 {offsets = [0, 17], sizes = [8, 512], strides = [1, 1]} : vector<8x529xf32> to vector<8x512xf32>
    %155 = arith.maximumf %153, %154 : vector<8x512xf32>
    %156 = arith.maximumf %152, %155 : vector<8x512xf32>
    %157 = arith.truncf %156 : vector<8x512xf32> to vector<8x512xbf16>
    %cst_20 = arith.constant dense<0.000000e+00> : vector<8x128xf32>
    %158 = tpu.matmul %157, %148, %cst_20 {dimension_numbers = #tpu.dot_dimension_numbers<[1], [0], [0], [1], [0, 0, 1, 1], [], []>} : vector<8x512xbf16>, vector<512x128xbf16>, vector<8x128xf32> -> vector<8x128xf32>
    %c0_21 = arith.constant 0 : index
    %c0_22 = arith.constant 0 : index
    %159 = vector.load %arg6[%c0_21, %c0_22] : memref<16x72xbf16, #tpu.memory_space<vmem>>, vector<16x72xbf16>
    %c0_23 = arith.constant 0 : index
    %c0_24 = arith.constant 0 : index
    %160 = vector.load %arg7[%c0_23, %c0_24] : memref<16x1xf32, #tpu.memory_space<vmem>>, vector<16x1xf32>
    %cst_25 = arith.constant 0.000000e+00 : f32
    %161 = vector.broadcast %cst_25 : f32 to vector<8x9xf32>
    %162 = tpu.concatenate %161, %158, %161 in 1 : vector<8x9xf32>, vector<8x128xf32>, vector<8x9xf32> -> vector<8x146xf32>
    %163 = vector.extract_strided_slice %162 {offsets = [0, 0], sizes = [8, 128], strides = [1, 1]} : vector<8x146xf32> to vector<8x128xf32>
    %164 = vector.broadcast %46 : vector<1x128xf32> to vector<8x128xf32>
    %165 = arith.mulf %163, %164 : vector<8x128xf32>
    %166 = vector.extract_strided_slice %162 {offsets = [0, 1], sizes = [8, 128], strides = [1, 1]} : vector<8x146xf32> to vector<8x128xf32>
    %167 = vector.broadcast %33 : vector<1x128xf32> to vector<8x128xf32>
    %168 = arith.mulf %166, %167 : vector<8x128xf32>
    %169 = vector.extract_strided_slice %162 {offsets = [0, 2], sizes = [8, 128], strides = [1, 1]} : vector<8x146xf32> to vector<8x128xf32>
    %170 = vector.broadcast %47 : vector<1x128xf32> to vector<8x128xf32>
    %171 = arith.mulf %169, %170 : vector<8x128xf32>
    %172 = vector.extract_strided_slice %162 {offsets = [0, 8], sizes = [8, 128], strides = [1, 1]} : vector<8x146xf32> to vector<8x128xf32>
    %173 = vector.broadcast %41 : vector<1x128xf32> to vector<8x128xf32>
    %174 = arith.mulf %172, %173 : vector<8x128xf32>
    %175 = vector.extract_strided_slice %162 {offsets = [0, 9], sizes = [8, 128], strides = [1, 1]} : vector<8x146xf32> to vector<8x128xf32>
    %176 = vector.extract_strided_slice %162 {offsets = [0, 10], sizes = [8, 128], strides = [1, 1]} : vector<8x146xf32> to vector<8x128xf32>
    %177 = vector.broadcast %45 : vector<1x128xf32> to vector<8x128xf32>
    %178 = arith.mulf %176, %177 : vector<8x128xf32>
    %179 = vector.extract_strided_slice %162 {offsets = [0, 16], sizes = [8, 128], strides = [1, 1]} : vector<8x146xf32> to vector<8x128xf32>
    %180 = vector.broadcast %48 : vector<1x128xf32> to vector<8x128xf32>
    %181 = arith.mulf %179, %180 : vector<8x128xf32>
    %182 = vector.extract_strided_slice %162 {offsets = [0, 17], sizes = [8, 128], strides = [1, 1]} : vector<8x146xf32> to vector<8x128xf32>
    %183 = vector.broadcast %37 : vector<1x128xf32> to vector<8x128xf32>
    %184 = arith.mulf %182, %183 : vector<8x128xf32>
    %185 = vector.extract_strided_slice %162 {offsets = [0, 18], sizes = [8, 128], strides = [1, 1]} : vector<8x146xf32> to vector<8x128xf32>
    %186 = vector.broadcast %49 : vector<1x128xf32> to vector<8x128xf32>
    %187 = arith.mulf %185, %186 : vector<8x128xf32>
    %188 = tpu.concatenate %165, %168, %171, %174, %175, %178, %181, %184, %187 in 0 : vector<8x128xf32>, vector<8x128xf32>, vector<8x128xf32>, vector<8x128xf32>, vector<8x128xf32>, vector<8x128xf32>, vector<8x128xf32>, vector<8x128xf32>, vector<8x128xf32> -> vector<72x128xf32>
    %189 = arith.truncf %188 : vector<72x128xf32> to vector<72x128xbf16>
    %cst_26 = arith.constant dense<0.000000e+00> : vector<16x128xf32>
    %190 = tpu.matmul %159, %189, %cst_26 {dimension_numbers = #tpu.dot_dimension_numbers<[1], [0], [0], [1], [0, 0, 1, 1], [], []>} : vector<16x72xbf16>, vector<72x128xbf16>, vector<16x128xf32> -> vector<16x128xf32>
    %191 = vector.broadcast %160 : vector<16x1xf32> to vector<16x128xf32>
    %192 = arith.addf %190, %191 : vector<16x128xf32>
    %cst_27 = arith.constant 0.000000e+00 : f32
    %193 = vector.broadcast %cst_27 : f32 to vector<16x128xf32>
    %194 = arith.maximumf %192, %193 : vector<16x128xf32>
    %c0_28 = arith.constant 0 : index
    %c0_29 = arith.constant 0 : index
    %195 = vector.load %arg8[%c0_28, %c0_29] : memref<16x144xbf16, #tpu.memory_space<vmem>>, vector<16x144xbf16>
    %c0_30 = arith.constant 0 : index
    %c0_31 = arith.constant 0 : index
    %196 = vector.load %arg9[%c0_30, %c0_31] : memref<16x1xf32, #tpu.memory_space<vmem>>, vector<16x1xf32>
    %cst_32 = arith.constant 0.000000e+00 : f32
    %197 = vector.broadcast %cst_32 : f32 to vector<16x9xf32>
    %198 = tpu.concatenate %197, %194, %197 in 1 : vector<16x9xf32>, vector<16x128xf32>, vector<16x9xf32> -> vector<16x146xf32>
    %199 = vector.extract_strided_slice %198 {offsets = [0, 0], sizes = [16, 128], strides = [1, 1]} : vector<16x146xf32> to vector<16x128xf32>
    %200 = vector.broadcast %46 : vector<1x128xf32> to vector<16x128xf32>
    %201 = arith.mulf %199, %200 : vector<16x128xf32>
    %202 = vector.extract_strided_slice %198 {offsets = [0, 1], sizes = [16, 128], strides = [1, 1]} : vector<16x146xf32> to vector<16x128xf32>
    %203 = vector.broadcast %33 : vector<1x128xf32> to vector<16x128xf32>
    %204 = arith.mulf %202, %203 : vector<16x128xf32>
    %205 = vector.extract_strided_slice %198 {offsets = [0, 2], sizes = [16, 128], strides = [1, 1]} : vector<16x146xf32> to vector<16x128xf32>
    %206 = vector.broadcast %47 : vector<1x128xf32> to vector<16x128xf32>
    %207 = arith.mulf %205, %206 : vector<16x128xf32>
    %208 = vector.extract_strided_slice %198 {offsets = [0, 8], sizes = [16, 128], strides = [1, 1]} : vector<16x146xf32> to vector<16x128xf32>
    %209 = vector.broadcast %41 : vector<1x128xf32> to vector<16x128xf32>
    %210 = arith.mulf %208, %209 : vector<16x128xf32>
    %211 = vector.extract_strided_slice %198 {offsets = [0, 9], sizes = [16, 128], strides = [1, 1]} : vector<16x146xf32> to vector<16x128xf32>
    %212 = vector.extract_strided_slice %198 {offsets = [0, 10], sizes = [16, 128], strides = [1, 1]} : vector<16x146xf32> to vector<16x128xf32>
    %213 = vector.broadcast %45 : vector<1x128xf32> to vector<16x128xf32>
    %214 = arith.mulf %212, %213 : vector<16x128xf32>
    %215 = vector.extract_strided_slice %198 {offsets = [0, 16], sizes = [16, 128], strides = [1, 1]} : vector<16x146xf32> to vector<16x128xf32>
    %216 = vector.broadcast %48 : vector<1x128xf32> to vector<16x128xf32>
    %217 = arith.mulf %215, %216 : vector<16x128xf32>
    %218 = vector.extract_strided_slice %198 {offsets = [0, 17], sizes = [16, 128], strides = [1, 1]} : vector<16x146xf32> to vector<16x128xf32>
    %219 = vector.broadcast %37 : vector<1x128xf32> to vector<16x128xf32>
    %220 = arith.mulf %218, %219 : vector<16x128xf32>
    %221 = vector.extract_strided_slice %198 {offsets = [0, 18], sizes = [16, 128], strides = [1, 1]} : vector<16x146xf32> to vector<16x128xf32>
    %222 = vector.broadcast %49 : vector<1x128xf32> to vector<16x128xf32>
    %223 = arith.mulf %221, %222 : vector<16x128xf32>
    %224 = tpu.concatenate %201, %204, %207, %210, %211, %214, %217, %220, %223 in 0 : vector<16x128xf32>, vector<16x128xf32>, vector<16x128xf32>, vector<16x128xf32>, vector<16x128xf32>, vector<16x128xf32>, vector<16x128xf32>, vector<16x128xf32>, vector<16x128xf32> -> vector<144x128xf32>
    %225 = arith.truncf %224 : vector<144x128xf32> to vector<144x128xbf16>
    %cst_33 = arith.constant dense<0.000000e+00> : vector<16x128xf32>
    %226 = tpu.matmul %195, %225, %cst_33 {dimension_numbers = #tpu.dot_dimension_numbers<[1], [0], [0], [1], [0, 0, 1, 1], [], []>} : vector<16x144xbf16>, vector<144x128xbf16>, vector<16x128xf32> -> vector<16x128xf32>
    %227 = vector.broadcast %196 : vector<16x1xf32> to vector<16x128xf32>
    %228 = arith.addf %226, %227 : vector<16x128xf32>
    %cst_34 = arith.constant 0.000000e+00 : f32
    %229 = vector.broadcast %cst_34 : f32 to vector<16x128xf32>
    %230 = arith.maximumf %228, %229 : vector<16x128xf32>
    %c0_35 = arith.constant 0 : index
    %c0_36 = arith.constant 0 : index
    %231 = vector.load %arg29[%c0_35, %c0_36] : memref<128x32xbf16, #tpu.memory_space<vmem>>, vector<128x32xbf16>
    %cst_37 = arith.constant 0.000000e+00 : f32
    %232 = vector.broadcast %cst_37 : f32 to vector<16x9xf32>
    %233 = tpu.concatenate %230, %232 in 1 : vector<16x128xf32>, vector<16x9xf32> -> vector<16x137xf32>
    %234 = vector.extract_strided_slice %233 {offsets = [0, 1], sizes = [16, 128], strides = [1, 1]} : vector<16x137xf32> to vector<16x128xf32>
    %235 = arith.maximumf %230, %234 : vector<16x128xf32>
    %236 = vector.extract_strided_slice %233 {offsets = [0, 8], sizes = [16, 128], strides = [1, 1]} : vector<16x137xf32> to vector<16x128xf32>
    %237 = vector.extract_strided_slice %233 {offsets = [0, 9], sizes = [16, 128], strides = [1, 1]} : vector<16x137xf32> to vector<16x128xf32>
    %238 = arith.maximumf %236, %237 : vector<16x128xf32>
    %239 = arith.maximumf %235, %238 : vector<16x128xf32>
    %240 = arith.truncf %239 : vector<16x128xf32> to vector<16x128xbf16>
    %cst_38 = arith.constant dense<0.000000e+00> : vector<16x32xf32>
    %241 = tpu.matmul %240, %231, %cst_38 {dimension_numbers = #tpu.dot_dimension_numbers<[1], [0], [0], [1], [0, 0, 1, 1], [], []>} : vector<16x128xbf16>, vector<128x32xbf16>, vector<16x32xf32> -> vector<16x32xf32>
    %c0_39 = arith.constant 0 : index
    %c0_40 = arith.constant 0 : index
    %242 = vector.load %arg10[%c0_39, %c0_40] : memref<32x144xbf16, #tpu.memory_space<vmem>>, vector<32x144xbf16>
    %c0_41 = arith.constant 0 : index
    %c0_42 = arith.constant 0 : index
    %243 = vector.load %arg11[%c0_41, %c0_42] : memref<32x1xf32, #tpu.memory_space<vmem>>, vector<32x1xf32>
    %cst_43 = arith.constant 0.000000e+00 : f32
    %244 = vector.broadcast %cst_43 : f32 to vector<16x5xf32>
    %245 = tpu.concatenate %244, %241, %244 in 1 : vector<16x5xf32>, vector<16x32xf32>, vector<16x5xf32> -> vector<16x42xf32>
    %246 = vector.extract_strided_slice %245 {offsets = [0, 0], sizes = [16, 32], strides = [1, 1]} : vector<16x42xf32> to vector<16x32xf32>
    %247 = vector.broadcast %71 : vector<1x32xf32> to vector<16x32xf32>
    %248 = arith.mulf %246, %247 : vector<16x32xf32>
    %249 = vector.extract_strided_slice %245 {offsets = [0, 1], sizes = [16, 32], strides = [1, 1]} : vector<16x42xf32> to vector<16x32xf32>
    %250 = vector.broadcast %58 : vector<1x32xf32> to vector<16x32xf32>
    %251 = arith.mulf %249, %250 : vector<16x32xf32>
    %252 = vector.extract_strided_slice %245 {offsets = [0, 2], sizes = [16, 32], strides = [1, 1]} : vector<16x42xf32> to vector<16x32xf32>
    %253 = vector.broadcast %72 : vector<1x32xf32> to vector<16x32xf32>
    %254 = arith.mulf %252, %253 : vector<16x32xf32>
    %255 = vector.extract_strided_slice %245 {offsets = [0, 4], sizes = [16, 32], strides = [1, 1]} : vector<16x42xf32> to vector<16x32xf32>
    %256 = vector.broadcast %66 : vector<1x32xf32> to vector<16x32xf32>
    %257 = arith.mulf %255, %256 : vector<16x32xf32>
    %258 = vector.extract_strided_slice %245 {offsets = [0, 5], sizes = [16, 32], strides = [1, 1]} : vector<16x42xf32> to vector<16x32xf32>
    %259 = vector.extract_strided_slice %245 {offsets = [0, 6], sizes = [16, 32], strides = [1, 1]} : vector<16x42xf32> to vector<16x32xf32>
    %260 = vector.broadcast %70 : vector<1x32xf32> to vector<16x32xf32>
    %261 = arith.mulf %259, %260 : vector<16x32xf32>
    %262 = vector.extract_strided_slice %245 {offsets = [0, 8], sizes = [16, 32], strides = [1, 1]} : vector<16x42xf32> to vector<16x32xf32>
    %263 = vector.broadcast %73 : vector<1x32xf32> to vector<16x32xf32>
    %264 = arith.mulf %262, %263 : vector<16x32xf32>
    %265 = vector.extract_strided_slice %245 {offsets = [0, 9], sizes = [16, 32], strides = [1, 1]} : vector<16x42xf32> to vector<16x32xf32>
    %266 = vector.broadcast %62 : vector<1x32xf32> to vector<16x32xf32>
    %267 = arith.mulf %265, %266 : vector<16x32xf32>
    %268 = vector.extract_strided_slice %245 {offsets = [0, 10], sizes = [16, 32], strides = [1, 1]} : vector<16x42xf32> to vector<16x32xf32>
    %269 = vector.broadcast %74 : vector<1x32xf32> to vector<16x32xf32>
    %270 = arith.mulf %268, %269 : vector<16x32xf32>
    %271 = tpu.concatenate %248, %251, %254, %257, %258, %261, %264, %267, %270 in 0 : vector<16x32xf32>, vector<16x32xf32>, vector<16x32xf32>, vector<16x32xf32>, vector<16x32xf32>, vector<16x32xf32>, vector<16x32xf32>, vector<16x32xf32>, vector<16x32xf32> -> vector<144x32xf32>
    %272 = arith.truncf %271 : vector<144x32xf32> to vector<144x32xbf16>
    %cst_44 = arith.constant dense<0.000000e+00> : vector<32x32xf32>
    %273 = tpu.matmul %242, %272, %cst_44 {dimension_numbers = #tpu.dot_dimension_numbers<[1], [0], [0], [1], [0, 0, 1, 1], [], []>} : vector<32x144xbf16>, vector<144x32xbf16>, vector<32x32xf32> -> vector<32x32xf32>
    %274 = vector.broadcast %243 : vector<32x1xf32> to vector<32x32xf32>
    %275 = arith.addf %273, %274 : vector<32x32xf32>
    %cst_45 = arith.constant 0.000000e+00 : f32
    %276 = vector.broadcast %cst_45 : f32 to vector<32x32xf32>
    %277 = arith.maximumf %275, %276 : vector<32x32xf32>
    %c0_46 = arith.constant 0 : index
    %c0_47 = arith.constant 0 : index
    %278 = vector.load %arg12[%c0_46, %c0_47] : memref<32x288xbf16, #tpu.memory_space<vmem>>, vector<32x288xbf16>
    %c0_48 = arith.constant 0 : index
    %c0_49 = arith.constant 0 : index
    %279 = vector.load %arg13[%c0_48, %c0_49] : memref<32x1xf32, #tpu.memory_space<vmem>>, vector<32x1xf32>
    %cst_50 = arith.constant 0.000000e+00 : f32
    %280 = vector.broadcast %cst_50 : f32 to vector<32x5xf32>
    %281 = tpu.concatenate %280, %277, %280 in 1 : vector<32x5xf32>, vector<32x32xf32>, vector<32x5xf32> -> vector<32x42xf32>
    %282 = vector.extract_strided_slice %281 {offsets = [0, 0], sizes = [32, 32], strides = [1, 1]} : vector<32x42xf32> to vector<32x32xf32>
    %283 = vector.broadcast %71 : vector<1x32xf32> to vector<32x32xf32>
    %284 = arith.mulf %282, %283 : vector<32x32xf32>
    %285 = vector.extract_strided_slice %281 {offsets = [0, 1], sizes = [32, 32], strides = [1, 1]} : vector<32x42xf32> to vector<32x32xf32>
    %286 = vector.broadcast %58 : vector<1x32xf32> to vector<32x32xf32>
    %287 = arith.mulf %285, %286 : vector<32x32xf32>
    %288 = vector.extract_strided_slice %281 {offsets = [0, 2], sizes = [32, 32], strides = [1, 1]} : vector<32x42xf32> to vector<32x32xf32>
    %289 = vector.broadcast %72 : vector<1x32xf32> to vector<32x32xf32>
    %290 = arith.mulf %288, %289 : vector<32x32xf32>
    %291 = vector.extract_strided_slice %281 {offsets = [0, 4], sizes = [32, 32], strides = [1, 1]} : vector<32x42xf32> to vector<32x32xf32>
    %292 = vector.broadcast %66 : vector<1x32xf32> to vector<32x32xf32>
    %293 = arith.mulf %291, %292 : vector<32x32xf32>
    %294 = vector.extract_strided_slice %281 {offsets = [0, 5], sizes = [32, 32], strides = [1, 1]} : vector<32x42xf32> to vector<32x32xf32>
    %295 = vector.extract_strided_slice %281 {offsets = [0, 6], sizes = [32, 32], strides = [1, 1]} : vector<32x42xf32> to vector<32x32xf32>
    %296 = vector.broadcast %70 : vector<1x32xf32> to vector<32x32xf32>
    %297 = arith.mulf %295, %296 : vector<32x32xf32>
    %298 = vector.extract_strided_slice %281 {offsets = [0, 8], sizes = [32, 32], strides = [1, 1]} : vector<32x42xf32> to vector<32x32xf32>
    %299 = vector.broadcast %73 : vector<1x32xf32> to vector<32x32xf32>
    %300 = arith.mulf %298, %299 : vector<32x32xf32>
    %301 = vector.extract_strided_slice %281 {offsets = [0, 9], sizes = [32, 32], strides = [1, 1]} : vector<32x42xf32> to vector<32x32xf32>
    %302 = vector.broadcast %62 : vector<1x32xf32> to vector<32x32xf32>
    %303 = arith.mulf %301, %302 : vector<32x32xf32>
    %304 = vector.extract_strided_slice %281 {offsets = [0, 10], sizes = [32, 32], strides = [1, 1]} : vector<32x42xf32> to vector<32x32xf32>
    %305 = vector.broadcast %74 : vector<1x32xf32> to vector<32x32xf32>
    %306 = arith.mulf %304, %305 : vector<32x32xf32>
    %307 = tpu.concatenate %284, %287, %290, %293, %294, %297, %300, %303, %306 in 0 : vector<32x32xf32>, vector<32x32xf32>, vector<32x32xf32>, vector<32x32xf32>, vector<32x32xf32>, vector<32x32xf32>, vector<32x32xf32>, vector<32x32xf32>, vector<32x32xf32> -> vector<288x32xf32>
    %308 = arith.truncf %307 : vector<288x32xf32> to vector<288x32xbf16>
    %cst_51 = arith.constant dense<0.000000e+00> : vector<32x32xf32>
    %309 = tpu.matmul %278, %308, %cst_51 {dimension_numbers = #tpu.dot_dimension_numbers<[1], [0], [0], [1], [0, 0, 1, 1], [], []>} : vector<32x288xbf16>, vector<288x32xbf16>, vector<32x32xf32> -> vector<32x32xf32>
    %310 = vector.broadcast %279 : vector<32x1xf32> to vector<32x32xf32>
    %311 = arith.addf %309, %310 : vector<32x32xf32>
    %cst_52 = arith.constant 0.000000e+00 : f32
    %312 = vector.broadcast %cst_52 : f32 to vector<32x32xf32>
    %313 = arith.maximumf %311, %312 : vector<32x32xf32>
    %c0_53 = arith.constant 0 : index
    %c0_54 = arith.constant 0 : index
    %314 = vector.load %arg30[%c0_53, %c0_54] : memref<128x512xbf16, #tpu.memory_space<vmem>>, vector<128x512xbf16>
    %315 = arith.truncf %230 : vector<16x128xf32> to vector<16x128xbf16>
    %cst_55 = arith.constant dense<0.000000e+00> : vector<16x512xf32>
    %316 = tpu.matmul %315, %314, %cst_55 {dimension_numbers = #tpu.dot_dimension_numbers<[1], [0], [0], [1], [0, 0, 1, 1], [], []>} : vector<16x128xbf16>, vector<128x512xbf16>, vector<16x512xf32> -> vector<16x512xf32>
    %317 = tpu.concatenate %147, %316 in 0 : vector<8x512xf32>, vector<16x512xf32> -> vector<24x512xf32>
    %c0_56 = arith.constant 0 : index
    %c0_57 = arith.constant 0 : index
    %318 = vector.load %arg14[%c0_56, %c0_57] : memref<8x216xbf16, #tpu.memory_space<vmem>>, vector<8x216xbf16>
    %c0_58 = arith.constant 0 : index
    %c0_59 = arith.constant 0 : index
    %319 = vector.load %arg15[%c0_58, %c0_59] : memref<8x1xf32, #tpu.memory_space<vmem>>, vector<8x1xf32>
    %cst_60 = arith.constant 0.000000e+00 : f32
    %320 = vector.broadcast %cst_60 : f32 to vector<24x17xf32>
    %321 = tpu.concatenate %320, %317, %320 in 1 : vector<24x17xf32>, vector<24x512xf32>, vector<24x17xf32> -> vector<24x546xf32>
    %322 = vector.extract_strided_slice %321 {offsets = [0, 0], sizes = [24, 512], strides = [1, 1]} : vector<24x546xf32> to vector<24x512xf32>
    %323 = vector.broadcast %21 : vector<1x512xf32> to vector<24x512xf32>
    %324 = arith.mulf %322, %323 : vector<24x512xf32>
    %325 = vector.extract_strided_slice %321 {offsets = [0, 1], sizes = [24, 512], strides = [1, 1]} : vector<24x546xf32> to vector<24x512xf32>
    %326 = vector.broadcast %8 : vector<1x512xf32> to vector<24x512xf32>
    %327 = arith.mulf %325, %326 : vector<24x512xf32>
    %328 = vector.extract_strided_slice %321 {offsets = [0, 2], sizes = [24, 512], strides = [1, 1]} : vector<24x546xf32> to vector<24x512xf32>
    %329 = vector.broadcast %22 : vector<1x512xf32> to vector<24x512xf32>
    %330 = arith.mulf %328, %329 : vector<24x512xf32>
    %331 = vector.extract_strided_slice %321 {offsets = [0, 16], sizes = [24, 512], strides = [1, 1]} : vector<24x546xf32> to vector<24x512xf32>
    %332 = vector.broadcast %16 : vector<1x512xf32> to vector<24x512xf32>
    %333 = arith.mulf %331, %332 : vector<24x512xf32>
    %334 = vector.extract_strided_slice %321 {offsets = [0, 17], sizes = [24, 512], strides = [1, 1]} : vector<24x546xf32> to vector<24x512xf32>
    %335 = vector.extract_strided_slice %321 {offsets = [0, 18], sizes = [24, 512], strides = [1, 1]} : vector<24x546xf32> to vector<24x512xf32>
    %336 = vector.broadcast %20 : vector<1x512xf32> to vector<24x512xf32>
    %337 = arith.mulf %335, %336 : vector<24x512xf32>
    %338 = vector.extract_strided_slice %321 {offsets = [0, 32], sizes = [24, 512], strides = [1, 1]} : vector<24x546xf32> to vector<24x512xf32>
    %339 = vector.broadcast %23 : vector<1x512xf32> to vector<24x512xf32>
    %340 = arith.mulf %338, %339 : vector<24x512xf32>
    %341 = vector.extract_strided_slice %321 {offsets = [0, 33], sizes = [24, 512], strides = [1, 1]} : vector<24x546xf32> to vector<24x512xf32>
    %342 = vector.broadcast %12 : vector<1x512xf32> to vector<24x512xf32>
    %343 = arith.mulf %341, %342 : vector<24x512xf32>
    %344 = vector.extract_strided_slice %321 {offsets = [0, 34], sizes = [24, 512], strides = [1, 1]} : vector<24x546xf32> to vector<24x512xf32>
    %345 = vector.broadcast %24 : vector<1x512xf32> to vector<24x512xf32>
    %346 = arith.mulf %344, %345 : vector<24x512xf32>
    %347 = tpu.concatenate %324, %327, %330, %333, %334, %337, %340, %343, %346 in 0 : vector<24x512xf32>, vector<24x512xf32>, vector<24x512xf32>, vector<24x512xf32>, vector<24x512xf32>, vector<24x512xf32>, vector<24x512xf32>, vector<24x512xf32>, vector<24x512xf32> -> vector<216x512xf32>
    %348 = arith.truncf %347 : vector<216x512xf32> to vector<216x512xbf16>
    %cst_61 = arith.constant dense<0.000000e+00> : vector<8x512xf32>
    %349 = tpu.matmul %318, %348, %cst_61 {dimension_numbers = #tpu.dot_dimension_numbers<[1], [0], [0], [1], [0, 0, 1, 1], [], []>} : vector<8x216xbf16>, vector<216x512xbf16>, vector<8x512xf32> -> vector<8x512xf32>
    %350 = vector.broadcast %319 : vector<8x1xf32> to vector<8x512xf32>
    %351 = arith.addf %349, %350 : vector<8x512xf32>
    %cst_62 = arith.constant 0.000000e+00 : f32
    %352 = vector.broadcast %cst_62 : f32 to vector<8x512xf32>
    %353 = arith.maximumf %351, %352 : vector<8x512xf32>
    %c0_63 = arith.constant 0 : index
    %c0_64 = arith.constant 0 : index
    %354 = vector.load %arg16[%c0_63, %c0_64] : memref<8x72xbf16, #tpu.memory_space<vmem>>, vector<8x72xbf16>
    %c0_65 = arith.constant 0 : index
    %c0_66 = arith.constant 0 : index
    %355 = vector.load %arg17[%c0_65, %c0_66] : memref<8x1xf32, #tpu.memory_space<vmem>>, vector<8x1xf32>
    %cst_67 = arith.constant 0.000000e+00 : f32
    %356 = vector.broadcast %cst_67 : f32 to vector<8x17xf32>
    %357 = tpu.concatenate %356, %353, %356 in 1 : vector<8x17xf32>, vector<8x512xf32>, vector<8x17xf32> -> vector<8x546xf32>
    %358 = vector.extract_strided_slice %357 {offsets = [0, 0], sizes = [8, 512], strides = [1, 1]} : vector<8x546xf32> to vector<8x512xf32>
    %359 = vector.broadcast %21 : vector<1x512xf32> to vector<8x512xf32>
    %360 = arith.mulf %358, %359 : vector<8x512xf32>
    %361 = vector.extract_strided_slice %357 {offsets = [0, 1], sizes = [8, 512], strides = [1, 1]} : vector<8x546xf32> to vector<8x512xf32>
    %362 = vector.broadcast %8 : vector<1x512xf32> to vector<8x512xf32>
    %363 = arith.mulf %361, %362 : vector<8x512xf32>
    %364 = vector.extract_strided_slice %357 {offsets = [0, 2], sizes = [8, 512], strides = [1, 1]} : vector<8x546xf32> to vector<8x512xf32>
    %365 = vector.broadcast %22 : vector<1x512xf32> to vector<8x512xf32>
    %366 = arith.mulf %364, %365 : vector<8x512xf32>
    %367 = vector.extract_strided_slice %357 {offsets = [0, 16], sizes = [8, 512], strides = [1, 1]} : vector<8x546xf32> to vector<8x512xf32>
    %368 = vector.broadcast %16 : vector<1x512xf32> to vector<8x512xf32>
    %369 = arith.mulf %367, %368 : vector<8x512xf32>
    %370 = vector.extract_strided_slice %357 {offsets = [0, 17], sizes = [8, 512], strides = [1, 1]} : vector<8x546xf32> to vector<8x512xf32>
    %371 = vector.extract_strided_slice %357 {offsets = [0, 18], sizes = [8, 512], strides = [1, 1]} : vector<8x546xf32> to vector<8x512xf32>
    %372 = vector.broadcast %20 : vector<1x512xf32> to vector<8x512xf32>
    %373 = arith.mulf %371, %372 : vector<8x512xf32>
    %374 = vector.extract_strided_slice %357 {offsets = [0, 32], sizes = [8, 512], strides = [1, 1]} : vector<8x546xf32> to vector<8x512xf32>
    %375 = vector.broadcast %23 : vector<1x512xf32> to vector<8x512xf32>
    %376 = arith.mulf %374, %375 : vector<8x512xf32>
    %377 = vector.extract_strided_slice %357 {offsets = [0, 33], sizes = [8, 512], strides = [1, 1]} : vector<8x546xf32> to vector<8x512xf32>
    %378 = vector.broadcast %12 : vector<1x512xf32> to vector<8x512xf32>
    %379 = arith.mulf %377, %378 : vector<8x512xf32>
    %380 = vector.extract_strided_slice %357 {offsets = [0, 34], sizes = [8, 512], strides = [1, 1]} : vector<8x546xf32> to vector<8x512xf32>
    %381 = vector.broadcast %24 : vector<1x512xf32> to vector<8x512xf32>
    %382 = arith.mulf %380, %381 : vector<8x512xf32>
    %383 = tpu.concatenate %360, %363, %366, %369, %370, %373, %376, %379, %382 in 0 : vector<8x512xf32>, vector<8x512xf32>, vector<8x512xf32>, vector<8x512xf32>, vector<8x512xf32>, vector<8x512xf32>, vector<8x512xf32>, vector<8x512xf32>, vector<8x512xf32> -> vector<72x512xf32>
    %384 = arith.truncf %383 : vector<72x512xf32> to vector<72x512xbf16>
    %cst_68 = arith.constant dense<0.000000e+00> : vector<8x512xf32>
    %385 = tpu.matmul %354, %384, %cst_68 {dimension_numbers = #tpu.dot_dimension_numbers<[1], [0], [0], [1], [0, 0, 1, 1], [], []>} : vector<8x72xbf16>, vector<72x512xbf16>, vector<8x512xf32> -> vector<8x512xf32>
    %386 = vector.broadcast %355 : vector<8x1xf32> to vector<8x512xf32>
    %387 = arith.addf %385, %386 : vector<8x512xf32>
    %cst_69 = arith.constant 0.000000e+00 : f32
    %388 = vector.broadcast %cst_69 : f32 to vector<8x512xf32>
    %389 = arith.maximumf %387, %388 : vector<8x512xf32>
    %c0_70 = arith.constant 0 : index
    %c0_71 = arith.constant 0 : index
    %390 = vector.load %arg31[%c0_70, %c0_71] : memref<32x128xbf16, #tpu.memory_space<vmem>>, vector<32x128xbf16>
    %391 = arith.truncf %313 : vector<32x32xf32> to vector<32x32xbf16>
    %cst_72 = arith.constant dense<0.000000e+00> : vector<32x128xf32>
    %392 = tpu.matmul %391, %390, %cst_72 {dimension_numbers = #tpu.dot_dimension_numbers<[1], [0], [0], [1], [0, 0, 1, 1], [], []>} : vector<32x32xbf16>, vector<32x128xbf16>, vector<32x128xf32> -> vector<32x128xf32>
    %393 = tpu.concatenate %230, %392 in 0 : vector<16x128xf32>, vector<32x128xf32> -> vector<48x128xf32>
    %c0_73 = arith.constant 0 : index
    %c0_74 = arith.constant 0 : index
    %394 = vector.load %arg18[%c0_73, %c0_74] : memref<16x432xbf16, #tpu.memory_space<vmem>>, vector<16x432xbf16>
    %c0_75 = arith.constant 0 : index
    %c0_76 = arith.constant 0 : index
    %395 = vector.load %arg19[%c0_75, %c0_76] : memref<16x1xf32, #tpu.memory_space<vmem>>, vector<16x1xf32>
    %cst_77 = arith.constant 0.000000e+00 : f32
    %396 = vector.broadcast %cst_77 : f32 to vector<48x9xf32>
    %397 = tpu.concatenate %396, %393, %396 in 1 : vector<48x9xf32>, vector<48x128xf32>, vector<48x9xf32> -> vector<48x146xf32>
    %398 = vector.extract_strided_slice %397 {offsets = [0, 0], sizes = [48, 128], strides = [1, 1]} : vector<48x146xf32> to vector<48x128xf32>
    %399 = vector.broadcast %46 : vector<1x128xf32> to vector<48x128xf32>
    %400 = arith.mulf %398, %399 : vector<48x128xf32>
    %401 = vector.extract_strided_slice %397 {offsets = [0, 1], sizes = [48, 128], strides = [1, 1]} : vector<48x146xf32> to vector<48x128xf32>
    %402 = vector.broadcast %33 : vector<1x128xf32> to vector<48x128xf32>
    %403 = arith.mulf %401, %402 : vector<48x128xf32>
    %404 = vector.extract_strided_slice %397 {offsets = [0, 2], sizes = [48, 128], strides = [1, 1]} : vector<48x146xf32> to vector<48x128xf32>
    %405 = vector.broadcast %47 : vector<1x128xf32> to vector<48x128xf32>
    %406 = arith.mulf %404, %405 : vector<48x128xf32>
    %407 = vector.extract_strided_slice %397 {offsets = [0, 8], sizes = [48, 128], strides = [1, 1]} : vector<48x146xf32> to vector<48x128xf32>
    %408 = vector.broadcast %41 : vector<1x128xf32> to vector<48x128xf32>
    %409 = arith.mulf %407, %408 : vector<48x128xf32>
    %410 = vector.extract_strided_slice %397 {offsets = [0, 9], sizes = [48, 128], strides = [1, 1]} : vector<48x146xf32> to vector<48x128xf32>
    %411 = vector.extract_strided_slice %397 {offsets = [0, 10], sizes = [48, 128], strides = [1, 1]} : vector<48x146xf32> to vector<48x128xf32>
    %412 = vector.broadcast %45 : vector<1x128xf32> to vector<48x128xf32>
    %413 = arith.mulf %411, %412 : vector<48x128xf32>
    %414 = vector.extract_strided_slice %397 {offsets = [0, 16], sizes = [48, 128], strides = [1, 1]} : vector<48x146xf32> to vector<48x128xf32>
    %415 = vector.broadcast %48 : vector<1x128xf32> to vector<48x128xf32>
    %416 = arith.mulf %414, %415 : vector<48x128xf32>
    %417 = vector.extract_strided_slice %397 {offsets = [0, 17], sizes = [48, 128], strides = [1, 1]} : vector<48x146xf32> to vector<48x128xf32>
    %418 = vector.broadcast %37 : vector<1x128xf32> to vector<48x128xf32>
    %419 = arith.mulf %417, %418 : vector<48x128xf32>
    %420 = vector.extract_strided_slice %397 {offsets = [0, 18], sizes = [48, 128], strides = [1, 1]} : vector<48x146xf32> to vector<48x128xf32>
    %421 = vector.broadcast %49 : vector<1x128xf32> to vector<48x128xf32>
    %422 = arith.mulf %420, %421 : vector<48x128xf32>
    %423 = tpu.concatenate %400, %403, %406, %409, %410, %413, %416, %419, %422 in 0 : vector<48x128xf32>, vector<48x128xf32>, vector<48x128xf32>, vector<48x128xf32>, vector<48x128xf32>, vector<48x128xf32>, vector<48x128xf32>, vector<48x128xf32>, vector<48x128xf32> -> vector<432x128xf32>
    %424 = arith.truncf %423 : vector<432x128xf32> to vector<432x128xbf16>
    %cst_78 = arith.constant dense<0.000000e+00> : vector<16x128xf32>
    %425 = tpu.matmul %394, %424, %cst_78 {dimension_numbers = #tpu.dot_dimension_numbers<[1], [0], [0], [1], [0, 0, 1, 1], [], []>} : vector<16x432xbf16>, vector<432x128xbf16>, vector<16x128xf32> -> vector<16x128xf32>
    %426 = vector.broadcast %395 : vector<16x1xf32> to vector<16x128xf32>
    %427 = arith.addf %425, %426 : vector<16x128xf32>
    %cst_79 = arith.constant 0.000000e+00 : f32
    %428 = vector.broadcast %cst_79 : f32 to vector<16x128xf32>
    %429 = arith.maximumf %427, %428 : vector<16x128xf32>
    %c0_80 = arith.constant 0 : index
    %c0_81 = arith.constant 0 : index
    %430 = vector.load %arg20[%c0_80, %c0_81] : memref<16x144xbf16, #tpu.memory_space<vmem>>, vector<16x144xbf16>
    %c0_82 = arith.constant 0 : index
    %c0_83 = arith.constant 0 : index
    %431 = vector.load %arg21[%c0_82, %c0_83] : memref<16x1xf32, #tpu.memory_space<vmem>>, vector<16x1xf32>
    %cst_84 = arith.constant 0.000000e+00 : f32
    %432 = vector.broadcast %cst_84 : f32 to vector<16x9xf32>
    %433 = tpu.concatenate %432, %429, %432 in 1 : vector<16x9xf32>, vector<16x128xf32>, vector<16x9xf32> -> vector<16x146xf32>
    %434 = vector.extract_strided_slice %433 {offsets = [0, 0], sizes = [16, 128], strides = [1, 1]} : vector<16x146xf32> to vector<16x128xf32>
    %435 = vector.broadcast %46 : vector<1x128xf32> to vector<16x128xf32>
    %436 = arith.mulf %434, %435 : vector<16x128xf32>
    %437 = vector.extract_strided_slice %433 {offsets = [0, 1], sizes = [16, 128], strides = [1, 1]} : vector<16x146xf32> to vector<16x128xf32>
    %438 = vector.broadcast %33 : vector<1x128xf32> to vector<16x128xf32>
    %439 = arith.mulf %437, %438 : vector<16x128xf32>
    %440 = vector.extract_strided_slice %433 {offsets = [0, 2], sizes = [16, 128], strides = [1, 1]} : vector<16x146xf32> to vector<16x128xf32>
    %441 = vector.broadcast %47 : vector<1x128xf32> to vector<16x128xf32>
    %442 = arith.mulf %440, %441 : vector<16x128xf32>
    %443 = vector.extract_strided_slice %433 {offsets = [0, 8], sizes = [16, 128], strides = [1, 1]} : vector<16x146xf32> to vector<16x128xf32>
    %444 = vector.broadcast %41 : vector<1x128xf32> to vector<16x128xf32>
    %445 = arith.mulf %443, %444 : vector<16x128xf32>
    %446 = vector.extract_strided_slice %433 {offsets = [0, 9], sizes = [16, 128], strides = [1, 1]} : vector<16x146xf32> to vector<16x128xf32>
    %447 = vector.extract_strided_slice %433 {offsets = [0, 10], sizes = [16, 128], strides = [1, 1]} : vector<16x146xf32> to vector<16x128xf32>
    %448 = vector.broadcast %45 : vector<1x128xf32> to vector<16x128xf32>
    %449 = arith.mulf %447, %448 : vector<16x128xf32>
    %450 = vector.extract_strided_slice %433 {offsets = [0, 16], sizes = [16, 128], strides = [1, 1]} : vector<16x146xf32> to vector<16x128xf32>
    %451 = vector.broadcast %48 : vector<1x128xf32> to vector<16x128xf32>
    %452 = arith.mulf %450, %451 : vector<16x128xf32>
    %453 = vector.extract_strided_slice %433 {offsets = [0, 17], sizes = [16, 128], strides = [1, 1]} : vector<16x146xf32> to vector<16x128xf32>
    %454 = vector.broadcast %37 : vector<1x128xf32> to vector<16x128xf32>
    %455 = arith.mulf %453, %454 : vector<16x128xf32>
    %456 = vector.extract_strided_slice %433 {offsets = [0, 18], sizes = [16, 128], strides = [1, 1]} : vector<16x146xf32> to vector<16x128xf32>
    %457 = vector.broadcast %49 : vector<1x128xf32> to vector<16x128xf32>
    %458 = arith.mulf %456, %457 : vector<16x128xf32>
    %459 = tpu.concatenate %436, %439, %442, %445, %446, %449, %452, %455, %458 in 0 : vector<16x128xf32>, vector<16x128xf32>, vector<16x128xf32>, vector<16x128xf32>, vector<16x128xf32>, vector<16x128xf32>, vector<16x128xf32>, vector<16x128xf32>, vector<16x128xf32> -> vector<144x128xf32>
    %460 = arith.truncf %459 : vector<144x128xf32> to vector<144x128xbf16>
    %cst_85 = arith.constant dense<0.000000e+00> : vector<16x128xf32>
    %461 = tpu.matmul %430, %460, %cst_85 {dimension_numbers = #tpu.dot_dimension_numbers<[1], [0], [0], [1], [0, 0, 1, 1], [], []>} : vector<16x144xbf16>, vector<144x128xbf16>, vector<16x128xf32> -> vector<16x128xf32>
    %462 = vector.broadcast %431 : vector<16x1xf32> to vector<16x128xf32>
    %463 = arith.addf %461, %462 : vector<16x128xf32>
    %cst_86 = arith.constant 0.000000e+00 : f32
    %464 = vector.broadcast %cst_86 : f32 to vector<16x128xf32>
    %465 = arith.maximumf %463, %464 : vector<16x128xf32>
    %c0_87 = arith.constant 0 : index
    %c0_88 = arith.constant 0 : index
    %466 = vector.load %arg30[%c0_87, %c0_88] : memref<128x512xbf16, #tpu.memory_space<vmem>>, vector<128x512xbf16>
    %467 = arith.truncf %465 : vector<16x128xf32> to vector<16x128xbf16>
    %cst_89 = arith.constant dense<0.000000e+00> : vector<16x512xf32>
    %468 = tpu.matmul %467, %466, %cst_89 {dimension_numbers = #tpu.dot_dimension_numbers<[1], [0], [0], [1], [0, 0, 1, 1], [], []>} : vector<16x128xbf16>, vector<128x512xbf16>, vector<16x512xf32> -> vector<16x512xf32>
    %469 = tpu.concatenate %147, %389, %468 in 0 : vector<8x512xf32>, vector<8x512xf32>, vector<16x512xf32> -> vector<32x512xf32>
    %c0_90 = arith.constant 0 : index
    %c0_91 = arith.constant 0 : index
    %470 = vector.load %arg22[%c0_90, %c0_91] : memref<8x288xbf16, #tpu.memory_space<vmem>>, vector<8x288xbf16>
    %c0_92 = arith.constant 0 : index
    %c0_93 = arith.constant 0 : index
    %471 = vector.load %arg23[%c0_92, %c0_93] : memref<8x1xf32, #tpu.memory_space<vmem>>, vector<8x1xf32>
    %cst_94 = arith.constant 0.000000e+00 : f32
    %472 = vector.broadcast %cst_94 : f32 to vector<32x17xf32>
    %473 = tpu.concatenate %472, %469, %472 in 1 : vector<32x17xf32>, vector<32x512xf32>, vector<32x17xf32> -> vector<32x546xf32>
    %474 = vector.extract_strided_slice %473 {offsets = [0, 0], sizes = [32, 512], strides = [1, 1]} : vector<32x546xf32> to vector<32x512xf32>
    %475 = vector.broadcast %21 : vector<1x512xf32> to vector<32x512xf32>
    %476 = arith.mulf %474, %475 : vector<32x512xf32>
    %477 = vector.extract_strided_slice %473 {offsets = [0, 1], sizes = [32, 512], strides = [1, 1]} : vector<32x546xf32> to vector<32x512xf32>
    %478 = vector.broadcast %8 : vector<1x512xf32> to vector<32x512xf32>
    %479 = arith.mulf %477, %478 : vector<32x512xf32>
    %480 = vector.extract_strided_slice %473 {offsets = [0, 2], sizes = [32, 512], strides = [1, 1]} : vector<32x546xf32> to vector<32x512xf32>
    %481 = vector.broadcast %22 : vector<1x512xf32> to vector<32x512xf32>
    %482 = arith.mulf %480, %481 : vector<32x512xf32>
    %483 = vector.extract_strided_slice %473 {offsets = [0, 16], sizes = [32, 512], strides = [1, 1]} : vector<32x546xf32> to vector<32x512xf32>
    %484 = vector.broadcast %16 : vector<1x512xf32> to vector<32x512xf32>
    %485 = arith.mulf %483, %484 : vector<32x512xf32>
    %486 = vector.extract_strided_slice %473 {offsets = [0, 17], sizes = [32, 512], strides = [1, 1]} : vector<32x546xf32> to vector<32x512xf32>
    %487 = vector.extract_strided_slice %473 {offsets = [0, 18], sizes = [32, 512], strides = [1, 1]} : vector<32x546xf32> to vector<32x512xf32>
    %488 = vector.broadcast %20 : vector<1x512xf32> to vector<32x512xf32>
    %489 = arith.mulf %487, %488 : vector<32x512xf32>
    %490 = vector.extract_strided_slice %473 {offsets = [0, 32], sizes = [32, 512], strides = [1, 1]} : vector<32x546xf32> to vector<32x512xf32>
    %491 = vector.broadcast %23 : vector<1x512xf32> to vector<32x512xf32>
    %492 = arith.mulf %490, %491 : vector<32x512xf32>
    %493 = vector.extract_strided_slice %473 {offsets = [0, 33], sizes = [32, 512], strides = [1, 1]} : vector<32x546xf32> to vector<32x512xf32>
    %494 = vector.broadcast %12 : vector<1x512xf32> to vector<32x512xf32>
    %495 = arith.mulf %493, %494 : vector<32x512xf32>
    %496 = vector.extract_strided_slice %473 {offsets = [0, 34], sizes = [32, 512], strides = [1, 1]} : vector<32x546xf32> to vector<32x512xf32>
    %497 = vector.broadcast %24 : vector<1x512xf32> to vector<32x512xf32>
    %498 = arith.mulf %496, %497 : vector<32x512xf32>
    %499 = tpu.concatenate %476, %479, %482, %485, %486, %489, %492, %495, %498 in 0 : vector<32x512xf32>, vector<32x512xf32>, vector<32x512xf32>, vector<32x512xf32>, vector<32x512xf32>, vector<32x512xf32>, vector<32x512xf32>, vector<32x512xf32>, vector<32x512xf32> -> vector<288x512xf32>
    %500 = arith.truncf %499 : vector<288x512xf32> to vector<288x512xbf16>
    %cst_95 = arith.constant dense<0.000000e+00> : vector<8x512xf32>
    %501 = tpu.matmul %470, %500, %cst_95 {dimension_numbers = #tpu.dot_dimension_numbers<[1], [0], [0], [1], [0, 0, 1, 1], [], []>} : vector<8x288xbf16>, vector<288x512xbf16>, vector<8x512xf32> -> vector<8x512xf32>
    %502 = vector.broadcast %471 : vector<8x1xf32> to vector<8x512xf32>
    %503 = arith.addf %501, %502 : vector<8x512xf32>
    %cst_96 = arith.constant 0.000000e+00 : f32
    %504 = vector.broadcast %cst_96 : f32 to vector<8x512xf32>
    %505 = arith.maximumf %503, %504 : vector<8x512xf32>
    %c0_97 = arith.constant 0 : index
    %c0_98 = arith.constant 0 : index
    %506 = vector.load %arg24[%c0_97, %c0_98] : memref<8x72xbf16, #tpu.memory_space<vmem>>, vector<8x72xbf16>
    %c0_99 = arith.constant 0 : index
    %c0_100 = arith.constant 0 : index
    %507 = vector.load %arg25[%c0_99, %c0_100] : memref<8x1xf32, #tpu.memory_space<vmem>>, vector<8x1xf32>
    %cst_101 = arith.constant 0.000000e+00 : f32
    %508 = vector.broadcast %cst_101 : f32 to vector<8x17xf32>
    %509 = tpu.concatenate %508, %505, %508 in 1 : vector<8x17xf32>, vector<8x512xf32>, vector<8x17xf32> -> vector<8x546xf32>
    %510 = vector.extract_strided_slice %509 {offsets = [0, 0], sizes = [8, 512], strides = [1, 1]} : vector<8x546xf32> to vector<8x512xf32>
    %511 = vector.broadcast %21 : vector<1x512xf32> to vector<8x512xf32>
    %512 = arith.mulf %510, %511 : vector<8x512xf32>
    %513 = vector.extract_strided_slice %509 {offsets = [0, 1], sizes = [8, 512], strides = [1, 1]} : vector<8x546xf32> to vector<8x512xf32>
    %514 = vector.broadcast %8 : vector<1x512xf32> to vector<8x512xf32>
    %515 = arith.mulf %513, %514 : vector<8x512xf32>
    %516 = vector.extract_strided_slice %509 {offsets = [0, 2], sizes = [8, 512], strides = [1, 1]} : vector<8x546xf32> to vector<8x512xf32>
    %517 = vector.broadcast %22 : vector<1x512xf32> to vector<8x512xf32>
    %518 = arith.mulf %516, %517 : vector<8x512xf32>
    %519 = vector.extract_strided_slice %509 {offsets = [0, 16], sizes = [8, 512], strides = [1, 1]} : vector<8x546xf32> to vector<8x512xf32>
    %520 = vector.broadcast %16 : vector<1x512xf32> to vector<8x512xf32>
    %521 = arith.mulf %519, %520 : vector<8x512xf32>
    %522 = vector.extract_strided_slice %509 {offsets = [0, 17], sizes = [8, 512], strides = [1, 1]} : vector<8x546xf32> to vector<8x512xf32>
    %523 = vector.extract_strided_slice %509 {offsets = [0, 18], sizes = [8, 512], strides = [1, 1]} : vector<8x546xf32> to vector<8x512xf32>
    %524 = vector.broadcast %20 : vector<1x512xf32> to vector<8x512xf32>
    %525 = arith.mulf %523, %524 : vector<8x512xf32>
    %526 = vector.extract_strided_slice %509 {offsets = [0, 32], sizes = [8, 512], strides = [1, 1]} : vector<8x546xf32> to vector<8x512xf32>
    %527 = vector.broadcast %23 : vector<1x512xf32> to vector<8x512xf32>
    %528 = arith.mulf %526, %527 : vector<8x512xf32>
    %529 = vector.extract_strided_slice %509 {offsets = [0, 33], sizes = [8, 512], strides = [1, 1]} : vector<8x546xf32> to vector<8x512xf32>
    %530 = vector.broadcast %12 : vector<1x512xf32> to vector<8x512xf32>
    %531 = arith.mulf %529, %530 : vector<8x512xf32>
    %532 = vector.extract_strided_slice %509 {offsets = [0, 34], sizes = [8, 512], strides = [1, 1]} : vector<8x546xf32> to vector<8x512xf32>
    %533 = vector.broadcast %24 : vector<1x512xf32> to vector<8x512xf32>
    %534 = arith.mulf %532, %533 : vector<8x512xf32>
    %535 = tpu.concatenate %512, %515, %518, %521, %522, %525, %528, %531, %534 in 0 : vector<8x512xf32>, vector<8x512xf32>, vector<8x512xf32>, vector<8x512xf32>, vector<8x512xf32>, vector<8x512xf32>, vector<8x512xf32>, vector<8x512xf32>, vector<8x512xf32> -> vector<72x512xf32>
    %536 = arith.truncf %535 : vector<72x512xf32> to vector<72x512xbf16>
    %cst_102 = arith.constant dense<0.000000e+00> : vector<8x512xf32>
    %537 = tpu.matmul %506, %536, %cst_102 {dimension_numbers = #tpu.dot_dimension_numbers<[1], [0], [0], [1], [0, 0, 1, 1], [], []>} : vector<8x72xbf16>, vector<72x512xbf16>, vector<8x512xf32> -> vector<8x512xf32>
    %538 = vector.broadcast %507 : vector<8x1xf32> to vector<8x512xf32>
    %539 = arith.addf %537, %538 : vector<8x512xf32>
    %cst_103 = arith.constant 0.000000e+00 : f32
    %540 = vector.broadcast %cst_103 : f32 to vector<8x512xf32>
    %541 = arith.maximumf %539, %540 : vector<8x512xf32>
    %c0_104 = arith.constant 0 : index
    %c0_105 = arith.constant 0 : index
    %542 = vector.load %arg26[%c0_104, %c0_105] : memref<104x8xbf16, #tpu.memory_space<vmem>>, vector<104x8xbf16>
    %543 = arith.truncf %541 : vector<8x512xf32> to vector<8x512xbf16>
    %cst_106 = arith.constant dense<0.000000e+00> : vector<104x512xf32>
    %544 = tpu.matmul %542, %543, %cst_106 {dimension_numbers = #tpu.dot_dimension_numbers<[1], [0], [0], [1], [0, 0, 1, 1], [], []>} : vector<104x8xbf16>, vector<8x512xbf16>, vector<104x512xf32> -> vector<104x512xf32>
    %c0_107 = arith.constant 0 : index
    %c0_108 = arith.constant 0 : index
    %545 = vector.load %arg27[%c0_107, %c0_108] : memref<104x1xf32, #tpu.memory_space<vmem>>, vector<104x1xf32>
    %546 = vector.broadcast %545 : vector<104x1xf32> to vector<104x512xf32>
    %547 = arith.addf %544, %546 : vector<104x512xf32>
    %c0_109 = arith.constant 0 : index
    %c0_110 = arith.constant 0 : index
    %548 = vector.load %arg32[%c0_109, %c0_110] : memref<104x512xf32, #tpu.memory_space<vmem>>, vector<104x512xf32>
    tpu.vector_store %arg32[%c0_109, %c0_110], %547 {strides = array<i32>} : memref<104x512xf32, #tpu.memory_space<vmem>>, vector<104x512xf32>,
    return
  }
  func.func @transform_0(%arg0: i32) -> (i32, i32) {
    %c0_i32 = arith.constant 0 : i32
    %c0_i32_0 = arith.constant 0 : i32
    %c0_i32_1 = arith.constant 0 : i32
    return %c0_i32, %c0_i32_0 : i32, i32
  }
  func.func @transform_1(%arg0: i32) -> (i32, i32) {
    %c0_i32 = arith.constant 0 : i32
    %c0_i32_0 = arith.constant 0 : i32
    %c0_i32_1 = arith.constant 0 : i32
    return %c0_i32, %c0_i32_0 : i32, i32
  }
  func.func @transform_2(%arg0: i32) -> (i32, i32) {
    %c0_i32 = arith.constant 0 : i32
    %c0_i32_0 = arith.constant 0 : i32
    %c0_i32_1 = arith.constant 0 : i32
    return %c0_i32, %c0_i32_0 : i32, i32
  }
  func.func @transform_3(%arg0: i32) -> (i32, i32) {
    %c0_i32 = arith.constant 0 : i32
    %c0_i32_0 = arith.constant 0 : i32
    %c0_i32_1 = arith.constant 0 : i32
    return %c0_i32, %c0_i32_0 : i32, i32
  }
  func.func @transform_4(%arg0: i32) -> (i32, i32) {
    %c0_i32 = arith.constant 0 : i32
    %c0_i32_0 = arith.constant 0 : i32
    %c0_i32_1 = arith.constant 0 : i32
    return %c0_i32, %c0_i32_0 : i32, i32
  }
  func.func @transform_5(%arg0: i32) -> (i32, i32) {
    %c0_i32 = arith.constant 0 : i32
    %c0_i32_0 = arith.constant 0 : i32
    %c0_i32_1 = arith.constant 0 : i32
    return %c0_i32, %c0_i32_0 : i32, i32
  }
  func.func @transform_6(%arg0: i32) -> (i32, i32) {
    %c0_i32 = arith.constant 0 : i32
    %c0_i32_0 = arith.constant 0 : i32
    %c0_i32_1 = arith.constant 0 : i32
    return %c0_i32, %c0_i32_0 : i32, i32
  }
  func.func @transform_7(%arg0: i32) -> (i32, i32) {
    %c0_i32 = arith.constant 0 : i32
    %c0_i32_0 = arith.constant 0 : i32
    %c0_i32_1 = arith.constant 0 : i32
    return %c0_i32, %c0_i32_0 : i32, i32
  }
  func.func @transform_8(%arg0: i32) -> (i32, i32) {
    %c0_i32 = arith.constant 0 : i32
    %c0_i32_0 = arith.constant 0 : i32
    %c0_i32_1 = arith.constant 0 : i32
    return %c0_i32, %c0_i32_0 : i32, i32
  }
  func.func @transform_9(%arg0: i32) -> (i32, i32) {
    %c0_i32 = arith.constant 0 : i32
    %c0_i32_0 = arith.constant 0 : i32
    %c0_i32_1 = arith.constant 0 : i32
    return %c0_i32, %c0_i32_0 : i32, i32
  }
  func.func @transform_10(%arg0: i32) -> (i32, i32) {
    %c0_i32 = arith.constant 0 : i32
    %c0_i32_0 = arith.constant 0 : i32
    %c0_i32_1 = arith.constant 0 : i32
    return %c0_i32, %c0_i32_0 : i32, i32
  }
  func.func @transform_11(%arg0: i32) -> (i32, i32) {
    %c0_i32 = arith.constant 0 : i32
    %c0_i32_0 = arith.constant 0 : i32
    %c0_i32_1 = arith.constant 0 : i32
    return %c0_i32, %c0_i32_0 : i32, i32
  }
  func.func @transform_12(%arg0: i32) -> (i32, i32) {
    %c0_i32 = arith.constant 0 : i32
    %c0_i32_0 = arith.constant 0 : i32
    %c0_i32_1 = arith.constant 0 : i32
    return %c0_i32, %c0_i32_0 : i32, i32
  }
  func.func @transform_13(%arg0: i32) -> (i32, i32) {
    %c0_i32 = arith.constant 0 : i32
    %c0_i32_0 = arith.constant 0 : i32
    %c0_i32_1 = arith.constant 0 : i32
    return %c0_i32, %c0_i32_0 : i32, i32
  }
  func.func @transform_14(%arg0: i32) -> (i32, i32) {
    %c0_i32 = arith.constant 0 : i32
    %c0_i32_0 = arith.constant 0 : i32
    %c0_i32_1 = arith.constant 0 : i32
    return %c0_i32, %c0_i32_0 : i32, i32
  }
  func.func @transform_15(%arg0: i32) -> (i32, i32) {
    %c0_i32 = arith.constant 0 : i32
    %c0_i32_0 = arith.constant 0 : i32
    %c0_i32_1 = arith.constant 0 : i32
    return %c0_i32, %c0_i32_0 : i32, i32
  }
  func.func @transform_16(%arg0: i32) -> (i32, i32) {
    %c0_i32 = arith.constant 0 : i32
    %c0_i32_0 = arith.constant 0 : i32
    %c0_i32_1 = arith.constant 0 : i32
    return %c0_i32, %c0_i32_0 : i32, i32
  }
  func.func @transform_17(%arg0: i32) -> (i32, i32) {
    %c0_i32 = arith.constant 0 : i32
    %c0_i32_0 = arith.constant 0 : i32
    %c0_i32_1 = arith.constant 0 : i32
    return %c0_i32, %c0_i32_0 : i32, i32
  }
  func.func @transform_18(%arg0: i32) -> (i32, i32) {
    %c0_i32 = arith.constant 0 : i32
    %c0_i32_0 = arith.constant 0 : i32
    %c0_i32_1 = arith.constant 0 : i32
    return %c0_i32, %c0_i32_0 : i32, i32
  }
  func.func @transform_19(%arg0: i32) -> (i32, i32) {
    %c0_i32 = arith.constant 0 : i32
    %c0_i32_0 = arith.constant 0 : i32
    %c0_i32_1 = arith.constant 0 : i32
    return %c0_i32, %c0_i32_0 : i32, i32
  }
  func.func @transform_20(%arg0: i32) -> (i32, i32) {
    %c0_i32 = arith.constant 0 : i32
    %c0_i32_0 = arith.constant 0 : i32
    %c0_i32_1 = arith.constant 0 : i32
    return %c0_i32, %c0_i32_0 : i32, i32
  }
  func.func @transform_21(%arg0: i32) -> (i32, i32) {
    %c0_i32 = arith.constant 0 : i32
    %c0_i32_0 = arith.constant 0 : i32
    %c0_i32_1 = arith.constant 0 : i32
    return %c0_i32, %c0_i32_0 : i32, i32
  }
  func.func @transform_22(%arg0: i32) -> (i32, i32) {
    %c0_i32 = arith.constant 0 : i32
    %c0_i32_0 = arith.constant 0 : i32
    %c0_i32_1 = arith.constant 0 : i32
    return %c0_i32, %c0_i32_0 : i32, i32
  }
  func.func @transform_23(%arg0: i32) -> (i32, i32) {
    %c0_i32 = arith.constant 0 : i32
    %c0_i32_0 = arith.constant 0 : i32
    %c0_i32_1 = arith.constant 0 : i32
    return %c0_i32, %c0_i32_0 : i32, i32
  }
  func.func @transform_24(%arg0: i32) -> (i32, i32) {
    %c0_i32 = arith.constant 0 : i32
    %c0_i32_0 = arith.constant 0 : i32
    %c0_i32_1 = arith.constant 0 : i32
    return %c0_i32, %c0_i32_0 : i32, i32
  }
  func.func @transform_25(%arg0: i32) -> (i32, i32) {
    %c0_i32 = arith.constant 0 : i32
    %c0_i32_0 = arith.constant 0 : i32
    %c0_i32_1 = arith.constant 0 : i32
    return %c0_i32, %c0_i32_0 : i32, i32
  }
  func.func @transform_26(%arg0: i32) -> (i32, i32) {
    %c0_i32 = arith.constant 0 : i32
    %c0_i32_0 = arith.constant 0 : i32
    %c0_i32_1 = arith.constant 0 : i32
    return %c0_i32, %c0_i32_0 : i32, i32
  }
  func.func @transform_27(%arg0: i32) -> (i32, i32) {
    %c0_i32 = arith.constant 0 : i32
    %c0_i32_0 = arith.constant 0 : i32
    %c0_i32_1 = arith.constant 0 : i32
    return %c0_i32, %c0_i32_0 : i32, i32
  }
  func.func @transform_28(%arg0: i32) -> (i32, i32) {
    %c0_i32 = arith.constant 0 : i32
    %c0_i32_0 = arith.constant 0 : i32
    %c0_i32_1 = arith.constant 0 : i32
    return %c0_i32, %c0_i32_0 : i32, i32
  }
  func.func @transform_29(%arg0: i32) -> (i32, i32) {
    %c0_i32 = arith.constant 0 : i32
    %c0_i32_0 = arith.constant 0 : i32
    %c0_i32_1 = arith.constant 0 : i32
    return %c0_i32, %c0_i32_0 : i32, i32
  }
  func.func @transform_30(%arg0: i32) -> (i32, i32) {
    %c0_i32 = arith.constant 0 : i32
    %c0_i32_0 = arith.constant 0 : i32
    %c0_i32_1 = arith.constant 0 : i32
    return %c0_i32, %c0_i32_0 : i32, i32
  }
  func.func @transform_31(%arg0: i32) -> (i32, i32) {
    %c0_i32 = arith.constant 0 : i32
    %c0_i32_0 = arith.constant 0 : i32
    %c0_i32_1 = arith.constant 0 : i32
    return %c0_i32, %c0_i32_0 : i32, i32
  }
}

</mosaic_0001>

<llo_original>
// kernel: food_segmentation_forward.1
$region0: #{food_segmentation_forward.1}
  #allocation0 [shape = 'u32[]', space=smem, size = 0x4, offset = 0x4, fixed_abs, tag = 'smem constant byte address 0x4 - core index']
  #allocation1 [shape = 'u32[72,128]{1,0:T(1,128)}', space=vmem, size = 0x9000, scoped, tag = 'internal scratch']
  %s0 = inlined_call_operand.smem [shape: u32[32], index: -1, kind: input, shape index: {}]
  %s1 = sld [smem:[%s0]]
  %s2 = scalar_lea.smem %s0, 1
  %s3 = sld [smem:[%s2]]
  %s4 = scalar_lea.smem %s0, 2
  %s5 = sld [smem:[%s4]]
  %s6 = scalar_lea.smem %s0, 3
  %s7 = sld [smem:[%s6]]
  %s8 = scalar_lea.smem %s0, 4
  %s9 = sld [smem:[%s8]]
  %s10 = scalar_lea.smem %s0, 5
  %s11 = sld [smem:[%s10]]
  %s12 = scalar_lea.smem %s0, 6
  %s13 = sld [smem:[%s12]]
  %s14 = scalar_lea.smem %s0, 7
  %s15 = sld [smem:[%s14]]
  %s16 = scalar_lea.smem %s0, 8
  %s17 = sld [smem:[%s16]]
  %s18 = scalar_lea.smem %s0, 9
  %s19 = sld [smem:[%s18]]
  %s20 = scalar_lea.smem %s0, 10
  %s21 = sld [smem:[%s20]]
  %s22 = scalar_lea.smem %s0, 11
  %s23 = sld [smem:[%s22]]
  %s24 = scalar_lea.smem %s0, 12
  %s25 = sld [smem:[%s24]]
  %s26 = scalar_lea.smem %s0, 13
  %s27 = sld [smem:[%s26]]
  %s28 = scalar_lea.smem %s0, 14
  %s29 = sld [smem:[%s28]]
  %s30 = scalar_lea.smem %s0, 15
  %s31 = sld [smem:[%s30]]
  %s32 = scalar_lea.smem %s0, 16
  %s33 = sld [smem:[%s32]]
  %s34 = scalar_lea.smem %s0, 17
  %s35 = sld [smem:[%s34]]
  %s36 = scalar_lea.smem %s0, 18
  %s37 = sld [smem:[%s36]]
  %s38 = scalar_lea.smem %s0, 19
  %s39 = sld [smem:[%s38]]
  %s40 = scalar_lea.smem %s0, 20
  %s41 = sld [smem:[%s40]]
  %s42 = scalar_lea.smem %s0, 21
  %s43 = sld [smem:[%s42]]
  %s44 = scalar_lea.smem %s0, 22
  %s45 = sld [smem:[%s44]]
  %s46 = scalar_lea.smem %s0, 23
  %s47 = sld [smem:[%s46]]
  %s48 = scalar_lea.smem %s0, 24
  %s49 = sld [smem:[%s48]]
  %s50 = scalar_lea.smem %s0, 25
  %s51 = sld [smem:[%s50]]
  %s52 = scalar_lea.smem %s0, 26
  %s53 = sld [smem:[%s52]]
  %s54 = scalar_lea.smem %s0, 27
  %s55 = sld [smem:[%s54]]
  %s56 = scalar_lea.smem %s0, 28
  %s57 = sld [smem:[%s56]]
  %s58 = scalar_lea.smem %s0, 29
  %s59 = sld [smem:[%s58]]
  %s60 = scalar_lea.smem %s0, 30
  %s61 = sld [smem:[%s60]]
  %s62 = scalar_lea.smem %s0, 31
  %s63 = sld [smem:[%s62]]
  %s64 = sld [smem:[#allocation0]]
  $region138: #{food_segmentation_forward.1} parent=0
    _
  %s66 = ssub.s32 1, %s64
  %s67 = scalar_select 0, %s66, %s64
  $region1: #{food_segmentation_forward.1} parent=0
    #allocation2 [shape = 'u8[131072]{0}', space=vmem, size = 0x20000, scoped, tag = 'input window, operand 29, single buffered']
    #allocation3 [shape = 's32[1]{0}', space=sflag, size = 0x4, scoped, tag = 'scoped memory for food_segmentation_forward.1']
    %68 = vsyncpa [#allocation3], 0
    // Predicated region
    $region2: #{food_segmentation_forward.1} parent=1 // pred_check
      _
    $region3: #{food_segmentation_forward.1} parent=1 // pred_check_branch
      %70 = sbr.rel (0) target = $region5
    $region4: #{food_segmentation_forward.1} parent=1 // pred_region
      _
    $region5: #{food_segmentation_forward.1} parent=1 // pred_fallthru
      _
    // Predicated region
    $region6: #{food_segmentation_forward.1} parent=1 // pred_check
      _
    $region7: #{food_segmentation_forward.1} parent=1 // pred_check_branch
      %72 = sbr.rel (0) target = $region9
    $region8: #{food_segmentation_forward.1} parent=1 // pred_region
      _
    $region9: #{food_segmentation_forward.1} parent=1 // pred_fallthru
      _
    // Predicated region
    $region10: #{food_segmentation_forward.1} parent=1 // pred_check
      _
    $region11: #{food_segmentation_forward.1} parent=1 // pred_check_branch
      %74 = sbr.rel (0) target = $region13
    $region12: #{food_segmentation_forward.1} parent=1 // pred_region
      _
    $region13: #{food_segmentation_forward.1} parent=1 // pred_fallthru
      _
    // Predicated region
    $region14: #{food_segmentation_forward.1} parent=1 // pred_check
      _
    $region15: #{food_segmentation_forward.1} parent=1 // pred_check_branch
      %76 = sbr.rel (0) target = $region17
    $region16: #{food_segmentation_forward.1} parent=1 // pred_region
      _
    $region17: #{food_segmentation_forward.1} parent=1 // pred_fallthru
      _
    // Predicated region
    $region18: #{food_segmentation_forward.1} parent=1 // pred_check
      _
    $region19: #{food_segmentation_forward.1} parent=1 // pred_check_branch
      %78 = sbr.rel (0) target = $region21
    $region20: #{food_segmentation_forward.1} parent=1 // pred_region
      _
    $region21: #{food_segmentation_forward.1} parent=1 // pred_fallthru
      _
    // Predicated region
    $region22: #{food_segmentation_forward.1} parent=1 // pred_check
      _
    $region23: #{food_segmentation_forward.1} parent=1 // pred_check_branch
      %80 = sbr.rel (0) target = $region25
    $region24: #{food_segmentation_forward.1} parent=1 // pred_region
      _
    $region25: #{food_segmentation_forward.1} parent=1 // pred_fallthru
      _
    // Predicated region
    $region26: #{food_segmentation_forward.1} parent=1 // pred_check
      _
    $region27: #{food_segmentation_forward.1} parent=1 // pred_check_branch
      %82 = sbr.rel (0) target = $region29
    $region28: #{food_segmentation_forward.1} parent=1 // pred_region
      _
    $region29: #{food_segmentation_forward.1} parent=1 // pred_fallthru
      _
    // Predicated region
    $region30: #{food_segmentation_forward.1} parent=1 // pred_check
      _
    $region31: #{food_segmentation_forward.1} parent=1 // pred_check_branch
      %84 = sbr.rel (0) target = $region33
    $region32: #{food_segmentation_forward.1} parent=1 // pred_region
      _
    $region33: #{food_segmentation_forward.1} parent=1 // pred_fallthru
      _
    // Predicated region
    $region34: #{food_segmentation_forward.1} parent=1 // pred_check
      _
    $region35: #{food_segmentation_forward.1} parent=1 // pred_check_branch
      %86 = sbr.rel (0) target = $region37
    $region36: #{food_segmentation_forward.1} parent=1 // pred_region
      _
    $region37: #{food_segmentation_forward.1} parent=1 // pred_fallthru
      _
    // Predicated region
    $region38: #{food_segmentation_forward.1} parent=1 // pred_check
      _
    $region39: #{food_segmentation_forward.1} parent=1 // pred_check_branch
      %88 = sbr.rel (0) target = $region41
    $region40: #{food_segmentation_forward.1} parent=1 // pred_region
      _
    $region41: #{food_segmentation_forward.1} parent=1 // pred_fallthru
      _
    // Predicated region
    $region42: #{food_segmentation_forward.1} parent=1 // pred_check
      _
    $region43: #{food_segmentation_forward.1} parent=1 // pred_check_branch
      %90 = sbr.rel (0) target = $region45
    $region44: #{food_segmentation_forward.1} parent=1 // pred_region
      _
    $region45: #{food_segmentation_forward.1} parent=1 // pred_fallthru
      _
    // Predicated region
    $region46: #{food_segmentation_forward.1} parent=1 // pred_check
      _
    $region47: #{food_segmentation_forward.1} parent=1 // pred_check_branch
      %92 = sbr.rel (0) target = $region49
    $region48: #{food_segmentation_forward.1} parent=1 // pred_region
      _
    $region49: #{food_segmentation_forward.1} parent=1 // pred_fallthru
      _
    // Predicated region
    $region50: #{food_segmentation_forward.1} parent=1 // pred_check
      _
    $region51: #{food_segmentation_forward.1} parent=1 // pred_check_branch
      %94 = sbr.rel (0) target = $region53
    $region52: #{food_segmentation_forward.1} parent=1 // pred_region
      _
    $region53: #{food_segmentation_forward.1} parent=1 // pred_fallthru
      _
    // Predicated region
    $region54: #{food_segmentation_forward.1} parent=1 // pred_check
      _
    $region55: #{food_segmentation_forward.1} parent=1 // pred_check_branch
      %96 = sbr.rel (0) target = $region57
    $region56: #{food_segmentation_forward.1} parent=1 // pred_region
      _
    $region57: #{food_segmentation_forward.1} parent=1 // pred_fallthru
      _
    // Predicated region
    $region58: #{food_segmentation_forward.1} parent=1 // pred_check
      _
    $region59: #{food_segmentation_forward.1} parent=1 // pred_check_branch
      %98 = sbr.rel (0) target = $region61
    $region60: #{food_segmentation_forward.1} parent=1 // pred_region
      _
    $region61: #{food_segmentation_forward.1} parent=1 // pred_fallthru
      _
    // Predicated region
    $region62: #{food_segmentation_forward.1} parent=1 // pred_check
      _
    $region63: #{food_segmentation_forward.1} parent=1 // pred_check_branch
      %100 = sbr.rel (0) target = $region65
    $region64: #{food_segmentation_forward.1} parent=1 // pred_region
      _
    $region65: #{food_segmentation_forward.1} parent=1 // pred_fallthru
      _
    // Predicated region
    $region66: #{food_segmentation_forward.1} parent=1 // pred_check
      _
    $region67: #{food_segmentation_forward.1} parent=1 // pred_check_branch
      %102 = sbr.rel (0) target = $region69
    $region68: #{food_segmentation_forward.1} parent=1 // pred_region
      _
    $region69: #{food_segmentation_forward.1} parent=1 // pred_fallthru
      _
    // Predicated region
    $region70: #{food_segmentation_forward.1} parent=1 // pred_check
      _
    $region71: #{food_segmentation_forward.1} parent=1 // pred_check_branch
      %104 = sbr.rel (0) target = $region73
    $region72: #{food_segmentation_forward.1} parent=1 // pred_region
      _
    $region73: #{food_segmentation_forward.1} parent=1 // pred_fallthru
      _
    // Predicated region
    $region74: #{food_segmentation_forward.1} parent=1 // pred_check
      _
    $region75: #{food_segmentation_forward.1} parent=1 // pred_check_branch
      %106 = sbr.rel (0) target = $region77
    $region76: #{food_segmentation_forward.1} parent=1 // pred_region
      _
    $region77: #{food_segmentation_forward.1} parent=1 // pred_fallthru
      _
    // Predicated region
    $region78: #{food_segmentation_forward.1} parent=1 // pred_check
      _
    $region79: #{food_segmentation_forward.1} parent=1 // pred_check_branch
      %108 = sbr.rel (0) target = $region81
    $region80: #{food_segmentation_forward.1} parent=1 // pred_region
      _
    $region81: #{food_segmentation_forward.1} parent=1 // pred_fallthru
      _
    // Predicated region
    $region82: #{food_segmentation_forward.1} parent=1 // pred_check
      _
    $region83: #{food_segmentation_forward.1} parent=1 // pred_check_branch
      %110 = sbr.rel (0) target = $region85
    $region84: #{food_segmentation_forward.1} parent=1 // pred_region
      _
    $region85: #{food_segmentation_forward.1} parent=1 // pred_fallthru
      _
    // Predicated region
    $region86: #{food_segmentation_forward.1} parent=1 // pred_check
      _
    $region87: #{food_segmentation_forward.1} parent=1 // pred_check_branch
      %112 = sbr.rel (0) target = $region89
    $region88: #{food_segmentation_forward.1} parent=1 // pred_region
      _
    $region89: #{food_segmentation_forward.1} parent=1 // pred_fallthru
      _
    // Predicated region
    $region90: #{food_segmentation_forward.1} parent=1 // pred_check
      _
    $region91: #{food_segmentation_forward.1} parent=1 // pred_check_branch
      %114 = sbr.rel (0) target = $region93
    $region92: #{food_segmentation_forward.1} parent=1 // pred_region
      _
    $region93: #{food_segmentation_forward.1} parent=1 // pred_fallthru
      _
    // Predicated region
    $region94: #{food_segmentation_forward.1} parent=1 // pred_check
      _
    $region95: #{food_segmentation_forward.1} parent=1 // pred_check_branch
      %116 = sbr.rel (0) target = $region97
    $region96: #{food_segmentation_forward.1} parent=1 // pred_region
      _
    $region97: #{food_segmentation_forward.1} parent=1 // pred_fallthru
      _
    // Predicated region
    $region98: #{food_segmentation_forward.1} parent=1 // pred_check
      _
    $region99: #{food_segmentation_forward.1} parent=1 // pred_check_branch
      %118 = sbr.rel (0) target = $region101
    $region100: #{food_segmentation_forward.1} parent=1 // pred_region
      _
    $region101: #{food_segmentation_forward.1} parent=1 // pred_fallthru
      _
    // Predicated region
    $region102: #{food_segmentation_forward.1} parent=1 // pred_check
      _
    $region103: #{food_segmentation_forward.1} parent=1 // pred_check_branch
      %120 = sbr.rel (0) target = $region105
    $region104: #{food_segmentation_forward.1} parent=1 // pred_region
      _
    $region105: #{food_segmentation_forward.1} parent=1 // pred_fallthru
      _
    // Predicated region
    $region106: #{food_segmentation_forward.1} parent=1 // pred_check
      _
    $region107: #{food_segmentation_forward.1} parent=1 // pred_check_branch
      %122 = sbr.rel (0) target = $region109
    $region108: #{food_segmentation_forward.1} parent=1 // pred_region
      _
    $region109: #{food_segmentation_forward.1} parent=1 // pred_fallthru
      _
    // Predicated region
    $region110: #{food_segmentation_forward.1} parent=1 // pred_check
      _
    $region111: #{food_segmentation_forward.1} parent=1 // pred_check_branch
      %124 = sbr.rel (0) target = $region113
    $region112: #{food_segmentation_forward.1} parent=1 // pred_region
      _
    $region113: #{food_segmentation_forward.1} parent=1 // pred_fallthru
      _
    // Predicated region
    $region114: #{food_segmentation_forward.1} parent=1 // pred_check
      _
    $region115: #{food_segmentation_forward.1} parent=1 // pred_check_branch
      %126 = sbr.rel (0) target = $region117
    $region116: #{food_segmentation_forward.1} parent=1 // pred_region
      _
    $region117: #{food_segmentation_forward.1} parent=1 // pred_fallthru
      _
    // Predicated region
    $region118: #{food_segmentation_forward.1} parent=1 // pred_check
      _
    $region119: #{food_segmentation_forward.1} parent=1 // pred_check_branch
      %128 = sbr.rel (0) target = $region121
    $region120: #{food_segmentation_forward.1} parent=1 // pred_region
      %130 = vsyncadd [#allocation3], 0
      %s131 = sshll.u32 %s59, 4
      %s132 = int_to_ptr.hbm [resolvable:$true] %s131
      %s133 = sshll.u32 [#allocation2], 4
      %s134 = int_to_ptr.vmem [resolvable:$true] %s133
      %139 = dma.hbm_to_vmem [thread:$0]  %s132, 4096, %s134, [#allocation3], 256, 256, 16
    $region121: #{food_segmentation_forward.1} parent=1 // pred_fallthru
      _
    // Predicated region
    $region122: #{food_segmentation_forward.1} parent=1 // pred_check
      _
    $region123: #{food_segmentation_forward.1} parent=1 // pred_check_branch
      %141 = sbr.rel (0) target = $region125
    $region124: #{food_segmentation_forward.1} parent=1 // pred_region
      _
    $region125: #{food_segmentation_forward.1} parent=1 // pred_fallthru
      _
    // Predicated region
    $region126: #{food_segmentation_forward.1} parent=1 // pred_check
      _
    $region127: #{food_segmentation_forward.1} parent=1 // pred_check_branch
      %143 = sbr.rel (0) target = $region129
    $region128: #{food_segmentation_forward.1} parent=1 // pred_region
      %145 = dma.done [#allocation3], 4096
    $region129: #{food_segmentation_forward.1} parent=1 // pred_fallthru
      _
    %v147 = vlaneseq
    %v148 = vand.u32 %v147, 127
    %v149 = vadd.s32 %v148, 128
    %v150 = vadd.s32 %v148, 256
    %v151 = vadd.s32 %v148, 384
    %v152 = vand.u32 %v148, 255
    %v153 = vand.u32 %v149, 255
    %v154 = vand.u32 %v150, 255
    %v155 = vand.u32 %v151, 255
    %v156 = vand.u32 %v148, 15
    %v157 = vand.u32 %v149, 15
    %v158 = vand.u32 %v150, 15
    %v159 = vand.u32 %v151, 15
    %vm160 = vcmp.ge.s32.totalorder %v152, 16
    %vm161 = vcmp.ge.s32.totalorder %v153, 16
    %vm162 = vcmp.ge.s32.totalorder %v154, 16
    %vm163 = vcmp.ge.s32.totalorder %v155, 16
    %v164 = vsel %vm160, 1, 0
    %v165 = vsel %vm161, 1, 0
    %v166 = vsel %vm162, 1, 0
    %v167 = vsel %vm163, 1, 0
    %v168 = vcvt.s32.f32 %v164
    %v169 = vcvt.s32.f32 %v165
    %v170 = vcvt.s32.f32 %v166
    %v171 = vcvt.s32.f32 %v167
    %vm172 = vcmp.lt.s32.totalorder %v152, 240
    %vm173 = vcmp.lt.s32.totalorder %v153, 240
    %vm174 = vcmp.lt.s32.totalorder %v154, 240
    %vm175 = vcmp.lt.s32.totalorder %v155, 240
    %v176 = vsel %vm172, 1, 0
    %v177 = vsel %vm173, 1, 0
    %v178 = vsel %vm174, 1, 0
    %v179 = vsel %vm175, 1, 0
    %v180 = vcvt.s32.f32 %v176
    %v181 = vcvt.s32.f32 %v177
    %v182 = vcvt.s32.f32 %v178
    %v183 = vcvt.s32.f32 %v179
    %vm184 = vcmp.ge.s32.totalorder %v156, 1
    %vm185 = vcmp.ge.s32.totalorder %v157, 1
    %vm186 = vcmp.ge.s32.totalorder %v158, 1
    %vm187 = vcmp.ge.s32.totalorder %v159, 1
    %v188 = vsel %vm184, 1, 0
    %v189 = vsel %vm185, 1, 0
    %v190 = vsel %vm186, 1, 0
    %v191 = vsel %vm187, 1, 0
    %v192 = vcvt.s32.f32 %v188
    %v193 = vcvt.s32.f32 %v189
    %v194 = vcvt.s32.f32 %v190
    %v195 = vcvt.s32.f32 %v191
    %vm196 = vcmp.le.s32.totalorder %v156, 14
    %vm197 = vcmp.le.s32.totalorder %v157, 14
    %vm198 = vcmp.le.s32.totalorder %v158, 14
    %vm199 = vcmp.le.s32.totalorder %v159, 14
    %v200 = vsel %vm196, 1, 0
    %v201 = vsel %vm197, 1, 0
    %v202 = vsel %vm198, 1, 0
    %v203 = vsel %vm199, 1, 0
    %v204 = vcvt.s32.f32 %v200
    %v205 = vcvt.s32.f32 %v201
    %v206 = vcvt.s32.f32 %v202
    %v207 = vcvt.s32.f32 %v203
    %v208 = vmul.f32 %v168, %v192
    %v209 = vmul.f32 %v169, %v193
    %v210 = vmul.f32 %v170, %v194
    %v211 = vmul.f32 %v171, %v195
    %v212 = vmul.f32 %v168, %v204
    %v213 = vmul.f32 %v169, %v205
    %v214 = vmul.f32 %v170, %v206
    %v215 = vmul.f32 %v171, %v207
    %v216 = vmul.f32 %v180, %v192
    %v217 = vmul.f32 %v181, %v193
    %v218 = vmul.f32 %v182, %v194
    %v219 = vmul.f32 %v183, %v195
    %v220 = vmul.f32 %v180, %v204
    %v221 = vmul.f32 %v181, %v205
    %v222 = vmul.f32 %v182, %v206
    %v223 = vmul.f32 %v183, %v207
    %v224 = vand.u32 %v148, 63
    %v225 = vand.u32 %v148, 7
    %vm226 = vcmp.ge.s32.totalorder %v224, 8
    %v227 = vsel %vm226, 1, 0
    %v228 = vcvt.s32.f32 %v227
    %vm229 = vcmp.lt.s32.totalorder %v224, 56
    %v230 = vsel %vm229, 1, 0
    %v231 = vcvt.s32.f32 %v230
    %vm232 = vcmp.ge.s32.totalorder %v225, 1
    %v233 = vsel %vm232, 1, 0
    %v234 = vcvt.s32.f32 %v233
    %vm235 = vcmp.le.s32.totalorder %v225, 6
    %v236 = vsel %vm235, 1, 0
    %v237 = vcvt.s32.f32 %v236
    %v238 = vmul.f32 %v228, %v234
    %v239 = vmul.f32 %v228, %v237
    %v240 = vmul.f32 %v231, %v234
    %v241 = vmul.f32 %v231, %v237
    %v242 = vand.u32 %v148, 3
    %vm243 = vcmp.ge.s32.totalorder %v156, 4
    %v244 = vsel %vm243, 1, 0
    %v245 = vcvt.s32.f32 %v244
    %vm246 = vcmp.lt.s32.totalorder %v156, 12
    %v247 = vsel %vm246, 1, 0
    %v248 = vcvt.s32.f32 %v247
    %vm249 = vcmp.ge.s32.totalorder %v242, 1
    %v250 = vsel %vm249, 1, 0
    %v251 = vcvt.s32.f32 %v250
    %vm252 = vcmp.le.s32.totalorder %v242, 2
    %v253 = vsel %vm252, 1, 0
    %v254 = vcvt.s32.f32 %v253
    %v255 = vmul.f32 %v245, %v251
    %v256 = vmul.f32 %v245, %v254
    %v257 = vmul.f32 %v248, %v251
    %v258 = vmul.f32 %v248, %v254
    %v259 = vld [vmem:[%s1] sm:$0x77]
    %v260 = vld [vmem:[%s1 + $0x8] sm:$0x77]
    %v261 = vld [vmem:[%s3] sm:$0xf]
    %v262 = vld [vmem:[%s5] sm:$0xff]
    %265 = vst [vmem:[#allocation1] ss:$2 sm:$0xff] %v259
    %s266 = scalar_lea.vmem [#allocation1], 16
    %267 = vst [vmem:[%s266] ss:$2 sm:$0xff] %v260
    %v268 = vld.sshfl [vmem:[#allocation1] sm:$0xff pattern:$0x75316420]
    %v269 = vld.sshfl [vmem:[#allocation1 + $0x8] sm:$0xff pattern:$0x75316420]
    %v270 = vld.sshfl [vmem:[#allocation1 + $0x10] sm:$0xff pattern:$0x75316420]
    %v271 = vld.sshfl [vmem:[#allocation1 + $0x18] sm:$0xff pattern:$0x75316420]
    %272 = vrot.lane.b32.xlu0 %v268, 17
    %v273 = vpop.permute.xlu0 %272
    %274 = vrot.lane.b32.xlu0 %v269, 17
    %v275 = vpop.permute.xlu0 %274
    %276 = vrot.lane.b32.xlu0 %v270, 17
    %v277 = vpop.permute.xlu0 %276
    %278 = vrot.lane.b32.xlu0 %v271, 17
    %v279 = vpop.permute.xlu0 %278
    %vm280 = vcmask 138240
    %v281 = vsel %vm280, %v273, %v275
    %v282 = vsel %vm280, %v275, %v277
    %v283 = vsel %vm280, %v277, %v279
    %v289 = vsel %vm280, 0.0, %v273
    %v290 = vsel %vm280, %v279, 0.0
    %v291 = vmul.f32 %v289, %v208
    %v292 = vmul.f32 %v281, %v209
    %v293 = vmul.f32 %v282, %v210
    %v294 = vmul.f32 %v283, %v211
    %299 = vrot.lane.b32.xlu0 %v168, 1
    %v300 = vpop.permute.xlu0 %299
    %301 = vrot.lane.b32.xlu0 %v169, 1
    %v302 = vpop.permute.xlu0 %301
    %303 = vrot.lane.b32.xlu0 %v170, 1
    %v304 = vpop.permute.xlu0 %303
    %305 = vrot.lane.b32.xlu0 %v171, 1
    %v306 = vpop.permute.xlu0 %305
    %vm307 = vcmask 7168
    %v308 = vsel %vm307, %v300, %v302
    %v309 = vsel %vm307, %v302, %v304
    %v310 = vsel %vm307, %v304, %v306
    %v316 = vmul.f32 %v289, %v300
    %v317 = vmul.f32 %v281, %v308
    %v318 = vmul.f32 %v282, %v309
    %v319 = vmul.f32 %v283, %v310
    %v320 = vmul.f32 %v290, %v306
    %325 = vrot.lane.b32.xlu0 %v212, 2
    %v326 = vpop.permute.xlu0 %325
    %327 = vrot.lane.b32.xlu0 %v213, 2
    %v328 = vpop.permute.xlu0 %327
    %329 = vrot.lane.b32.xlu0 %v214, 2
    %v330 = vpop.permute.xlu0 %329
    %331 = vrot.lane.b32.xlu0 %v215, 2
    %v332 = vpop.permute.xlu0 %331
    %vm333 = vcmask 15360
    %v334 = vsel %vm333, %v326, %v328
    %v335 = vsel %vm333, %v328, %v330
    %v336 = vsel %vm333, %v330, %v332
    %v342 = vmul.f32 %v289, %v326
    %v343 = vmul.f32 %v281, %v334
    %v344 = vmul.f32 %v282, %v335
    %v345 = vmul.f32 %v283, %v336
    %v346 = vmul.f32 %v290, %v332
    %351 = vrot.lane.b32.xlu0 %v192, 16
    %v352 = vpop.permute.xlu0 %351
    %353 = vrot.lane.b32.xlu0 %v193, 16
    %v354 = vpop.permute.xlu0 %353
    %355 = vrot.lane.b32.xlu0 %v194, 16
    %v356 = vpop.permute.xlu0 %355
    %357 = vrot.lane.b32.xlu0 %v195, 16
    %v358 = vpop.permute.xlu0 %357
    %vm359 = vcmask 130048
    %v360 = vsel %vm359, %v352, %v354
    %v361 = vsel %vm359, %v354, %v356
    %v362 = vsel %vm359, %v356, %v358
    %v368 = vmul.f32 %v289, %v352
    %v369 = vmul.f32 %v281, %v360
    %v370 = vmul.f32 %v282, %v361
    %v371 = vmul.f32 %v283, %v362
    %v372 = vmul.f32 %v290, %v358
    %377 = vrot.lane.b32.xlu0 %v204, 18
    %v378 = vpop.permute.xlu0 %377
    %379 = vrot.lane.b32.xlu0 %v205, 18
    %v380 = vpop.permute.xlu0 %379
    %381 = vrot.lane.b32.xlu0 %v206, 18
    %v382 = vpop.permute.xlu0 %381
    %383 = vrot.lane.b32.xlu0 %v207, 18
    %v384 = vpop.permute.xlu0 %383
    %vm385 = vcmask 146432
    %v386 = vsel %vm385, %v378, %v380
    %v387 = vsel %vm385, %v380, %v382
    %v388 = vsel %vm385, %v382, %v384
    %v394 = vmul.f32 %v289, %v378
    %v395 = vmul.f32 %v281, %v386
    %v396 = vmul.f32 %v282, %v387
    %v397 = vmul.f32 %v283, %v388
    %v398 = vmul.f32 %v290, %v384
    %403 = vrot.lane.b32.xlu0 %v216, 32
    %v404 = vpop.permute.xlu0 %403
    %405 = vrot.lane.b32.xlu0 %v217, 32
    %v406 = vpop.permute.xlu0 %405
    %407 = vrot.lane.b32.xlu0 %v218, 32
    %v408 = vpop.permute.xlu0 %407
    %409 = vrot.lane.b32.xlu0 %v219, 32
    %v410 = vpop.permute.xlu0 %409
    %vm411 = vcmask 261120
    %v412 = vsel %vm411, %v404, %v406
    %v413 = vsel %vm411, %v406, %v408
    %v414 = vsel %vm411, %v408, %v410
    %v420 = vmul.f32 %v289, %v404
    %v421 = vmul.f32 %v281, %v412
    %v422 = vmul.f32 %v282, %v413
    %v423 = vmul.f32 %v283, %v414
    %v424 = vmul.f32 %v290, %v410
    %429 = vrot.lane.b32.xlu0 %v180, 33
    %v430 = vpop.permute.xlu0 %429
    %431 = vrot.lane.b32.xlu0 %v181, 33
    %v432 = vpop.permute.xlu0 %431
    %433 = vrot.lane.b32.xlu0 %v182, 33
    %v434 = vpop.permute.xlu0 %433
    %435 = vrot.lane.b32.xlu0 %v183, 33
    %v436 = vpop.permute.xlu0 %435
    %vm437 = vcmask 269312
    %v438 = vsel %vm437, %v430, %v432
    %v439 = vsel %vm437, %v432, %v434
    %v440 = vsel %vm437, %v434, %v436
    %v446 = vmul.f32 %v289, %v430
    %v447 = vmul.f32 %v281, %v438
    %v448 = vmul.f32 %v282, %v439
    %v449 = vmul.f32 %v283, %v440
    %v450 = vmul.f32 %v290, %v436
    %455 = vrot.lane.b32.xlu0 %v220, 34
    %v456 = vpop.permute.xlu0 %455
    %457 = vrot.lane.b32.xlu0 %v221, 34
    %v458 = vpop.permute.xlu0 %457
    %459 = vrot.lane.b32.xlu0 %v222, 34
    %v460 = vpop.permute.xlu0 %459
    %461 = vrot.lane.b32.xlu0 %v223, 34
    %v462 = vpop.permute.xlu0 %461
    %vm463 = vcmask 277504
    %v464 = vsel %vm463, %v456, %v458
    %v465 = vsel %vm463, %v458, %v460
    %v466 = vsel %vm463, %v460, %v462
    %v472 = vmul.f32 %v289, %v456
    %v473 = vmul.f32 %v281, %v464
    %v474 = vmul.f32 %v282, %v465
    %v475 = vmul.f32 %v283, %v466
    %v476 = vmul.f32 %v290, %v462
    %v482 = vrot.slane %v316, 5
    %v483 = vrot.slane %v317, 5
    %v484 = vrot.slane %v318, 5
    %v485 = vrot.slane %v319, 5
    %v486 = vrot.slane %v320, 5
    %487 = vrot.lane.b32.xlu0 %v482, 127
    %v488 = vpop.permute.xlu0 %487
    %489 = vrot.lane.b32.xlu0 %v483, 127
    %v490 = vpop.permute.xlu0 %489
    %491 = vrot.lane.b32.xlu0 %v484, 127
    %v492 = vpop.permute.xlu0 %491
    %493 = vrot.lane.b32.xlu0 %v485, 127
    %v494 = vpop.permute.xlu0 %493
    %495 = vrot.lane.b32.xlu0 %v486, 127
    %v496 = vpop.permute.xlu0 %495
    %vm497 = vcmask 1039360
    %v498 = vsel %vm497, %v488, %v490
    %v499 = vsel %vm497, %v490, %v492
    %v500 = vsel %vm497, %v492, %v494
    %v501 = vsel %vm497, %v494, %v496
    %v511 = vrot.slane %v342, 2
    %v512 = vrot.slane %v343, 2
    %v513 = vrot.slane %v344, 2
    %v514 = vrot.slane %v345, 2
    %v515 = vrot.slane %v346, 2
    %516 = vrot.lane.b32.xlu0 %v511, 126
    %v517 = vpop.permute.xlu0 %516
    %518 = vrot.lane.b32.xlu0 %v512, 126
    %v519 = vpop.permute.xlu0 %518
    %520 = vrot.lane.b32.xlu0 %v513, 126
    %v521 = vpop.permute.xlu0 %520
    %522 = vrot.lane.b32.xlu0 %v514, 126
    %v523 = vpop.permute.xlu0 %522
    %524 = vrot.lane.b32.xlu0 %v515, 126
    %v525 = vpop.permute.xlu0 %524
    %vm526 = vcmask 1031168
    %v527 = vsel %vm526, %v517, %v519
    %v528 = vsel %vm526, %v519, %v521
    %v529 = vsel %vm526, %v521, %v523
    %v530 = vsel %vm526, %v523, %v525
    %v540 = vrot.slane %v368, 7
    %v541 = vrot.slane %v369, 7
    %v542 = vrot.slane %v370, 7
    %v543 = vrot.slane %v371, 7
    %v544 = vrot.slane %v372, 7
    %545 = vrot.lane.b32.xlu0 %v540, 112
    %v546 = vpop.permute.xlu0 %545
    %547 = vrot.lane.b32.xlu0 %v541, 112
    %v548 = vpop.permute.xlu0 %547
    %549 = vrot.lane.b32.xlu0 %v542, 112
    %v550 = vpop.permute.xlu0 %549
    %551 = vrot.lane.b32.xlu0 %v543, 112
    %v552 = vpop.permute.xlu0 %551
    %553 = vrot.lane.b32.xlu0 %v544, 112
    %v554 = vpop.permute.xlu0 %553
    %vm555 = vcmask 916480
    %v556 = vsel %vm555, %v546, %v548
    %v557 = vsel %vm555, %v548, %v550
    %v558 = vsel %vm555, %v550, %v552
    %v559 = vsel %vm555, %v552, %v554
    %v566 = vrot.slane %v289, 4
    %v567 = vrot.slane %v281, 4
    %v568 = vrot.slane %v282, 4
    %v569 = vrot.slane %v283, 4
    %v570 = vrot.slane %v290, 4
    %571 = vrot.lane.b32.xlu0 %v566, 111
    %v572 = vpop.permute.xlu0 %571
    %573 = vrot.lane.b32.xlu0 %v567, 111
    %v574 = vpop.permute.xlu0 %573
    %575 = vrot.lane.b32.xlu0 %v568, 111
    %v576 = vpop.permute.xlu0 %575
    %577 = vrot.lane.b32.xlu0 %v569, 111
    %v578 = vpop.permute.xlu0 %577
    %579 = vrot.lane.b32.xlu0 %v570, 111
    %v580 = vpop.permute.xlu0 %579
    %vm581 = vcmask 908288
    %v582 = vsel %vm581, %v572, %v574
    %v583 = vsel %vm581, %v574, %v576
    %v584 = vsel %vm581, %v576, %v578
    %v585 = vsel %vm581, %v578, %v580
    %v595 = vrot.slane %v394, 1
    %v596 = vrot.slane %v395, 1
    %v597 = vrot.slane %v396, 1
    %v598 = vrot.slane %v397, 1
    %v599 = vrot.slane %v398, 1
    %600 = vrot.lane.b32.xlu0 %v595, 110
    %v601 = vpop.permute.xlu0 %600
    %602 = vrot.lane.b32.xlu0 %v596, 110
    %v603 = vpop.permute.xlu0 %602
    %604 = vrot.lane.b32.xlu0 %v597, 110
    %v605 = vpop.permute.xlu0 %604
    %606 = vrot.lane.b32.xlu0 %v598, 110
    %v607 = vpop.permute.xlu0 %606
    %608 = vrot.lane.b32.xlu0 %v599, 110
    %v609 = vpop.permute.xlu0 %608
    %vm610 = vcmask 900096
    %v611 = vsel %vm610, %v601, %v603
    %v612 = vsel %vm610, %v603, %v605
    %v613 = vsel %vm610, %v605, %v607
    %v614 = vsel %vm610, %v607, %v609
    %v624 = vrot.slane %v420, 6
    %v625 = vrot.slane %v421, 6
    %v626 = vrot.slane %v422, 6
    %v627 = vrot.slane %v423, 6
    %v628 = vrot.slane %v424, 6
    %629 = vrot.lane.b32.xlu0 %v624, 96
    %v630 = vpop.permute.xlu0 %629
    %631 = vrot.lane.b32.xlu0 %v625, 96
    %v632 = vpop.permute.xlu0 %631
    %633 = vrot.lane.b32.xlu0 %v626, 96
    %v634 = vpop.permute.xlu0 %633
    %635 = vrot.lane.b32.xlu0 %v627, 96
    %v636 = vpop.permute.xlu0 %635
    %637 = vrot.lane.b32.xlu0 %v628, 96
    %v638 = vpop.permute.xlu0 %637
    %vm639 = vcmask 785408
    %v640 = vsel %vm639, %v630, %v632
    %v641 = vsel %vm639, %v632, %v634
    %v642 = vsel %vm639, %v634, %v636
    %v643 = vsel %vm639, %v636, %v638
    %v653 = vrot.slane %v446, 3
    %v654 = vrot.slane %v447, 3
    %v655 = vrot.slane %v448, 3
    %v656 = vrot.slane %v449, 3
    %v657 = vrot.slane %v450, 3
    %658 = vrot.lane.b32.xlu0 %v653, 95
    %v659 = vpop.permute.xlu0 %658
    %660 = vrot.lane.b32.xlu0 %v654, 95
    %v661 = vpop.permute.xlu0 %660
    %662 = vrot.lane.b32.xlu0 %v655, 95
    %v663 = vpop.permute.xlu0 %662
    %664 = vrot.lane.b32.xlu0 %v656, 95
    %v665 = vpop.permute.xlu0 %664
    %666 = vrot.lane.b32.xlu0 %v657, 95
    %v667 = vpop.permute.xlu0 %666
    %vm668 = vcmask 777216
    %v669 = vsel %vm668, %v659, %v661
    %v670 = vsel %vm668, %v661, %v663
    %v671 = vsel %vm668, %v663, %v665
    %v672 = vsel %vm668, %v665, %v667
    %682 = vrot.lane.b32.xlu0 %v472, 94
    %v683 = vpop.permute.xlu0 %682
    %684 = vrot.lane.b32.xlu0 %v473, 94
    %v685 = vpop.permute.xlu0 %684
    %686 = vrot.lane.b32.xlu0 %v474, 94
    %v687 = vpop.permute.xlu0 %686
    %688 = vrot.lane.b32.xlu0 %v475, 94
    %v689 = vpop.permute.xlu0 %688
    %690 = vrot.lane.b32.xlu0 %v476, 94
    %v691 = vpop.permute.xlu0 %690
    %vm692 = vcmask 769024
    %v693 = vsel %vm692, %v683, %v685
    %v694 = vsel %vm692, %v685, %v687
    %v695 = vsel %vm692, %v687, %v689
    %v696 = vsel %vm692, %v689, %v691
    %vm701 = vcmask 1042432
    %v702 = vsel %vm701, %v291, %v498
    %v703 = vsel %vm701, %v292, %v499
    %v704 = vsel %vm701, %v293, %v500
    %v705 = vsel %vm701, %v294, %v501
    %vm706 = vcmask 1045504
    %v707 = vsel %vm706, %v702, %v527
    %v708 = vsel %vm706, %v703, %v528
    %v709 = vsel %vm706, %v704, %v529
    %v710 = vsel %vm706, %v705, %v530
    %vm711 = vcmask 1040384
    %v712 = vsel %vm711, %v527, %v556
    %v713 = vsel %vm711, %v528, %v557
    %v714 = vsel %vm711, %v529, %v558
    %v715 = vsel %vm711, %v530, %v559
    %vm716 = vcmask 1043456
    %v717 = vsel %vm716, %v712, %v582
    %v718 = vsel %vm716, %v713, %v583
    %v719 = vsel %vm716, %v714, %v584
    %v720 = vsel %vm716, %v715, %v585
    %vm721 = vcmask 1046528
    %v722 = vsel %vm721, %v717, %v611
    %v723 = vsel %vm721, %v718, %v612
    %v724 = vsel %vm721, %v719, %v613
    %v725 = vsel %vm721, %v720, %v614
    %vm726 = vcmask 1041408
    %v727 = vsel %vm726, %v611, %v640
    %v728 = vsel %vm726, %v612, %v641
    %v729 = vsel %vm726, %v613, %v642
    %v730 = vsel %vm726, %v614, %v643
    %vm731 = vcmask 1044480
    %v732 = vsel %vm731, %v727, %v669
    %v733 = vsel %vm731, %v728, %v670
    %v734 = vsel %vm731, %v729, %v671
    %v735 = vsel %vm731, %v730, %v672
    %v736 = vpack.c.bf16 %v722, %v707
    %v737 = vpack.c.bf16 %v723, %v708
    %v738 = vpack.c.bf16 %v724, %v709
    %v739 = vpack.c.bf16 %v725, %v710
    %v740 = vpack.c.bf16 %v693, %v732
    %v741 = vpack.c.bf16 %v694, %v733
    %v742 = vpack.c.bf16 %v695, %v734
    %v743 = vpack.c.bf16 %v696, %v735
    %745 = vset.pattern.permute.xlu0 0
    %746 = vperm.xlu0 %745, %v262
    %v747 = vpop.permute.xlu0 %746
    %vm749 = vcmask 220160
    %v751 = vsel %vm749, %v261, 0
    %v753 = vsel %vm731, 4294967295, 65535
    %v754 = vsel %vm706, %v753, 0
    %v756 = vand.u32 %v740, %v754
    %v759 = vand.u32 %v741, %v754
    %v762 = vand.u32 %v742, %v754
    %v765 = vand.u32 %v743, %v754
    %767 = vmatpush.bf16.msra.mxu0 0
    %768 = vmatpush.bf16.msra.mxu0 0
    %769 = vmatpush.bf16.msra.mxu0 0
    %770 = vmatpush.bf16.msra.mxu0 0
    %771 = vmatpush.bf16.msra.mxu0 0
    %772 = vmatpush.bf16.msra.mxu0 0
    %773 = vmatpush.bf16.msra.mxu0 %v756
    %774 = vmatpush.bf16.msra.mxu0 %v736
    %775 = vmatmul.bf16.gmra.mxu0 %v751
    %v776 = vpop.f32.mrf.mxu0
    %v777 = vadd.f32 %v747, %v776
    %v778 = vpop.f32.mrf.mxu0
    %779 = vdwg.mxu0
    %780 = vmatpush.bf16.msra.mxu0 0
    %781 = vmatpush.bf16.msra.mxu0 0
    %782 = vmatpush.bf16.msra.mxu0 0
    %783 = vmatpush.bf16.msra.mxu0 0
    %784 = vmatpush.bf16.msra.mxu0 0
    %785 = vmatpush.bf16.msra.mxu0 0
    %786 = vmatpush.bf16.msra.mxu0 %v759
    %787 = vmatpush.bf16.msra.mxu0 %v737
    %788 = vmatmul.bf16.gmra.mxu0 %v751
    %v789 = vpop.f32.mrf.mxu0
    %v790 = vadd.f32 %v747, %v789
    %v791 = vpop.f32.mrf.mxu0
    %792 = vdwg.mxu0
    %793 = vmatpush.bf16.msra.mxu0 0
    %794 = vmatpush.bf16.msra.mxu0 0
    %795 = vmatpush.bf16.msra.mxu0 0
    %796 = vmatpush.bf16.msra.mxu0 0
    %797 = vmatpush.bf16.msra.mxu0 0
    %798 = vmatpush.bf16.msra.mxu0 0
    %799 = vmatpush.bf16.msra.mxu0 %v762
    %800 = vmatpush.bf16.msra.mxu0 %v738
    %801 = vmatmul.bf16.gmra.mxu0 %v751
    %v802 = vpop.f32.mrf.mxu0
    %v803 = vadd.f32 %v747, %v802
    %v804 = vpop.f32.mrf.mxu0
    %805 = vdwg.mxu0
    %806 = vmatpush.bf16.msra.mxu0 0
    %807 = vmatpush.bf16.msra.mxu0 0
    %808 = vmatpush.bf16.msra.mxu0 0
    %809 = vmatpush.bf16.msra.mxu0 0
    %810 = vmatpush.bf16.msra.mxu0 0
    %811 = vmatpush.bf16.msra.mxu0 0
    %812 = vmatpush.bf16.msra.mxu0 %v765
    %813 = vmatpush.bf16.msra.mxu0 %v739
    %814 = vmatmul.bf16.gmra.mxu0 %v751
    %v815 = vpop.f32.mrf.mxu0
    %v816 = vadd.f32 %v747, %v815
    %v817 = vpop.f32.mrf.mxu0
    %818 = vdwg.mxu0
    %v819 = vmax.f32 %v777, 0.0
    %v820 = vmax.f32 %v790, 0.0
    %v821 = vmax.f32 %v803, 0.0
    %v822 = vmax.f32 %v816, 0.0
    %v823 = vld [vmem:[%s7] sm:$0xf]
    %v824 = vld [vmem:[%s9] sm:$0xff]
    %829 = vrot.lane.b32.xlu0 %v819, 17
    %v830 = vpop.permute.xlu0 %829
    %831 = vrot.lane.b32.xlu0 %v820, 17
    %v832 = vpop.permute.xlu0 %831
    %833 = vrot.lane.b32.xlu0 %v821, 17
    %v834 = vpop.permute.xlu0 %833
    %835 = vrot.lane.b32.xlu0 %v822, 17
    %v836 = vpop.permute.xlu0 %835
    %v837 = vsel %vm280, %v830, %v832
    %v838 = vsel %vm280, %v832, %v834
    %v839 = vsel %vm280, %v834, %v836
    %v845 = vsel %vm280, 0.0, %v830
    %v846 = vsel %vm280, %v836, 0.0
    %v847 = vmul.f32 %v845, %v208
    %v848 = vmul.f32 %v837, %v209
    %v849 = vmul.f32 %v838, %v210
    %v850 = vmul.f32 %v839, %v211
    %v851 = vmul.f32 %v845, %v300
    %v852 = vmul.f32 %v837, %v308
    %v853 = vmul.f32 %v838, %v309
    %v854 = vmul.f32 %v839, %v310
    %v855 = vmul.f32 %v846, %v306
    %v856 = vmul.f32 %v845, %v326
    %v857 = vmul.f32 %v837, %v334
    %v858 = vmul.f32 %v838, %v335
    %v859 = vmul.f32 %v839, %v336
    %v860 = vmul.f32 %v846, %v332
    %v861 = vmul.f32 %v845, %v352
    %v862 = vmul.f32 %v837, %v360
    %v863 = vmul.f32 %v838, %v361
    %v864 = vmul.f32 %v839, %v362
    %v865 = vmul.f32 %v846, %v358
    %v866 = vmul.f32 %v845, %v378
    %v867 = vmul.f32 %v837, %v386
    %v868 = vmul.f32 %v838, %v387
    %v869 = vmul.f32 %v839, %v388
    %v870 = vmul.f32 %v846, %v384
    %v871 = vmul.f32 %v845, %v404
    %v872 = vmul.f32 %v837, %v412
    %v873 = vmul.f32 %v838, %v413
    %v874 = vmul.f32 %v839, %v414
    %v875 = vmul.f32 %v846, %v410
    %v876 = vmul.f32 %v845, %v430
    %v877 = vmul.f32 %v837, %v438
    %v878 = vmul.f32 %v838, %v439
    %v879 = vmul.f32 %v839, %v440
    %v880 = vmul.f32 %v846, %v436
    %v881 = vmul.f32 %v845, %v456
    %v882 = vmul.f32 %v837, %v464
    %v883 = vmul.f32 %v838, %v465
    %v884 = vmul.f32 %v839, %v466
    %v885 = vmul.f32 %v846, %v462
    %891 = vrot.lane.b32.xlu0 %v851, 127
    %v892 = vpop.permute.xlu0 %891
    %893 = vrot.lane.b32.xlu0 %v852, 127
    %v894 = vpop.permute.xlu0 %893
    %895 = vrot.lane.b32.xlu0 %v853, 127
    %v896 = vpop.permute.xlu0 %895
    %897 = vrot.lane.b32.xlu0 %v854, 127
    %v898 = vpop.permute.xlu0 %897
    %899 = vrot.lane.b32.xlu0 %v855, 127
    %v900 = vpop.permute.xlu0 %899
    %v901 = vsel %vm497, %v892, %v894
    %v902 = vsel %vm497, %v894, %v896
    %v903 = vsel %vm497, %v896, %v898
    %v904 = vsel %vm497, %v898, %v900
    %914 = vrot.lane.b32.xlu0 %v856, 126
    %v915 = vpop.permute.xlu0 %914
    %916 = vrot.lane.b32.xlu0 %v857, 126
    %v917 = vpop.permute.xlu0 %916
    %918 = vrot.lane.b32.xlu0 %v858, 126
    %v919 = vpop.permute.xlu0 %918
    %920 = vrot.lane.b32.xlu0 %v859, 126
    %v921 = vpop.permute.xlu0 %920
    %922 = vrot.lane.b32.xlu0 %v860, 126
    %v923 = vpop.permute.xlu0 %922
    %v924 = vsel %vm526, %v915, %v917
    %v925 = vsel %vm526, %v917, %v919
    %v926 = vsel %vm526, %v919, %v921
    %v927 = vsel %vm526, %v921, %v923
    %937 = vrot.lane.b32.xlu0 %v861, 112
    %v938 = vpop.permute.xlu0 %937
    %939 = vrot.lane.b32.xlu0 %v862, 112
    %v940 = vpop.permute.xlu0 %939
    %941 = vrot.lane.b32.xlu0 %v863, 112
    %v942 = vpop.permute.xlu0 %941
    %943 = vrot.lane.b32.xlu0 %v864, 112
    %v944 = vpop.permute.xlu0 %943
    %945 = vrot.lane.b32.xlu0 %v865, 112
    %v946 = vpop.permute.xlu0 %945
    %v947 = vsel %vm555, %v938, %v940
    %v948 = vsel %vm555, %v940, %v942
    %v949 = vsel %vm555, %v942, %v944
    %v950 = vsel %vm555, %v944, %v946
    %957 = vrot.lane.b32.xlu0 %v845, 111
    %v958 = vpop.permute.xlu0 %957
    %959 = vrot.lane.b32.xlu0 %v837, 111
    %v960 = vpop.permute.xlu0 %959
    %961 = vrot.lane.b32.xlu0 %v838, 111
    %v962 = vpop.permute.xlu0 %961
    %963 = vrot.lane.b32.xlu0 %v839, 111
    %v964 = vpop.permute.xlu0 %963
    %965 = vrot.lane.b32.xlu0 %v846, 111
    %v966 = vpop.permute.xlu0 %965
    %v967 = vsel %vm581, %v958, %v960
    %v968 = vsel %vm581, %v960, %v962
    %v969 = vsel %vm581, %v962, %v964
    %v970 = vsel %vm581, %v964, %v966
    %980 = vrot.lane.b32.xlu0 %v866, 110
    %v981 = vpop.permute.xlu0 %980
    %982 = vrot.lane.b32.xlu0 %v867, 110
    %v983 = vpop.permute.xlu0 %982
    %984 = vrot.lane.b32.xlu0 %v868, 110
    %v985 = vpop.permute.xlu0 %984
    %986 = vrot.lane.b32.xlu0 %v869, 110
    %v987 = vpop.permute.xlu0 %986
    %988 = vrot.lane.b32.xlu0 %v870, 110
    %v989 = vpop.permute.xlu0 %988
    %v990 = vsel %vm610, %v981, %v983
    %v991 = vsel %vm610, %v983, %v985
    %v992 = vsel %vm610, %v985, %v987
    %v993 = vsel %vm610, %v987, %v989
    %1003 = vrot.lane.b32.xlu0 %v871, 96
    %v1004 = vpop.permute.xlu0 %1003
    %1005 = vrot.lane.b32.xlu0 %v872, 96
    %v1006 = vpop.permute.xlu0 %1005
    %1007 = vrot.lane.b32.xlu0 %v873, 96
    %v1008 = vpop.permute.xlu0 %1007
    %1009 = vrot.lane.b32.xlu0 %v874, 96
    %v1010 = vpop.permute.xlu0 %1009
    %1011 = vrot.lane.b32.xlu0 %v875, 96
    %v1012 = vpop.permute.xlu0 %1011
    %v1013 = vsel %vm639, %v1004, %v1006
    %v1014 = vsel %vm639, %v1006, %v1008
    %v1015 = vsel %vm639, %v1008, %v1010
    %v1016 = vsel %vm639, %v1010, %v1012
    %1026 = vrot.lane.b32.xlu0 %v876, 95
    %v1027 = vpop.permute.xlu0 %1026
    %1028 = vrot.lane.b32.xlu0 %v877, 95
    %v1029 = vpop.permute.xlu0 %1028
    %1030 = vrot.lane.b32.xlu0 %v878, 95
    %v1031 = vpop.permute.xlu0 %1030
    %1032 = vrot.lane.b32.xlu0 %v879, 95
    %v1033 = vpop.permute.xlu0 %1032
    %1034 = vrot.lane.b32.xlu0 %v880, 95
    %v1035 = vpop.permute.xlu0 %1034
    %v1036 = vsel %vm668, %v1027, %v1029
    %v1037 = vsel %vm668, %v1029, %v1031
    %v1038 = vsel %vm668, %v1031, %v1033
    %v1039 = vsel %vm668, %v1033, %v1035
    %1049 = vrot.lane.b32.xlu0 %v881, 94
    %v1050 = vpop.permute.xlu0 %1049
    %1051 = vrot.lane.b32.xlu0 %v882, 94
    %v1052 = vpop.permute.xlu0 %1051
    %1053 = vrot.lane.b32.xlu0 %v883, 94
    %v1054 = vpop.permute.xlu0 %1053
    %1055 = vrot.lane.b32.xlu0 %v884, 94
    %v1056 = vpop.permute.xlu0 %1055
    %1057 = vrot.lane.b32.xlu0 %v885, 94
    %v1058 = vpop.permute.xlu0 %1057
    %v1059 = vsel %vm692, %v1050, %v1052
    %v1060 = vsel %vm692, %v1052, %v1054
    %v1061 = vsel %vm692, %v1054, %v1056
    %v1062 = vsel %vm692, %v1056, %v1058
    %v1067 = vpack.c.bf16 %v901, %v847
    %v1068 = vpack.c.bf16 %v902, %v848
    %v1069 = vpack.c.bf16 %v903, %v849
    %v1070 = vpack.c.bf16 %v904, %v850
    %v1071 = vpack.c.bf16 %v947, %v924
    %v1072 = vpack.c.bf16 %v948, %v925
    %v1073 = vpack.c.bf16 %v949, %v926
    %v1074 = vpack.c.bf16 %v950, %v927
    %v1075 = vpack.c.bf16 %v990, %v967
    %v1076 = vpack.c.bf16 %v991, %v968
    %v1077 = vpack.c.bf16 %v992, %v969
    %v1078 = vpack.c.bf16 %v993, %v970
    %v1079 = vpack.c.bf16 %v1036, %v1013
    %v1080 = vpack.c.bf16 %v1037, %v1014
    %v1081 = vpack.c.bf16 %v1038, %v1015
    %v1082 = vpack.c.bf16 %v1039, %v1016
    %v1083 = vpack.c.bf16 %v1059, %v1059
    %v1084 = vpack.c.bf16 %v1060, %v1060
    %v1085 = vpack.c.bf16 %v1061, %v1061
    %v1086 = vpack.c.bf16 %v1062, %v1062
    %1088 = vset.pattern.permute.xlu0 0
    %1089 = vperm.xlu0 %1088, %v824
    %v1090 = vpop.permute.xlu0 %1089
    %vm1092 = vcmask 588800
    %v1094 = vsel %vm1092, %v823, 0
    %v1097 = vsel %vm716, %v1083, 0
    %v1100 = vsel %vm716, %v1084, 0
    %v1103 = vsel %vm716, %v1085, 0
    %v1106 = vsel %vm716, %v1086, 0
    %1108 = vmatpush.bf16.msra.mxu0 0
    %1109 = vmatpush.bf16.msra.mxu0 0
    %1110 = vmatpush.bf16.msra.mxu0 0
    %1111 = vmatpush.bf16.msra.mxu0 %v1097
    %1112 = vmatpush.bf16.msra.mxu0 %v1079
    %1113 = vmatpush.bf16.msra.mxu0 %v1075
    %1114 = vmatpush.bf16.msra.mxu0 %v1071
    %1115 = vmatpush.bf16.msra.mxu0 %v1067
    %1116 = vmatmul.bf16.gmra.mxu0 %v1094
    %v1117 = vpop.f32.mrf.mxu0
    %v1118 = vadd.f32 %v1090, %v1117
    %v1119 = vpop.f32.mrf.mxu0
    %1120 = vdwg.mxu0
    %1121 = vmatpush.bf16.msra.mxu0 0
    %1122 = vmatpush.bf16.msra.mxu0 0
    %1123 = vmatpush.bf16.msra.mxu0 0
    %1124 = vmatpush.bf16.msra.mxu0 %v1100
    %1125 = vmatpush.bf16.msra.mxu0 %v1080
    %1126 = vmatpush.bf16.msra.mxu0 %v1076
    %1127 = vmatpush.bf16.msra.mxu0 %v1072
    %1128 = vmatpush.bf16.msra.mxu0 %v1068
    %1129 = vmatmul.bf16.gmra.mxu0 %v1094
    %v1130 = vpop.f32.mrf.mxu0
    %v1131 = vadd.f32 %v1090, %v1130
    %v1132 = vpop.f32.mrf.mxu0
    %1133 = vdwg.mxu0
    %1134 = vmatpush.bf16.msra.mxu0 0
    %1135 = vmatpush.bf16.msra.mxu0 0
    %1136 = vmatpush.bf16.msra.mxu0 0
    %1137 = vmatpush.bf16.msra.mxu0 %v1103
    %1138 = vmatpush.bf16.msra.mxu0 %v1081
    %1139 = vmatpush.bf16.msra.mxu0 %v1077
    %1140 = vmatpush.bf16.msra.mxu0 %v1073
    %1141 = vmatpush.bf16.msra.mxu0 %v1069
    %1142 = vmatmul.bf16.gmra.mxu0 %v1094
    %v1143 = vpop.f32.mrf.mxu0
    %v1144 = vadd.f32 %v1090, %v1143
    %v1145 = vpop.f32.mrf.mxu0
    %1146 = vdwg.mxu0
    %1147 = vmatpush.bf16.msra.mxu0 0
    %1148 = vmatpush.bf16.msra.mxu0 0
    %1149 = vmatpush.bf16.msra.mxu0 0
    %1150 = vmatpush.bf16.msra.mxu0 %v1106
    %1151 = vmatpush.bf16.msra.mxu0 %v1082
    %1152 = vmatpush.bf16.msra.mxu0 %v1078
    %1153 = vmatpush.bf16.msra.mxu0 %v1074
    %1154 = vmatpush.bf16.msra.mxu0 %v1070
    %1155 = vmatmul.bf16.gmra.mxu0 %v1094
    %v1156 = vpop.f32.mrf.mxu0
    %v1157 = vadd.f32 %v1090, %v1156
    %v1158 = vpop.f32.mrf.mxu0
    %1159 = vdwg.mxu0
    %v1160 = vmax.f32 %v1118, 0.0
    %v1161 = vmax.f32 %v1131, 0.0
    %v1162 = vmax.f32 %v1144, 0.0
    %v1163 = vmax.f32 %v1157, 0.0
    %v1164 = vld [vmem:[%s55] sm:$0xf]
    %v1165 = vld [vmem:[%s55 + $0x4] sm:$0xf]
    %v1166 = vld [vmem:[%s55 + $0x8] sm:$0xf]
    %v1167 = vld [vmem:[%s55 + $0xc] sm:$0xf]
    %v1168 = vld [vmem:[%s55 + $0x10] sm:$0xf]
    %v1169 = vld [vmem:[%s55 + $0x14] sm:$0xf]
    %v1170 = vld [vmem:[%s55 + $0x18] sm:$0xf]
    %v1171 = vld [vmem:[%s55 + $0x1c] sm:$0xf]
    %v1172 = vld [vmem:[%s55 + $0x20] sm:$0xf]
    %v1173 = vld [vmem:[%s55 + $0x24] sm:$0xf]
    %v1174 = vld [vmem:[%s55 + $0x28] sm:$0xf]
    %v1175 = vld [vmem:[%s55 + $0x2c] sm:$0xf]
    %v1176 = vld [vmem:[%s55 + $0x30] sm:$0xf]
    %v1177 = vld [vmem:[%s55 + $0x34] sm:$0xf]
    %v1178 = vld [vmem:[%s55 + $0x38] sm:$0xf]
    %v1179 = vld [vmem:[%s55 + $0x3c] sm:$0xf]
    %v1180 = vld [vmem:[%s55 + $0x40] sm:$0xf]
    %v1181 = vld [vmem:[%s55 + $0x44] sm:$0xf]
    %v1182 = vld [vmem:[%s55 + $0x48] sm:$0xf]
    %v1183 = vld [vmem:[%s55 + $0x4c] sm:$0xf]
    %v1184 = vld [vmem:[%s55 + $0x50] sm:$0xf]
    %v1185 = vld [vmem:[%s55 + $0x54] sm:$0xf]
    %v1186 = vld [vmem:[%s55 + $0x58] sm:$0xf]
    %v1187 = vld [vmem:[%s55 + $0x5c] sm:$0xf]
    %v1188 = vld [vmem:[%s55 + $0x60] sm:$0xf]
    %v1189 = vld [vmem:[%s55 + $0x64] sm:$0xf]
    %v1190 = vld [vmem:[%s55 + $0x68] sm:$0xf]
    %v1191 = vld [vmem:[%s55 + $0x6c] sm:$0xf]
    %v1192 = vld [vmem:[%s55 + $0x70] sm:$0xf]
    %v1193 = vld [vmem:[%s55 + $0x74] sm:$0xf]
    %v1194 = vld [vmem:[%s55 + $0x78] sm:$0xf]
    %v1195 = vld [vmem:[%s55 + $0x7c] sm:$0xf]
    %v1196 = vld [vmem:[%s55 + $0x80] sm:$0xf]
    %v1197 = vld [vmem:[%s55 + $0x84] sm:$0xf]
    %v1198 = vld [vmem:[%s55 + $0x88] sm:$0xf]
    %v1199 = vld [vmem:[%s55 + $0x8c] sm:$0xf]
    %v1200 = vld [vmem:[%s55 + $0x90] sm:$0xf]
    %v1201 = vld [vmem:[%s55 + $0x94] sm:$0xf]
    %v1202 = vld [vmem:[%s55 + $0x98] sm:$0xf]
    %v1203 = vld [vmem:[%s55 + $0x9c] sm:$0xf]
    %v1204 = vld [vmem:[%s55 + $0xa0] sm:$0xf]
    %v1205 = vld [vmem:[%s55 + $0xa4] sm:$0xf]
    %v1206 = vld [vmem:[%s55 + $0xa8] sm:$0xf]
    %v1207 = vld [vmem:[%s55 + $0xac] sm:$0xf]
    %v1208 = vld [vmem:[%s55 + $0xb0] sm:$0xf]
    %v1209 = vld [vmem:[%s55 + $0xb4] sm:$0xf]
    %v1210 = vld [vmem:[%s55 + $0xb8] sm:$0xf]
    %v1211 = vld [vmem:[%s55 + $0xbc] sm:$0xf]
    %v1212 = vld [vmem:[%s55 + $0xc0] sm:$0xf]
    %v1213 = vld [vmem:[%s55 + $0xc4] sm:$0xf]
    %v1214 = vld [vmem:[%s55 + $0xc8] sm:$0xf]
    %v1215 = vld [vmem:[%s55 + $0xcc] sm:$0xf]
    %v1216 = vld [vmem:[%s55 + $0xd0] sm:$0xf]
    %v1217 = vld [vmem:[%s55 + $0xd4] sm:$0xf]
    %v1218 = vld [vmem:[%s55 + $0xd8] sm:$0xf]
    %v1219 = vld [vmem:[%s55 + $0xdc] sm:$0xf]
    %v1220 = vld [vmem:[%s55 + $0xe0] sm:$0xf]
    %v1221 = vld [vmem:[%s55 + $0xe4] sm:$0xf]
    %v1222 = vld [vmem:[%s55 + $0xe8] sm:$0xf]
    %v1223 = vld [vmem:[%s55 + $0xec] sm:$0xf]
    %v1224 = vld [vmem:[%s55 + $0xf0] sm:$0xf]
    %v1225 = vld [vmem:[%s55 + $0xf4] sm:$0xf]
    %v1226 = vld [vmem:[%s55 + $0xf8] sm:$0xf]
    %v1227 = vld [vmem:[%s55 + $0xfc] sm:$0xf]
    %1233 = vrot.lane.b32.xlu0 %v1160, 127
    %v1234 = vpop.permute.xlu0 %1233
    %1235 = vrot.lane.b32.xlu0 %v1161, 127
    %v1236 = vpop.permute.xlu0 %1235
    %1237 = vrot.lane.b32.xlu0 %v1162, 127
    %v1238 = vpop.permute.xlu0 %1237
    %1239 = vrot.lane.b32.xlu0 %v1163, 127
    %v1240 = vpop.permute.xlu0 %1239
    %1241 = vrot.lane.b32.xlu0 0.0, 127
    %v1242 = vpop.permute.xlu0 %1241
    %v1243 = vsel %vm497, %v1234, %v1236
    %v1244 = vsel %vm497, %v1236, %v1238
    %v1245 = vsel %vm497, %v1238, %v1240
    %v1246 = vsel %vm497, %v1240, %v1242
    %v1251 = vmax.f32 %v1160, %v1243
    %v1252 = vmax.f32 %v1161, %v1244
    %v1253 = vmax.f32 %v1162, %v1245
    %v1254 = vmax.f32 %v1163, %v1246
    %v1256 = vmax.f32 %v1242, 0.0
    %1262 = vrot.lane.b32.xlu0 %v1251, 112
    %v1263 = vpop.permute.xlu0 %1262
    %1264 = vrot.lane.b32.xlu0 %v1252, 112
    %v1265 = vpop.permute.xlu0 %1264
    %1266 = vrot.lane.b32.xlu0 %v1253, 112
    %v1267 = vpop.permute.xlu0 %1266
    %1268 = vrot.lane.b32.xlu0 %v1254, 112
    %v1269 = vpop.permute.xlu0 %1268
    %1270 = vrot.lane.b32.xlu0 %v1256, 112
    %v1271 = vpop.permute.xlu0 %1270
    %v1272 = vsel %vm555, %v1263, %v1265
    %v1273 = vsel %vm555, %v1265, %v1267
    %v1274 = vsel %vm555, %v1267, %v1269
    %v1275 = vsel %vm555, %v1269, %v1271
    %v1280 = vmax.f32 %v1251, %v1272
    %v1281 = vmax.f32 %v1252, %v1273
    %v1282 = vmax.f32 %v1253, %v1274
    %v1283 = vmax.f32 %v1254, %v1275
    %v1284 = vpack.c.bf16 %v1280, %v1280
    %v1285 = vpack.c.bf16 %v1281, %v1281
    %v1286 = vpack.c.bf16 %v1282, %v1282
    %v1287 = vpack.c.bf16 %v1283, %v1283
    %v1352 = vunpack.c.l.b16 %v1164
    %v1353 = vunpack.c.l.b16 %v1165
    %v1354 = vunpack.c.l.b16 %v1166
    %v1355 = vunpack.c.l.b16 %v1167
    %v1356 = vunpack.c.l.b16 %v1168
    %v1357 = vunpack.c.l.b16 %v1169
    %v1358 = vunpack.c.l.b16 %v1170
    %v1359 = vunpack.c.l.b16 %v1171
    %v1360 = vunpack.c.l.b16 %v1172
    %v1361 = vunpack.c.l.b16 %v1173
    %v1362 = vunpack.c.l.b16 %v1174
    %v1363 = vunpack.c.l.b16 %v1175
    %v1364 = vunpack.c.l.b16 %v1176
    %v1365 = vunpack.c.l.b16 %v1177
    %v1366 = vunpack.c.l.b16 %v1178
    %v1367 = vunpack.c.l.b16 %v1179
    %v1368 = vunpack.c.l.b16 %v1180
    %v1369 = vunpack.c.l.b16 %v1181
    %v1370 = vunpack.c.l.b16 %v1182
    %v1371 = vunpack.c.l.b16 %v1183
    %v1372 = vunpack.c.l.b16 %v1184
    %v1373 = vunpack.c.l.b16 %v1185
    %v1374 = vunpack.c.l.b16 %v1186
    %v1375 = vunpack.c.l.b16 %v1187
    %v1376 = vunpack.c.l.b16 %v1188
    %v1377 = vunpack.c.l.b16 %v1189
    %v1378 = vunpack.c.l.b16 %v1190
    %v1379 = vunpack.c.l.b16 %v1191
    %v1380 = vunpack.c.l.b16 %v1192
    %v1381 = vunpack.c.l.b16 %v1193
    %v1382 = vunpack.c.l.b16 %v1194
    %v1383 = vunpack.c.l.b16 %v1195
    %v1384 = vunpack.c.l.b16 %v1196
    %v1385 = vunpack.c.l.b16 %v1197
    %v1386 = vunpack.c.l.b16 %v1198
    %v1387 = vunpack.c.l.b16 %v1199
    %v1388 = vunpack.c.l.b16 %v1200
    %v1389 = vunpack.c.l.b16 %v1201
    %v1390 = vunpack.c.l.b16 %v1202
    %v1391 = vunpack.c.l.b16 %v1203
    %v1392 = vunpack.c.l.b16 %v1204
    %v1393 = vunpack.c.l.b16 %v1205
    %v1394 = vunpack.c.l.b16 %v1206
    %v1395 = vunpack.c.l.b16 %v1207
    %v1396 = vunpack.c.l.b16 %v1208
    %v1397 = vunpack.c.l.b16 %v1209
    %v1398 = vunpack.c.l.b16 %v1210
    %v1399 = vunpack.c.l.b16 %v1211
    %v1400 = vunpack.c.l.b16 %v1212
    %v1401 = vunpack.c.l.b16 %v1213
    %v1402 = vunpack.c.l.b16 %v1214
    %v1403 = vunpack.c.l.b16 %v1215
    %v1404 = vunpack.c.l.b16 %v1216
    %v1405 = vunpack.c.l.b16 %v1217
    %v1406 = vunpack.c.l.b16 %v1218
    %v1407 = vunpack.c.l.b16 %v1219
    %v1408 = vunpack.c.l.b16 %v1220
    %v1409 = vunpack.c.l.b16 %v1221
    %v1410 = vunpack.c.l.b16 %v1222
    %v1411 = vunpack.c.l.b16 %v1223
    %v1412 = vunpack.c.l.b16 %v1224
    %v1413 = vunpack.c.l.b16 %v1225
    %v1414 = vunpack.c.l.b16 %v1226
    %v1415 = vunpack.c.l.b16 %v1227
    %v1416 = vpack.c.b16 %v1353, %v1352
    %v1417 = vpack.c.b16 %v1355, %v1354
    %v1418 = vpack.c.b16 %v1357, %v1356
    %v1419 = vpack.c.b16 %v1359, %v1358
    %v1420 = vpack.c.b16 %v1361, %v1360
    %v1421 = vpack.c.b16 %v1363, %v1362
    %v1422 = vpack.c.b16 %v1365, %v1364
    %v1423 = vpack.c.b16 %v1367, %v1366
    %v1424 = vpack.c.b16 %v1369, %v1368
    %v1425 = vpack.c.b16 %v1371, %v1370
    %v1426 = vpack.c.b16 %v1373, %v1372
    %v1427 = vpack.c.b16 %v1375, %v1374
    %v1428 = vpack.c.b16 %v1377, %v1376
    %v1429 = vpack.c.b16 %v1379, %v1378
    %v1430 = vpack.c.b16 %v1381, %v1380
    %v1431 = vpack.c.b16 %v1383, %v1382
    %v1432 = vpack.c.b16 %v1385, %v1384
    %v1433 = vpack.c.b16 %v1387, %v1386
    %v1434 = vpack.c.b16 %v1389, %v1388
    %v1435 = vpack.c.b16 %v1391, %v1390
    %v1436 = vpack.c.b16 %v1393, %v1392
    %v1437 = vpack.c.b16 %v1395, %v1394
    %v1438 = vpack.c.b16 %v1397, %v1396
    %v1439 = vpack.c.b16 %v1399, %v1398
    %v1440 = vpack.c.b16 %v1401, %v1400
    %v1441 = vpack.c.b16 %v1403, %v1402
    %v1442 = vpack.c.b16 %v1405, %v1404
    %v1443 = vpack.c.b16 %v1407, %v1406
    %v1444 = vpack.c.b16 %v1409, %v1408
    %v1445 = vpack.c.b16 %v1411, %v1410
    %v1446 = vpack.c.b16 %v1413, %v1412
    %v1447 = vpack.c.b16 %v1415, %v1414
    %1480 = vmatpush.bf16.msra.mxu0 %v1423
    %1481 = vmatpush.bf16.msra.mxu0 %v1422
    %1482 = vmatpush.bf16.msra.mxu0 %v1421
    %1483 = vmatpush.bf16.msra.mxu0 %v1420
    %1484 = vmatpush.bf16.msra.mxu0 %v1419
    %1485 = vmatpush.bf16.msra.mxu0 %v1418
    %1486 = vmatpush.bf16.msra.mxu0 %v1417
    %1487 = vmatpush.bf16.msra.mxu0 %v1416
    %1488 = vmatmul.bf16.gmra.mxu0 %v1284
    %v1489 = vpop.f32.mrf.mxu0
    %v1490 = vadd.f32 0.0, %v1489
    %v1491 = vpop.f32.mrf.mxu0
    %1492 = vdwg.mxu0
    %1493 = vmatpush.bf16.msra.mxu0 %v1431
    %1494 = vmatpush.bf16.msra.mxu0 %v1430
    %1495 = vmatpush.bf16.msra.mxu0 %v1429
    %1496 = vmatpush.bf16.msra.mxu0 %v1428
    %1497 = vmatpush.bf16.msra.mxu0 %v1427
    %1498 = vmatpush.bf16.msra.mxu0 %v1426
    %1499 = vmatpush.bf16.msra.mxu0 %v1425
    %1500 = vmatpush.bf16.msra.mxu0 %v1424
    %1501 = vmatmul.bf16.gmra.mxu0 %v1285
    %v1502 = vpop.f32.mrf.mxu0
    %v1503 = vadd.f32 %v1490, %v1502
    %v1504 = vpop.f32.mrf.mxu0
    %1505 = vdwg.mxu0
    %1506 = vmatpush.bf16.msra.mxu0 %v1439
    %1507 = vmatpush.bf16.msra.mxu0 %v1438
    %1508 = vmatpush.bf16.msra.mxu0 %v1437
    %1509 = vmatpush.bf16.msra.mxu0 %v1436
    %1510 = vmatpush.bf16.msra.mxu0 %v1435
    %1511 = vmatpush.bf16.msra.mxu0 %v1434
    %1512 = vmatpush.bf16.msra.mxu0 %v1433
    %1513 = vmatpush.bf16.msra.mxu0 %v1432
    %1514 = vmatmul.bf16.gmra.mxu0 %v1286
    %v1515 = vpop.f32.mrf.mxu0
    %v1516 = vadd.f32 %v1503, %v1515
    %v1517 = vpop.f32.mrf.mxu0
    %1518 = vdwg.mxu0
    %1519 = vmatpush.bf16.msra.mxu0 %v1447
    %1520 = vmatpush.bf16.msra.mxu0 %v1446
    %1521 = vmatpush.bf16.msra.mxu0 %v1445
    %1522 = vmatpush.bf16.msra.mxu0 %v1444
    %1523 = vmatpush.bf16.msra.mxu0 %v1443
    %1524 = vmatpush.bf16.msra.mxu0 %v1442
    %1525 = vmatpush.bf16.msra.mxu0 %v1441
    %1526 = vmatpush.bf16.msra.mxu0 %v1440
    %1527 = vmatmul.bf16.gmra.mxu0 %v1287
    %v1528 = vpop.f32.mrf.mxu0
    %v1529 = vadd.f32 %v1516, %v1528
    %v1530 = vpop.f32.mrf.mxu0
    %1531 = vdwg.mxu0
    %v1532 = vld [vmem:[%s11] sm:$0xf]
    %v1533 = vld [vmem:[%s11 + $0x4] sm:$0xf]
    %v1534 = vld [vmem:[%s13] sm:$0xff]
    %v1535 = vld [vmem:[%s13 + $0x8] sm:$0xff]
    %1537 = vrot.lane.b32.xlu0 %v1529, 9
    %v1538 = vpop.permute.xlu0 %1537
    %vm1540 = vcmask 72704
    %v1541 = vsel %vm1540, 0.0, %v1538
    %v1542 = vsel %vm1540, %v1538, 0.0
    %v1543 = vmul.f32 %v1541, %v238
    %1545 = vrot.lane.b32.xlu0 %v228, 1
    %v1546 = vpop.permute.xlu0 %1545
    %v1548 = vmul.f32 %v1541, %v1546
    %v1549 = vmul.f32 %v1542, %v1546
    %1551 = vrot.lane.b32.xlu0 %v239, 2
    %v1552 = vpop.permute.xlu0 %1551
    %v1554 = vmul.f32 %v1541, %v1552
    %v1555 = vmul.f32 %v1542, %v1552
    %1557 = vrot.lane.b32.xlu0 %v234, 8
    %v1558 = vpop.permute.xlu0 %1557
    %v1560 = vmul.f32 %v1541, %v1558
    %v1561 = vmul.f32 %v1542, %v1558
    %1563 = vrot.lane.b32.xlu0 %v237, 10
    %v1564 = vpop.permute.xlu0 %1563
    %v1566 = vmul.f32 %v1541, %v1564
    %v1567 = vmul.f32 %v1542, %v1564
    %1569 = vrot.lane.b32.xlu0 %v240, 16
    %v1570 = vpop.permute.xlu0 %1569
    %v1572 = vmul.f32 %v1541, %v1570
    %v1573 = vmul.f32 %v1542, %v1570
    %1575 = vrot.lane.b32.xlu0 %v231, 17
    %v1576 = vpop.permute.xlu0 %1575
    %v1578 = vmul.f32 %v1541, %v1576
    %v1579 = vmul.f32 %v1542, %v1576
    %1581 = vrot.lane.b32.xlu0 %v241, 18
    %v1582 = vpop.permute.xlu0 %1581
    %v1584 = vmul.f32 %v1541, %v1582
    %v1585 = vmul.f32 %v1542, %v1582
    %1588 = vrot.lane.b32.xlu0 %v1548, 127
    %v1589 = vpop.permute.xlu0 %1588
    %1590 = vrot.lane.b32.xlu0 %v1549, 127
    %v1591 = vpop.permute.xlu0 %1590
    %v1592 = vsel %vm497, %v1589, %v1591
    %1596 = vrot.lane.b32.xlu0 %v1554, 126
    %v1597 = vpop.permute.xlu0 %1596
    %1598 = vrot.lane.b32.xlu0 %v1555, 126
    %v1599 = vpop.permute.xlu0 %1598
    %v1600 = vsel %vm526, %v1597, %v1599
    %1604 = vrot.lane.b32.xlu0 %v1560, 120
    %v1605 = vpop.permute.xlu0 %1604
    %1606 = vrot.lane.b32.xlu0 %v1561, 120
    %v1607 = vpop.permute.xlu0 %1606
    %vm1608 = vcmask 982016
    %v1609 = vsel %vm1608, %v1605, %v1607
    %1613 = vrot.lane.b32.xlu0 %v1541, 119
    %v1614 = vpop.permute.xlu0 %1613
    %1615 = vrot.lane.b32.xlu0 %v1542, 119
    %v1616 = vpop.permute.xlu0 %1615
    %vm1617 = vcmask 973824
    %v1618 = vsel %vm1617, %v1614, %v1616
    %1622 = vrot.lane.b32.xlu0 %v1566, 118
    %v1623 = vpop.permute.xlu0 %1622
    %1624 = vrot.lane.b32.xlu0 %v1567, 118
    %v1625 = vpop.permute.xlu0 %1624
    %vm1626 = vcmask 965632
    %v1627 = vsel %vm1626, %v1623, %v1625
    %1631 = vrot.lane.b32.xlu0 %v1572, 112
    %v1632 = vpop.permute.xlu0 %1631
    %1633 = vrot.lane.b32.xlu0 %v1573, 112
    %v1634 = vpop.permute.xlu0 %1633
    %v1635 = vsel %vm555, %v1632, %v1634
    %1639 = vrot.lane.b32.xlu0 %v1578, 111
    %v1640 = vpop.permute.xlu0 %1639
    %1641 = vrot.lane.b32.xlu0 %v1579, 111
    %v1642 = vpop.permute.xlu0 %1641
    %v1643 = vsel %vm581, %v1640, %v1642
    %1647 = vrot.lane.b32.xlu0 %v1584, 110
    %v1648 = vpop.permute.xlu0 %1647
    %1649 = vrot.lane.b32.xlu0 %v1585, 110
    %v1650 = vpop.permute.xlu0 %1649
    %v1651 = vsel %vm610, %v1648, %v1650
    %v1653 = vpack.c.bf16 %v1592, %v1543
    %v1654 = vpack.c.bf16 %v1609, %v1600
    %v1655 = vpack.c.bf16 %v1627, %v1618
    %v1656 = vpack.c.bf16 %v1643, %v1635
    %v1657 = vpack.c.bf16 %v1651, %v1651
    %1659 = vset.pattern.permute.xlu0 0
    %1660 = vperm.xlu0 %1659, %v1534
    %v1661 = vpop.permute.xlu0 %1660
    %1664 = vset.pattern.permute.xlu0 0
    %1665 = vperm.xlu0 %1664, %v1535
    %v1666 = vpop.permute.xlu0 %1665
    %v1670 = vunpack.c.l.b16 %v1532
    %v1671 = vunpack.c.l.b16 %v1533
    %v1672 = vpack.c.b16 %v1671, %v1670
    %v1674 = vsel %vm1092, %v1672, 0
    %v1677 = vsel %vm716, %v1657, 0
    %1679 = vmatpush.bf16.msra.mxu0 0
    %1680 = vmatpush.bf16.msra.mxu0 0
    %1681 = vmatpush.bf16.msra.mxu0 0
    %1682 = vmatpush.bf16.msra.mxu0 %v1677
    %1683 = vmatpush.bf16.msra.mxu0 %v1656
    %1684 = vmatpush.bf16.msra.mxu0 %v1655
    %1685 = vmatpush.bf16.msra.mxu0 %v1654
    %1686 = vmatpush.bf16.msra.mxu0 %v1653
    %1687 = vmatmul.bf16.gmra.mxu0 %v1674
    %v1688 = vpop.f32.mrf.mxu0
    %v1689 = vadd.f32 %v1661, %v1688
    %v1690 = vpop.f32.mrf.mxu0
    %v1691 = vadd.f32 %v1666, %v1690
    %1692 = vdwg.mxu0
    %v1693 = vmax.f32 %v1689, 0.0
    %v1694 = vmax.f32 %v1691, 0.0
    %v1695 = vld [vmem:[%s15] sm:$0xff]
    %v1696 = vld [vmem:[%s15 + $0x8] sm:$0xff]
    %v1697 = vld [vmem:[%s17] sm:$0xff]
    %v1698 = vld [vmem:[%s17 + $0x8] sm:$0xff]
    %1701 = vrot.lane.b32.xlu0 %v1693, 9
    %v1702 = vpop.permute.xlu0 %1701
    %1703 = vrot.lane.b32.xlu0 %v1694, 9
    %v1704 = vpop.permute.xlu0 %1703
    %v1707 = vsel %vm1540, 0.0, %v1702
    %v1708 = vsel %vm1540, 0.0, %v1704
    %v1709 = vsel %vm1540, %v1702, 0.0
    %v1710 = vsel %vm1540, %v1704, 0.0
    %v1711 = vmul.f32 %v1707, %v238
    %v1712 = vmul.f32 %v1708, %v238
    %v1713 = vmul.f32 %v1707, %v1546
    %v1714 = vmul.f32 %v1709, %v1546
    %v1715 = vmul.f32 %v1708, %v1546
    %v1716 = vmul.f32 %v1710, %v1546
    %v1717 = vmul.f32 %v1707, %v1552
    %v1718 = vmul.f32 %v1709, %v1552
    %v1719 = vmul.f32 %v1708, %v1552
    %v1720 = vmul.f32 %v1710, %v1552
    %v1721 = vmul.f32 %v1707, %v1558
    %v1722 = vmul.f32 %v1709, %v1558
    %v1723 = vmul.f32 %v1708, %v1558
    %v1724 = vmul.f32 %v1710, %v1558
    %v1725 = vmul.f32 %v1707, %v1564
    %v1726 = vmul.f32 %v1709, %v1564
    %v1727 = vmul.f32 %v1708, %v1564
    %v1728 = vmul.f32 %v1710, %v1564
    %v1729 = vmul.f32 %v1707, %v1570
    %v1730 = vmul.f32 %v1709, %v1570
    %v1731 = vmul.f32 %v1708, %v1570
    %v1732 = vmul.f32 %v1710, %v1570
    %v1733 = vmul.f32 %v1707, %v1576
    %v1734 = vmul.f32 %v1709, %v1576
    %v1735 = vmul.f32 %v1708, %v1576
    %v1736 = vmul.f32 %v1710, %v1576
    %v1737 = vmul.f32 %v1707, %v1582
    %v1738 = vmul.f32 %v1709, %v1582
    %v1739 = vmul.f32 %v1708, %v1582
    %v1740 = vmul.f32 %v1710, %v1582
    %1745 = vrot.lane.b32.xlu0 %v1713, 127
    %v1746 = vpop.permute.xlu0 %1745
    %1747 = vrot.lane.b32.xlu0 %v1714, 127
    %v1748 = vpop.permute.xlu0 %1747
    %1749 = vrot.lane.b32.xlu0 %v1715, 127
    %v1750 = vpop.permute.xlu0 %1749
    %1751 = vrot.lane.b32.xlu0 %v1716, 127
    %v1752 = vpop.permute.xlu0 %1751
    %v1753 = vsel %vm497, %v1746, %v1748
    %v1754 = vsel %vm497, %v1750, %v1752
    %1761 = vrot.lane.b32.xlu0 %v1717, 126
    %v1762 = vpop.permute.xlu0 %1761
    %1763 = vrot.lane.b32.xlu0 %v1718, 126
    %v1764 = vpop.permute.xlu0 %1763
    %1765 = vrot.lane.b32.xlu0 %v1719, 126
    %v1766 = vpop.permute.xlu0 %1765
    %1767 = vrot.lane.b32.xlu0 %v1720, 126
    %v1768 = vpop.permute.xlu0 %1767
    %v1769 = vsel %vm526, %v1762, %v1764
    %v1770 = vsel %vm526, %v1766, %v1768
    %1777 = vrot.lane.b32.xlu0 %v1721, 120
    %v1778 = vpop.permute.xlu0 %1777
    %1779 = vrot.lane.b32.xlu0 %v1722, 120
    %v1780 = vpop.permute.xlu0 %1779
    %1781 = vrot.lane.b32.xlu0 %v1723, 120
    %v1782 = vpop.permute.xlu0 %1781
    %1783 = vrot.lane.b32.xlu0 %v1724, 120
    %v1784 = vpop.permute.xlu0 %1783
    %v1785 = vsel %vm1608, %v1778, %v1780
    %v1786 = vsel %vm1608, %v1782, %v1784
    %1793 = vrot.lane.b32.xlu0 %v1707, 119
    %v1794 = vpop.permute.xlu0 %1793
    %1795 = vrot.lane.b32.xlu0 %v1709, 119
    %v1796 = vpop.permute.xlu0 %1795
    %1797 = vrot.lane.b32.xlu0 %v1708, 119
    %v1798 = vpop.permute.xlu0 %1797
    %1799 = vrot.lane.b32.xlu0 %v1710, 119
    %v1800 = vpop.permute.xlu0 %1799
    %v1801 = vsel %vm1617, %v1794, %v1796
    %v1802 = vsel %vm1617, %v1798, %v1800
    %1809 = vrot.lane.b32.xlu0 %v1725, 118
    %v1810 = vpop.permute.xlu0 %1809
    %1811 = vrot.lane.b32.xlu0 %v1726, 118
    %v1812 = vpop.permute.xlu0 %1811
    %1813 = vrot.lane.b32.xlu0 %v1727, 118
    %v1814 = vpop.permute.xlu0 %1813
    %1815 = vrot.lane.b32.xlu0 %v1728, 118
    %v1816 = vpop.permute.xlu0 %1815
    %v1817 = vsel %vm1626, %v1810, %v1812
    %v1818 = vsel %vm1626, %v1814, %v1816
    %1825 = vrot.lane.b32.xlu0 %v1729, 112
    %v1826 = vpop.permute.xlu0 %1825
    %1827 = vrot.lane.b32.xlu0 %v1730, 112
    %v1828 = vpop.permute.xlu0 %1827
    %1829 = vrot.lane.b32.xlu0 %v1731, 112
    %v1830 = vpop.permute.xlu0 %1829
    %1831 = vrot.lane.b32.xlu0 %v1732, 112
    %v1832 = vpop.permute.xlu0 %1831
    %v1833 = vsel %vm555, %v1826, %v1828
    %v1834 = vsel %vm555, %v1830, %v1832
    %1841 = vrot.lane.b32.xlu0 %v1733, 111
    %v1842 = vpop.permute.xlu0 %1841
    %1843 = vrot.lane.b32.xlu0 %v1734, 111
    %v1844 = vpop.permute.xlu0 %1843
    %1845 = vrot.lane.b32.xlu0 %v1735, 111
    %v1846 = vpop.permute.xlu0 %1845
    %1847 = vrot.lane.b32.xlu0 %v1736, 111
    %v1848 = vpop.permute.xlu0 %1847
    %v1849 = vsel %vm581, %v1842, %v1844
    %v1850 = vsel %vm581, %v1846, %v1848
    %1857 = vrot.lane.b32.xlu0 %v1737, 110
    %v1858 = vpop.permute.xlu0 %1857
    %1859 = vrot.lane.b32.xlu0 %v1738, 110
    %v1860 = vpop.permute.xlu0 %1859
    %1861 = vrot.lane.b32.xlu0 %v1739, 110
    %v1862 = vpop.permute.xlu0 %1861
    %1863 = vrot.lane.b32.xlu0 %v1740, 110
    %v1864 = vpop.permute.xlu0 %1863
    %v1865 = vsel %vm610, %v1858, %v1860
    %v1866 = vsel %vm610, %v1862, %v1864
    %v1869 = vpack.c.bf16 %v1712, %v1711
    %v1870 = vpack.c.bf16 %v1754, %v1753
    %v1871 = vpack.c.bf16 %v1770, %v1769
    %v1872 = vpack.c.bf16 %v1786, %v1785
    %v1873 = vpack.c.bf16 %v1802, %v1801
    %v1874 = vpack.c.bf16 %v1818, %v1817
    %v1875 = vpack.c.bf16 %v1834, %v1833
    %v1876 = vpack.c.bf16 %v1850, %v1849
    %v1877 = vpack.c.bf16 %v1866, %v1865
    %1879 = vset.pattern.permute.xlu0 0
    %1880 = vperm.xlu0 %1879, %v1697
    %v1881 = vpop.permute.xlu0 %1880
    %1884 = vset.pattern.permute.xlu0 0
    %1885 = vperm.xlu0 %1884, %v1698
    %v1886 = vpop.permute.xlu0 %1885
    %v1890 = vunpack.c.l.b16 %v1695
    %v1891 = vunpack.c.h.b16 %v1695
    %v1892 = vunpack.c.l.b16 %v1696
    %v1893 = vunpack.c.h.b16 %v1696
    %v1894 = vpack.c.b16 %v1892, %v1890
    %v1895 = vpack.c.b16 %v1893, %v1891
    %v1898 = vsel %vm359, %v1895, 0
    %1900 = vmatpush.bf16.msra.mxu0 %v1876
    %1901 = vmatpush.bf16.msra.mxu0 %v1875
    %1902 = vmatpush.bf16.msra.mxu0 %v1874
    %1903 = vmatpush.bf16.msra.mxu0 %v1873
    %1904 = vmatpush.bf16.msra.mxu0 %v1872
    %1905 = vmatpush.bf16.msra.mxu0 %v1871
    %1906 = vmatpush.bf16.msra.mxu0 %v1870
    %1907 = vmatpush.bf16.msra.mxu0 %v1869
    %1908 = vmatmul.bf16.gmra.mxu0 %v1894
    %v1909 = vpop.f32.mrf.mxu0
    %v1910 = vadd.f32 %v1881, %v1909
    %v1911 = vpop.f32.mrf.mxu0
    %v1912 = vadd.f32 %v1886, %v1911
    %1913 = vdwg.mxu0
    %1914 = vmatpush.bf16.msra.mxu0 0
    %1915 = vmatpush.bf16.msra.mxu0 0
    %1916 = vmatpush.bf16.msra.mxu0 0
    %1917 = vmatpush.bf16.msra.mxu0 0
    %1918 = vmatpush.bf16.msra.mxu0 0
    %1919 = vmatpush.bf16.msra.mxu0 0
    %1920 = vmatpush.bf16.msra.mxu0 0
    %1921 = vmatpush.bf16.msra.mxu0 %v1877
    %1922 = vmatmul.bf16.gmra.mxu0 %v1898
    %v1923 = vpop.f32.mrf.mxu0
    %v1924 = vadd.f32 %v1910, %v1923
    %v1925 = vpop.f32.mrf.mxu0
    %v1926 = vadd.f32 %v1912, %v1925
    %1927 = vdwg.mxu0
    %v1928 = vmax.f32 %v1924, 0.0
    %v1929 = vmax.f32 %v1926, 0.0
    %v1930 = vld [vmem:[%s57] sm:$0xf]
    %v1931 = vld [vmem:[%s57 + $0x4] sm:$0xf]
    %v1932 = vld [vmem:[%s57 + $0x8] sm:$0xf]
    %v1933 = vld [vmem:[%s57 + $0xc] sm:$0xf]
    %v1934 = vld [vmem:[%s57 + $0x10] sm:$0xf]
    %v1935 = vld [vmem:[%s57 + $0x14] sm:$0xf]
    %v1936 = vld [vmem:[%s57 + $0x18] sm:$0xf]
    %v1937 = vld [vmem:[%s57 + $0x1c] sm:$0xf]
    %v1938 = vld [vmem:[%s57 + $0x20] sm:$0xf]
    %v1939 = vld [vmem:[%s57 + $0x24] sm:$0xf]
    %v1940 = vld [vmem:[%s57 + $0x28] sm:$0xf]
    %v1941 = vld [vmem:[%s57 + $0x2c] sm:$0xf]
    %v1942 = vld [vmem:[%s57 + $0x30] sm:$0xf]
    %v1943 = vld [vmem:[%s57 + $0x34] sm:$0xf]
    %v1944 = vld [vmem:[%s57 + $0x38] sm:$0xf]
    %v1945 = vld [vmem:[%s57 + $0x3c] sm:$0xf]
    %1948 = vrot.lane.b32.xlu0 %v1928, 127
    %v1949 = vpop.permute.xlu0 %1948
    %1950 = vrot.lane.b32.xlu0 %v1929, 127
    %v1951 = vpop.permute.xlu0 %1950
    %v1952 = vsel %vm497, %v1949, %v1242
    %v1953 = vsel %vm497, %v1951, %v1242
    %v1956 = vmax.f32 %v1928, %v1952
    %v1957 = vmax.f32 %v1929, %v1953
    %1960 = vrot.lane.b32.xlu0 %v1956, 120
    %v1961 = vpop.permute.xlu0 %1960
    %1962 = vrot.lane.b32.xlu0 %v1256, 120
    %v1963 = vpop.permute.xlu0 %1962
    %1964 = vrot.lane.b32.xlu0 %v1957, 120
    %v1965 = vpop.permute.xlu0 %1964
    %v1966 = vsel %vm1608, %v1961, %v1963
    %v1967 = vsel %vm1608, %v1965, %v1963
    %v1970 = vmax.f32 %v1956, %v1966
    %v1971 = vmax.f32 %v1957, %v1967
    %v1972 = vpack.c.bf16 %v1971, %v1970
    %v1989 = vunpack.c.l.b16 %v1930
    %v1990 = vunpack.c.l.b16 %v1931
    %v1991 = vunpack.c.l.b16 %v1932
    %v1992 = vunpack.c.l.b16 %v1933
    %v1993 = vunpack.c.l.b16 %v1934
    %v1994 = vunpack.c.l.b16 %v1935
    %v1995 = vunpack.c.l.b16 %v1936
    %v1996 = vunpack.c.l.b16 %v1937
    %v1997 = vunpack.c.l.b16 %v1938
    %v1998 = vunpack.c.l.b16 %v1939
    %v1999 = vunpack.c.l.b16 %v1940
    %v2000 = vunpack.c.l.b16 %v1941
    %v2001 = vunpack.c.l.b16 %v1942
    %v2002 = vunpack.c.l.b16 %v1943
    %v2003 = vunpack.c.l.b16 %v1944
    %v2004 = vunpack.c.l.b16 %v1945
    %v2005 = vpack.c.b16 %v1990, %v1989
    %v2006 = vpack.c.b16 %v1992, %v1991
    %v2007 = vpack.c.b16 %v1994, %v1993
    %v2008 = vpack.c.b16 %v1996, %v1995
    %v2009 = vpack.c.b16 %v1998, %v1997
    %v2010 = vpack.c.b16 %v2000, %v1999
    %v2011 = vpack.c.b16 %v2002, %v2001
    %v2012 = vpack.c.b16 %v2004, %v2003
    %2021 = vmatpush.bf16.msra.mxu0 %v2012
    %2022 = vmatpush.bf16.msra.mxu0 %v2011
    %2023 = vmatpush.bf16.msra.mxu0 %v2010
    %2024 = vmatpush.bf16.msra.mxu0 %v2009
    %2025 = vmatpush.bf16.msra.mxu0 %v2008
    %2026 = vmatpush.bf16.msra.mxu0 %v2007
    %2027 = vmatpush.bf16.msra.mxu0 %v2006
    %2028 = vmatpush.bf16.msra.mxu0 %v2005
    %2029 = vmatmul.bf16.gmra.mxu0 %v1972
    %v2030 = vpop.f32.mrf.mxu0
    %v2031 = vadd.f32 0.0, %v2030
    %v2032 = vpop.f32.mrf.mxu0
    %v2033 = vadd.f32 0.0, %v2032
    %2034 = vdwg.mxu0
    %v2035 = vld [vmem:[%s19] sm:$0xff]
    %v2036 = vld [vmem:[%s19 + $0x8] sm:$0xff]
    %v2037 = vld [vmem:[%s19 + $0x10] sm:$0xff]
    %v2038 = vld [vmem:[%s19 + $0x18] sm:$0xff]
    %v2039 = vld [vmem:[%s21] sm:$0xff]
    %v2040 = vld [vmem:[%s21 + $0x8] sm:$0xff]
    %v2041 = vld [vmem:[%s21 + $0x10] sm:$0xff]
    %v2042 = vld [vmem:[%s21 + $0x18] sm:$0xff]
    %2045 = vrot.lane.b32.xlu0 %v2031, 5
    %v2046 = vpop.permute.xlu0 %2045
    %2047 = vrot.lane.b32.xlu0 %v2033, 5
    %v2048 = vpop.permute.xlu0 %2047
    %vm2051 = vcmask 39936
    %v2052 = vsel %vm2051, 0.0, %v2046
    %v2053 = vsel %vm2051, 0.0, %v2048
    %vm2054 = vcmask 302080
    %v2055 = vsel %vm2054, %v2052, 0.0
    %v2056 = vsel %vm2054, %v2053, 0.0
    %v2057 = vmul.f32 %v2055, %v255
    %v2058 = vmul.f32 %v2056, %v255
    %2060 = vrot.lane.b32.xlu0 %v245, 1
    %v2061 = vpop.permute.xlu0 %2060
    %v2063 = vmul.f32 %v2055, %v2061
    %v2064 = vmul.f32 %v2056, %v2061
    %2066 = vrot.lane.b32.xlu0 %v256, 2
    %v2067 = vpop.permute.xlu0 %2066
    %v2069 = vmul.f32 %v2055, %v2067
    %v2070 = vmul.f32 %v2056, %v2067
    %2072 = vrot.lane.b32.xlu0 %v251, 4
    %v2073 = vpop.permute.xlu0 %2072
    %v2075 = vmul.f32 %v2055, %v2073
    %v2076 = vmul.f32 %v2056, %v2073
    %2078 = vrot.lane.b32.xlu0 %v254, 6
    %v2079 = vpop.permute.xlu0 %2078
    %v2081 = vmul.f32 %v2055, %v2079
    %v2082 = vmul.f32 %v2056, %v2079
    %2084 = vrot.lane.b32.xlu0 %v257, 8
    %v2085 = vpop.permute.xlu0 %2084
    %v2087 = vmul.f32 %v2055, %v2085
    %v2088 = vmul.f32 %v2056, %v2085
    %2090 = vrot.lane.b32.xlu0 %v248, 9
    %v2091 = vpop.permute.xlu0 %2090
    %v2093 = vmul.f32 %v2055, %v2091
    %v2094 = vmul.f32 %v2056, %v2091
    %2096 = vrot.lane.b32.xlu0 %v258, 10
    %v2097 = vpop.permute.xlu0 %2096
    %v2099 = vmul.f32 %v2055, %v2097
    %v2100 = vmul.f32 %v2056, %v2097
    %2103 = vrot.lane.b32.xlu0 %v2063, 127
    %v2104 = vpop.permute.xlu0 %2103
    %2105 = vrot.lane.b32.xlu0 %v2064, 127
    %v2106 = vpop.permute.xlu0 %2105
    %2111 = vrot.lane.b32.xlu0 %v2069, 126
    %v2112 = vpop.permute.xlu0 %2111
    %2113 = vrot.lane.b32.xlu0 %v2070, 126
    %v2114 = vpop.permute.xlu0 %2113
    %2119 = vrot.lane.b32.xlu0 %v2075, 124
    %v2120 = vpop.permute.xlu0 %2119
    %2121 = vrot.lane.b32.xlu0 %v2076, 124
    %v2122 = vpop.permute.xlu0 %2121
    %2127 = vrot.lane.b32.xlu0 %v2055, 123
    %v2128 = vpop.permute.xlu0 %2127
    %2129 = vrot.lane.b32.xlu0 %v2056, 123
    %v2130 = vpop.permute.xlu0 %2129
    %2135 = vrot.lane.b32.xlu0 %v2081, 122
    %v2136 = vpop.permute.xlu0 %2135
    %2137 = vrot.lane.b32.xlu0 %v2082, 122
    %v2138 = vpop.permute.xlu0 %2137
    %2143 = vrot.lane.b32.xlu0 %v2087, 120
    %v2144 = vpop.permute.xlu0 %2143
    %2145 = vrot.lane.b32.xlu0 %v2088, 120
    %v2146 = vpop.permute.xlu0 %2145
    %2151 = vrot.lane.b32.xlu0 %v2093, 119
    %v2152 = vpop.permute.xlu0 %2151
    %2153 = vrot.lane.b32.xlu0 %v2094, 119
    %v2154 = vpop.permute.xlu0 %2153
    %2159 = vrot.lane.b32.xlu0 %v2099, 118
    %v2160 = vpop.permute.xlu0 %2159
    %2161 = vrot.lane.b32.xlu0 %v2100, 118
    %v2162 = vpop.permute.xlu0 %2161
    %v2165 = vpack.c.bf16 %v2058, %v2057
    %v2166 = vpack.c.bf16 %v2106, %v2104
    %v2167 = vpack.c.bf16 %v2114, %v2112
    %v2168 = vpack.c.bf16 %v2122, %v2120
    %v2169 = vpack.c.bf16 %v2130, %v2128
    %v2170 = vpack.c.bf16 %v2138, %v2136
    %v2171 = vpack.c.bf16 %v2146, %v2144
    %v2172 = vpack.c.bf16 %v2154, %v2152
    %v2173 = vpack.c.bf16 %v2162, %v2160
    %2175 = vset.pattern.permute.xlu0 0
    %2176 = vperm.xlu0 %2175, %v2039
    %v2177 = vpop.permute.xlu0 %2176
    %2180 = vset.pattern.permute.xlu0 0
    %2181 = vperm.xlu0 %2180, %v2040
    %v2182 = vpop.permute.xlu0 %2181
    %2185 = vset.pattern.permute.xlu0 0
    %2186 = vperm.xlu0 %2185, %v2041
    %v2187 = vpop.permute.xlu0 %2186
    %2190 = vset.pattern.permute.xlu0 0
    %2191 = vperm.xlu0 %2190, %v2042
    %v2192 = vpop.permute.xlu0 %2191
    %v2198 = vunpack.c.l.b16 %v2035
    %v2199 = vunpack.c.h.b16 %v2035
    %v2200 = vunpack.c.l.b16 %v2036
    %v2201 = vunpack.c.h.b16 %v2036
    %v2202 = vunpack.c.l.b16 %v2037
    %v2203 = vunpack.c.h.b16 %v2037
    %v2204 = vunpack.c.l.b16 %v2038
    %v2205 = vunpack.c.h.b16 %v2038
    %v2206 = vpack.c.b16 %v2200, %v2198
    %v2207 = vpack.c.b16 %v2201, %v2199
    %v2208 = vpack.c.b16 %v2204, %v2202
    %v2209 = vpack.c.b16 %v2205, %v2203
    %v2213 = vsel %vm359, %v2207, 0
    %v2216 = vsel %vm359, %v2209, 0
    %2218 = vmatpush.bf16.msra.mxu0 %v2172
    %2219 = vmatpush.bf16.msra.mxu0 %v2171
    %2220 = vmatpush.bf16.msra.mxu0 %v2170
    %2221 = vmatpush.bf16.msra.mxu0 %v2169
    %2222 = vmatpush.bf16.msra.mxu0 %v2168
    %2223 = vmatpush.bf16.msra.mxu0 %v2167
    %2224 = vmatpush.bf16.msra.mxu0 %v2166
    %2225 = vmatpush.bf16.msra.mxu0 %v2165
    %2226 = vmatmul.bf16.gmra.mxu0 %v2206
    %v2227 = vpop.f32.mrf.mxu0
    %v2228 = vadd.f32 %v2177, %v2227
    %v2229 = vpop.f32.mrf.mxu0
    %v2230 = vadd.f32 %v2182, %v2229
    %2231 = vmatmul.bf16.gmra.mxu0 %v2208
    %v2232 = vpop.f32.mrf.mxu0
    %v2233 = vadd.f32 %v2187, %v2232
    %v2234 = vpop.f32.mrf.mxu0
    %v2235 = vadd.f32 %v2192, %v2234
    %2236 = vdwg.mxu0
    %2237 = vmatpush.bf16.msra.mxu0 0
    %2238 = vmatpush.bf16.msra.mxu0 0
    %2239 = vmatpush.bf16.msra.mxu0 0
    %2240 = vmatpush.bf16.msra.mxu0 0
    %2241 = vmatpush.bf16.msra.mxu0 0
    %2242 = vmatpush.bf16.msra.mxu0 0
    %2243 = vmatpush.bf16.msra.mxu0 0
    %2244 = vmatpush.bf16.msra.mxu0 %v2173
    %2245 = vmatmul.bf16.gmra.mxu0 %v2213
    %v2246 = vpop.f32.mrf.mxu0
    %v2247 = vadd.f32 %v2228, %v2246
    %v2248 = vpop.f32.mrf.mxu0
    %v2249 = vadd.f32 %v2230, %v2248
    %2250 = vmatmul.bf16.gmra.mxu0 %v2216
    %v2251 = vpop.f32.mrf.mxu0
    %v2252 = vadd.f32 %v2233, %v2251
    %v2253 = vpop.f32.mrf.mxu0
    %v2254 = vadd.f32 %v2235, %v2253
    %2255 = vdwg.mxu0
    %v2256 = vmax.f32 %v2247, 0.0
    %v2257 = vmax.f32 %v2249, 0.0
    %v2258 = vmax.f32 %v2252, 0.0
    %v2259 = vmax.f32 %v2254, 0.0
    %v2260 = vld [vmem:[%s23] sm:$0xff]
    %v2261 = vld [vmem:[%s23 + $0x8] sm:$0xf]
    %v2262 = vld [vmem:[%s23 + $0xc] sm:$0xff]
    %v2263 = vld [vmem:[%s23 + $0x14] sm:$0xf]
    %v2264 = vld [vmem:[%s23 + $0x18] sm:$0xff]
    %v2265 = vld [vmem:[%s23 + $0x20] sm:$0xf]
    %v2266 = vld [vmem:[%s23 + $0x24] sm:$0xff]
    %v2267 = vld [vmem:[%s23 + $0x2c] sm:$0xf]
    %v2268 = vld [vmem:[%s25] sm:$0xff]
    %v2269 = vld [vmem:[%s25 + $0x8] sm:$0xff]
    %v2270 = vld [vmem:[%s25 + $0x10] sm:$0xff]
    %v2271 = vld [vmem:[%s25 + $0x18] sm:$0xff]
    %2276 = vrot.lane.b32.xlu0 %v2256, 5
    %v2277 = vpop.permute.xlu0 %2276
    %2278 = vrot.lane.b32.xlu0 %v2257, 5
    %v2279 = vpop.permute.xlu0 %2278
    %2280 = vrot.lane.b32.xlu0 %v2258, 5
    %v2281 = vpop.permute.xlu0 %2280
    %2282 = vrot.lane.b32.xlu0 %v2259, 5
    %v2283 = vpop.permute.xlu0 %2282
    %v2288 = vsel %vm2051, 0.0, %v2277
    %v2289 = vsel %vm2051, 0.0, %v2279
    %v2290 = vsel %vm2051, 0.0, %v2281
    %v2291 = vsel %vm2051, 0.0, %v2283
    %v2292 = vsel %vm2054, %v2288, 0.0
    %v2293 = vsel %vm2054, %v2289, 0.0
    %v2294 = vsel %vm2054, %v2290, 0.0
    %v2295 = vsel %vm2054, %v2291, 0.0
    %v2296 = vmul.f32 %v2292, %v255
    %v2297 = vmul.f32 %v2293, %v255
    %v2298 = vmul.f32 %v2294, %v255
    %v2299 = vmul.f32 %v2295, %v255
    %v2300 = vmul.f32 %v2292, %v2061
    %v2301 = vmul.f32 %v2293, %v2061
    %v2302 = vmul.f32 %v2294, %v2061
    %v2303 = vmul.f32 %v2295, %v2061
    %v2304 = vmul.f32 %v2292, %v2067
    %v2305 = vmul.f32 %v2293, %v2067
    %v2306 = vmul.f32 %v2294, %v2067
    %v2307 = vmul.f32 %v2295, %v2067
    %v2308 = vmul.f32 %v2292, %v2073
    %v2309 = vmul.f32 %v2293, %v2073
    %v2310 = vmul.f32 %v2294, %v2073
    %v2311 = vmul.f32 %v2295, %v2073
    %v2312 = vmul.f32 %v2292, %v2079
    %v2313 = vmul.f32 %v2293, %v2079
    %v2314 = vmul.f32 %v2294, %v2079
    %v2315 = vmul.f32 %v2295, %v2079
    %v2316 = vmul.f32 %v2292, %v2085
    %v2317 = vmul.f32 %v2293, %v2085
    %v2318 = vmul.f32 %v2294, %v2085
    %v2319 = vmul.f32 %v2295, %v2085
    %v2320 = vmul.f32 %v2292, %v2091
    %v2321 = vmul.f32 %v2293, %v2091
    %v2322 = vmul.f32 %v2294, %v2091
    %v2323 = vmul.f32 %v2295, %v2091
    %v2324 = vmul.f32 %v2292, %v2097
    %v2325 = vmul.f32 %v2293, %v2097
    %v2326 = vmul.f32 %v2294, %v2097
    %v2327 = vmul.f32 %v2295, %v2097
    %2332 = vrot.lane.b32.xlu0 %v2300, 127
    %v2333 = vpop.permute.xlu0 %2332
    %2334 = vrot.lane.b32.xlu0 %v2301, 127
    %v2335 = vpop.permute.xlu0 %2334
    %2336 = vrot.lane.b32.xlu0 %v2302, 127
    %v2337 = vpop.permute.xlu0 %2336
    %2338 = vrot.lane.b32.xlu0 %v2303, 127
    %v2339 = vpop.permute.xlu0 %2338
    %2348 = vrot.lane.b32.xlu0 %v2304, 126
    %v2349 = vpop.permute.xlu0 %2348
    %2350 = vrot.lane.b32.xlu0 %v2305, 126
    %v2351 = vpop.permute.xlu0 %2350
    %2352 = vrot.lane.b32.xlu0 %v2306, 126
    %v2353 = vpop.permute.xlu0 %2352
    %2354 = vrot.lane.b32.xlu0 %v2307, 126
    %v2355 = vpop.permute.xlu0 %2354
    %2364 = vrot.lane.b32.xlu0 %v2308, 124
    %v2365 = vpop.permute.xlu0 %2364
    %2366 = vrot.lane.b32.xlu0 %v2309, 124
    %v2367 = vpop.permute.xlu0 %2366
    %2368 = vrot.lane.b32.xlu0 %v2310, 124
    %v2369 = vpop.permute.xlu0 %2368
    %2370 = vrot.lane.b32.xlu0 %v2311, 124
    %v2371 = vpop.permute.xlu0 %2370
    %2380 = vrot.lane.b32.xlu0 %v2292, 123
    %v2381 = vpop.permute.xlu0 %2380
    %2382 = vrot.lane.b32.xlu0 %v2293, 123
    %v2383 = vpop.permute.xlu0 %2382
    %2384 = vrot.lane.b32.xlu0 %v2294, 123
    %v2385 = vpop.permute.xlu0 %2384
    %2386 = vrot.lane.b32.xlu0 %v2295, 123
    %v2387 = vpop.permute.xlu0 %2386
    %2396 = vrot.lane.b32.xlu0 %v2312, 122
    %v2397 = vpop.permute.xlu0 %2396
    %2398 = vrot.lane.b32.xlu0 %v2313, 122
    %v2399 = vpop.permute.xlu0 %2398
    %2400 = vrot.lane.b32.xlu0 %v2314, 122
    %v2401 = vpop.permute.xlu0 %2400
    %2402 = vrot.lane.b32.xlu0 %v2315, 122
    %v2403 = vpop.permute.xlu0 %2402
    %2412 = vrot.lane.b32.xlu0 %v2316, 120
    %v2413 = vpop.permute.xlu0 %2412
    %2414 = vrot.lane.b32.xlu0 %v2317, 120
    %v2415 = vpop.permute.xlu0 %2414
    %2416 = vrot.lane.b32.xlu0 %v2318, 120
    %v2417 = vpop.permute.xlu0 %2416
    %2418 = vrot.lane.b32.xlu0 %v2319, 120
    %v2419 = vpop.permute.xlu0 %2418
    %2428 = vrot.lane.b32.xlu0 %v2320, 119
    %v2429 = vpop.permute.xlu0 %2428
    %2430 = vrot.lane.b32.xlu0 %v2321, 119
    %v2431 = vpop.permute.xlu0 %2430
    %2432 = vrot.lane.b32.xlu0 %v2322, 119
    %v2433 = vpop.permute.xlu0 %2432
    %2434 = vrot.lane.b32.xlu0 %v2323, 119
    %v2435 = vpop.permute.xlu0 %2434
    %2444 = vrot.lane.b32.xlu0 %v2324, 118
    %v2445 = vpop.permute.xlu0 %2444
    %2446 = vrot.lane.b32.xlu0 %v2325, 118
    %v2447 = vpop.permute.xlu0 %2446
    %2448 = vrot.lane.b32.xlu0 %v2326, 118
    %v2449 = vpop.permute.xlu0 %2448
    %2450 = vrot.lane.b32.xlu0 %v2327, 118
    %v2451 = vpop.permute.xlu0 %2450
    %v2456 = vpack.c.bf16 %v2297, %v2296
    %v2457 = vpack.c.bf16 %v2299, %v2298
    %v2458 = vpack.c.bf16 %v2335, %v2333
    %v2459 = vpack.c.bf16 %v2339, %v2337
    %v2460 = vpack.c.bf16 %v2351, %v2349
    %v2461 = vpack.c.bf16 %v2355, %v2353
    %v2462 = vpack.c.bf16 %v2367, %v2365
    %v2463 = vpack.c.bf16 %v2371, %v2369
    %v2464 = vpack.c.bf16 %v2383, %v2381
    %v2465 = vpack.c.bf16 %v2387, %v2385
    %v2466 = vpack.c.bf16 %v2399, %v2397
    %v2467 = vpack.c.bf16 %v2403, %v2401
    %v2468 = vpack.c.bf16 %v2415, %v2413
    %v2469 = vpack.c.bf16 %v2419, %v2417
    %v2470 = vpack.c.bf16 %v2431, %v2429
    %v2471 = vpack.c.bf16 %v2435, %v2433
    %v2472 = vpack.c.bf16 %v2447, %v2445
    %v2473 = vpack.c.bf16 %v2451, %v2449
    %2475 = vset.pattern.permute.xlu0 0
    %2476 = vperm.xlu0 %2475, %v2268
    %v2477 = vpop.permute.xlu0 %2476
    %2480 = vset.pattern.permute.xlu0 0
    %2481 = vperm.xlu0 %2480, %v2269
    %v2482 = vpop.permute.xlu0 %2481
    %2485 = vset.pattern.permute.xlu0 0
    %2486 = vperm.xlu0 %2485, %v2270
    %v2487 = vpop.permute.xlu0 %2486
    %2490 = vset.pattern.permute.xlu0 0
    %2491 = vperm.xlu0 %2490, %v2271
    %v2492 = vpop.permute.xlu0 %2491
    %v2502 = vunpack.c.l.b16 %v2260
    %v2503 = vunpack.c.h.b16 %v2260
    %v2504 = vunpack.c.l.b16 %v2261
    %v2505 = vunpack.c.l.b16 %v2262
    %v2506 = vunpack.c.h.b16 %v2262
    %v2507 = vunpack.c.l.b16 %v2263
    %v2508 = vunpack.c.l.b16 %v2264
    %v2509 = vunpack.c.h.b16 %v2264
    %v2510 = vunpack.c.l.b16 %v2265
    %v2511 = vunpack.c.l.b16 %v2266
    %v2512 = vunpack.c.h.b16 %v2266
    %v2513 = vunpack.c.l.b16 %v2267
    %v2514 = vpack.c.b16 %v2505, %v2502
    %v2515 = vpack.c.b16 %v2506, %v2503
    %v2516 = vpack.c.b16 %v2507, %v2504
    %v2517 = vpack.c.b16 %v2511, %v2508
    %v2518 = vpack.c.b16 %v2512, %v2509
    %v2519 = vpack.c.b16 %v2513, %v2510
    %v2525 = vsel %vm411, %v2516, 0
    %v2528 = vsel %vm411, %v2519, 0
    %2530 = vmatpush.bf16.msra.mxu0 %v2463
    %2531 = vmatpush.bf16.msra.mxu0 %v2462
    %2532 = vmatpush.bf16.msra.mxu0 %v2461
    %2533 = vmatpush.bf16.msra.mxu0 %v2460
    %2534 = vmatpush.bf16.msra.mxu0 %v2459
    %2535 = vmatpush.bf16.msra.mxu0 %v2458
    %2536 = vmatpush.bf16.msra.mxu0 %v2457
    %2537 = vmatpush.bf16.msra.mxu0 %v2456
    %2538 = vmatmul.bf16.gmra.mxu0 %v2514
    %v2539 = vpop.f32.mrf.mxu0
    %v2540 = vadd.f32 %v2477, %v2539
    %v2541 = vpop.f32.mrf.mxu0
    %v2542 = vadd.f32 %v2482, %v2541
    %2543 = vmatmul.bf16.gmra.mxu0 %v2517
    %v2544 = vpop.f32.mrf.mxu0
    %v2545 = vadd.f32 %v2487, %v2544
    %v2546 = vpop.f32.mrf.mxu0
    %v2547 = vadd.f32 %v2492, %v2546
    %2548 = vdwg.mxu0
    %2549 = vmatpush.bf16.msra.mxu0 %v2471
    %2550 = vmatpush.bf16.msra.mxu0 %v2470
    %2551 = vmatpush.bf16.msra.mxu0 %v2469
    %2552 = vmatpush.bf16.msra.mxu0 %v2468
    %2553 = vmatpush.bf16.msra.mxu0 %v2467
    %2554 = vmatpush.bf16.msra.mxu0 %v2466
    %2555 = vmatpush.bf16.msra.mxu0 %v2465
    %2556 = vmatpush.bf16.msra.mxu0 %v2464
    %2557 = vmatmul.bf16.gmra.mxu0 %v2515
    %v2558 = vpop.f32.mrf.mxu0
    %v2559 = vadd.f32 %v2540, %v2558
    %v2560 = vpop.f32.mrf.mxu0
    %v2561 = vadd.f32 %v2542, %v2560
    %2562 = vmatmul.bf16.gmra.mxu0 %v2518
    %v2563 = vpop.f32.mrf.mxu0
    %v2564 = vadd.f32 %v2545, %v2563
    %v2565 = vpop.f32.mrf.mxu0
    %v2566 = vadd.f32 %v2547, %v2565
    %2567 = vdwg.mxu0
    %2568 = vmatpush.bf16.msra.mxu0 0
    %2569 = vmatpush.bf16.msra.mxu0 0
    %2570 = vmatpush.bf16.msra.mxu0 0
    %2571 = vmatpush.bf16.msra.mxu0 0
    %2572 = vmatpush.bf16.msra.mxu0 0
    %2573 = vmatpush.bf16.msra.mxu0 0
    %2574 = vmatpush.bf16.msra.mxu0 %v2473
    %2575 = vmatpush.bf16.msra.mxu0 %v2472
    %2576 = vmatmul.bf16.gmra.mxu0 %v2525
    %v2577 = vpop.f32.mrf.mxu0
    %v2578 = vadd.f32 %v2559, %v2577
    %v2579 = vpop.f32.mrf.mxu0
    %v2580 = vadd.f32 %v2561, %v2579
    %2581 = vmatmul.bf16.gmra.mxu0 %v2528
    %v2582 = vpop.f32.mrf.mxu0
    %v2583 = vadd.f32 %v2564, %v2582
    %v2584 = vpop.f32.mrf.mxu0
    %v2585 = vadd.f32 %v2566, %v2584
    %2586 = vdwg.mxu0
    %v2587 = vmax.f32 %v2578, 0.0
    %v2588 = vmax.f32 %v2580, 0.0
    %v2589 = vmax.f32 %v2583, 0.0
    %v2590 = vmax.f32 %v2585, 0.0
    %v2591 = vld [vmem:[#allocation2] sm:$0xff]
    %v2592 = vld [vmem:[#allocation2 + $0x8] sm:$0xff]
    %v2593 = vld [vmem:[#allocation2 + $0x10] sm:$0xff]
    %v2594 = vld [vmem:[#allocation2 + $0x18] sm:$0xff]
    %v2595 = vld [vmem:[#allocation2 + $0x20] sm:$0xff]
    %v2596 = vld [vmem:[#allocation2 + $0x28] sm:$0xff]
    %v2597 = vld [vmem:[#allocation2 + $0x30] sm:$0xff]
    %v2598 = vld [vmem:[#allocation2 + $0x38] sm:$0xff]
    %v2599 = vld [vmem:[#allocation2 + $0x40] sm:$0xff]
    %v2600 = vld [vmem:[#allocation2 + $0x48] sm:$0xff]
    %v2601 = vld [vmem:[#allocation2 + $0x50] sm:$0xff]
    %v2602 = vld [vmem:[#allocation2 + $0x58] sm:$0xff]
    %v2603 = vld [vmem:[#allocation2 + $0x60] sm:$0xff]
    %v2604 = vld [vmem:[#allocation2 + $0x68] sm:$0xff]
    %v2605 = vld [vmem:[#allocation2 + $0x70] sm:$0xff]
    %v2606 = vld [vmem:[#allocation2 + $0x78] sm:$0xff]
    %v2607 = vld [vmem:[#allocation2 + $0x80] sm:$0xff]
    %v2608 = vld [vmem:[#allocation2 + $0x88] sm:$0xff]
    %v2609 = vld [vmem:[#allocation2 + $0x90] sm:$0xff]
    %v2610 = vld [vmem:[#allocation2 + $0x98] sm:$0xff]
    %v2611 = vld [vmem:[#allocation2 + $0xa0] sm:$0xff]
    %v2612 = vld [vmem:[#allocation2 + $0xa8] sm:$0xff]
    %v2613 = vld [vmem:[#allocation2 + $0xb0] sm:$0xff]
    %v2614 = vld [vmem:[#allocation2 + $0xb8] sm:$0xff]
    %v2615 = vld [vmem:[#allocation2 + $0xc0] sm:$0xff]
    %v2616 = vld [vmem:[#allocation2 + $0xc8] sm:$0xff]
    %v2617 = vld [vmem:[#allocation2 + $0xd0] sm:$0xff]
    %v2618 = vld [vmem:[#allocation2 + $0xd8] sm:$0xff]
    %v2619 = vld [vmem:[#allocation2 + $0xe0] sm:$0xff]
    %v2620 = vld [vmem:[#allocation2 + $0xe8] sm:$0xff]
    %v2621 = vld [vmem:[#allocation2 + $0xf0] sm:$0xff]
    %v2622 = vld [vmem:[#allocation2 + $0xf8] sm:$0xff]
    %v2623 = vpack.c.bf16 %v1929, %v1928
    %v2656 = vunpack.c.l.b16 %v2591
    %v2657 = vunpack.c.h.b16 %v2591
    %v2658 = vunpack.c.l.b16 %v2592
    %v2659 = vunpack.c.h.b16 %v2592
    %v2660 = vunpack.c.l.b16 %v2593
    %v2661 = vunpack.c.h.b16 %v2593
    %v2662 = vunpack.c.l.b16 %v2594
    %v2663 = vunpack.c.h.b16 %v2594
    %v2664 = vunpack.c.l.b16 %v2595
    %v2665 = vunpack.c.h.b16 %v2595
    %v2666 = vunpack.c.l.b16 %v2596
    %v2667 = vunpack.c.h.b16 %v2596
    %v2668 = vunpack.c.l.b16 %v2597
    %v2669 = vunpack.c.h.b16 %v2597
    %v2670 = vunpack.c.l.b16 %v2598
    %v2671 = vunpack.c.h.b16 %v2598
    %v2672 = vunpack.c.l.b16 %v2599
    %v2673 = vunpack.c.h.b16 %v2599
    %v2674 = vunpack.c.l.b16 %v2600
    %v2675 = vunpack.c.h.b16 %v2600
    %v2676 = vunpack.c.l.b16 %v2601
    %v2677 = vunpack.c.h.b16 %v2601
    %v2678 = vunpack.c.l.b16 %v2602
    %v2679 = vunpack.c.h.b16 %v2602
    %v2680 = vunpack.c.l.b16 %v2603
    %v2681 = vunpack.c.h.b16 %v2603
    %v2682 = vunpack.c.l.b16 %v2604
    %v2683 = vunpack.c.h.b16 %v2604
    %v2684 = vunpack.c.l.b16 %v2605
    %v2685 = vunpack.c.h.b16 %v2605
    %v2686 = vunpack.c.l.b16 %v2606
    %v2687 = vunpack.c.h.b16 %v2606
    %v2688 = vunpack.c.l.b16 %v2607
    %v2689 = vunpack.c.h.b16 %v2607
    %v2690 = vunpack.c.l.b16 %v2608
    %v2691 = vunpack.c.h.b16 %v2608
    %v2692 = vunpack.c.l.b16 %v2609
    %v2693 = vunpack.c.h.b16 %v2609
    %v2694 = vunpack.c.l.b16 %v2610
    %v2695 = vunpack.c.h.b16 %v2610
    %v2696 = vunpack.c.l.b16 %v2611
    %v2697 = vunpack.c.h.b16 %v2611
    %v2698 = vunpack.c.l.b16 %v2612
    %v2699 = vunpack.c.h.b16 %v2612
    %v2700 = vunpack.c.l.b16 %v2613
    %v2701 = vunpack.c.h.b16 %v2613
    %v2702 = vunpack.c.l.b16 %v2614
    %v2703 = vunpack.c.h.b16 %v2614
    %v2704 = vunpack.c.l.b16 %v2615
    %v2705 = vunpack.c.h.b16 %v2615
    %v2706 = vunpack.c.l.b16 %v2616
    %v2707 = vunpack.c.h.b16 %v2616
    %v2708 = vunpack.c.l.b16 %v2617
    %v2709 = vunpack.c.h.b16 %v2617
    %v2710 = vunpack.c.l.b16 %v2618
    %v2711 = vunpack.c.h.b16 %v2618
    %v2712 = vunpack.c.l.b16 %v2619
    %v2713 = vunpack.c.h.b16 %v2619
    %v2714 = vunpack.c.l.b16 %v2620
    %v2715 = vunpack.c.h.b16 %v2620
    %v2716 = vunpack.c.l.b16 %v2621
    %v2717 = vunpack.c.h.b16 %v2621
    %v2718 = vunpack.c.l.b16 %v2622
    %v2719 = vunpack.c.h.b16 %v2622
    %v2720 = vpack.c.b16 %v2660, %v2656
    %v2721 = vpack.c.b16 %v2661, %v2657
    %v2722 = vpack.c.b16 %v2662, %v2658
    %v2723 = vpack.c.b16 %v2663, %v2659
    %v2724 = vpack.c.b16 %v2668, %v2664
    %v2725 = vpack.c.b16 %v2669, %v2665
    %v2726 = vpack.c.b16 %v2670, %v2666
    %v2727 = vpack.c.b16 %v2671, %v2667
    %v2728 = vpack.c.b16 %v2676, %v2672
    %v2729 = vpack.c.b16 %v2677, %v2673
    %v2730 = vpack.c.b16 %v2678, %v2674
    %v2731 = vpack.c.b16 %v2679, %v2675
    %v2732 = vpack.c.b16 %v2684, %v2680
    %v2733 = vpack.c.b16 %v2685, %v2681
    %v2734 = vpack.c.b16 %v2686, %v2682
    %v2735 = vpack.c.b16 %v2687, %v2683
    %v2736 = vpack.c.b16 %v2692, %v2688
    %v2737 = vpack.c.b16 %v2693, %v2689
    %v2738 = vpack.c.b16 %v2694, %v2690
    %v2739 = vpack.c.b16 %v2695, %v2691
    %v2740 = vpack.c.b16 %v2700, %v2696
    %v2741 = vpack.c.b16 %v2701, %v2697
    %v2742 = vpack.c.b16 %v2702, %v2698
    %v2743 = vpack.c.b16 %v2703, %v2699
    %v2744 = vpack.c.b16 %v2708, %v2704
    %v2745 = vpack.c.b16 %v2709, %v2705
    %v2746 = vpack.c.b16 %v2710, %v2706
    %v2747 = vpack.c.b16 %v2711, %v2707
    %v2748 = vpack.c.b16 %v2716, %v2712
    %v2749 = vpack.c.b16 %v2717, %v2713
    %v2750 = vpack.c.b16 %v2718, %v2714
    %v2751 = vpack.c.b16 %v2719, %v2715
    %2784 = vmatpush.bf16.msra.mxu0 %v2748
    %2785 = vmatpush.bf16.msra.mxu0 %v2744
    %2786 = vmatpush.bf16.msra.mxu0 %v2740
    %2787 = vmatpush.bf16.msra.mxu0 %v2736
    %2788 = vmatpush.bf16.msra.mxu0 %v2732
    %2789 = vmatpush.bf16.msra.mxu0 %v2728
    %2790 = vmatpush.bf16.msra.mxu0 %v2724
    %2791 = vmatpush.bf16.msra.mxu0 %v2720
    %2792 = vmatmul.bf16.gmra.mxu0 %v2623
    %v2793 = vpop.f32.mrf.mxu0
    %v2794 = vadd.f32 0.0, %v2793
    %v2795 = vpop.f32.mrf.mxu0
    %v2796 = vadd.f32 0.0, %v2795
    %2797 = vdwg.mxu0
    %2798 = vmatpush.bf16.msra.mxu0 %v2749
    %2799 = vmatpush.bf16.msra.mxu0 %v2745
    %2800 = vmatpush.bf16.msra.mxu0 %v2741
    %2801 = vmatpush.bf16.msra.mxu0 %v2737
    %2802 = vmatpush.bf16.msra.mxu0 %v2733
    %2803 = vmatpush.bf16.msra.mxu0 %v2729
    %2804 = vmatpush.bf16.msra.mxu0 %v2725
    %2805 = vmatpush.bf16.msra.mxu0 %v2721
    %2806 = vmatmul.bf16.gmra.mxu0 %v2623
    %v2807 = vpop.f32.mrf.mxu0
    %v2808 = vadd.f32 0.0, %v2807
    %v2809 = vpop.f32.mrf.mxu0
    %v2810 = vadd.f32 0.0, %v2809
    %2811 = vdwg.mxu0
    %2812 = vmatpush.bf16.msra.mxu0 %v2750
    %2813 = vmatpush.bf16.msra.mxu0 %v2746
    %2814 = vmatpush.bf16.msra.mxu0 %v2742
    %2815 = vmatpush.bf16.msra.mxu0 %v2738
    %2816 = vmatpush.bf16.msra.mxu0 %v2734
    %2817 = vmatpush.bf16.msra.mxu0 %v2730
    %2818 = vmatpush.bf16.msra.mxu0 %v2726
    %2819 = vmatpush.bf16.msra.mxu0 %v2722
    %2820 = vmatmul.bf16.gmra.mxu0 %v2623
    %v2821 = vpop.f32.mrf.mxu0
    %v2822 = vadd.f32 0.0, %v2821
    %v2823 = vpop.f32.mrf.mxu0
    %v2824 = vadd.f32 0.0, %v2823
    %2825 = vdwg.mxu0
    %2826 = vmatpush.bf16.msra.mxu0 %v2751
    %2827 = vmatpush.bf16.msra.mxu0 %v2747
    %2828 = vmatpush.bf16.msra.mxu0 %v2743
    %2829 = vmatpush.bf16.msra.mxu0 %v2739
    %2830 = vmatpush.bf16.msra.mxu0 %v2735
    %2831 = vmatpush.bf16.msra.mxu0 %v2731
    %2832 = vmatpush.bf16.msra.mxu0 %v2727
    %2833 = vmatpush.bf16.msra.mxu0 %v2723
    %2834 = vmatmul.bf16.gmra.mxu0 %v2623
    %v2835 = vpop.f32.mrf.mxu0
    %v2836 = vadd.f32 0.0, %v2835
    %v2837 = vpop.f32.mrf.mxu0
    %v2838 = vadd.f32 0.0, %v2837
    %2839 = vdwg.mxu0
    %v2840 = vld [vmem:[%s27] sm:$0xff]
    %v2841 = vld [vmem:[%s29] sm:$0xff]
    %2850 = vrot.lane.b32.xlu0 %v1160, 17
    %v2851 = vpop.permute.xlu0 %2850
    %2852 = vrot.lane.b32.xlu0 %v1161, 17
    %v2853 = vpop.permute.xlu0 %2852
    %2854 = vrot.lane.b32.xlu0 %v1162, 17
    %v2855 = vpop.permute.xlu0 %2854
    %2856 = vrot.lane.b32.xlu0 %v1163, 17
    %v2857 = vpop.permute.xlu0 %2856
    %2858 = vrot.lane.b32.xlu0 %v2794, 17
    %v2859 = vpop.permute.xlu0 %2858
    %2860 = vrot.lane.b32.xlu0 %v2808, 17
    %v2861 = vpop.permute.xlu0 %2860
    %2862 = vrot.lane.b32.xlu0 %v2822, 17
    %v2863 = vpop.permute.xlu0 %2862
    %2864 = vrot.lane.b32.xlu0 %v2836, 17
    %v2865 = vpop.permute.xlu0 %2864
    %2866 = vrot.lane.b32.xlu0 %v2796, 17
    %v2867 = vpop.permute.xlu0 %2866
    %2868 = vrot.lane.b32.xlu0 %v2810, 17
    %v2869 = vpop.permute.xlu0 %2868
    %2870 = vrot.lane.b32.xlu0 %v2824, 17
    %v2871 = vpop.permute.xlu0 %2870
    %2872 = vrot.lane.b32.xlu0 %v2838, 17
    %v2873 = vpop.permute.xlu0 %2872
    %v2874 = vsel %vm280, %v2851, %v2853
    %v2875 = vsel %vm280, %v2853, %v2855
    %v2876 = vsel %vm280, %v2855, %v2857
    %v2877 = vsel %vm280, %v2859, %v2861
    %v2878 = vsel %vm280, %v2861, %v2863
    %v2879 = vsel %vm280, %v2863, %v2865
    %v2880 = vsel %vm280, %v2867, %v2869
    %v2881 = vsel %vm280, %v2869, %v2871
    %v2882 = vsel %vm280, %v2871, %v2873
    %v2898 = vsel %vm280, 0.0, %v2851
    %v2899 = vsel %vm280, 0.0, %v2859
    %v2900 = vsel %vm280, 0.0, %v2867
    %v2901 = vsel %vm280, %v2857, 0.0
    %v2902 = vsel %vm280, %v2865, 0.0
    %v2903 = vsel %vm280, %v2873, 0.0
    %v2904 = vmul.f32 %v2898, %v208
    %v2905 = vmul.f32 %v2874, %v209
    %v2906 = vmul.f32 %v2875, %v210
    %v2907 = vmul.f32 %v2876, %v211
    %v2908 = vmul.f32 %v2899, %v208
    %v2909 = vmul.f32 %v2877, %v209
    %v2910 = vmul.f32 %v2878, %v210
    %v2911 = vmul.f32 %v2879, %v211
    %v2912 = vmul.f32 %v2900, %v208
    %v2913 = vmul.f32 %v2880, %v209
    %v2914 = vmul.f32 %v2881, %v210
    %v2915 = vmul.f32 %v2882, %v211
    %v2916 = vmul.f32 %v2898, %v300
    %v2917 = vmul.f32 %v2874, %v308
    %v2918 = vmul.f32 %v2875, %v309
    %v2919 = vmul.f32 %v2876, %v310
    %v2920 = vmul.f32 %v2901, %v306
    %v2921 = vmul.f32 %v2899, %v300
    %v2922 = vmul.f32 %v2877, %v308
    %v2923 = vmul.f32 %v2878, %v309
    %v2924 = vmul.f32 %v2879, %v310
    %v2925 = vmul.f32 %v2902, %v306
    %v2926 = vmul.f32 %v2900, %v300
    %v2927 = vmul.f32 %v2880, %v308
    %v2928 = vmul.f32 %v2881, %v309
    %v2929 = vmul.f32 %v2882, %v310
    %v2930 = vmul.f32 %v2903, %v306
    %v2931 = vmul.f32 %v2898, %v326
    %v2932 = vmul.f32 %v2874, %v334
    %v2933 = vmul.f32 %v2875, %v335
    %v2934 = vmul.f32 %v2876, %v336
    %v2935 = vmul.f32 %v2901, %v332
    %v2936 = vmul.f32 %v2899, %v326
    %v2937 = vmul.f32 %v2877, %v334
    %v2938 = vmul.f32 %v2878, %v335
    %v2939 = vmul.f32 %v2879, %v336
    %v2940 = vmul.f32 %v2902, %v332
    %v2941 = vmul.f32 %v2900, %v326
    %v2942 = vmul.f32 %v2880, %v334
    %v2943 = vmul.f32 %v2881, %v335
    %v2944 = vmul.f32 %v2882, %v336
    %v2945 = vmul.f32 %v2903, %v332
    %v2946 = vmul.f32 %v2898, %v352
    %v2947 = vmul.f32 %v2874, %v360
    %v2948 = vmul.f32 %v2875, %v361
    %v2949 = vmul.f32 %v2876, %v362
    %v2950 = vmul.f32 %v2901, %v358
    %v2951 = vmul.f32 %v2899, %v352
    %v2952 = vmul.f32 %v2877, %v360
    %v2953 = vmul.f32 %v2878, %v361
    %v2954 = vmul.f32 %v2879, %v362
    %v2955 = vmul.f32 %v2902, %v358
    %v2956 = vmul.f32 %v2900, %v352
    %v2957 = vmul.f32 %v2880, %v360
    %v2958 = vmul.f32 %v2881, %v361
    %v2959 = vmul.f32 %v2882, %v362
    %v2960 = vmul.f32 %v2903, %v358
    %v2961 = vmul.f32 %v2898, %v378
    %v2962 = vmul.f32 %v2874, %v386
    %v2963 = vmul.f32 %v2875, %v387
    %v2964 = vmul.f32 %v2876, %v388
    %v2965 = vmul.f32 %v2901, %v384
    %v2966 = vmul.f32 %v2899, %v378
    %v2967 = vmul.f32 %v2877, %v386
    %v2968 = vmul.f32 %v2878, %v387
    %v2969 = vmul.f32 %v2879, %v388
    %v2970 = vmul.f32 %v2902, %v384
    %v2971 = vmul.f32 %v2900, %v378
    %v2972 = vmul.f32 %v2880, %v386
    %v2973 = vmul.f32 %v2881, %v387
    %v2974 = vmul.f32 %v2882, %v388
    %v2975 = vmul.f32 %v2903, %v384
    %v2976 = vmul.f32 %v2898, %v404
    %v2977 = vmul.f32 %v2874, %v412
    %v2978 = vmul.f32 %v2875, %v413
    %v2979 = vmul.f32 %v2876, %v414
    %v2980 = vmul.f32 %v2901, %v410
    %v2981 = vmul.f32 %v2899, %v404
    %v2982 = vmul.f32 %v2877, %v412
    %v2983 = vmul.f32 %v2878, %v413
    %v2984 = vmul.f32 %v2879, %v414
    %v2985 = vmul.f32 %v2902, %v410
    %v2986 = vmul.f32 %v2900, %v404
    %v2987 = vmul.f32 %v2880, %v412
    %v2988 = vmul.f32 %v2881, %v413
    %v2989 = vmul.f32 %v2882, %v414
    %v2990 = vmul.f32 %v2903, %v410
    %v2991 = vmul.f32 %v2898, %v430
    %v2992 = vmul.f32 %v2874, %v438
    %v2993 = vmul.f32 %v2875, %v439
    %v2994 = vmul.f32 %v2876, %v440
    %v2995 = vmul.f32 %v2901, %v436
    %v2996 = vmul.f32 %v2899, %v430
    %v2997 = vmul.f32 %v2877, %v438
    %v2998 = vmul.f32 %v2878, %v439
    %v2999 = vmul.f32 %v2879, %v440
    %v3000 = vmul.f32 %v2902, %v436
    %v3001 = vmul.f32 %v2900, %v430
    %v3002 = vmul.f32 %v2880, %v438
    %v3003 = vmul.f32 %v2881, %v439
    %v3004 = vmul.f32 %v2882, %v440
    %v3005 = vmul.f32 %v2903, %v436
    %v3006 = vmul.f32 %v2898, %v456
    %v3007 = vmul.f32 %v2874, %v464
    %v3008 = vmul.f32 %v2875, %v465
    %v3009 = vmul.f32 %v2876, %v466
    %v3010 = vmul.f32 %v2901, %v462
    %v3011 = vmul.f32 %v2899, %v456
    %v3012 = vmul.f32 %v2877, %v464
    %v3013 = vmul.f32 %v2878, %v465
    %v3014 = vmul.f32 %v2879, %v466
    %v3015 = vmul.f32 %v2902, %v462
    %v3016 = vmul.f32 %v2900, %v456
    %v3017 = vmul.f32 %v2880, %v464
    %v3018 = vmul.f32 %v2881, %v465
    %v3019 = vmul.f32 %v2882, %v466
    %v3020 = vmul.f32 %v2903, %v462
    %3036 = vrot.lane.b32.xlu0 %v2916, 127
    %v3037 = vpop.permute.xlu0 %3036
    %3038 = vrot.lane.b32.xlu0 %v2917, 127
    %v3039 = vpop.permute.xlu0 %3038
    %3040 = vrot.lane.b32.xlu0 %v2918, 127
    %v3041 = vpop.permute.xlu0 %3040
    %3042 = vrot.lane.b32.xlu0 %v2919, 127
    %v3043 = vpop.permute.xlu0 %3042
    %3044 = vrot.lane.b32.xlu0 %v2920, 127
    %v3045 = vpop.permute.xlu0 %3044
    %3046 = vrot.lane.b32.xlu0 %v2921, 127
    %v3047 = vpop.permute.xlu0 %3046
    %3048 = vrot.lane.b32.xlu0 %v2922, 127
    %v3049 = vpop.permute.xlu0 %3048
    %3050 = vrot.lane.b32.xlu0 %v2923, 127
    %v3051 = vpop.permute.xlu0 %3050
    %3052 = vrot.lane.b32.xlu0 %v2924, 127
    %v3053 = vpop.permute.xlu0 %3052
    %3054 = vrot.lane.b32.xlu0 %v2925, 127
    %v3055 = vpop.permute.xlu0 %3054
    %3056 = vrot.lane.b32.xlu0 %v2926, 127
    %v3057 = vpop.permute.xlu0 %3056
    %3058 = vrot.lane.b32.xlu0 %v2927, 127
    %v3059 = vpop.permute.xlu0 %3058
    %3060 = vrot.lane.b32.xlu0 %v2928, 127
    %v3061 = vpop.permute.xlu0 %3060
    %3062 = vrot.lane.b32.xlu0 %v2929, 127
    %v3063 = vpop.permute.xlu0 %3062
    %3064 = vrot.lane.b32.xlu0 %v2930, 127
    %v3065 = vpop.permute.xlu0 %3064
    %v3066 = vsel %vm497, %v3037, %v3039
    %v3067 = vsel %vm497, %v3039, %v3041
    %v3068 = vsel %vm497, %v3041, %v3043
    %v3069 = vsel %vm497, %v3043, %v3045
    %v3070 = vsel %vm497, %v3047, %v3049
    %v3071 = vsel %vm497, %v3049, %v3051
    %v3072 = vsel %vm497, %v3051, %v3053
    %v3073 = vsel %vm497, %v3053, %v3055
    %v3074 = vsel %vm497, %v3057, %v3059
    %v3075 = vsel %vm497, %v3059, %v3061
    %v3076 = vsel %vm497, %v3061, %v3063
    %v3077 = vsel %vm497, %v3063, %v3065
    %3105 = vrot.lane.b32.xlu0 %v2931, 126
    %v3106 = vpop.permute.xlu0 %3105
    %3107 = vrot.lane.b32.xlu0 %v2932, 126
    %v3108 = vpop.permute.xlu0 %3107
    %3109 = vrot.lane.b32.xlu0 %v2933, 126
    %v3110 = vpop.permute.xlu0 %3109
    %3111 = vrot.lane.b32.xlu0 %v2934, 126
    %v3112 = vpop.permute.xlu0 %3111
    %3113 = vrot.lane.b32.xlu0 %v2935, 126
    %v3114 = vpop.permute.xlu0 %3113
    %3115 = vrot.lane.b32.xlu0 %v2936, 126
    %v3116 = vpop.permute.xlu0 %3115
    %3117 = vrot.lane.b32.xlu0 %v2937, 126
    %v3118 = vpop.permute.xlu0 %3117
    %3119 = vrot.lane.b32.xlu0 %v2938, 126
    %v3120 = vpop.permute.xlu0 %3119
    %3121 = vrot.lane.b32.xlu0 %v2939, 126
    %v3122 = vpop.permute.xlu0 %3121
    %3123 = vrot.lane.b32.xlu0 %v2940, 126
    %v3124 = vpop.permute.xlu0 %3123
    %3125 = vrot.lane.b32.xlu0 %v2941, 126
    %v3126 = vpop.permute.xlu0 %3125
    %3127 = vrot.lane.b32.xlu0 %v2942, 126
    %v3128 = vpop.permute.xlu0 %3127
    %3129 = vrot.lane.b32.xlu0 %v2943, 126
    %v3130 = vpop.permute.xlu0 %3129
    %3131 = vrot.lane.b32.xlu0 %v2944, 126
    %v3132 = vpop.permute.xlu0 %3131
    %3133 = vrot.lane.b32.xlu0 %v2945, 126
    %v3134 = vpop.permute.xlu0 %3133
    %v3135 = vsel %vm526, %v3106, %v3108
    %v3136 = vsel %vm526, %v3108, %v3110
    %v3137 = vsel %vm526, %v3110, %v3112
    %v3138 = vsel %vm526, %v3112, %v3114
    %v3139 = vsel %vm526, %v3116, %v3118
    %v3140 = vsel %vm526, %v3118, %v3120
    %v3141 = vsel %vm526, %v3120, %v3122
    %v3142 = vsel %vm526, %v3122, %v3124
    %v3143 = vsel %vm526, %v3126, %v3128
    %v3144 = vsel %vm526, %v3128, %v3130
    %v3145 = vsel %vm526, %v3130, %v3132
    %v3146 = vsel %vm526, %v3132, %v3134
    %3174 = vrot.lane.b32.xlu0 %v2946, 112
    %v3175 = vpop.permute.xlu0 %3174
    %3176 = vrot.lane.b32.xlu0 %v2947, 112
    %v3177 = vpop.permute.xlu0 %3176
    %3178 = vrot.lane.b32.xlu0 %v2948, 112
    %v3179 = vpop.permute.xlu0 %3178
    %3180 = vrot.lane.b32.xlu0 %v2949, 112
    %v3181 = vpop.permute.xlu0 %3180
    %3182 = vrot.lane.b32.xlu0 %v2950, 112
    %v3183 = vpop.permute.xlu0 %3182
    %3184 = vrot.lane.b32.xlu0 %v2951, 112
    %v3185 = vpop.permute.xlu0 %3184
    %3186 = vrot.lane.b32.xlu0 %v2952, 112
    %v3187 = vpop.permute.xlu0 %3186
    %3188 = vrot.lane.b32.xlu0 %v2953, 112
    %v3189 = vpop.permute.xlu0 %3188
    %3190 = vrot.lane.b32.xlu0 %v2954, 112
    %v3191 = vpop.permute.xlu0 %3190
    %3192 = vrot.lane.b32.xlu0 %v2955, 112
    %v3193 = vpop.permute.xlu0 %3192
    %3194 = vrot.lane.b32.xlu0 %v2956, 112
    %v3195 = vpop.permute.xlu0 %3194
    %3196 = vrot.lane.b32.xlu0 %v2957, 112
    %v3197 = vpop.permute.xlu0 %3196
    %3198 = vrot.lane.b32.xlu0 %v2958, 112
    %v3199 = vpop.permute.xlu0 %3198
    %3200 = vrot.lane.b32.xlu0 %v2959, 112
    %v3201 = vpop.permute.xlu0 %3200
    %3202 = vrot.lane.b32.xlu0 %v2960, 112
    %v3203 = vpop.permute.xlu0 %3202
    %v3204 = vsel %vm555, %v3175, %v3177
    %v3205 = vsel %vm555, %v3177, %v3179
    %v3206 = vsel %vm555, %v3179, %v3181
    %v3207 = vsel %vm555, %v3181, %v3183
    %v3208 = vsel %vm555, %v3185, %v3187
    %v3209 = vsel %vm555, %v3187, %v3189
    %v3210 = vsel %vm555, %v3189, %v3191
    %v3211 = vsel %vm555, %v3191, %v3193
    %v3212 = vsel %vm555, %v3195, %v3197
    %v3213 = vsel %vm555, %v3197, %v3199
    %v3214 = vsel %vm555, %v3199, %v3201
    %v3215 = vsel %vm555, %v3201, %v3203
    %3234 = vrot.lane.b32.xlu0 %v2898, 111
    %v3235 = vpop.permute.xlu0 %3234
    %3236 = vrot.lane.b32.xlu0 %v2874, 111
    %v3237 = vpop.permute.xlu0 %3236
    %3238 = vrot.lane.b32.xlu0 %v2875, 111
    %v3239 = vpop.permute.xlu0 %3238
    %3240 = vrot.lane.b32.xlu0 %v2876, 111
    %v3241 = vpop.permute.xlu0 %3240
    %3242 = vrot.lane.b32.xlu0 %v2901, 111
    %v3243 = vpop.permute.xlu0 %3242
    %3244 = vrot.lane.b32.xlu0 %v2899, 111
    %v3245 = vpop.permute.xlu0 %3244
    %3246 = vrot.lane.b32.xlu0 %v2877, 111
    %v3247 = vpop.permute.xlu0 %3246
    %3248 = vrot.lane.b32.xlu0 %v2878, 111
    %v3249 = vpop.permute.xlu0 %3248
    %3250 = vrot.lane.b32.xlu0 %v2879, 111
    %v3251 = vpop.permute.xlu0 %3250
    %3252 = vrot.lane.b32.xlu0 %v2902, 111
    %v3253 = vpop.permute.xlu0 %3252
    %3254 = vrot.lane.b32.xlu0 %v2900, 111
    %v3255 = vpop.permute.xlu0 %3254
    %3256 = vrot.lane.b32.xlu0 %v2880, 111
    %v3257 = vpop.permute.xlu0 %3256
    %3258 = vrot.lane.b32.xlu0 %v2881, 111
    %v3259 = vpop.permute.xlu0 %3258
    %3260 = vrot.lane.b32.xlu0 %v2882, 111
    %v3261 = vpop.permute.xlu0 %3260
    %3262 = vrot.lane.b32.xlu0 %v2903, 111
    %v3263 = vpop.permute.xlu0 %3262
    %v3264 = vsel %vm581, %v3235, %v3237
    %v3265 = vsel %vm581, %v3237, %v3239
    %v3266 = vsel %vm581, %v3239, %v3241
    %v3267 = vsel %vm581, %v3241, %v3243
    %v3268 = vsel %vm581, %v3245, %v3247
    %v3269 = vsel %vm581, %v3247, %v3249
    %v3270 = vsel %vm581, %v3249, %v3251
    %v3271 = vsel %vm581, %v3251, %v3253
    %v3272 = vsel %vm581, %v3255, %v3257
    %v3273 = vsel %vm581, %v3257, %v3259
    %v3274 = vsel %vm581, %v3259, %v3261
    %v3275 = vsel %vm581, %v3261, %v3263
    %3303 = vrot.lane.b32.xlu0 %v2961, 110
    %v3304 = vpop.permute.xlu0 %3303
    %3305 = vrot.lane.b32.xlu0 %v2962, 110
    %v3306 = vpop.permute.xlu0 %3305
    %3307 = vrot.lane.b32.xlu0 %v2963, 110
    %v3308 = vpop.permute.xlu0 %3307
    %3309 = vrot.lane.b32.xlu0 %v2964, 110
    %v3310 = vpop.permute.xlu0 %3309
    %3311 = vrot.lane.b32.xlu0 %v2965, 110
    %v3312 = vpop.permute.xlu0 %3311
    %3313 = vrot.lane.b32.xlu0 %v2966, 110
    %v3314 = vpop.permute.xlu0 %3313
    %3315 = vrot.lane.b32.xlu0 %v2967, 110
    %v3316 = vpop.permute.xlu0 %3315
    %3317 = vrot.lane.b32.xlu0 %v2968, 110
    %v3318 = vpop.permute.xlu0 %3317
    %3319 = vrot.lane.b32.xlu0 %v2969, 110
    %v3320 = vpop.permute.xlu0 %3319
    %3321 = vrot.lane.b32.xlu0 %v2970, 110
    %v3322 = vpop.permute.xlu0 %3321
    %3323 = vrot.lane.b32.xlu0 %v2971, 110
    %v3324 = vpop.permute.xlu0 %3323
    %3325 = vrot.lane.b32.xlu0 %v2972, 110
    %v3326 = vpop.permute.xlu0 %3325
    %3327 = vrot.lane.b32.xlu0 %v2973, 110
    %v3328 = vpop.permute.xlu0 %3327
    %3329 = vrot.lane.b32.xlu0 %v2974, 110
    %v3330 = vpop.permute.xlu0 %3329
    %3331 = vrot.lane.b32.xlu0 %v2975, 110
    %v3332 = vpop.permute.xlu0 %3331
    %v3333 = vsel %vm610, %v3304, %v3306
    %v3334 = vsel %vm610, %v3306, %v3308
    %v3335 = vsel %vm610, %v3308, %v3310
    %v3336 = vsel %vm610, %v3310, %v3312
    %v3337 = vsel %vm610, %v3314, %v3316
    %v3338 = vsel %vm610, %v3316, %v3318
    %v3339 = vsel %vm610, %v3318, %v3320
    %v3340 = vsel %vm610, %v3320, %v3322
    %v3341 = vsel %vm610, %v3324, %v3326
    %v3342 = vsel %vm610, %v3326, %v3328
    %v3343 = vsel %vm610, %v3328, %v3330
    %v3344 = vsel %vm610, %v3330, %v3332
    %3372 = vrot.lane.b32.xlu0 %v2976, 96
    %v3373 = vpop.permute.xlu0 %3372
    %3374 = vrot.lane.b32.xlu0 %v2977, 96
    %v3375 = vpop.permute.xlu0 %3374
    %3376 = vrot.lane.b32.xlu0 %v2978, 96
    %v3377 = vpop.permute.xlu0 %3376
    %3378 = vrot.lane.b32.xlu0 %v2979, 96
    %v3379 = vpop.permute.xlu0 %3378
    %3380 = vrot.lane.b32.xlu0 %v2980, 96
    %v3381 = vpop.permute.xlu0 %3380
    %3382 = vrot.lane.b32.xlu0 %v2981, 96
    %v3383 = vpop.permute.xlu0 %3382
    %3384 = vrot.lane.b32.xlu0 %v2982, 96
    %v3385 = vpop.permute.xlu0 %3384
    %3386 = vrot.lane.b32.xlu0 %v2983, 96
    %v3387 = vpop.permute.xlu0 %3386
    %3388 = vrot.lane.b32.xlu0 %v2984, 96
    %v3389 = vpop.permute.xlu0 %3388
    %3390 = vrot.lane.b32.xlu0 %v2985, 96
    %v3391 = vpop.permute.xlu0 %3390
    %3392 = vrot.lane.b32.xlu0 %v2986, 96
    %v3393 = vpop.permute.xlu0 %3392
    %3394 = vrot.lane.b32.xlu0 %v2987, 96
    %v3395 = vpop.permute.xlu0 %3394
    %3396 = vrot.lane.b32.xlu0 %v2988, 96
    %v3397 = vpop.permute.xlu0 %3396
    %3398 = vrot.lane.b32.xlu0 %v2989, 96
    %v3399 = vpop.permute.xlu0 %3398
    %3400 = vrot.lane.b32.xlu0 %v2990, 96
    %v3401 = vpop.permute.xlu0 %3400
    %v3402 = vsel %vm639, %v3373, %v3375
    %v3403 = vsel %vm639, %v3375, %v3377
    %v3404 = vsel %vm639, %v3377, %v3379
    %v3405 = vsel %vm639, %v3379, %v3381
    %v3406 = vsel %vm639, %v3383, %v3385
    %v3407 = vsel %vm639, %v3385, %v3387
    %v3408 = vsel %vm639, %v3387, %v3389
    %v3409 = vsel %vm639, %v3389, %v3391
    %v3410 = vsel %vm639, %v3393, %v3395
    %v3411 = vsel %vm639, %v3395, %v3397
    %v3412 = vsel %vm639, %v3397, %v3399
    %v3413 = vsel %vm639, %v3399, %v3401
    %3441 = vrot.lane.b32.xlu0 %v2991, 95
    %v3442 = vpop.permute.xlu0 %3441
    %3443 = vrot.lane.b32.xlu0 %v2992, 95
    %v3444 = vpop.permute.xlu0 %3443
    %3445 = vrot.lane.b32.xlu0 %v2993, 95
    %v3446 = vpop.permute.xlu0 %3445
    %3447 = vrot.lane.b32.xlu0 %v2994, 95
    %v3448 = vpop.permute.xlu0 %3447
    %3449 = vrot.lane.b32.xlu0 %v2995, 95
    %v3450 = vpop.permute.xlu0 %3449
    %3451 = vrot.lane.b32.xlu0 %v2996, 95
    %v3452 = vpop.permute.xlu0 %3451
    %3453 = vrot.lane.b32.xlu0 %v2997, 95
    %v3454 = vpop.permute.xlu0 %3453
    %3455 = vrot.lane.b32.xlu0 %v2998, 95
    %v3456 = vpop.permute.xlu0 %3455
    %3457 = vrot.lane.b32.xlu0 %v2999, 95
    %v3458 = vpop.permute.xlu0 %3457
    %3459 = vrot.lane.b32.xlu0 %v3000, 95
    %v3460 = vpop.permute.xlu0 %3459
    %3461 = vrot.lane.b32.xlu0 %v3001, 95
    %v3462 = vpop.permute.xlu0 %3461
    %3463 = vrot.lane.b32.xlu0 %v3002, 95
    %v3464 = vpop.permute.xlu0 %3463
    %3465 = vrot.lane.b32.xlu0 %v3003, 95
    %v3466 = vpop.permute.xlu0 %3465
    %3467 = vrot.lane.b32.xlu0 %v3004, 95
    %v3468 = vpop.permute.xlu0 %3467
    %3469 = vrot.lane.b32.xlu0 %v3005, 95
    %v3470 = vpop.permute.xlu0 %3469
    %v3471 = vsel %vm668, %v3442, %v3444
    %v3472 = vsel %vm668, %v3444, %v3446
    %v3473 = vsel %vm668, %v3446, %v3448
    %v3474 = vsel %vm668, %v3448, %v3450
    %v3475 = vsel %vm668, %v3452, %v3454
    %v3476 = vsel %vm668, %v3454, %v3456
    %v3477 = vsel %vm668, %v3456, %v3458
    %v3478 = vsel %vm668, %v3458, %v3460
    %v3479 = vsel %vm668, %v3462, %v3464
    %v3480 = vsel %vm668, %v3464, %v3466
    %v3481 = vsel %vm668, %v3466, %v3468
    %v3482 = vsel %vm668, %v3468, %v3470
    %3510 = vrot.lane.b32.xlu0 %v3006, 94
    %v3511 = vpop.permute.xlu0 %3510
    %3512 = vrot.lane.b32.xlu0 %v3007, 94
    %v3513 = vpop.permute.xlu0 %3512
    %3514 = vrot.lane.b32.xlu0 %v3008, 94
    %v3515 = vpop.permute.xlu0 %3514
    %3516 = vrot.lane.b32.xlu0 %v3009, 94
    %v3517 = vpop.permute.xlu0 %3516
    %3518 = vrot.lane.b32.xlu0 %v3010, 94
    %v3519 = vpop.permute.xlu0 %3518
    %3520 = vrot.lane.b32.xlu0 %v3011, 94
    %v3521 = vpop.permute.xlu0 %3520
    %3522 = vrot.lane.b32.xlu0 %v3012, 94
    %v3523 = vpop.permute.xlu0 %3522
    %3524 = vrot.lane.b32.xlu0 %v3013, 94
    %v3525 = vpop.permute.xlu0 %3524
    %3526 = vrot.lane.b32.xlu0 %v3014, 94
    %v3527 = vpop.permute.xlu0 %3526
    %3528 = vrot.lane.b32.xlu0 %v3015, 94
    %v3529 = vpop.permute.xlu0 %3528
    %3530 = vrot.lane.b32.xlu0 %v3016, 94
    %v3531 = vpop.permute.xlu0 %3530
    %3532 = vrot.lane.b32.xlu0 %v3017, 94
    %v3533 = vpop.permute.xlu0 %3532
    %3534 = vrot.lane.b32.xlu0 %v3018, 94
    %v3535 = vpop.permute.xlu0 %3534
    %3536 = vrot.lane.b32.xlu0 %v3019, 94
    %v3537 = vpop.permute.xlu0 %3536
    %3538 = vrot.lane.b32.xlu0 %v3020, 94
    %v3539 = vpop.permute.xlu0 %3538
    %v3540 = vsel %vm692, %v3511, %v3513
    %v3541 = vsel %vm692, %v3513, %v3515
    %v3542 = vsel %vm692, %v3515, %v3517
    %v3543 = vsel %vm692, %v3517, %v3519
    %v3544 = vsel %vm692, %v3521, %v3523
    %v3545 = vsel %vm692, %v3523, %v3525
    %v3546 = vsel %vm692, %v3525, %v3527
    %v3547 = vsel %vm692, %v3527, %v3529
    %v3548 = vsel %vm692, %v3531, %v3533
    %v3549 = vsel %vm692, %v3533, %v3535
    %v3550 = vsel %vm692, %v3535, %v3537
    %v3551 = vsel %vm692, %v3537, %v3539
    %v3564 = vpack.c.bf16 %v2908, %v2904
    %v3565 = vpack.c.bf16 %v2909, %v2905
    %v3566 = vpack.c.bf16 %v2910, %v2906
    %v3567 = vpack.c.bf16 %v2911, %v2907
    %v3568 = vpack.c.bf16 %v3066, %v2912
    %v3569 = vpack.c.bf16 %v3067, %v2913
    %v3570 = vpack.c.bf16 %v3068, %v2914
    %v3571 = vpack.c.bf16 %v3069, %v2915
    %v3572 = vpack.c.bf16 %v3074, %v3070
    %v3573 = vpack.c.bf16 %v3075, %v3071
    %v3574 = vpack.c.bf16 %v3076, %v3072
    %v3575 = vpack.c.bf16 %v3077, %v3073
    %v3576 = vpack.c.bf16 %v3139, %v3135
    %v3577 = vpack.c.bf16 %v3140, %v3136
    %v3578 = vpack.c.bf16 %v3141, %v3137
    %v3579 = vpack.c.bf16 %v3142, %v3138
    %v3580 = vpack.c.bf16 %v3204, %v3143
    %v3581 = vpack.c.bf16 %v3205, %v3144
    %v3582 = vpack.c.bf16 %v3206, %v3145
    %v3583 = vpack.c.bf16 %v3207, %v3146
    %v3584 = vpack.c.bf16 %v3212, %v3208
    %v3585 = vpack.c.bf16 %v3213, %v3209
    %v3586 = vpack.c.bf16 %v3214, %v3210
    %v3587 = vpack.c.bf16 %v3215, %v3211
    %v3588 = vpack.c.bf16 %v3268, %v3264
    %v3589 = vpack.c.bf16 %v3269, %v3265
    %v3590 = vpack.c.bf16 %v3270, %v3266
    %v3591 = vpack.c.bf16 %v3271, %v3267
    %v3592 = vpack.c.bf16 %v3333, %v3272
    %v3593 = vpack.c.bf16 %v3334, %v3273
    %v3594 = vpack.c.bf16 %v3335, %v3274
    %v3595 = vpack.c.bf16 %v3336, %v3275
    %v3596 = vpack.c.bf16 %v3341, %v3337
    %v3597 = vpack.c.bf16 %v3342, %v3338
    %v3598 = vpack.c.bf16 %v3343, %v3339
    %v3599 = vpack.c.bf16 %v3344, %v3340
    %v3600 = vpack.c.bf16 %v3406, %v3402
    %v3601 = vpack.c.bf16 %v3407, %v3403
    %v3602 = vpack.c.bf16 %v3408, %v3404
    %v3603 = vpack.c.bf16 %v3409, %v3405
    %v3604 = vpack.c.bf16 %v3471, %v3410
    %v3605 = vpack.c.bf16 %v3472, %v3411
    %v3606 = vpack.c.bf16 %v3473, %v3412
    %v3607 = vpack.c.bf16 %v3474, %v3413
    %v3608 = vpack.c.bf16 %v3479, %v3475
    %v3609 = vpack.c.bf16 %v3480, %v3476
    %v3610 = vpack.c.bf16 %v3481, %v3477
    %v3611 = vpack.c.bf16 %v3482, %v3478
    %v3612 = vpack.c.bf16 %v3544, %v3540
    %v3613 = vpack.c.bf16 %v3545, %v3541
    %v3614 = vpack.c.bf16 %v3546, %v3542
    %v3615 = vpack.c.bf16 %v3547, %v3543
    %v3616 = vpack.c.bf16 %v3548, %v3548
    %v3617 = vpack.c.bf16 %v3549, %v3549
    %v3618 = vpack.c.bf16 %v3550, %v3550
    %v3619 = vpack.c.bf16 %v3551, %v3551
    %3621 = vset.pattern.permute.xlu0 0
    %3622 = vperm.xlu0 %3621, %v2841
    %v3623 = vpop.permute.xlu0 %3622
    %v3626 = vunpack.c.l.b16 %v2840
    %v3627 = vunpack.c.h.b16 %v2840
    %v3628 = vpack.c.b16 %v3626, %v3626
    %v3629 = vpack.c.b16 %v3627, %v3627
    %vm3631 = vcmask 719872
    %v3633 = vsel %vm3631, %v3629, 0
    %v3636 = vsel %vm716, %v3616, 0
    %v3639 = vsel %vm716, %v3617, 0
    %v3642 = vsel %vm716, %v3618, 0
    %v3645 = vsel %vm716, %v3619, 0
    %3647 = vmatpush.bf16.msra.mxu0 %v3592
    %3648 = vmatpush.bf16.msra.mxu0 %v3588
    %3649 = vmatpush.bf16.msra.mxu0 %v3584
    %3650 = vmatpush.bf16.msra.mxu0 %v3580
    %3651 = vmatpush.bf16.msra.mxu0 %v3576
    %3652 = vmatpush.bf16.msra.mxu0 %v3572
    %3653 = vmatpush.bf16.msra.mxu0 %v3568
    %3654 = vmatpush.bf16.msra.mxu0 %v3564
    %3655 = vmatmul.bf16.gmra.mxu0 %v3628
    %v3656 = vpop.f32.mrf.mxu0
    %v3657 = vadd.f32 %v3623, %v3656
    %v3658 = vpop.f32.mrf.mxu0
    %3659 = vdwg.mxu0
    %3660 = vmatpush.bf16.msra.mxu0 0
    %3661 = vmatpush.bf16.msra.mxu0 0
    %3662 = vmatpush.bf16.msra.mxu0 %v3636
    %3663 = vmatpush.bf16.msra.mxu0 %v3612
    %3664 = vmatpush.bf16.msra.mxu0 %v3608
    %3665 = vmatpush.bf16.msra.mxu0 %v3604
    %3666 = vmatpush.bf16.msra.mxu0 %v3600
    %3667 = vmatpush.bf16.msra.mxu0 %v3596
    %3668 = vmatmul.bf16.gmra.mxu0 %v3633
    %v3669 = vpop.f32.mrf.mxu0
    %v3670 = vadd.f32 %v3657, %v3669
    %v3671 = vpop.f32.mrf.mxu0
    %3672 = vdwg.mxu0
    %3673 = vmatpush.bf16.msra.mxu0 %v3593
    %3674 = vmatpush.bf16.msra.mxu0 %v3589
    %3675 = vmatpush.bf16.msra.mxu0 %v3585
    %3676 = vmatpush.bf16.msra.mxu0 %v3581
    %3677 = vmatpush.bf16.msra.mxu0 %v3577
    %3678 = vmatpush.bf16.msra.mxu0 %v3573
    %3679 = vmatpush.bf16.msra.mxu0 %v3569
    %3680 = vmatpush.bf16.msra.mxu0 %v3565
    %3681 = vmatmul.bf16.gmra.mxu0 %v3628
    %v3682 = vpop.f32.mrf.mxu0
    %v3683 = vadd.f32 %v3623, %v3682
    %v3684 = vpop.f32.mrf.mxu0
    %3685 = vdwg.mxu0
    %3686 = vmatpush.bf16.msra.mxu0 0
    %3687 = vmatpush.bf16.msra.mxu0 0
    %3688 = vmatpush.bf16.msra.mxu0 %v3639
    %3689 = vmatpush.bf16.msra.mxu0 %v3613
    %3690 = vmatpush.bf16.msra.mxu0 %v3609
    %3691 = vmatpush.bf16.msra.mxu0 %v3605
    %3692 = vmatpush.bf16.msra.mxu0 %v3601
    %3693 = vmatpush.bf16.msra.mxu0 %v3597
    %3694 = vmatmul.bf16.gmra.mxu0 %v3633
    %v3695 = vpop.f32.mrf.mxu0
    %v3696 = vadd.f32 %v3683, %v3695
    %v3697 = vpop.f32.mrf.mxu0
    %3698 = vdwg.mxu0
    %3699 = vmatpush.bf16.msra.mxu0 %v3594
    %3700 = vmatpush.bf16.msra.mxu0 %v3590
    %3701 = vmatpush.bf16.msra.mxu0 %v3586
    %3702 = vmatpush.bf16.msra.mxu0 %v3582
    %3703 = vmatpush.bf16.msra.mxu0 %v3578
    %3704 = vmatpush.bf16.msra.mxu0 %v3574
    %3705 = vmatpush.bf16.msra.mxu0 %v3570
    %3706 = vmatpush.bf16.msra.mxu0 %v3566
    %3707 = vmatmul.bf16.gmra.mxu0 %v3628
    %v3708 = vpop.f32.mrf.mxu0
    %v3709 = vadd.f32 %v3623, %v3708
    %v3710 = vpop.f32.mrf.mxu0
    %3711 = vdwg.mxu0
    %3712 = vmatpush.bf16.msra.mxu0 0
    %3713 = vmatpush.bf16.msra.mxu0 0
    %3714 = vmatpush.bf16.msra.mxu0 %v3642
    %3715 = vmatpush.bf16.msra.mxu0 %v3614
    %3716 = vmatpush.bf16.msra.mxu0 %v3610
    %3717 = vmatpush.bf16.msra.mxu0 %v3606
    %3718 = vmatpush.bf16.msra.mxu0 %v3602
    %3719 = vmatpush.bf16.msra.mxu0 %v3598
    %3720 = vmatmul.bf16.gmra.mxu0 %v3633
    %v3721 = vpop.f32.mrf.mxu0
    %v3722 = vadd.f32 %v3709, %v3721
    %v3723 = vpop.f32.mrf.mxu0
    %3724 = vdwg.mxu0
    %3725 = vmatpush.bf16.msra.mxu0 %v3595
    %3726 = vmatpush.bf16.msra.mxu0 %v3591
    %3727 = vmatpush.bf16.msra.mxu0 %v3587
    %3728 = vmatpush.bf16.msra.mxu0 %v3583
    %3729 = vmatpush.bf16.msra.mxu0 %v3579
    %3730 = vmatpush.bf16.msra.mxu0 %v3575
    %3731 = vmatpush.bf16.msra.mxu0 %v3571
    %3732 = vmatpush.bf16.msra.mxu0 %v3567
    %3733 = vmatmul.bf16.gmra.mxu0 %v3628
    %v3734 = vpop.f32.mrf.mxu0
    %v3735 = vadd.f32 %v3623, %v3734
    %v3736 = vpop.f32.mrf.mxu0
    %3737 = vdwg.mxu0
    %3738 = vmatpush.bf16.msra.mxu0 0
    %3739 = vmatpush.bf16.msra.mxu0 0
    %3740 = vmatpush.bf16.msra.mxu0 %v3645
    %3741 = vmatpush.bf16.msra.mxu0 %v3615
    %3742 = vmatpush.bf16.msra.mxu0 %v3611
    %3743 = vmatpush.bf16.msra.mxu0 %v3607
    %3744 = vmatpush.bf16.msra.mxu0 %v3603
    %3745 = vmatpush.bf16.msra.mxu0 %v3599
    %3746 = vmatmul.bf16.gmra.mxu0 %v3633
    %v3747 = vpop.f32.mrf.mxu0
    %v3748 = vadd.f32 %v3735, %v3747
    %v3749 = vpop.f32.mrf.mxu0
    %3750 = vdwg.mxu0
    %v3751 = vmax.f32 %v3670, 0.0
    %v3752 = vmax.f32 %v3696, 0.0
    %v3753 = vmax.f32 %v3722, 0.0
    %v3754 = vmax.f32 %v3748, 0.0
    %v3755 = vld [vmem:[%s31] sm:$0xf]
    %v3756 = vld [vmem:[%s33] sm:$0xff]
    %3761 = vrot.lane.b32.xlu0 %v3751, 17
    %v3762 = vpop.permute.xlu0 %3761
    %3763 = vrot.lane.b32.xlu0 %v3752, 17
    %v3764 = vpop.permute.xlu0 %3763
    %3765 = vrot.lane.b32.xlu0 %v3753, 17
    %v3766 = vpop.permute.xlu0 %3765
    %3767 = vrot.lane.b32.xlu0 %v3754, 17
    %v3768 = vpop.permute.xlu0 %3767
    %v3769 = vsel %vm280, %v3762, %v3764
    %v3770 = vsel %vm280, %v3764, %v3766
    %v3771 = vsel %vm280, %v3766, %v3768
    %v3777 = vsel %vm280, 0.0, %v3762
    %v3778 = vsel %vm280, %v3768, 0.0
    %v3779 = vmul.f32 %v3777, %v208
    %v3780 = vmul.f32 %v3769, %v209
    %v3781 = vmul.f32 %v3770, %v210
    %v3782 = vmul.f32 %v3771, %v211
    %v3783 = vmul.f32 %v3777, %v300
    %v3784 = vmul.f32 %v3769, %v308
    %v3785 = vmul.f32 %v3770, %v309
    %v3786 = vmul.f32 %v3771, %v310
    %v3787 = vmul.f32 %v3778, %v306
    %v3788 = vmul.f32 %v3777, %v326
    %v3789 = vmul.f32 %v3769, %v334
    %v3790 = vmul.f32 %v3770, %v335
    %v3791 = vmul.f32 %v3771, %v336
    %v3792 = vmul.f32 %v3778, %v332
    %v3793 = vmul.f32 %v3777, %v352
    %v3794 = vmul.f32 %v3769, %v360
    %v3795 = vmul.f32 %v3770, %v361
    %v3796 = vmul.f32 %v3771, %v362
    %v3797 = vmul.f32 %v3778, %v358
    %v3798 = vmul.f32 %v3777, %v378
    %v3799 = vmul.f32 %v3769, %v386
    %v3800 = vmul.f32 %v3770, %v387
    %v3801 = vmul.f32 %v3771, %v388
    %v3802 = vmul.f32 %v3778, %v384
    %v3803 = vmul.f32 %v3777, %v404
    %v3804 = vmul.f32 %v3769, %v412
    %v3805 = vmul.f32 %v3770, %v413
    %v3806 = vmul.f32 %v3771, %v414
    %v3807 = vmul.f32 %v3778, %v410
    %v3808 = vmul.f32 %v3777, %v430
    %v3809 = vmul.f32 %v3769, %v438
    %v3810 = vmul.f32 %v3770, %v439
    %v3811 = vmul.f32 %v3771, %v440
    %v3812 = vmul.f32 %v3778, %v436
    %v3813 = vmul.f32 %v3777, %v456
    %v3814 = vmul.f32 %v3769, %v464
    %v3815 = vmul.f32 %v3770, %v465
    %v3816 = vmul.f32 %v3771, %v466
    %v3817 = vmul.f32 %v3778, %v462
    %3823 = vrot.lane.b32.xlu0 %v3783, 127
    %v3824 = vpop.permute.xlu0 %3823
    %3825 = vrot.lane.b32.xlu0 %v3784, 127
    %v3826 = vpop.permute.xlu0 %3825
    %3827 = vrot.lane.b32.xlu0 %v3785, 127
    %v3828 = vpop.permute.xlu0 %3827
    %3829 = vrot.lane.b32.xlu0 %v3786, 127
    %v3830 = vpop.permute.xlu0 %3829
    %3831 = vrot.lane.b32.xlu0 %v3787, 127
    %v3832 = vpop.permute.xlu0 %3831
    %v3833 = vsel %vm497, %v3824, %v3826
    %v3834 = vsel %vm497, %v3826, %v3828
    %v3835 = vsel %vm497, %v3828, %v3830
    %v3836 = vsel %vm497, %v3830, %v3832
    %3846 = vrot.lane.b32.xlu0 %v3788, 126
    %v3847 = vpop.permute.xlu0 %3846
    %3848 = vrot.lane.b32.xlu0 %v3789, 126
    %v3849 = vpop.permute.xlu0 %3848
    %3850 = vrot.lane.b32.xlu0 %v3790, 126
    %v3851 = vpop.permute.xlu0 %3850
    %3852 = vrot.lane.b32.xlu0 %v3791, 126
    %v3853 = vpop.permute.xlu0 %3852
    %3854 = vrot.lane.b32.xlu0 %v3792, 126
    %v3855 = vpop.permute.xlu0 %3854
    %v3856 = vsel %vm526, %v3847, %v3849
    %v3857 = vsel %vm526, %v3849, %v3851
    %v3858 = vsel %vm526, %v3851, %v3853
    %v3859 = vsel %vm526, %v3853, %v3855
    %3869 = vrot.lane.b32.xlu0 %v3793, 112
    %v3870 = vpop.permute.xlu0 %3869
    %3871 = vrot.lane.b32.xlu0 %v3794, 112
    %v3872 = vpop.permute.xlu0 %3871
    %3873 = vrot.lane.b32.xlu0 %v3795, 112
    %v3874 = vpop.permute.xlu0 %3873
    %3875 = vrot.lane.b32.xlu0 %v3796, 112
    %v3876 = vpop.permute.xlu0 %3875
    %3877 = vrot.lane.b32.xlu0 %v3797, 112
    %v3878 = vpop.permute.xlu0 %3877
    %v3879 = vsel %vm555, %v3870, %v3872
    %v3880 = vsel %vm555, %v3872, %v3874
    %v3881 = vsel %vm555, %v3874, %v3876
    %v3882 = vsel %vm555, %v3876, %v3878
    %3889 = vrot.lane.b32.xlu0 %v3777, 111
    %v3890 = vpop.permute.xlu0 %3889
    %3891 = vrot.lane.b32.xlu0 %v3769, 111
    %v3892 = vpop.permute.xlu0 %3891
    %3893 = vrot.lane.b32.xlu0 %v3770, 111
    %v3894 = vpop.permute.xlu0 %3893
    %3895 = vrot.lane.b32.xlu0 %v3771, 111
    %v3896 = vpop.permute.xlu0 %3895
    %3897 = vrot.lane.b32.xlu0 %v3778, 111
    %v3898 = vpop.permute.xlu0 %3897
    %v3899 = vsel %vm581, %v3890, %v3892
    %v3900 = vsel %vm581, %v3892, %v3894
    %v3901 = vsel %vm581, %v3894, %v3896
    %v3902 = vsel %vm581, %v3896, %v3898
    %3912 = vrot.lane.b32.xlu0 %v3798, 110
    %v3913 = vpop.permute.xlu0 %3912
    %3914 = vrot.lane.b32.xlu0 %v3799, 110
    %v3915 = vpop.permute.xlu0 %3914
    %3916 = vrot.lane.b32.xlu0 %v3800, 110
    %v3917 = vpop.permute.xlu0 %3916
    %3918 = vrot.lane.b32.xlu0 %v3801, 110
    %v3919 = vpop.permute.xlu0 %3918
    %3920 = vrot.lane.b32.xlu0 %v3802, 110
    %v3921 = vpop.permute.xlu0 %3920
    %v3922 = vsel %vm610, %v3913, %v3915
    %v3923 = vsel %vm610, %v3915, %v3917
    %v3924 = vsel %vm610, %v3917, %v3919
    %v3925 = vsel %vm610, %v3919, %v3921
    %3935 = vrot.lane.b32.xlu0 %v3803, 96
    %v3936 = vpop.permute.xlu0 %3935
    %3937 = vrot.lane.b32.xlu0 %v3804, 96
    %v3938 = vpop.permute.xlu0 %3937
    %3939 = vrot.lane.b32.xlu0 %v3805, 96
    %v3940 = vpop.permute.xlu0 %3939
    %3941 = vrot.lane.b32.xlu0 %v3806, 96
    %v3942 = vpop.permute.xlu0 %3941
    %3943 = vrot.lane.b32.xlu0 %v3807, 96
    %v3944 = vpop.permute.xlu0 %3943
    %v3945 = vsel %vm639, %v3936, %v3938
    %v3946 = vsel %vm639, %v3938, %v3940
    %v3947 = vsel %vm639, %v3940, %v3942
    %v3948 = vsel %vm639, %v3942, %v3944
    %3958 = vrot.lane.b32.xlu0 %v3808, 95
    %v3959 = vpop.permute.xlu0 %3958
    %3960 = vrot.lane.b32.xlu0 %v3809, 95
    %v3961 = vpop.permute.xlu0 %3960
    %3962 = vrot.lane.b32.xlu0 %v3810, 95
    %v3963 = vpop.permute.xlu0 %3962
    %3964 = vrot.lane.b32.xlu0 %v3811, 95
    %v3965 = vpop.permute.xlu0 %3964
    %3966 = vrot.lane.b32.xlu0 %v3812, 95
    %v3967 = vpop.permute.xlu0 %3966
    %v3968 = vsel %vm668, %v3959, %v3961
    %v3969 = vsel %vm668, %v3961, %v3963
    %v3970 = vsel %vm668, %v3963, %v3965
    %v3971 = vsel %vm668, %v3965, %v3967
    %3981 = vrot.lane.b32.xlu0 %v3813, 94
    %v3982 = vpop.permute.xlu0 %3981
    %3983 = vrot.lane.b32.xlu0 %v3814, 94
    %v3984 = vpop.permute.xlu0 %3983
    %3985 = vrot.lane.b32.xlu0 %v3815, 94
    %v3986 = vpop.permute.xlu0 %3985
    %3987 = vrot.lane.b32.xlu0 %v3816, 94
    %v3988 = vpop.permute.xlu0 %3987
    %3989 = vrot.lane.b32.xlu0 %v3817, 94
    %v3990 = vpop.permute.xlu0 %3989
    %v3991 = vsel %vm692, %v3982, %v3984
    %v3992 = vsel %vm692, %v3984, %v3986
    %v3993 = vsel %vm692, %v3986, %v3988
    %v3994 = vsel %vm692, %v3988, %v3990
    %v3999 = vpack.c.bf16 %v3833, %v3779
    %v4000 = vpack.c.bf16 %v3834, %v3780
    %v4001 = vpack.c.bf16 %v3835, %v3781
    %v4002 = vpack.c.bf16 %v3836, %v3782
    %v4003 = vpack.c.bf16 %v3879, %v3856
    %v4004 = vpack.c.bf16 %v3880, %v3857
    %v4005 = vpack.c.bf16 %v3881, %v3858
    %v4006 = vpack.c.bf16 %v3882, %v3859
    %v4007 = vpack.c.bf16 %v3922, %v3899
    %v4008 = vpack.c.bf16 %v3923, %v3900
    %v4009 = vpack.c.bf16 %v3924, %v3901
    %v4010 = vpack.c.bf16 %v3925, %v3902
    %v4011 = vpack.c.bf16 %v3968, %v3945
    %v4012 = vpack.c.bf16 %v3969, %v3946
    %v4013 = vpack.c.bf16 %v3970, %v3947
    %v4014 = vpack.c.bf16 %v3971, %v3948
    %v4015 = vpack.c.bf16 %v3991, %v3991
    %v4016 = vpack.c.bf16 %v3992, %v3992
    %v4017 = vpack.c.bf16 %v3993, %v3993
    %v4018 = vpack.c.bf16 %v3994, %v3994
    %4020 = vset.pattern.permute.xlu0 0
    %4021 = vperm.xlu0 %4020, %v3756
    %v4022 = vpop.permute.xlu0 %4021
    %v4025 = vsel %vm1092, %v3755, 0
    %v4028 = vsel %vm716, %v4015, 0
    %v4031 = vsel %vm716, %v4016, 0
    %v4034 = vsel %vm716, %v4017, 0
    %v4037 = vsel %vm716, %v4018, 0
    %4039 = vmatpush.bf16.msra.mxu0 0
    %4040 = vmatpush.bf16.msra.mxu0 0
    %4041 = vmatpush.bf16.msra.mxu0 0
    %4042 = vmatpush.bf16.msra.mxu0 %v4028
    %4043 = vmatpush.bf16.msra.mxu0 %v4011
    %4044 = vmatpush.bf16.msra.mxu0 %v4007
    %4045 = vmatpush.bf16.msra.mxu0 %v4003
    %4046 = vmatpush.bf16.msra.mxu0 %v3999
    %4047 = vmatmul.bf16.gmra.mxu0 %v4025
    %v4048 = vpop.f32.mrf.mxu0
    %v4049 = vadd.f32 %v4022, %v4048
    %v4050 = vpop.f32.mrf.mxu0
    %4051 = vdwg.mxu0
    %4052 = vmatpush.bf16.msra.mxu0 0
    %4053 = vmatpush.bf16.msra.mxu0 0
    %4054 = vmatpush.bf16.msra.mxu0 0
    %4055 = vmatpush.bf16.msra.mxu0 %v4031
    %4056 = vmatpush.bf16.msra.mxu0 %v4012
    %4057 = vmatpush.bf16.msra.mxu0 %v4008
    %4058 = vmatpush.bf16.msra.mxu0 %v4004
    %4059 = vmatpush.bf16.msra.mxu0 %v4000
    %4060 = vmatmul.bf16.gmra.mxu0 %v4025
    %v4061 = vpop.f32.mrf.mxu0
    %v4062 = vadd.f32 %v4022, %v4061
    %v4063 = vpop.f32.mrf.mxu0
    %4064 = vdwg.mxu0
    %4065 = vmatpush.bf16.msra.mxu0 0
    %4066 = vmatpush.bf16.msra.mxu0 0
    %4067 = vmatpush.bf16.msra.mxu0 0
    %4068 = vmatpush.bf16.msra.mxu0 %v4034
    %4069 = vmatpush.bf16.msra.mxu0 %v4013
    %4070 = vmatpush.bf16.msra.mxu0 %v4009
    %4071 = vmatpush.bf16.msra.mxu0 %v4005
    %4072 = vmatpush.bf16.msra.mxu0 %v4001
    %4073 = vmatmul.bf16.gmra.mxu0 %v4025
    %v4074 = vpop.f32.mrf.mxu0
    %v4075 = vadd.f32 %v4022, %v4074
    %v4076 = vpop.f32.mrf.mxu0
    %4077 = vdwg.mxu0
    %4078 = vmatpush.bf16.msra.mxu0 0
    %4079 = vmatpush.bf16.msra.mxu0 0
    %4080 = vmatpush.bf16.msra.mxu0 0
    %4081 = vmatpush.bf16.msra.mxu0 %v4037
    %4082 = vmatpush.bf16.msra.mxu0 %v4014
    %4083 = vmatpush.bf16.msra.mxu0 %v4010
    %4084 = vmatpush.bf16.msra.mxu0 %v4006
    %4085 = vmatpush.bf16.msra.mxu0 %v4002
    %4086 = vmatmul.bf16.gmra.mxu0 %v4025
    %v4087 = vpop.f32.mrf.mxu0
    %v4088 = vadd.f32 %v4022, %v4087
    %v4089 = vpop.f32.mrf.mxu0
    %4090 = vdwg.mxu0
    %v4091 = vmax.f32 %v4049, 0.0
    %v4092 = vmax.f32 %v4062, 0.0
    %v4093 = vmax.f32 %v4075, 0.0
    %v4094 = vmax.f32 %v4088, 0.0
    %v4095 = vld [vmem:[%s61] sm:$0xf]
    %v4096 = vld [vmem:[%s61 + $0x4] sm:$0xf]
    %v4097 = vld [vmem:[%s61 + $0x8] sm:$0xf]
    %v4098 = vld [vmem:[%s61 + $0xc] sm:$0xf]
    %v4099 = vpack.c.bf16 %v2588, %v2587
    %v4100 = vpack.c.bf16 %v2590, %v2589
    %v4105 = vunpack.c.l.b16 %v4095
    %v4106 = vunpack.c.l.b16 %v4096
    %v4107 = vunpack.c.l.b16 %v4097
    %v4108 = vunpack.c.l.b16 %v4098
    %v4109 = vpack.c.b16 %v4106, %v4105
    %v4110 = vpack.c.b16 %v4108, %v4107
    %v4114 = vsel %vm411, %v4099, 0
    %v4117 = vsel %vm411, %v4100, 0
    %4119 = vmatpush.bf16.msra.mxu0 0
    %4120 = vmatpush.bf16.msra.mxu0 0
    %4121 = vmatpush.bf16.msra.mxu0 0
    %4122 = vmatpush.bf16.msra.mxu0 0
    %4123 = vmatpush.bf16.msra.mxu0 0
    %4124 = vmatpush.bf16.msra.mxu0 0
    %4125 = vmatpush.bf16.msra.mxu0 %v4110
    %4126 = vmatpush.bf16.msra.mxu0 %v4109
    %4127 = vmatmul.bf16.gmra.mxu0 %v4114
    %v4128 = vpop.f32.mrf.mxu0
    %v4129 = vadd.f32 0.0, %v4128
    %v4130 = vpop.f32.mrf.mxu0
    %v4131 = vadd.f32 0.0, %v4130
    %4132 = vmatmul.bf16.gmra.mxu0 %v4117
    %v4133 = vpop.f32.mrf.mxu0
    %v4134 = vadd.f32 0.0, %v4133
    %v4135 = vpop.f32.mrf.mxu0
    %v4136 = vadd.f32 0.0, %v4135
    %4137 = vdwg.mxu0
    %v4138 = vld [vmem:[%s35] sm:$0xff]
    %v4139 = vld [vmem:[%s35 + $0x8] sm:$0xff]
    %v4140 = vld [vmem:[%s35 + $0x10] sm:$0xff]
    %v4141 = vld [vmem:[%s35 + $0x18] sm:$0xff]
    %v4142 = vld [vmem:[%s37] sm:$0xff]
    %v4143 = vld [vmem:[%s37 + $0x8] sm:$0xff]
    %4148 = vrot.lane.b32.xlu0 %v1928, 9
    %v4149 = vpop.permute.xlu0 %4148
    %4150 = vrot.lane.b32.xlu0 %v1929, 9
    %v4151 = vpop.permute.xlu0 %4150
    %4152 = vrot.lane.b32.xlu0 %v4129, 9
    %v4153 = vpop.permute.xlu0 %4152
    %4154 = vrot.lane.b32.xlu0 %v4131, 9
    %v4155 = vpop.permute.xlu0 %4154
    %4156 = vrot.lane.b32.xlu0 %v4134, 9
    %v4157 = vpop.permute.xlu0 %4156
    %4158 = vrot.lane.b32.xlu0 %v4136, 9
    %v4159 = vpop.permute.xlu0 %4158
    %v4166 = vsel %vm1540, 0.0, %v4149
    %v4167 = vsel %vm1540, 0.0, %v4151
    %v4168 = vsel %vm1540, 0.0, %v4153
    %v4169 = vsel %vm1540, 0.0, %v4155
    %v4170 = vsel %vm1540, 0.0, %v4157
    %v4171 = vsel %vm1540, 0.0, %v4159
    %v4172 = vsel %vm1540, %v4149, 0.0
    %v4173 = vsel %vm1540, %v4151, 0.0
    %v4174 = vsel %vm1540, %v4153, 0.0
    %v4175 = vsel %vm1540, %v4155, 0.0
    %v4176 = vsel %vm1540, %v4157, 0.0
    %v4177 = vsel %vm1540, %v4159, 0.0
    %v4178 = vmul.f32 %v4166, %v238
    %v4179 = vmul.f32 %v4167, %v238
    %v4180 = vmul.f32 %v4168, %v238
    %v4181 = vmul.f32 %v4169, %v238
    %v4182 = vmul.f32 %v4170, %v238
    %v4183 = vmul.f32 %v4171, %v238
    %v4184 = vmul.f32 %v4166, %v1546
    %v4185 = vmul.f32 %v4172, %v1546
    %v4186 = vmul.f32 %v4167, %v1546
    %v4187 = vmul.f32 %v4173, %v1546
    %v4188 = vmul.f32 %v4168, %v1546
    %v4189 = vmul.f32 %v4174, %v1546
    %v4190 = vmul.f32 %v4169, %v1546
    %v4191 = vmul.f32 %v4175, %v1546
    %v4192 = vmul.f32 %v4170, %v1546
    %v4193 = vmul.f32 %v4176, %v1546
    %v4194 = vmul.f32 %v4171, %v1546
    %v4195 = vmul.f32 %v4177, %v1546
    %v4196 = vmul.f32 %v4166, %v1552
    %v4197 = vmul.f32 %v4172, %v1552
    %v4198 = vmul.f32 %v4167, %v1552
    %v4199 = vmul.f32 %v4173, %v1552
    %v4200 = vmul.f32 %v4168, %v1552
    %v4201 = vmul.f32 %v4174, %v1552
    %v4202 = vmul.f32 %v4169, %v1552
    %v4203 = vmul.f32 %v4175, %v1552
    %v4204 = vmul.f32 %v4170, %v1552
    %v4205 = vmul.f32 %v4176, %v1552
    %v4206 = vmul.f32 %v4171, %v1552
    %v4207 = vmul.f32 %v4177, %v1552
    %v4208 = vmul.f32 %v4166, %v1558
    %v4209 = vmul.f32 %v4172, %v1558
    %v4210 = vmul.f32 %v4167, %v1558
    %v4211 = vmul.f32 %v4173, %v1558
    %v4212 = vmul.f32 %v4168, %v1558
    %v4213 = vmul.f32 %v4174, %v1558
    %v4214 = vmul.f32 %v4169, %v1558
    %v4215 = vmul.f32 %v4175, %v1558
    %v4216 = vmul.f32 %v4170, %v1558
    %v4217 = vmul.f32 %v4176, %v1558
    %v4218 = vmul.f32 %v4171, %v1558
    %v4219 = vmul.f32 %v4177, %v1558
    %v4220 = vmul.f32 %v4166, %v1564
    %v4221 = vmul.f32 %v4172, %v1564
    %v4222 = vmul.f32 %v4167, %v1564
    %v4223 = vmul.f32 %v4173, %v1564
    %v4224 = vmul.f32 %v4168, %v1564
    %v4225 = vmul.f32 %v4174, %v1564
    %v4226 = vmul.f32 %v4169, %v1564
    %v4227 = vmul.f32 %v4175, %v1564
    %v4228 = vmul.f32 %v4170, %v1564
    %v4229 = vmul.f32 %v4176, %v1564
    %v4230 = vmul.f32 %v4171, %v1564
    %v4231 = vmul.f32 %v4177, %v1564
    %v4232 = vmul.f32 %v4166, %v1570
    %v4233 = vmul.f32 %v4172, %v1570
    %v4234 = vmul.f32 %v4167, %v1570
    %v4235 = vmul.f32 %v4173, %v1570
    %v4236 = vmul.f32 %v4168, %v1570
    %v4237 = vmul.f32 %v4174, %v1570
    %v4238 = vmul.f32 %v4169, %v1570
    %v4239 = vmul.f32 %v4175, %v1570
    %v4240 = vmul.f32 %v4170, %v1570
    %v4241 = vmul.f32 %v4176, %v1570
    %v4242 = vmul.f32 %v4171, %v1570
    %v4243 = vmul.f32 %v4177, %v1570
    %v4244 = vmul.f32 %v4166, %v1576
    %v4245 = vmul.f32 %v4172, %v1576
    %v4246 = vmul.f32 %v4167, %v1576
    %v4247 = vmul.f32 %v4173, %v1576
    %v4248 = vmul.f32 %v4168, %v1576
    %v4249 = vmul.f32 %v4174, %v1576
    %v4250 = vmul.f32 %v4169, %v1576
    %v4251 = vmul.f32 %v4175, %v1576
    %v4252 = vmul.f32 %v4170, %v1576
    %v4253 = vmul.f32 %v4176, %v1576
    %v4254 = vmul.f32 %v4171, %v1576
    %v4255 = vmul.f32 %v4177, %v1576
    %v4256 = vmul.f32 %v4166, %v1582
    %v4257 = vmul.f32 %v4172, %v1582
    %v4258 = vmul.f32 %v4167, %v1582
    %v4259 = vmul.f32 %v4173, %v1582
    %v4260 = vmul.f32 %v4168, %v1582
    %v4261 = vmul.f32 %v4174, %v1582
    %v4262 = vmul.f32 %v4169, %v1582
    %v4263 = vmul.f32 %v4175, %v1582
    %v4264 = vmul.f32 %v4170, %v1582
    %v4265 = vmul.f32 %v4176, %v1582
    %v4266 = vmul.f32 %v4171, %v1582
    %v4267 = vmul.f32 %v4177, %v1582
    %4280 = vrot.lane.b32.xlu0 %v4184, 127
    %v4281 = vpop.permute.xlu0 %4280
    %4282 = vrot.lane.b32.xlu0 %v4185, 127
    %v4283 = vpop.permute.xlu0 %4282
    %4284 = vrot.lane.b32.xlu0 %v4186, 127
    %v4285 = vpop.permute.xlu0 %4284
    %4286 = vrot.lane.b32.xlu0 %v4187, 127
    %v4287 = vpop.permute.xlu0 %4286
    %4288 = vrot.lane.b32.xlu0 %v4188, 127
    %v4289 = vpop.permute.xlu0 %4288
    %4290 = vrot.lane.b32.xlu0 %v4189, 127
    %v4291 = vpop.permute.xlu0 %4290
    %4292 = vrot.lane.b32.xlu0 %v4190, 127
    %v4293 = vpop.permute.xlu0 %4292
    %4294 = vrot.lane.b32.xlu0 %v4191, 127
    %v4295 = vpop.permute.xlu0 %4294
    %4296 = vrot.lane.b32.xlu0 %v4192, 127
    %v4297 = vpop.permute.xlu0 %4296
    %4298 = vrot.lane.b32.xlu0 %v4193, 127
    %v4299 = vpop.permute.xlu0 %4298
    %4300 = vrot.lane.b32.xlu0 %v4194, 127
    %v4301 = vpop.permute.xlu0 %4300
    %4302 = vrot.lane.b32.xlu0 %v4195, 127
    %v4303 = vpop.permute.xlu0 %4302
    %v4304 = vsel %vm497, %v4281, %v4283
    %v4305 = vsel %vm497, %v4285, %v4287
    %v4306 = vsel %vm497, %v4289, %v4291
    %v4307 = vsel %vm497, %v4293, %v4295
    %v4308 = vsel %vm497, %v4297, %v4299
    %v4309 = vsel %vm497, %v4301, %v4303
    %4328 = vrot.lane.b32.xlu0 %v4196, 126
    %v4329 = vpop.permute.xlu0 %4328
    %4330 = vrot.lane.b32.xlu0 %v4197, 126
    %v4331 = vpop.permute.xlu0 %4330
    %4332 = vrot.lane.b32.xlu0 %v4198, 126
    %v4333 = vpop.permute.xlu0 %4332
    %4334 = vrot.lane.b32.xlu0 %v4199, 126
    %v4335 = vpop.permute.xlu0 %4334
    %4336 = vrot.lane.b32.xlu0 %v4200, 126
    %v4337 = vpop.permute.xlu0 %4336
    %4338 = vrot.lane.b32.xlu0 %v4201, 126
    %v4339 = vpop.permute.xlu0 %4338
    %4340 = vrot.lane.b32.xlu0 %v4202, 126
    %v4341 = vpop.permute.xlu0 %4340
    %4342 = vrot.lane.b32.xlu0 %v4203, 126
    %v4343 = vpop.permute.xlu0 %4342
    %4344 = vrot.lane.b32.xlu0 %v4204, 126
    %v4345 = vpop.permute.xlu0 %4344
    %4346 = vrot.lane.b32.xlu0 %v4205, 126
    %v4347 = vpop.permute.xlu0 %4346
    %4348 = vrot.lane.b32.xlu0 %v4206, 126
    %v4349 = vpop.permute.xlu0 %4348
    %4350 = vrot.lane.b32.xlu0 %v4207, 126
    %v4351 = vpop.permute.xlu0 %4350
    %v4352 = vsel %vm526, %v4329, %v4331
    %v4353 = vsel %vm526, %v4333, %v4335
    %v4354 = vsel %vm526, %v4337, %v4339
    %v4355 = vsel %vm526, %v4341, %v4343
    %v4356 = vsel %vm526, %v4345, %v4347
    %v4357 = vsel %vm526, %v4349, %v4351
    %4376 = vrot.lane.b32.xlu0 %v4208, 120
    %v4377 = vpop.permute.xlu0 %4376
    %4378 = vrot.lane.b32.xlu0 %v4209, 120
    %v4379 = vpop.permute.xlu0 %4378
    %4380 = vrot.lane.b32.xlu0 %v4210, 120
    %v4381 = vpop.permute.xlu0 %4380
    %4382 = vrot.lane.b32.xlu0 %v4211, 120
    %v4383 = vpop.permute.xlu0 %4382
    %4384 = vrot.lane.b32.xlu0 %v4212, 120
    %v4385 = vpop.permute.xlu0 %4384
    %4386 = vrot.lane.b32.xlu0 %v4213, 120
    %v4387 = vpop.permute.xlu0 %4386
    %4388 = vrot.lane.b32.xlu0 %v4214, 120
    %v4389 = vpop.permute.xlu0 %4388
    %4390 = vrot.lane.b32.xlu0 %v4215, 120
    %v4391 = vpop.permute.xlu0 %4390
    %4392 = vrot.lane.b32.xlu0 %v4216, 120
    %v4393 = vpop.permute.xlu0 %4392
    %4394 = vrot.lane.b32.xlu0 %v4217, 120
    %v4395 = vpop.permute.xlu0 %4394
    %4396 = vrot.lane.b32.xlu0 %v4218, 120
    %v4397 = vpop.permute.xlu0 %4396
    %4398 = vrot.lane.b32.xlu0 %v4219, 120
    %v4399 = vpop.permute.xlu0 %4398
    %v4400 = vsel %vm1608, %v4377, %v4379
    %v4401 = vsel %vm1608, %v4381, %v4383
    %v4402 = vsel %vm1608, %v4385, %v4387
    %v4403 = vsel %vm1608, %v4389, %v4391
    %v4404 = vsel %vm1608, %v4393, %v4395
    %v4405 = vsel %vm1608, %v4397, %v4399
    %4424 = vrot.lane.b32.xlu0 %v4166, 119
    %v4425 = vpop.permute.xlu0 %4424
    %4426 = vrot.lane.b32.xlu0 %v4172, 119
    %v4427 = vpop.permute.xlu0 %4426
    %4428 = vrot.lane.b32.xlu0 %v4167, 119
    %v4429 = vpop.permute.xlu0 %4428
    %4430 = vrot.lane.b32.xlu0 %v4173, 119
    %v4431 = vpop.permute.xlu0 %4430
    %4432 = vrot.lane.b32.xlu0 %v4168, 119
    %v4433 = vpop.permute.xlu0 %4432
    %4434 = vrot.lane.b32.xlu0 %v4174, 119
    %v4435 = vpop.permute.xlu0 %4434
    %4436 = vrot.lane.b32.xlu0 %v4169, 119
    %v4437 = vpop.permute.xlu0 %4436
    %4438 = vrot.lane.b32.xlu0 %v4175, 119
    %v4439 = vpop.permute.xlu0 %4438
    %4440 = vrot.lane.b32.xlu0 %v4170, 119
    %v4441 = vpop.permute.xlu0 %4440
    %4442 = vrot.lane.b32.xlu0 %v4176, 119
    %v4443 = vpop.permute.xlu0 %4442
    %4444 = vrot.lane.b32.xlu0 %v4171, 119
    %v4445 = vpop.permute.xlu0 %4444
    %4446 = vrot.lane.b32.xlu0 %v4177, 119
    %v4447 = vpop.permute.xlu0 %4446
    %v4448 = vsel %vm1617, %v4425, %v4427
    %v4449 = vsel %vm1617, %v4429, %v4431
    %v4450 = vsel %vm1617, %v4433, %v4435
    %v4451 = vsel %vm1617, %v4437, %v4439
    %v4452 = vsel %vm1617, %v4441, %v4443
    %v4453 = vsel %vm1617, %v4445, %v4447
    %4472 = vrot.lane.b32.xlu0 %v4220, 118
    %v4473 = vpop.permute.xlu0 %4472
    %4474 = vrot.lane.b32.xlu0 %v4221, 118
    %v4475 = vpop.permute.xlu0 %4474
    %4476 = vrot.lane.b32.xlu0 %v4222, 118
    %v4477 = vpop.permute.xlu0 %4476
    %4478 = vrot.lane.b32.xlu0 %v4223, 118
    %v4479 = vpop.permute.xlu0 %4478
    %4480 = vrot.lane.b32.xlu0 %v4224, 118
    %v4481 = vpop.permute.xlu0 %4480
    %4482 = vrot.lane.b32.xlu0 %v4225, 118
    %v4483 = vpop.permute.xlu0 %4482
    %4484 = vrot.lane.b32.xlu0 %v4226, 118
    %v4485 = vpop.permute.xlu0 %4484
    %4486 = vrot.lane.b32.xlu0 %v4227, 118
    %v4487 = vpop.permute.xlu0 %4486
    %4488 = vrot.lane.b32.xlu0 %v4228, 118
    %v4489 = vpop.permute.xlu0 %4488
    %4490 = vrot.lane.b32.xlu0 %v4229, 118
    %v4491 = vpop.permute.xlu0 %4490
    %4492 = vrot.lane.b32.xlu0 %v4230, 118
    %v4493 = vpop.permute.xlu0 %4492
    %4494 = vrot.lane.b32.xlu0 %v4231, 118
    %v4495 = vpop.permute.xlu0 %4494
    %v4496 = vsel %vm1626, %v4473, %v4475
    %v4497 = vsel %vm1626, %v4477, %v4479
    %v4498 = vsel %vm1626, %v4481, %v4483
    %v4499 = vsel %vm1626, %v4485, %v4487
    %v4500 = vsel %vm1626, %v4489, %v4491
    %v4501 = vsel %vm1626, %v4493, %v4495
    %4520 = vrot.lane.b32.xlu0 %v4232, 112
    %v4521 = vpop.permute.xlu0 %4520
    %4522 = vrot.lane.b32.xlu0 %v4233, 112
    %v4523 = vpop.permute.xlu0 %4522
    %4524 = vrot.lane.b32.xlu0 %v4234, 112
    %v4525 = vpop.permute.xlu0 %4524
    %4526 = vrot.lane.b32.xlu0 %v4235, 112
    %v4527 = vpop.permute.xlu0 %4526
    %4528 = vrot.lane.b32.xlu0 %v4236, 112
    %v4529 = vpop.permute.xlu0 %4528
    %4530 = vrot.lane.b32.xlu0 %v4237, 112
    %v4531 = vpop.permute.xlu0 %4530
    %4532 = vrot.lane.b32.xlu0 %v4238, 112
    %v4533 = vpop.permute.xlu0 %4532
    %4534 = vrot.lane.b32.xlu0 %v4239, 112
    %v4535 = vpop.permute.xlu0 %4534
    %4536 = vrot.lane.b32.xlu0 %v4240, 112
    %v4537 = vpop.permute.xlu0 %4536
    %4538 = vrot.lane.b32.xlu0 %v4241, 112
    %v4539 = vpop.permute.xlu0 %4538
    %4540 = vrot.lane.b32.xlu0 %v4242, 112
    %v4541 = vpop.permute.xlu0 %4540
    %4542 = vrot.lane.b32.xlu0 %v4243, 112
    %v4543 = vpop.permute.xlu0 %4542
    %v4544 = vsel %vm555, %v4521, %v4523
    %v4545 = vsel %vm555, %v4525, %v4527
    %v4546 = vsel %vm555, %v4529, %v4531
    %v4547 = vsel %vm555, %v4533, %v4535
    %v4548 = vsel %vm555, %v4537, %v4539
    %v4549 = vsel %vm555, %v4541, %v4543
    %4568 = vrot.lane.b32.xlu0 %v4244, 111
    %v4569 = vpop.permute.xlu0 %4568
    %4570 = vrot.lane.b32.xlu0 %v4245, 111
    %v4571 = vpop.permute.xlu0 %4570
    %4572 = vrot.lane.b32.xlu0 %v4246, 111
    %v4573 = vpop.permute.xlu0 %4572
    %4574 = vrot.lane.b32.xlu0 %v4247, 111
    %v4575 = vpop.permute.xlu0 %4574
    %4576 = vrot.lane.b32.xlu0 %v4248, 111
    %v4577 = vpop.permute.xlu0 %4576
    %4578 = vrot.lane.b32.xlu0 %v4249, 111
    %v4579 = vpop.permute.xlu0 %4578
    %4580 = vrot.lane.b32.xlu0 %v4250, 111
    %v4581 = vpop.permute.xlu0 %4580
    %4582 = vrot.lane.b32.xlu0 %v4251, 111
    %v4583 = vpop.permute.xlu0 %4582
    %4584 = vrot.lane.b32.xlu0 %v4252, 111
    %v4585 = vpop.permute.xlu0 %4584
    %4586 = vrot.lane.b32.xlu0 %v4253, 111
    %v4587 = vpop.permute.xlu0 %4586
    %4588 = vrot.lane.b32.xlu0 %v4254, 111
    %v4589 = vpop.permute.xlu0 %4588
    %4590 = vrot.lane.b32.xlu0 %v4255, 111
    %v4591 = vpop.permute.xlu0 %4590
    %v4592 = vsel %vm581, %v4569, %v4571
    %v4593 = vsel %vm581, %v4573, %v4575
    %v4594 = vsel %vm581, %v4577, %v4579
    %v4595 = vsel %vm581, %v4581, %v4583
    %v4596 = vsel %vm581, %v4585, %v4587
    %v4597 = vsel %vm581, %v4589, %v4591
    %4616 = vrot.lane.b32.xlu0 %v4256, 110
    %v4617 = vpop.permute.xlu0 %4616
    %4618 = vrot.lane.b32.xlu0 %v4257, 110
    %v4619 = vpop.permute.xlu0 %4618
    %4620 = vrot.lane.b32.xlu0 %v4258, 110
    %v4621 = vpop.permute.xlu0 %4620
    %4622 = vrot.lane.b32.xlu0 %v4259, 110
    %v4623 = vpop.permute.xlu0 %4622
    %4624 = vrot.lane.b32.xlu0 %v4260, 110
    %v4625 = vpop.permute.xlu0 %4624
    %4626 = vrot.lane.b32.xlu0 %v4261, 110
    %v4627 = vpop.permute.xlu0 %4626
    %4628 = vrot.lane.b32.xlu0 %v4262, 110
    %v4629 = vpop.permute.xlu0 %4628
    %4630 = vrot.lane.b32.xlu0 %v4263, 110
    %v4631 = vpop.permute.xlu0 %4630
    %4632 = vrot.lane.b32.xlu0 %v4264, 110
    %v4633 = vpop.permute.xlu0 %4632
    %4634 = vrot.lane.b32.xlu0 %v4265, 110
    %v4635 = vpop.permute.xlu0 %4634
    %4636 = vrot.lane.b32.xlu0 %v4266, 110
    %v4637 = vpop.permute.xlu0 %4636
    %4638 = vrot.lane.b32.xlu0 %v4267, 110
    %v4639 = vpop.permute.xlu0 %4638
    %v4640 = vsel %vm610, %v4617, %v4619
    %v4641 = vsel %vm610, %v4621, %v4623
    %v4642 = vsel %vm610, %v4625, %v4627
    %v4643 = vsel %vm610, %v4629, %v4631
    %v4644 = vsel %vm610, %v4633, %v4635
    %v4645 = vsel %vm610, %v4637, %v4639
    %v4652 = vpack.c.bf16 %v4179, %v4178
    %v4653 = vpack.c.bf16 %v4181, %v4180
    %v4654 = vpack.c.bf16 %v4183, %v4182
    %v4655 = vpack.c.bf16 %v4305, %v4304
    %v4656 = vpack.c.bf16 %v4307, %v4306
    %v4657 = vpack.c.bf16 %v4309, %v4308
    %v4658 = vpack.c.bf16 %v4353, %v4352
    %v4659 = vpack.c.bf16 %v4355, %v4354
    %v4660 = vpack.c.bf16 %v4357, %v4356
    %v4661 = vpack.c.bf16 %v4401, %v4400
    %v4662 = vpack.c.bf16 %v4403, %v4402
    %v4663 = vpack.c.bf16 %v4405, %v4404
    %v4664 = vpack.c.bf16 %v4449, %v4448
    %v4665 = vpack.c.bf16 %v4451, %v4450
    %v4666 = vpack.c.bf16 %v4453, %v4452
    %v4667 = vpack.c.bf16 %v4497, %v4496
    %v4668 = vpack.c.bf16 %v4499, %v4498
    %v4669 = vpack.c.bf16 %v4501, %v4500
    %v4670 = vpack.c.bf16 %v4545, %v4544
    %v4671 = vpack.c.bf16 %v4547, %v4546
    %v4672 = vpack.c.bf16 %v4549, %v4548
    %v4673 = vpack.c.bf16 %v4593, %v4592
    %v4674 = vpack.c.bf16 %v4595, %v4594
    %v4675 = vpack.c.bf16 %v4597, %v4596
    %v4676 = vpack.c.bf16 %v4641, %v4640
    %v4677 = vpack.c.bf16 %v4643, %v4642
    %v4678 = vpack.c.bf16 %v4645, %v4644
    %4680 = vset.pattern.permute.xlu0 0
    %4681 = vperm.xlu0 %4680, %v4142
    %v4682 = vpop.permute.xlu0 %4681
    %4685 = vset.pattern.permute.xlu0 0
    %4686 = vperm.xlu0 %4685, %v4143
    %v4687 = vpop.permute.xlu0 %4686
    %v4693 = vunpack.c.l.b16 %v4138
    %v4694 = vunpack.c.h.b16 %v4138
    %v4695 = vunpack.c.l.b16 %v4139
    %v4696 = vunpack.c.h.b16 %v4139
    %v4697 = vunpack.c.l.b16 %v4140
    %v4698 = vunpack.c.h.b16 %v4140
    %v4699 = vunpack.c.l.b16 %v4141
    %v4700 = vunpack.c.h.b16 %v4141
    %v4701 = vpack.c.b16 %v4697, %v4693
    %v4702 = vpack.c.b16 %v4698, %v4694
    %v4703 = vpack.c.b16 %v4699, %v4695
    %v4704 = vpack.c.b16 %v4700, %v4696
    %vm4708 = vcmask 392192
    %v4710 = vsel %vm4708, %v4704, 0
    %4712 = vmatpush.bf16.msra.mxu0 %v4659
    %4713 = vmatpush.bf16.msra.mxu0 %v4658
    %4714 = vmatpush.bf16.msra.mxu0 %v4657
    %4715 = vmatpush.bf16.msra.mxu0 %v4656
    %4716 = vmatpush.bf16.msra.mxu0 %v4655
    %4717 = vmatpush.bf16.msra.mxu0 %v4654
    %4718 = vmatpush.bf16.msra.mxu0 %v4653
    %4719 = vmatpush.bf16.msra.mxu0 %v4652
    %4720 = vmatmul.bf16.gmra.mxu0 %v4701
    %v4721 = vpop.f32.mrf.mxu0
    %v4722 = vadd.f32 %v4682, %v4721
    %v4723 = vpop.f32.mrf.mxu0
    %v4724 = vadd.f32 %v4687, %v4723
    %4725 = vdwg.mxu0
    %4726 = vmatpush.bf16.msra.mxu0 %v4667
    %4727 = vmatpush.bf16.msra.mxu0 %v4666
    %4728 = vmatpush.bf16.msra.mxu0 %v4665
    %4729 = vmatpush.bf16.msra.mxu0 %v4664
    %4730 = vmatpush.bf16.msra.mxu0 %v4663
    %4731 = vmatpush.bf16.msra.mxu0 %v4662
    %4732 = vmatpush.bf16.msra.mxu0 %v4661
    %4733 = vmatpush.bf16.msra.mxu0 %v4660
    %4734 = vmatmul.bf16.gmra.mxu0 %v4702
    %v4735 = vpop.f32.mrf.mxu0
    %v4736 = vadd.f32 %v4722, %v4735
    %v4737 = vpop.f32.mrf.mxu0
    %v4738 = vadd.f32 %v4724, %v4737
    %4739 = vdwg.mxu0
    %4740 = vmatpush.bf16.msra.mxu0 %v4675
    %4741 = vmatpush.bf16.msra.mxu0 %v4674
    %4742 = vmatpush.bf16.msra.mxu0 %v4673
    %4743 = vmatpush.bf16.msra.mxu0 %v4672
    %4744 = vmatpush.bf16.msra.mxu0 %v4671
    %4745 = vmatpush.bf16.msra.mxu0 %v4670
    %4746 = vmatpush.bf16.msra.mxu0 %v4669
    %4747 = vmatpush.bf16.msra.mxu0 %v4668
    %4748 = vmatmul.bf16.gmra.mxu0 %v4703
    %v4749 = vpop.f32.mrf.mxu0
    %v4750 = vadd.f32 %v4736, %v4749
    %v4751 = vpop.f32.mrf.mxu0
    %v4752 = vadd.f32 %v4738, %v4751
    %4753 = vdwg.mxu0
    %4754 = vmatpush.bf16.msra.mxu0 0
    %4755 = vmatpush.bf16.msra.mxu0 0
    %4756 = vmatpush.bf16.msra.mxu0 0
    %4757 = vmatpush.bf16.msra.mxu0 0
    %4758 = vmatpush.bf16.msra.mxu0 0
    %4759 = vmatpush.bf16.msra.mxu0 %v4678
    %4760 = vmatpush.bf16.msra.mxu0 %v4677
    %4761 = vmatpush.bf16.msra.mxu0 %v4676
    %4762 = vmatmul.bf16.gmra.mxu0 %v4710
    %v4763 = vpop.f32.mrf.mxu0
    %v4764 = vadd.f32 %v4750, %v4763
    %v4765 = vpop.f32.mrf.mxu0
    %v4766 = vadd.f32 %v4752, %v4765
    %4767 = vdwg.mxu0
    %v4768 = vmax.f32 %v4764, 0.0
    %v4769 = vmax.f32 %v4766, 0.0
    %v4770 = vld [vmem:[%s39] sm:$0xff]
    %v4771 = vld [vmem:[%s39 + $0x8] sm:$0xff]
    %v4772 = vld [vmem:[%s41] sm:$0xff]
    %v4773 = vld [vmem:[%s41 + $0x8] sm:$0xff]
    %4776 = vrot.lane.b32.xlu0 %v4768, 9
    %v4777 = vpop.permute.xlu0 %4776
    %4778 = vrot.lane.b32.xlu0 %v4769, 9
    %v4779 = vpop.permute.xlu0 %4778
    %v4782 = vsel %vm1540, 0.0, %v4777
    %v4783 = vsel %vm1540, 0.0, %v4779
    %v4784 = vsel %vm1540, %v4777, 0.0
    %v4785 = vsel %vm1540, %v4779, 0.0
    %v4786 = vmul.f32 %v4782, %v238
    %v4787 = vmul.f32 %v4783, %v238
    %v4788 = vmul.f32 %v4782, %v1546
    %v4789 = vmul.f32 %v4784, %v1546
    %v4790 = vmul.f32 %v4783, %v1546
    %v4791 = vmul.f32 %v4785, %v1546
    %v4792 = vmul.f32 %v4782, %v1552
    %v4793 = vmul.f32 %v4784, %v1552
    %v4794 = vmul.f32 %v4783, %v1552
    %v4795 = vmul.f32 %v4785, %v1552
    %v4796 = vmul.f32 %v4782, %v1558
    %v4797 = vmul.f32 %v4784, %v1558
    %v4798 = vmul.f32 %v4783, %v1558
    %v4799 = vmul.f32 %v4785, %v1558
    %v4800 = vmul.f32 %v4782, %v1564
    %v4801 = vmul.f32 %v4784, %v1564
    %v4802 = vmul.f32 %v4783, %v1564
    %v4803 = vmul.f32 %v4785, %v1564
    %v4804 = vmul.f32 %v4782, %v1570
    %v4805 = vmul.f32 %v4784, %v1570
    %v4806 = vmul.f32 %v4783, %v1570
    %v4807 = vmul.f32 %v4785, %v1570
    %v4808 = vmul.f32 %v4782, %v1576
    %v4809 = vmul.f32 %v4784, %v1576
    %v4810 = vmul.f32 %v4783, %v1576
    %v4811 = vmul.f32 %v4785, %v1576
    %v4812 = vmul.f32 %v4782, %v1582
    %v4813 = vmul.f32 %v4784, %v1582
    %v4814 = vmul.f32 %v4783, %v1582
    %v4815 = vmul.f32 %v4785, %v1582
    %4820 = vrot.lane.b32.xlu0 %v4788, 127
    %v4821 = vpop.permute.xlu0 %4820
    %4822 = vrot.lane.b32.xlu0 %v4789, 127
    %v4823 = vpop.permute.xlu0 %4822
    %4824 = vrot.lane.b32.xlu0 %v4790, 127
    %v4825 = vpop.permute.xlu0 %4824
    %4826 = vrot.lane.b32.xlu0 %v4791, 127
    %v4827 = vpop.permute.xlu0 %4826
    %v4828 = vsel %vm497, %v4821, %v4823
    %v4829 = vsel %vm497, %v4825, %v4827
    %4836 = vrot.lane.b32.xlu0 %v4792, 126
    %v4837 = vpop.permute.xlu0 %4836
    %4838 = vrot.lane.b32.xlu0 %v4793, 126
    %v4839 = vpop.permute.xlu0 %4838
    %4840 = vrot.lane.b32.xlu0 %v4794, 126
    %v4841 = vpop.permute.xlu0 %4840
    %4842 = vrot.lane.b32.xlu0 %v4795, 126
    %v4843 = vpop.permute.xlu0 %4842
    %v4844 = vsel %vm526, %v4837, %v4839
    %v4845 = vsel %vm526, %v4841, %v4843
    %4852 = vrot.lane.b32.xlu0 %v4796, 120
    %v4853 = vpop.permute.xlu0 %4852
    %4854 = vrot.lane.b32.xlu0 %v4797, 120
    %v4855 = vpop.permute.xlu0 %4854
    %4856 = vrot.lane.b32.xlu0 %v4798, 120
    %v4857 = vpop.permute.xlu0 %4856
    %4858 = vrot.lane.b32.xlu0 %v4799, 120
    %v4859 = vpop.permute.xlu0 %4858
    %v4860 = vsel %vm1608, %v4853, %v4855
    %v4861 = vsel %vm1608, %v4857, %v4859
    %4868 = vrot.lane.b32.xlu0 %v4782, 119
    %v4869 = vpop.permute.xlu0 %4868
    %4870 = vrot.lane.b32.xlu0 %v4784, 119
    %v4871 = vpop.permute.xlu0 %4870
    %4872 = vrot.lane.b32.xlu0 %v4783, 119
    %v4873 = vpop.permute.xlu0 %4872
    %4874 = vrot.lane.b32.xlu0 %v4785, 119
    %v4875 = vpop.permute.xlu0 %4874
    %v4876 = vsel %vm1617, %v4869, %v4871
    %v4877 = vsel %vm1617, %v4873, %v4875
    %4884 = vrot.lane.b32.xlu0 %v4800, 118
    %v4885 = vpop.permute.xlu0 %4884
    %4886 = vrot.lane.b32.xlu0 %v4801, 118
    %v4887 = vpop.permute.xlu0 %4886
    %4888 = vrot.lane.b32.xlu0 %v4802, 118
    %v4889 = vpop.permute.xlu0 %4888
    %4890 = vrot.lane.b32.xlu0 %v4803, 118
    %v4891 = vpop.permute.xlu0 %4890
    %v4892 = vsel %vm1626, %v4885, %v4887
    %v4893 = vsel %vm1626, %v4889, %v4891
    %4900 = vrot.lane.b32.xlu0 %v4804, 112
    %v4901 = vpop.permute.xlu0 %4900
    %4902 = vrot.lane.b32.xlu0 %v4805, 112
    %v4903 = vpop.permute.xlu0 %4902
    %4904 = vrot.lane.b32.xlu0 %v4806, 112
    %v4905 = vpop.permute.xlu0 %4904
    %4906 = vrot.lane.b32.xlu0 %v4807, 112
    %v4907 = vpop.permute.xlu0 %4906
    %v4908 = vsel %vm555, %v4901, %v4903
    %v4909 = vsel %vm555, %v4905, %v4907
    %4916 = vrot.lane.b32.xlu0 %v4808, 111
    %v4917 = vpop.permute.xlu0 %4916
    %4918 = vrot.lane.b32.xlu0 %v4809, 111
    %v4919 = vpop.permute.xlu0 %4918
    %4920 = vrot.lane.b32.xlu0 %v4810, 111
    %v4921 = vpop.permute.xlu0 %4920
    %4922 = vrot.lane.b32.xlu0 %v4811, 111
    %v4923 = vpop.permute.xlu0 %4922
    %v4924 = vsel %vm581, %v4917, %v4919
    %v4925 = vsel %vm581, %v4921, %v4923
    %4932 = vrot.lane.b32.xlu0 %v4812, 110
    %v4933 = vpop.permute.xlu0 %4932
    %4934 = vrot.lane.b32.xlu0 %v4813, 110
    %v4935 = vpop.permute.xlu0 %4934
    %4936 = vrot.lane.b32.xlu0 %v4814, 110
    %v4937 = vpop.permute.xlu0 %4936
    %4938 = vrot.lane.b32.xlu0 %v4815, 110
    %v4939 = vpop.permute.xlu0 %4938
    %v4940 = vsel %vm610, %v4933, %v4935
    %v4941 = vsel %vm610, %v4937, %v4939
    %v4944 = vpack.c.bf16 %v4787, %v4786
    %v4945 = vpack.c.bf16 %v4829, %v4828
    %v4946 = vpack.c.bf16 %v4845, %v4844
    %v4947 = vpack.c.bf16 %v4861, %v4860
    %v4948 = vpack.c.bf16 %v4877, %v4876
    %v4949 = vpack.c.bf16 %v4893, %v4892
    %v4950 = vpack.c.bf16 %v4909, %v4908
    %v4951 = vpack.c.bf16 %v4925, %v4924
    %v4952 = vpack.c.bf16 %v4941, %v4940
    %4954 = vset.pattern.permute.xlu0 0
    %4955 = vperm.xlu0 %4954, %v4772
    %v4956 = vpop.permute.xlu0 %4955
    %4959 = vset.pattern.permute.xlu0 0
    %4960 = vperm.xlu0 %4959, %v4773
    %v4961 = vpop.permute.xlu0 %4960
    %v4965 = vunpack.c.l.b16 %v4770
    %v4966 = vunpack.c.h.b16 %v4770
    %v4967 = vunpack.c.l.b16 %v4771
    %v4968 = vunpack.c.h.b16 %v4771
    %v4969 = vpack.c.b16 %v4967, %v4965
    %v4970 = vpack.c.b16 %v4968, %v4966
    %v4973 = vsel %vm359, %v4970, 0
    %4975 = vmatpush.bf16.msra.mxu0 %v4951
    %4976 = vmatpush.bf16.msra.mxu0 %v4950
    %4977 = vmatpush.bf16.msra.mxu0 %v4949
    %4978 = vmatpush.bf16.msra.mxu0 %v4948
    %4979 = vmatpush.bf16.msra.mxu0 %v4947
    %4980 = vmatpush.bf16.msra.mxu0 %v4946
    %4981 = vmatpush.bf16.msra.mxu0 %v4945
    %4982 = vmatpush.bf16.msra.mxu0 %v4944
    %4983 = vmatmul.bf16.gmra.mxu0 %v4969
    %v4984 = vpop.f32.mrf.mxu0
    %v4985 = vadd.f32 %v4956, %v4984
    %v4986 = vpop.f32.mrf.mxu0
    %v4987 = vadd.f32 %v4961, %v4986
    %4988 = vdwg.mxu0
    %4989 = vmatpush.bf16.msra.mxu0 0
    %4990 = vmatpush.bf16.msra.mxu0 0
    %4991 = vmatpush.bf16.msra.mxu0 0
    %4992 = vmatpush.bf16.msra.mxu0 0
    %4993 = vmatpush.bf16.msra.mxu0 0
    %4994 = vmatpush.bf16.msra.mxu0 0
    %4995 = vmatpush.bf16.msra.mxu0 0
    %4996 = vmatpush.bf16.msra.mxu0 %v4952
    %4997 = vmatmul.bf16.gmra.mxu0 %v4973
    %v4998 = vpop.f32.mrf.mxu0
    %v4999 = vadd.f32 %v4985, %v4998
    %v5000 = vpop.f32.mrf.mxu0
    %v5001 = vadd.f32 %v4987, %v5000
    %5002 = vdwg.mxu0
    %v5003 = vmax.f32 %v4999, 0.0
    %v5004 = vmax.f32 %v5001, 0.0
    %v5005 = vpack.c.bf16 %v5004, %v5003
    %5006 = vmatpush.bf16.msra.mxu0 %v2748
    %5007 = vmatpush.bf16.msra.mxu0 %v2744
    %5008 = vmatpush.bf16.msra.mxu0 %v2740
    %5009 = vmatpush.bf16.msra.mxu0 %v2736
    %5010 = vmatpush.bf16.msra.mxu0 %v2732
    %5011 = vmatpush.bf16.msra.mxu0 %v2728
    %5012 = vmatpush.bf16.msra.mxu0 %v2724
    %5013 = vmatpush.bf16.msra.mxu0 %v2720
    %5014 = vmatmul.bf16.gmra.mxu0 %v5005
    %v5015 = vpop.f32.mrf.mxu0
    %v5016 = vadd.f32 0.0, %v5015
    %v5017 = vpop.f32.mrf.mxu0
    %v5018 = vadd.f32 0.0, %v5017
    %5019 = vdwg.mxu0
    %5020 = vmatpush.bf16.msra.mxu0 %v2749
    %5021 = vmatpush.bf16.msra.mxu0 %v2745
    %5022 = vmatpush.bf16.msra.mxu0 %v2741
    %5023 = vmatpush.bf16.msra.mxu0 %v2737
    %5024 = vmatpush.bf16.msra.mxu0 %v2733
    %5025 = vmatpush.bf16.msra.mxu0 %v2729
    %5026 = vmatpush.bf16.msra.mxu0 %v2725
    %5027 = vmatpush.bf16.msra.mxu0 %v2721
    %5028 = vmatmul.bf16.gmra.mxu0 %v5005
    %v5029 = vpop.f32.mrf.mxu0
    %v5030 = vadd.f32 0.0, %v5029
    %v5031 = vpop.f32.mrf.mxu0
    %v5032 = vadd.f32 0.0, %v5031
    %5033 = vdwg.mxu0
    %5034 = vmatpush.bf16.msra.mxu0 %v2750
    %5035 = vmatpush.bf16.msra.mxu0 %v2746
    %5036 = vmatpush.bf16.msra.mxu0 %v2742
    %5037 = vmatpush.bf16.msra.mxu0 %v2738
    %5038 = vmatpush.bf16.msra.mxu0 %v2734
    %5039 = vmatpush.bf16.msra.mxu0 %v2730
    %5040 = vmatpush.bf16.msra.mxu0 %v2726
    %5041 = vmatpush.bf16.msra.mxu0 %v2722
    %5042 = vmatmul.bf16.gmra.mxu0 %v5005
    %v5043 = vpop.f32.mrf.mxu0
    %v5044 = vadd.f32 0.0, %v5043
    %v5045 = vpop.f32.mrf.mxu0
    %v5046 = vadd.f32 0.0, %v5045
    %5047 = vdwg.mxu0
    %5048 = vmatpush.bf16.msra.mxu0 %v2751
    %5049 = vmatpush.bf16.msra.mxu0 %v2747
    %5050 = vmatpush.bf16.msra.mxu0 %v2743
    %5051 = vmatpush.bf16.msra.mxu0 %v2739
    %5052 = vmatpush.bf16.msra.mxu0 %v2735
    %5053 = vmatpush.bf16.msra.mxu0 %v2731
    %5054 = vmatpush.bf16.msra.mxu0 %v2727
    %5055 = vmatpush.bf16.msra.mxu0 %v2723
    %5056 = vmatmul.bf16.gmra.mxu0 %v5005
    %v5057 = vpop.f32.mrf.mxu0
    %v5058 = vadd.f32 0.0, %v5057
    %v5059 = vpop.f32.mrf.mxu0
    %v5060 = vadd.f32 0.0, %v5059
    %5061 = vdwg.mxu0
    %v5062 = vld [vmem:[%s43] sm:$0xff]
    %v5063 = vld [vmem:[%s43 + $0x8] sm:$0xf]
    %v5064 = vld [vmem:[%s45] sm:$0xff]
    %5077 = vrot.lane.b32.xlu0 %v4091, 17
    %v5078 = vpop.permute.xlu0 %5077
    %5079 = vrot.lane.b32.xlu0 %v4092, 17
    %v5080 = vpop.permute.xlu0 %5079
    %5081 = vrot.lane.b32.xlu0 %v4093, 17
    %v5082 = vpop.permute.xlu0 %5081
    %5083 = vrot.lane.b32.xlu0 %v4094, 17
    %v5084 = vpop.permute.xlu0 %5083
    %5085 = vrot.lane.b32.xlu0 %v5016, 17
    %v5086 = vpop.permute.xlu0 %5085
    %5087 = vrot.lane.b32.xlu0 %v5030, 17
    %v5088 = vpop.permute.xlu0 %5087
    %5089 = vrot.lane.b32.xlu0 %v5044, 17
    %v5090 = vpop.permute.xlu0 %5089
    %5091 = vrot.lane.b32.xlu0 %v5058, 17
    %v5092 = vpop.permute.xlu0 %5091
    %5093 = vrot.lane.b32.xlu0 %v5018, 17
    %v5094 = vpop.permute.xlu0 %5093
    %5095 = vrot.lane.b32.xlu0 %v5032, 17
    %v5096 = vpop.permute.xlu0 %5095
    %5097 = vrot.lane.b32.xlu0 %v5046, 17
    %v5098 = vpop.permute.xlu0 %5097
    %5099 = vrot.lane.b32.xlu0 %v5060, 17
    %v5100 = vpop.permute.xlu0 %5099
    %v5101 = vsel %vm280, %v5078, %v5080
    %v5102 = vsel %vm280, %v5080, %v5082
    %v5103 = vsel %vm280, %v5082, %v5084
    %v5104 = vsel %vm280, %v5086, %v5088
    %v5105 = vsel %vm280, %v5088, %v5090
    %v5106 = vsel %vm280, %v5090, %v5092
    %v5107 = vsel %vm280, %v5094, %v5096
    %v5108 = vsel %vm280, %v5096, %v5098
    %v5109 = vsel %vm280, %v5098, %v5100
    %v5125 = vsel %vm280, 0.0, %v5078
    %v5126 = vsel %vm280, 0.0, %v5086
    %v5127 = vsel %vm280, 0.0, %v5094
    %v5128 = vsel %vm280, %v5084, 0.0
    %v5129 = vsel %vm280, %v5092, 0.0
    %v5130 = vsel %vm280, %v5100, 0.0
    %v5131 = vmul.f32 %v5125, %v208
    %v5132 = vmul.f32 %v5101, %v209
    %v5133 = vmul.f32 %v5102, %v210
    %v5134 = vmul.f32 %v5103, %v211
    %v5135 = vmul.f32 %v5126, %v208
    %v5136 = vmul.f32 %v5104, %v209
    %v5137 = vmul.f32 %v5105, %v210
    %v5138 = vmul.f32 %v5106, %v211
    %v5139 = vmul.f32 %v5127, %v208
    %v5140 = vmul.f32 %v5107, %v209
    %v5141 = vmul.f32 %v5108, %v210
    %v5142 = vmul.f32 %v5109, %v211
    %v5143 = vmul.f32 %v5125, %v300
    %v5144 = vmul.f32 %v5101, %v308
    %v5145 = vmul.f32 %v5102, %v309
    %v5146 = vmul.f32 %v5103, %v310
    %v5147 = vmul.f32 %v5128, %v306
    %v5148 = vmul.f32 %v5126, %v300
    %v5149 = vmul.f32 %v5104, %v308
    %v5150 = vmul.f32 %v5105, %v309
    %v5151 = vmul.f32 %v5106, %v310
    %v5152 = vmul.f32 %v5129, %v306
    %v5153 = vmul.f32 %v5127, %v300
    %v5154 = vmul.f32 %v5107, %v308
    %v5155 = vmul.f32 %v5108, %v309
    %v5156 = vmul.f32 %v5109, %v310
    %v5157 = vmul.f32 %v5130, %v306
    %v5158 = vmul.f32 %v5125, %v326
    %v5159 = vmul.f32 %v5101, %v334
    %v5160 = vmul.f32 %v5102, %v335
    %v5161 = vmul.f32 %v5103, %v336
    %v5162 = vmul.f32 %v5128, %v332
    %v5163 = vmul.f32 %v5126, %v326
    %v5164 = vmul.f32 %v5104, %v334
    %v5165 = vmul.f32 %v5105, %v335
    %v5166 = vmul.f32 %v5106, %v336
    %v5167 = vmul.f32 %v5129, %v332
    %v5168 = vmul.f32 %v5127, %v326
    %v5169 = vmul.f32 %v5107, %v334
    %v5170 = vmul.f32 %v5108, %v335
    %v5171 = vmul.f32 %v5109, %v336
    %v5172 = vmul.f32 %v5130, %v332
    %v5173 = vmul.f32 %v5125, %v352
    %v5174 = vmul.f32 %v5101, %v360
    %v5175 = vmul.f32 %v5102, %v361
    %v5176 = vmul.f32 %v5103, %v362
    %v5177 = vmul.f32 %v5128, %v358
    %v5178 = vmul.f32 %v5126, %v352
    %v5179 = vmul.f32 %v5104, %v360
    %v5180 = vmul.f32 %v5105, %v361
    %v5181 = vmul.f32 %v5106, %v362
    %v5182 = vmul.f32 %v5129, %v358
    %v5183 = vmul.f32 %v5127, %v352
    %v5184 = vmul.f32 %v5107, %v360
    %v5185 = vmul.f32 %v5108, %v361
    %v5186 = vmul.f32 %v5109, %v362
    %v5187 = vmul.f32 %v5130, %v358
    %v5188 = vmul.f32 %v5125, %v378
    %v5189 = vmul.f32 %v5101, %v386
    %v5190 = vmul.f32 %v5102, %v387
    %v5191 = vmul.f32 %v5103, %v388
    %v5192 = vmul.f32 %v5128, %v384
    %v5193 = vmul.f32 %v5126, %v378
    %v5194 = vmul.f32 %v5104, %v386
    %v5195 = vmul.f32 %v5105, %v387
    %v5196 = vmul.f32 %v5106, %v388
    %v5197 = vmul.f32 %v5129, %v384
    %v5198 = vmul.f32 %v5127, %v378
    %v5199 = vmul.f32 %v5107, %v386
    %v5200 = vmul.f32 %v5108, %v387
    %v5201 = vmul.f32 %v5109, %v388
    %v5202 = vmul.f32 %v5130, %v384
    %v5203 = vmul.f32 %v5125, %v404
    %v5204 = vmul.f32 %v5101, %v412
    %v5205 = vmul.f32 %v5102, %v413
    %v5206 = vmul.f32 %v5103, %v414
    %v5207 = vmul.f32 %v5128, %v410
    %v5208 = vmul.f32 %v5126, %v404
    %v5209 = vmul.f32 %v5104, %v412
    %v5210 = vmul.f32 %v5105, %v413
    %v5211 = vmul.f32 %v5106, %v414
    %v5212 = vmul.f32 %v5129, %v410
    %v5213 = vmul.f32 %v5127, %v404
    %v5214 = vmul.f32 %v5107, %v412
    %v5215 = vmul.f32 %v5108, %v413
    %v5216 = vmul.f32 %v5109, %v414
    %v5217 = vmul.f32 %v5130, %v410
    %v5218 = vmul.f32 %v5125, %v430
    %v5219 = vmul.f32 %v5101, %v438
    %v5220 = vmul.f32 %v5102, %v439
    %v5221 = vmul.f32 %v5103, %v440
    %v5222 = vmul.f32 %v5128, %v436
    %v5223 = vmul.f32 %v5126, %v430
    %v5224 = vmul.f32 %v5104, %v438
    %v5225 = vmul.f32 %v5105, %v439
    %v5226 = vmul.f32 %v5106, %v440
    %v5227 = vmul.f32 %v5129, %v436
    %v5228 = vmul.f32 %v5127, %v430
    %v5229 = vmul.f32 %v5107, %v438
    %v5230 = vmul.f32 %v5108, %v439
    %v5231 = vmul.f32 %v5109, %v440
    %v5232 = vmul.f32 %v5130, %v436
    %v5233 = vmul.f32 %v5125, %v456
    %v5234 = vmul.f32 %v5101, %v464
    %v5235 = vmul.f32 %v5102, %v465
    %v5236 = vmul.f32 %v5103, %v466
    %v5237 = vmul.f32 %v5128, %v462
    %v5238 = vmul.f32 %v5126, %v456
    %v5239 = vmul.f32 %v5104, %v464
    %v5240 = vmul.f32 %v5105, %v465
    %v5241 = vmul.f32 %v5106, %v466
    %v5242 = vmul.f32 %v5129, %v462
    %v5243 = vmul.f32 %v5127, %v456
    %v5244 = vmul.f32 %v5107, %v464
    %v5245 = vmul.f32 %v5108, %v465
    %v5246 = vmul.f32 %v5109, %v466
    %v5247 = vmul.f32 %v5130, %v462
    %5263 = vrot.lane.b32.xlu0 %v5143, 127
    %v5264 = vpop.permute.xlu0 %5263
    %5265 = vrot.lane.b32.xlu0 %v5144, 127
    %v5266 = vpop.permute.xlu0 %5265
    %5267 = vrot.lane.b32.xlu0 %v5145, 127
    %v5268 = vpop.permute.xlu0 %5267
    %5269 = vrot.lane.b32.xlu0 %v5146, 127
    %v5270 = vpop.permute.xlu0 %5269
    %5271 = vrot.lane.b32.xlu0 %v5147, 127
    %v5272 = vpop.permute.xlu0 %5271
    %5273 = vrot.lane.b32.xlu0 %v5148, 127
    %v5274 = vpop.permute.xlu0 %5273
    %5275 = vrot.lane.b32.xlu0 %v5149, 127
    %v5276 = vpop.permute.xlu0 %5275
    %5277 = vrot.lane.b32.xlu0 %v5150, 127
    %v5278 = vpop.permute.xlu0 %5277
    %5279 = vrot.lane.b32.xlu0 %v5151, 127
    %v5280 = vpop.permute.xlu0 %5279
    %5281 = vrot.lane.b32.xlu0 %v5152, 127
    %v5282 = vpop.permute.xlu0 %5281
    %5283 = vrot.lane.b32.xlu0 %v5153, 127
    %v5284 = vpop.permute.xlu0 %5283
    %5285 = vrot.lane.b32.xlu0 %v5154, 127
    %v5286 = vpop.permute.xlu0 %5285
    %5287 = vrot.lane.b32.xlu0 %v5155, 127
    %v5288 = vpop.permute.xlu0 %5287
    %5289 = vrot.lane.b32.xlu0 %v5156, 127
    %v5290 = vpop.permute.xlu0 %5289
    %5291 = vrot.lane.b32.xlu0 %v5157, 127
    %v5292 = vpop.permute.xlu0 %5291
    %v5293 = vsel %vm497, %v5264, %v5266
    %v5294 = vsel %vm497, %v5266, %v5268
    %v5295 = vsel %vm497, %v5268, %v5270
    %v5296 = vsel %vm497, %v5270, %v5272
    %v5297 = vsel %vm497, %v5274, %v5276
    %v5298 = vsel %vm497, %v5276, %v5278
    %v5299 = vsel %vm497, %v5278, %v5280
    %v5300 = vsel %vm497, %v5280, %v5282
    %v5301 = vsel %vm497, %v5284, %v5286
    %v5302 = vsel %vm497, %v5286, %v5288
    %v5303 = vsel %vm497, %v5288, %v5290
    %v5304 = vsel %vm497, %v5290, %v5292
    %5332 = vrot.lane.b32.xlu0 %v5158, 126
    %v5333 = vpop.permute.xlu0 %5332
    %5334 = vrot.lane.b32.xlu0 %v5159, 126
    %v5335 = vpop.permute.xlu0 %5334
    %5336 = vrot.lane.b32.xlu0 %v5160, 126
    %v5337 = vpop.permute.xlu0 %5336
    %5338 = vrot.lane.b32.xlu0 %v5161, 126
    %v5339 = vpop.permute.xlu0 %5338
    %5340 = vrot.lane.b32.xlu0 %v5162, 126
    %v5341 = vpop.permute.xlu0 %5340
    %5342 = vrot.lane.b32.xlu0 %v5163, 126
    %v5343 = vpop.permute.xlu0 %5342
    %5344 = vrot.lane.b32.xlu0 %v5164, 126
    %v5345 = vpop.permute.xlu0 %5344
    %5346 = vrot.lane.b32.xlu0 %v5165, 126
    %v5347 = vpop.permute.xlu0 %5346
    %5348 = vrot.lane.b32.xlu0 %v5166, 126
    %v5349 = vpop.permute.xlu0 %5348
    %5350 = vrot.lane.b32.xlu0 %v5167, 126
    %v5351 = vpop.permute.xlu0 %5350
    %5352 = vrot.lane.b32.xlu0 %v5168, 126
    %v5353 = vpop.permute.xlu0 %5352
    %5354 = vrot.lane.b32.xlu0 %v5169, 126
    %v5355 = vpop.permute.xlu0 %5354
    %5356 = vrot.lane.b32.xlu0 %v5170, 126
    %v5357 = vpop.permute.xlu0 %5356
    %5358 = vrot.lane.b32.xlu0 %v5171, 126
    %v5359 = vpop.permute.xlu0 %5358
    %5360 = vrot.lane.b32.xlu0 %v5172, 126
    %v5361 = vpop.permute.xlu0 %5360
    %v5362 = vsel %vm526, %v5333, %v5335
    %v5363 = vsel %vm526, %v5335, %v5337
    %v5364 = vsel %vm526, %v5337, %v5339
    %v5365 = vsel %vm526, %v5339, %v5341
    %v5366 = vsel %vm526, %v5343, %v5345
    %v5367 = vsel %vm526, %v5345, %v5347
    %v5368 = vsel %vm526, %v5347, %v5349
    %v5369 = vsel %vm526, %v5349, %v5351
    %v5370 = vsel %vm526, %v5353, %v5355
    %v5371 = vsel %vm526, %v5355, %v5357
    %v5372 = vsel %vm526, %v5357, %v5359
    %v5373 = vsel %vm526, %v5359, %v5361
    %5401 = vrot.lane.b32.xlu0 %v5173, 112
    %v5402 = vpop.permute.xlu0 %5401
    %5403 = vrot.lane.b32.xlu0 %v5174, 112
    %v5404 = vpop.permute.xlu0 %5403
    %5405 = vrot.lane.b32.xlu0 %v5175, 112
    %v5406 = vpop.permute.xlu0 %5405
    %5407 = vrot.lane.b32.xlu0 %v5176, 112
    %v5408 = vpop.permute.xlu0 %5407
    %5409 = vrot.lane.b32.xlu0 %v5177, 112
    %v5410 = vpop.permute.xlu0 %5409
    %5411 = vrot.lane.b32.xlu0 %v5178, 112
    %v5412 = vpop.permute.xlu0 %5411
    %5413 = vrot.lane.b32.xlu0 %v5179, 112
    %v5414 = vpop.permute.xlu0 %5413
    %5415 = vrot.lane.b32.xlu0 %v5180, 112
    %v5416 = vpop.permute.xlu0 %5415
    %5417 = vrot.lane.b32.xlu0 %v5181, 112
    %v5418 = vpop.permute.xlu0 %5417
    %5419 = vrot.lane.b32.xlu0 %v5182, 112
    %v5420 = vpop.permute.xlu0 %5419
    %5421 = vrot.lane.b32.xlu0 %v5183, 112
    %v5422 = vpop.permute.xlu0 %5421
    %5423 = vrot.lane.b32.xlu0 %v5184, 112
    %v5424 = vpop.permute.xlu0 %5423
    %5425 = vrot.lane.b32.xlu0 %v5185, 112
    %v5426 = vpop.permute.xlu0 %5425
    %5427 = vrot.lane.b32.xlu0 %v5186, 112
    %v5428 = vpop.permute.xlu0 %5427
    %5429 = vrot.lane.b32.xlu0 %v5187, 112
    %v5430 = vpop.permute.xlu0 %5429
    %v5431 = vsel %vm555, %v5402, %v5404
    %v5432 = vsel %vm555, %v5404, %v5406
    %v5433 = vsel %vm555, %v5406, %v5408
    %v5434 = vsel %vm555, %v5408, %v5410
    %v5435 = vsel %vm555, %v5412, %v5414
    %v5436 = vsel %vm555, %v5414, %v5416
    %v5437 = vsel %vm555, %v5416, %v5418
    %v5438 = vsel %vm555, %v5418, %v5420
    %v5439 = vsel %vm555, %v5422, %v5424
    %v5440 = vsel %vm555, %v5424, %v5426
    %v5441 = vsel %vm555, %v5426, %v5428
    %v5442 = vsel %vm555, %v5428, %v5430
    %5461 = vrot.lane.b32.xlu0 %v5125, 111
    %v5462 = vpop.permute.xlu0 %5461
    %5463 = vrot.lane.b32.xlu0 %v5101, 111
    %v5464 = vpop.permute.xlu0 %5463
    %5465 = vrot.lane.b32.xlu0 %v5102, 111
    %v5466 = vpop.permute.xlu0 %5465
    %5467 = vrot.lane.b32.xlu0 %v5103, 111
    %v5468 = vpop.permute.xlu0 %5467
    %5469 = vrot.lane.b32.xlu0 %v5128, 111
    %v5470 = vpop.permute.xlu0 %5469
    %5471 = vrot.lane.b32.xlu0 %v5126, 111
    %v5472 = vpop.permute.xlu0 %5471
    %5473 = vrot.lane.b32.xlu0 %v5104, 111
    %v5474 = vpop.permute.xlu0 %5473
    %5475 = vrot.lane.b32.xlu0 %v5105, 111
    %v5476 = vpop.permute.xlu0 %5475
    %5477 = vrot.lane.b32.xlu0 %v5106, 111
    %v5478 = vpop.permute.xlu0 %5477
    %5479 = vrot.lane.b32.xlu0 %v5129, 111
    %v5480 = vpop.permute.xlu0 %5479
    %5481 = vrot.lane.b32.xlu0 %v5127, 111
    %v5482 = vpop.permute.xlu0 %5481
    %5483 = vrot.lane.b32.xlu0 %v5107, 111
    %v5484 = vpop.permute.xlu0 %5483
    %5485 = vrot.lane.b32.xlu0 %v5108, 111
    %v5486 = vpop.permute.xlu0 %5485
    %5487 = vrot.lane.b32.xlu0 %v5109, 111
    %v5488 = vpop.permute.xlu0 %5487
    %5489 = vrot.lane.b32.xlu0 %v5130, 111
    %v5490 = vpop.permute.xlu0 %5489
    %v5491 = vsel %vm581, %v5462, %v5464
    %v5492 = vsel %vm581, %v5464, %v5466
    %v5493 = vsel %vm581, %v5466, %v5468
    %v5494 = vsel %vm581, %v5468, %v5470
    %v5495 = vsel %vm581, %v5472, %v5474
    %v5496 = vsel %vm581, %v5474, %v5476
    %v5497 = vsel %vm581, %v5476, %v5478
    %v5498 = vsel %vm581, %v5478, %v5480
    %v5499 = vsel %vm581, %v5482, %v5484
    %v5500 = vsel %vm581, %v5484, %v5486
    %v5501 = vsel %vm581, %v5486, %v5488
    %v5502 = vsel %vm581, %v5488, %v5490
    %5530 = vrot.lane.b32.xlu0 %v5188, 110
    %v5531 = vpop.permute.xlu0 %5530
    %5532 = vrot.lane.b32.xlu0 %v5189, 110
    %v5533 = vpop.permute.xlu0 %5532
    %5534 = vrot.lane.b32.xlu0 %v5190, 110
    %v5535 = vpop.permute.xlu0 %5534
    %5536 = vrot.lane.b32.xlu0 %v5191, 110
    %v5537 = vpop.permute.xlu0 %5536
    %5538 = vrot.lane.b32.xlu0 %v5192, 110
    %v5539 = vpop.permute.xlu0 %5538
    %5540 = vrot.lane.b32.xlu0 %v5193, 110
    %v5541 = vpop.permute.xlu0 %5540
    %5542 = vrot.lane.b32.xlu0 %v5194, 110
    %v5543 = vpop.permute.xlu0 %5542
    %5544 = vrot.lane.b32.xlu0 %v5195, 110
    %v5545 = vpop.permute.xlu0 %5544
    %5546 = vrot.lane.b32.xlu0 %v5196, 110
    %v5547 = vpop.permute.xlu0 %5546
    %5548 = vrot.lane.b32.xlu0 %v5197, 110
    %v5549 = vpop.permute.xlu0 %5548
    %5550 = vrot.lane.b32.xlu0 %v5198, 110
    %v5551 = vpop.permute.xlu0 %5550
    %5552 = vrot.lane.b32.xlu0 %v5199, 110
    %v5553 = vpop.permute.xlu0 %5552
    %5554 = vrot.lane.b32.xlu0 %v5200, 110
    %v5555 = vpop.permute.xlu0 %5554
    %5556 = vrot.lane.b32.xlu0 %v5201, 110
    %v5557 = vpop.permute.xlu0 %5556
    %5558 = vrot.lane.b32.xlu0 %v5202, 110
    %v5559 = vpop.permute.xlu0 %5558
    %v5560 = vsel %vm610, %v5531, %v5533
    %v5561 = vsel %vm610, %v5533, %v5535
    %v5562 = vsel %vm610, %v5535, %v5537
    %v5563 = vsel %vm610, %v5537, %v5539
    %v5564 = vsel %vm610, %v5541, %v5543
    %v5565 = vsel %vm610, %v5543, %v5545
    %v5566 = vsel %vm610, %v5545, %v5547
    %v5567 = vsel %vm610, %v5547, %v5549
    %v5568 = vsel %vm610, %v5551, %v5553
    %v5569 = vsel %vm610, %v5553, %v5555
    %v5570 = vsel %vm610, %v5555, %v5557
    %v5571 = vsel %vm610, %v5557, %v5559
    %5599 = vrot.lane.b32.xlu0 %v5203, 96
    %v5600 = vpop.permute.xlu0 %5599
    %5601 = vrot.lane.b32.xlu0 %v5204, 96
    %v5602 = vpop.permute.xlu0 %5601
    %5603 = vrot.lane.b32.xlu0 %v5205, 96
    %v5604 = vpop.permute.xlu0 %5603
    %5605 = vrot.lane.b32.xlu0 %v5206, 96
    %v5606 = vpop.permute.xlu0 %5605
    %5607 = vrot.lane.b32.xlu0 %v5207, 96
    %v5608 = vpop.permute.xlu0 %5607
    %5609 = vrot.lane.b32.xlu0 %v5208, 96
    %v5610 = vpop.permute.xlu0 %5609
    %5611 = vrot.lane.b32.xlu0 %v5209, 96
    %v5612 = vpop.permute.xlu0 %5611
    %5613 = vrot.lane.b32.xlu0 %v5210, 96
    %v5614 = vpop.permute.xlu0 %5613
    %5615 = vrot.lane.b32.xlu0 %v5211, 96
    %v5616 = vpop.permute.xlu0 %5615
    %5617 = vrot.lane.b32.xlu0 %v5212, 96
    %v5618 = vpop.permute.xlu0 %5617
    %5619 = vrot.lane.b32.xlu0 %v5213, 96
    %v5620 = vpop.permute.xlu0 %5619
    %5621 = vrot.lane.b32.xlu0 %v5214, 96
    %v5622 = vpop.permute.xlu0 %5621
    %5623 = vrot.lane.b32.xlu0 %v5215, 96
    %v5624 = vpop.permute.xlu0 %5623
    %5625 = vrot.lane.b32.xlu0 %v5216, 96
    %v5626 = vpop.permute.xlu0 %5625
    %5627 = vrot.lane.b32.xlu0 %v5217, 96
    %v5628 = vpop.permute.xlu0 %5627
    %v5629 = vsel %vm639, %v5600, %v5602
    %v5630 = vsel %vm639, %v5602, %v5604
    %v5631 = vsel %vm639, %v5604, %v5606
    %v5632 = vsel %vm639, %v5606, %v5608
    %v5633 = vsel %vm639, %v5610, %v5612
    %v5634 = vsel %vm639, %v5612, %v5614
    %v5635 = vsel %vm639, %v5614, %v5616
    %v5636 = vsel %vm639, %v5616, %v5618
    %v5637 = vsel %vm639, %v5620, %v5622
    %v5638 = vsel %vm639, %v5622, %v5624
    %v5639 = vsel %vm639, %v5624, %v5626
    %v5640 = vsel %vm639, %v5626, %v5628
    %5668 = vrot.lane.b32.xlu0 %v5218, 95
    %v5669 = vpop.permute.xlu0 %5668
    %5670 = vrot.lane.b32.xlu0 %v5219, 95
    %v5671 = vpop.permute.xlu0 %5670
    %5672 = vrot.lane.b32.xlu0 %v5220, 95
    %v5673 = vpop.permute.xlu0 %5672
    %5674 = vrot.lane.b32.xlu0 %v5221, 95
    %v5675 = vpop.permute.xlu0 %5674
    %5676 = vrot.lane.b32.xlu0 %v5222, 95
    %v5677 = vpop.permute.xlu0 %5676
    %5678 = vrot.lane.b32.xlu0 %v5223, 95
    %v5679 = vpop.permute.xlu0 %5678
    %5680 = vrot.lane.b32.xlu0 %v5224, 95
    %v5681 = vpop.permute.xlu0 %5680
    %5682 = vrot.lane.b32.xlu0 %v5225, 95
    %v5683 = vpop.permute.xlu0 %5682
    %5684 = vrot.lane.b32.xlu0 %v5226, 95
    %v5685 = vpop.permute.xlu0 %5684
    %5686 = vrot.lane.b32.xlu0 %v5227, 95
    %v5687 = vpop.permute.xlu0 %5686
    %5688 = vrot.lane.b32.xlu0 %v5228, 95
    %v5689 = vpop.permute.xlu0 %5688
    %5690 = vrot.lane.b32.xlu0 %v5229, 95
    %v5691 = vpop.permute.xlu0 %5690
    %5692 = vrot.lane.b32.xlu0 %v5230, 95
    %v5693 = vpop.permute.xlu0 %5692
    %5694 = vrot.lane.b32.xlu0 %v5231, 95
    %v5695 = vpop.permute.xlu0 %5694
    %5696 = vrot.lane.b32.xlu0 %v5232, 95
    %v5697 = vpop.permute.xlu0 %5696
    %v5698 = vsel %vm668, %v5669, %v5671
    %v5699 = vsel %vm668, %v5671, %v5673
    %v5700 = vsel %vm668, %v5673, %v5675
    %v5701 = vsel %vm668, %v5675, %v5677
    %v5702 = vsel %vm668, %v5679, %v5681
    %v5703 = vsel %vm668, %v5681, %v5683
    %v5704 = vsel %vm668, %v5683, %v5685
    %v5705 = vsel %vm668, %v5685, %v5687
    %v5706 = vsel %vm668, %v5689, %v5691
    %v5707 = vsel %vm668, %v5691, %v5693
    %v5708 = vsel %vm668, %v5693, %v5695
    %v5709 = vsel %vm668, %v5695, %v5697
    %5737 = vrot.lane.b32.xlu0 %v5233, 94
    %v5738 = vpop.permute.xlu0 %5737
    %5739 = vrot.lane.b32.xlu0 %v5234, 94
    %v5740 = vpop.permute.xlu0 %5739
    %5741 = vrot.lane.b32.xlu0 %v5235, 94
    %v5742 = vpop.permute.xlu0 %5741
    %5743 = vrot.lane.b32.xlu0 %v5236, 94
    %v5744 = vpop.permute.xlu0 %5743
    %5745 = vrot.lane.b32.xlu0 %v5237, 94
    %v5746 = vpop.permute.xlu0 %5745
    %5747 = vrot.lane.b32.xlu0 %v5238, 94
    %v5748 = vpop.permute.xlu0 %5747
    %5749 = vrot.lane.b32.xlu0 %v5239, 94
    %v5750 = vpop.permute.xlu0 %5749
    %5751 = vrot.lane.b32.xlu0 %v5240, 94
    %v5752 = vpop.permute.xlu0 %5751
    %5753 = vrot.lane.b32.xlu0 %v5241, 94
    %v5754 = vpop.permute.xlu0 %5753
    %5755 = vrot.lane.b32.xlu0 %v5242, 94
    %v5756 = vpop.permute.xlu0 %5755
    %5757 = vrot.lane.b32.xlu0 %v5243, 94
    %v5758 = vpop.permute.xlu0 %5757
    %5759 = vrot.lane.b32.xlu0 %v5244, 94
    %v5760 = vpop.permute.xlu0 %5759
    %5761 = vrot.lane.b32.xlu0 %v5245, 94
    %v5762 = vpop.permute.xlu0 %5761
    %5763 = vrot.lane.b32.xlu0 %v5246, 94
    %v5764 = vpop.permute.xlu0 %5763
    %5765 = vrot.lane.b32.xlu0 %v5247, 94
    %v5766 = vpop.permute.xlu0 %5765
    %v5767 = vsel %vm692, %v5738, %v5740
    %v5768 = vsel %vm692, %v5740, %v5742
    %v5769 = vsel %vm692, %v5742, %v5744
    %v5770 = vsel %vm692, %v5744, %v5746
    %v5771 = vsel %vm692, %v5748, %v5750
    %v5772 = vsel %vm692, %v5750, %v5752
    %v5773 = vsel %vm692, %v5752, %v5754
    %v5774 = vsel %vm692, %v5754, %v5756
    %v5775 = vsel %vm692, %v5758, %v5760
    %v5776 = vsel %vm692, %v5760, %v5762
    %v5777 = vsel %vm692, %v5762, %v5764
    %v5778 = vsel %vm692, %v5764, %v5766
    %v5791 = vpack.c.bf16 %v5131, %v2904
    %v5792 = vpack.c.bf16 %v5132, %v2905
    %v5793 = vpack.c.bf16 %v5133, %v2906
    %v5794 = vpack.c.bf16 %v5134, %v2907
    %v5795 = vpack.c.bf16 %v5139, %v5135
    %v5796 = vpack.c.bf16 %v5140, %v5136
    %v5797 = vpack.c.bf16 %v5141, %v5137
    %v5798 = vpack.c.bf16 %v5142, %v5138
    %v5799 = vpack.c.bf16 %v5293, %v3066
    %v5800 = vpack.c.bf16 %v5294, %v3067
    %v5801 = vpack.c.bf16 %v5295, %v3068
    %v5802 = vpack.c.bf16 %v5296, %v3069
    %v5803 = vpack.c.bf16 %v5301, %v5297
    %v5804 = vpack.c.bf16 %v5302, %v5298
    %v5805 = vpack.c.bf16 %v5303, %v5299
    %v5806 = vpack.c.bf16 %v5304, %v5300
    %v5807 = vpack.c.bf16 %v5362, %v3135
    %v5808 = vpack.c.bf16 %v5363, %v3136
    %v5809 = vpack.c.bf16 %v5364, %v3137
    %v5810 = vpack.c.bf16 %v5365, %v3138
    %v5811 = vpack.c.bf16 %v5370, %v5366
    %v5812 = vpack.c.bf16 %v5371, %v5367
    %v5813 = vpack.c.bf16 %v5372, %v5368
    %v5814 = vpack.c.bf16 %v5373, %v5369
    %v5815 = vpack.c.bf16 %v5431, %v3204
    %v5816 = vpack.c.bf16 %v5432, %v3205
    %v5817 = vpack.c.bf16 %v5433, %v3206
    %v5818 = vpack.c.bf16 %v5434, %v3207
    %v5819 = vpack.c.bf16 %v5439, %v5435
    %v5820 = vpack.c.bf16 %v5440, %v5436
    %v5821 = vpack.c.bf16 %v5441, %v5437
    %v5822 = vpack.c.bf16 %v5442, %v5438
    %v5823 = vpack.c.bf16 %v5491, %v3264
    %v5824 = vpack.c.bf16 %v5492, %v3265
    %v5825 = vpack.c.bf16 %v5493, %v3266
    %v5826 = vpack.c.bf16 %v5494, %v3267
    %v5827 = vpack.c.bf16 %v5499, %v5495
    %v5828 = vpack.c.bf16 %v5500, %v5496
    %v5829 = vpack.c.bf16 %v5501, %v5497
    %v5830 = vpack.c.bf16 %v5502, %v5498
    %v5831 = vpack.c.bf16 %v5560, %v3333
    %v5832 = vpack.c.bf16 %v5561, %v3334
    %v5833 = vpack.c.bf16 %v5562, %v3335
    %v5834 = vpack.c.bf16 %v5563, %v3336
    %v5835 = vpack.c.bf16 %v5568, %v5564
    %v5836 = vpack.c.bf16 %v5569, %v5565
    %v5837 = vpack.c.bf16 %v5570, %v5566
    %v5838 = vpack.c.bf16 %v5571, %v5567
    %v5839 = vpack.c.bf16 %v5629, %v3402
    %v5840 = vpack.c.bf16 %v5630, %v3403
    %v5841 = vpack.c.bf16 %v5631, %v3404
    %v5842 = vpack.c.bf16 %v5632, %v3405
    %v5843 = vpack.c.bf16 %v5637, %v5633
    %v5844 = vpack.c.bf16 %v5638, %v5634
    %v5845 = vpack.c.bf16 %v5639, %v5635
    %v5846 = vpack.c.bf16 %v5640, %v5636
    %v5847 = vpack.c.bf16 %v5698, %v3471
    %v5848 = vpack.c.bf16 %v5699, %v3472
    %v5849 = vpack.c.bf16 %v5700, %v3473
    %v5850 = vpack.c.bf16 %v5701, %v3474
    %v5851 = vpack.c.bf16 %v5706, %v5702
    %v5852 = vpack.c.bf16 %v5707, %v5703
    %v5853 = vpack.c.bf16 %v5708, %v5704
    %v5854 = vpack.c.bf16 %v5709, %v5705
    %v5855 = vpack.c.bf16 %v5767, %v3540
    %v5856 = vpack.c.bf16 %v5768, %v3541
    %v5857 = vpack.c.bf16 %v5769, %v3542
    %v5858 = vpack.c.bf16 %v5770, %v3543
    %v5859 = vpack.c.bf16 %v5775, %v5771
    %v5860 = vpack.c.bf16 %v5776, %v5772
    %v5861 = vpack.c.bf16 %v5777, %v5773
    %v5862 = vpack.c.bf16 %v5778, %v5774
    %5864 = vset.pattern.permute.xlu0 0
    %5865 = vperm.xlu0 %5864, %v5064
    %v5866 = vpop.permute.xlu0 %5865
    %v5870 = vunpack.c.l.b16 %v5062
    %v5871 = vunpack.c.h.b16 %v5062
    %v5872 = vunpack.c.l.b16 %v5063
    %v5873 = vpack.c.b16 %v5870, %v5870
    %v5874 = vpack.c.b16 %v5871, %v5871
    %v5875 = vpack.c.b16 %v5872, %v5872
    %v5879 = vsel %vm411, %v5875, 0
    %5881 = vmatpush.bf16.msra.mxu0 %v5819
    %5882 = vmatpush.bf16.msra.mxu0 %v5815
    %5883 = vmatpush.bf16.msra.mxu0 %v5811
    %5884 = vmatpush.bf16.msra.mxu0 %v5807
    %5885 = vmatpush.bf16.msra.mxu0 %v5803
    %5886 = vmatpush.bf16.msra.mxu0 %v5799
    %5887 = vmatpush.bf16.msra.mxu0 %v5795
    %5888 = vmatpush.bf16.msra.mxu0 %v5791
    %5889 = vmatmul.bf16.gmra.mxu0 %v5873
    %v5890 = vpop.f32.mrf.mxu0
    %v5891 = vadd.f32 %v5866, %v5890
    %v5892 = vpop.f32.mrf.mxu0
    %5893 = vdwg.mxu0
    %5894 = vmatpush.bf16.msra.mxu0 %v5851
    %5895 = vmatpush.bf16.msra.mxu0 %v5847
    %5896 = vmatpush.bf16.msra.mxu0 %v5843
    %5897 = vmatpush.bf16.msra.mxu0 %v5839
    %5898 = vmatpush.bf16.msra.mxu0 %v5835
    %5899 = vmatpush.bf16.msra.mxu0 %v5831
    %5900 = vmatpush.bf16.msra.mxu0 %v5827
    %5901 = vmatpush.bf16.msra.mxu0 %v5823
    %5902 = vmatmul.bf16.gmra.mxu0 %v5874
    %v5903 = vpop.f32.mrf.mxu0
    %v5904 = vadd.f32 %v5891, %v5903
    %v5905 = vpop.f32.mrf.mxu0
    %5906 = vdwg.mxu0
    %5907 = vmatpush.bf16.msra.mxu0 0
    %5908 = vmatpush.bf16.msra.mxu0 0
    %5909 = vmatpush.bf16.msra.mxu0 0
    %5910 = vmatpush.bf16.msra.mxu0 0
    %5911 = vmatpush.bf16.msra.mxu0 0
    %5912 = vmatpush.bf16.msra.mxu0 0
    %5913 = vmatpush.bf16.msra.mxu0 %v5859
    %5914 = vmatpush.bf16.msra.mxu0 %v5855
    %5915 = vmatmul.bf16.gmra.mxu0 %v5879
    %v5916 = vpop.f32.mrf.mxu0
    %v5917 = vadd.f32 %v5904, %v5916
    %v5918 = vpop.f32.mrf.mxu0
    %5919 = vdwg.mxu0
    %5920 = vmatpush.bf16.msra.mxu0 %v5820
    %5921 = vmatpush.bf16.msra.mxu0 %v5816
    %5922 = vmatpush.bf16.msra.mxu0 %v5812
    %5923 = vmatpush.bf16.msra.mxu0 %v5808
    %5924 = vmatpush.bf16.msra.mxu0 %v5804
    %5925 = vmatpush.bf16.msra.mxu0 %v5800
    %5926 = vmatpush.bf16.msra.mxu0 %v5796
    %5927 = vmatpush.bf16.msra.mxu0 %v5792
    %5928 = vmatmul.bf16.gmra.mxu0 %v5873
    %v5929 = vpop.f32.mrf.mxu0
    %v5930 = vadd.f32 %v5866, %v5929
    %v5931 = vpop.f32.mrf.mxu0
    %5932 = vdwg.mxu0
    %5933 = vmatpush.bf16.msra.mxu0 %v5852
    %5934 = vmatpush.bf16.msra.mxu0 %v5848
    %5935 = vmatpush.bf16.msra.mxu0 %v5844
    %5936 = vmatpush.bf16.msra.mxu0 %v5840
    %5937 = vmatpush.bf16.msra.mxu0 %v5836
    %5938 = vmatpush.bf16.msra.mxu0 %v5832
    %5939 = vmatpush.bf16.msra.mxu0 %v5828
    %5940 = vmatpush.bf16.msra.mxu0 %v5824
    %5941 = vmatmul.bf16.gmra.mxu0 %v5874
    %v5942 = vpop.f32.mrf.mxu0
    %v5943 = vadd.f32 %v5930, %v5942
    %v5944 = vpop.f32.mrf.mxu0
    %5945 = vdwg.mxu0
    %5946 = vmatpush.bf16.msra.mxu0 0
    %5947 = vmatpush.bf16.msra.mxu0 0
    %5948 = vmatpush.bf16.msra.mxu0 0
    %5949 = vmatpush.bf16.msra.mxu0 0
    %5950 = vmatpush.bf16.msra.mxu0 0
    %5951 = vmatpush.bf16.msra.mxu0 0
    %5952 = vmatpush.bf16.msra.mxu0 %v5860
    %5953 = vmatpush.bf16.msra.mxu0 %v5856
    %5954 = vmatmul.bf16.gmra.mxu0 %v5879
    %v5955 = vpop.f32.mrf.mxu0
    %v5956 = vadd.f32 %v5943, %v5955
    %v5957 = vpop.f32.mrf.mxu0
    %5958 = vdwg.mxu0
    %5959 = vmatpush.bf16.msra.mxu0 %v5821
    %5960 = vmatpush.bf16.msra.mxu0 %v5817
    %5961 = vmatpush.bf16.msra.mxu0 %v5813
    %5962 = vmatpush.bf16.msra.mxu0 %v5809
    %5963 = vmatpush.bf16.msra.mxu0 %v5805
    %5964 = vmatpush.bf16.msra.mxu0 %v5801
    %5965 = vmatpush.bf16.msra.mxu0 %v5797
    %5966 = vmatpush.bf16.msra.mxu0 %v5793
    %5967 = vmatmul.bf16.gmra.mxu0 %v5873
    %v5968 = vpop.f32.mrf.mxu0
    %v5969 = vadd.f32 %v5866, %v5968
    %v5970 = vpop.f32.mrf.mxu0
    %5971 = vdwg.mxu0
    %5972 = vmatpush.bf16.msra.mxu0 %v5853
    %5973 = vmatpush.bf16.msra.mxu0 %v5849
    %5974 = vmatpush.bf16.msra.mxu0 %v5845
    %5975 = vmatpush.bf16.msra.mxu0 %v5841
    %5976 = vmatpush.bf16.msra.mxu0 %v5837
    %5977 = vmatpush.bf16.msra.mxu0 %v5833
    %5978 = vmatpush.bf16.msra.mxu0 %v5829
    %5979 = vmatpush.bf16.msra.mxu0 %v5825
    %5980 = vmatmul.bf16.gmra.mxu0 %v5874
    %v5981 = vpop.f32.mrf.mxu0
    %v5982 = vadd.f32 %v5969, %v5981
    %v5983 = vpop.f32.mrf.mxu0
    %5984 = vdwg.mxu0
    %5985 = vmatpush.bf16.msra.mxu0 0
    %5986 = vmatpush.bf16.msra.mxu0 0
    %5987 = vmatpush.bf16.msra.mxu0 0
    %5988 = vmatpush.bf16.msra.mxu0 0
    %5989 = vmatpush.bf16.msra.mxu0 0
    %5990 = vmatpush.bf16.msra.mxu0 0
    %5991 = vmatpush.bf16.msra.mxu0 %v5861
    %5992 = vmatpush.bf16.msra.mxu0 %v5857
    %5993 = vmatmul.bf16.gmra.mxu0 %v5879
    %v5994 = vpop.f32.mrf.mxu0
    %v5995 = vadd.f32 %v5982, %v5994
    %v5996 = vpop.f32.mrf.mxu0
    %5997 = vdwg.mxu0
    %5998 = vmatpush.bf16.msra.mxu0 %v5822
    %5999 = vmatpush.bf16.msra.mxu0 %v5818
    %6000 = vmatpush.bf16.msra.mxu0 %v5814
    %6001 = vmatpush.bf16.msra.mxu0 %v5810
    %6002 = vmatpush.bf16.msra.mxu0 %v5806
    %6003 = vmatpush.bf16.msra.mxu0 %v5802
    %6004 = vmatpush.bf16.msra.mxu0 %v5798
    %6005 = vmatpush.bf16.msra.mxu0 %v5794
    %6006 = vmatmul.bf16.gmra.mxu0 %v5873
    %v6007 = vpop.f32.mrf.mxu0
    %v6008 = vadd.f32 %v5866, %v6007
    %v6009 = vpop.f32.mrf.mxu0
    %6010 = vdwg.mxu0
    %6011 = vmatpush.bf16.msra.mxu0 %v5854
    %6012 = vmatpush.bf16.msra.mxu0 %v5850
    %6013 = vmatpush.bf16.msra.mxu0 %v5846
    %6014 = vmatpush.bf16.msra.mxu0 %v5842
    %6015 = vmatpush.bf16.msra.mxu0 %v5838
    %6016 = vmatpush.bf16.msra.mxu0 %v5834
    %6017 = vmatpush.bf16.msra.mxu0 %v5830
    %6018 = vmatpush.bf16.msra.mxu0 %v5826
    %6019 = vmatmul.bf16.gmra.mxu0 %v5874
    %v6020 = vpop.f32.mrf.mxu0
    %v6021 = vadd.f32 %v6008, %v6020
    %v6022 = vpop.f32.mrf.mxu0
    %6023 = vdwg.mxu0
    %6024 = vmatpush.bf16.msra.mxu0 0
    %6025 = vmatpush.bf16.msra.mxu0 0
    %6026 = vmatpush.bf16.msra.mxu0 0
    %6027 = vmatpush.bf16.msra.mxu0 0
    %6028 = vmatpush.bf16.msra.mxu0 0
    %6029 = vmatpush.bf16.msra.mxu0 0
    %6030 = vmatpush.bf16.msra.mxu0 %v5862
    %6031 = vmatpush.bf16.msra.mxu0 %v5858
    %6032 = vmatmul.bf16.gmra.mxu0 %v5879
    %v6033 = vpop.f32.mrf.mxu0
    %v6034 = vadd.f32 %v6021, %v6033
    %v6035 = vpop.f32.mrf.mxu0
    %6036 = vdwg.mxu0
    %v6037 = vmax.f32 %v5917, 0.0
    %v6038 = vmax.f32 %v5956, 0.0
    %v6039 = vmax.f32 %v5995, 0.0
    %v6040 = vmax.f32 %v6034, 0.0
    %v6041 = vld [vmem:[%s47] sm:$0xf]
    %v6042 = vld [vmem:[%s49] sm:$0xff]
    %6047 = vrot.lane.b32.xlu0 %v6037, 17
    %v6048 = vpop.permute.xlu0 %6047
    %6049 = vrot.lane.b32.xlu0 %v6038, 17
    %v6050 = vpop.permute.xlu0 %6049
    %6051 = vrot.lane.b32.xlu0 %v6039, 17
    %v6052 = vpop.permute.xlu0 %6051
    %6053 = vrot.lane.b32.xlu0 %v6040, 17
    %v6054 = vpop.permute.xlu0 %6053
    %v6055 = vsel %vm280, %v6048, %v6050
    %v6056 = vsel %vm280, %v6050, %v6052
    %v6057 = vsel %vm280, %v6052, %v6054
    %v6063 = vsel %vm280, 0.0, %v6048
    %v6064 = vsel %vm280, %v6054, 0.0
    %v6065 = vmul.f32 %v6063, %v208
    %v6066 = vmul.f32 %v6055, %v209
    %v6067 = vmul.f32 %v6056, %v210
    %v6068 = vmul.f32 %v6057, %v211
    %v6069 = vmul.f32 %v6063, %v300
    %v6070 = vmul.f32 %v6055, %v308
    %v6071 = vmul.f32 %v6056, %v309
    %v6072 = vmul.f32 %v6057, %v310
    %v6073 = vmul.f32 %v6064, %v306
    %v6074 = vmul.f32 %v6063, %v326
    %v6075 = vmul.f32 %v6055, %v334
    %v6076 = vmul.f32 %v6056, %v335
    %v6077 = vmul.f32 %v6057, %v336
    %v6078 = vmul.f32 %v6064, %v332
    %v6079 = vmul.f32 %v6063, %v352
    %v6080 = vmul.f32 %v6055, %v360
    %v6081 = vmul.f32 %v6056, %v361
    %v6082 = vmul.f32 %v6057, %v362
    %v6083 = vmul.f32 %v6064, %v358
    %v6084 = vmul.f32 %v6063, %v378
    %v6085 = vmul.f32 %v6055, %v386
    %v6086 = vmul.f32 %v6056, %v387
    %v6087 = vmul.f32 %v6057, %v388
    %v6088 = vmul.f32 %v6064, %v384
    %v6089 = vmul.f32 %v6063, %v404
    %v6090 = vmul.f32 %v6055, %v412
    %v6091 = vmul.f32 %v6056, %v413
    %v6092 = vmul.f32 %v6057, %v414
    %v6093 = vmul.f32 %v6064, %v410
    %v6094 = vmul.f32 %v6063, %v430
    %v6095 = vmul.f32 %v6055, %v438
    %v6096 = vmul.f32 %v6056, %v439
    %v6097 = vmul.f32 %v6057, %v440
    %v6098 = vmul.f32 %v6064, %v436
    %v6099 = vmul.f32 %v6063, %v456
    %v6100 = vmul.f32 %v6055, %v464
    %v6101 = vmul.f32 %v6056, %v465
    %v6102 = vmul.f32 %v6057, %v466
    %v6103 = vmul.f32 %v6064, %v462
    %6109 = vrot.lane.b32.xlu0 %v6069, 127
    %v6110 = vpop.permute.xlu0 %6109
    %6111 = vrot.lane.b32.xlu0 %v6070, 127
    %v6112 = vpop.permute.xlu0 %6111
    %6113 = vrot.lane.b32.xlu0 %v6071, 127
    %v6114 = vpop.permute.xlu0 %6113
    %6115 = vrot.lane.b32.xlu0 %v6072, 127
    %v6116 = vpop.permute.xlu0 %6115
    %6117 = vrot.lane.b32.xlu0 %v6073, 127
    %v6118 = vpop.permute.xlu0 %6117
    %v6119 = vsel %vm497, %v6110, %v6112
    %v6120 = vsel %vm497, %v6112, %v6114
    %v6121 = vsel %vm497, %v6114, %v6116
    %v6122 = vsel %vm497, %v6116, %v6118
    %6132 = vrot.lane.b32.xlu0 %v6074, 126
    %v6133 = vpop.permute.xlu0 %6132
    %6134 = vrot.lane.b32.xlu0 %v6075, 126
    %v6135 = vpop.permute.xlu0 %6134
    %6136 = vrot.lane.b32.xlu0 %v6076, 126
    %v6137 = vpop.permute.xlu0 %6136
    %6138 = vrot.lane.b32.xlu0 %v6077, 126
    %v6139 = vpop.permute.xlu0 %6138
    %6140 = vrot.lane.b32.xlu0 %v6078, 126
    %v6141 = vpop.permute.xlu0 %6140
    %v6142 = vsel %vm526, %v6133, %v6135
    %v6143 = vsel %vm526, %v6135, %v6137
    %v6144 = vsel %vm526, %v6137, %v6139
    %v6145 = vsel %vm526, %v6139, %v6141
    %6155 = vrot.lane.b32.xlu0 %v6079, 112
    %v6156 = vpop.permute.xlu0 %6155
    %6157 = vrot.lane.b32.xlu0 %v6080, 112
    %v6158 = vpop.permute.xlu0 %6157
    %6159 = vrot.lane.b32.xlu0 %v6081, 112
    %v6160 = vpop.permute.xlu0 %6159
    %6161 = vrot.lane.b32.xlu0 %v6082, 112
    %v6162 = vpop.permute.xlu0 %6161
    %6163 = vrot.lane.b32.xlu0 %v6083, 112
    %v6164 = vpop.permute.xlu0 %6163
    %v6165 = vsel %vm555, %v6156, %v6158
    %v6166 = vsel %vm555, %v6158, %v6160
    %v6167 = vsel %vm555, %v6160, %v6162
    %v6168 = vsel %vm555, %v6162, %v6164
    %6175 = vrot.lane.b32.xlu0 %v6063, 111
    %v6176 = vpop.permute.xlu0 %6175
    %6177 = vrot.lane.b32.xlu0 %v6055, 111
    %v6178 = vpop.permute.xlu0 %6177
    %6179 = vrot.lane.b32.xlu0 %v6056, 111
    %v6180 = vpop.permute.xlu0 %6179
    %6181 = vrot.lane.b32.xlu0 %v6057, 111
    %v6182 = vpop.permute.xlu0 %6181
    %6183 = vrot.lane.b32.xlu0 %v6064, 111
    %v6184 = vpop.permute.xlu0 %6183
    %v6185 = vsel %vm581, %v6176, %v6178
    %v6186 = vsel %vm581, %v6178, %v6180
    %v6187 = vsel %vm581, %v6180, %v6182
    %v6188 = vsel %vm581, %v6182, %v6184
    %6198 = vrot.lane.b32.xlu0 %v6084, 110
    %v6199 = vpop.permute.xlu0 %6198
    %6200 = vrot.lane.b32.xlu0 %v6085, 110
    %v6201 = vpop.permute.xlu0 %6200
    %6202 = vrot.lane.b32.xlu0 %v6086, 110
    %v6203 = vpop.permute.xlu0 %6202
    %6204 = vrot.lane.b32.xlu0 %v6087, 110
    %v6205 = vpop.permute.xlu0 %6204
    %6206 = vrot.lane.b32.xlu0 %v6088, 110
    %v6207 = vpop.permute.xlu0 %6206
    %v6208 = vsel %vm610, %v6199, %v6201
    %v6209 = vsel %vm610, %v6201, %v6203
    %v6210 = vsel %vm610, %v6203, %v6205
    %v6211 = vsel %vm610, %v6205, %v6207
    %6221 = vrot.lane.b32.xlu0 %v6089, 96
    %v6222 = vpop.permute.xlu0 %6221
    %6223 = vrot.lane.b32.xlu0 %v6090, 96
    %v6224 = vpop.permute.xlu0 %6223
    %6225 = vrot.lane.b32.xlu0 %v6091, 96
    %v6226 = vpop.permute.xlu0 %6225
    %6227 = vrot.lane.b32.xlu0 %v6092, 96
    %v6228 = vpop.permute.xlu0 %6227
    %6229 = vrot.lane.b32.xlu0 %v6093, 96
    %v6230 = vpop.permute.xlu0 %6229
    %v6231 = vsel %vm639, %v6222, %v6224
    %v6232 = vsel %vm639, %v6224, %v6226
    %v6233 = vsel %vm639, %v6226, %v6228
    %v6234 = vsel %vm639, %v6228, %v6230
    %6244 = vrot.lane.b32.xlu0 %v6094, 95
    %v6245 = vpop.permute.xlu0 %6244
    %6246 = vrot.lane.b32.xlu0 %v6095, 95
    %v6247 = vpop.permute.xlu0 %6246
    %6248 = vrot.lane.b32.xlu0 %v6096, 95
    %v6249 = vpop.permute.xlu0 %6248
    %6250 = vrot.lane.b32.xlu0 %v6097, 95
    %v6251 = vpop.permute.xlu0 %6250
    %6252 = vrot.lane.b32.xlu0 %v6098, 95
    %v6253 = vpop.permute.xlu0 %6252
    %v6254 = vsel %vm668, %v6245, %v6247
    %v6255 = vsel %vm668, %v6247, %v6249
    %v6256 = vsel %vm668, %v6249, %v6251
    %v6257 = vsel %vm668, %v6251, %v6253
    %6267 = vrot.lane.b32.xlu0 %v6099, 94
    %v6268 = vpop.permute.xlu0 %6267
    %6269 = vrot.lane.b32.xlu0 %v6100, 94
    %v6270 = vpop.permute.xlu0 %6269
    %6271 = vrot.lane.b32.xlu0 %v6101, 94
    %v6272 = vpop.permute.xlu0 %6271
    %6273 = vrot.lane.b32.xlu0 %v6102, 94
    %v6274 = vpop.permute.xlu0 %6273
    %6275 = vrot.lane.b32.xlu0 %v6103, 94
    %v6276 = vpop.permute.xlu0 %6275
    %v6277 = vsel %vm692, %v6268, %v6270
    %v6278 = vsel %vm692, %v6270, %v6272
    %v6279 = vsel %vm692, %v6272, %v6274
    %v6280 = vsel %vm692, %v6274, %v6276
    %v6285 = vpack.c.bf16 %v6119, %v6065
    %v6286 = vpack.c.bf16 %v6120, %v6066
    %v6287 = vpack.c.bf16 %v6121, %v6067
    %v6288 = vpack.c.bf16 %v6122, %v6068
    %v6289 = vpack.c.bf16 %v6165, %v6142
    %v6290 = vpack.c.bf16 %v6166, %v6143
    %v6291 = vpack.c.bf16 %v6167, %v6144
    %v6292 = vpack.c.bf16 %v6168, %v6145
    %v6293 = vpack.c.bf16 %v6208, %v6185
    %v6294 = vpack.c.bf16 %v6209, %v6186
    %v6295 = vpack.c.bf16 %v6210, %v6187
    %v6296 = vpack.c.bf16 %v6211, %v6188
    %v6297 = vpack.c.bf16 %v6254, %v6231
    %v6298 = vpack.c.bf16 %v6255, %v6232
    %v6299 = vpack.c.bf16 %v6256, %v6233
    %v6300 = vpack.c.bf16 %v6257, %v6234
    %v6301 = vpack.c.bf16 %v6277, %v6277
    %v6302 = vpack.c.bf16 %v6278, %v6278
    %v6303 = vpack.c.bf16 %v6279, %v6279
    %v6304 = vpack.c.bf16 %v6280, %v6280
    %6306 = vset.pattern.permute.xlu0 0
    %6307 = vperm.xlu0 %6306, %v6042
    %v6308 = vpop.permute.xlu0 %6307
    %v6311 = vsel %vm1092, %v6041, 0
    %v6314 = vsel %vm716, %v6301, 0
    %v6317 = vsel %vm716, %v6302, 0
    %v6320 = vsel %vm716, %v6303, 0
    %v6323 = vsel %vm716, %v6304, 0
    %6325 = vmatpush.bf16.msra.mxu0 0
    %6326 = vmatpush.bf16.msra.mxu0 0
    %6327 = vmatpush.bf16.msra.mxu0 0
    %6328 = vmatpush.bf16.msra.mxu0 %v6314
    %6329 = vmatpush.bf16.msra.mxu0 %v6297
    %6330 = vmatpush.bf16.msra.mxu0 %v6293
    %6331 = vmatpush.bf16.msra.mxu0 %v6289
    %6332 = vmatpush.bf16.msra.mxu0 %v6285
    %6333 = vmatmul.bf16.gmra.mxu0 %v6311
    %v6334 = vpop.f32.mrf.mxu0
    %v6335 = vadd.f32 %v6308, %v6334
    %v6336 = vpop.f32.mrf.mxu0
    %6337 = vdwg.mxu0
    %6338 = vmatpush.bf16.msra.mxu0 0
    %6339 = vmatpush.bf16.msra.mxu0 0
    %6340 = vmatpush.bf16.msra.mxu0 0
    %6341 = vmatpush.bf16.msra.mxu0 %v6317
    %6342 = vmatpush.bf16.msra.mxu0 %v6298
    %6343 = vmatpush.bf16.msra.mxu0 %v6294
    %6344 = vmatpush.bf16.msra.mxu0 %v6290
    %6345 = vmatpush.bf16.msra.mxu0 %v6286
    %6346 = vmatmul.bf16.gmra.mxu0 %v6311
    %v6347 = vpop.f32.mrf.mxu0
    %v6348 = vadd.f32 %v6308, %v6347
    %v6349 = vpop.f32.mrf.mxu0
    %6350 = vdwg.mxu0
    %6351 = vmatpush.bf16.msra.mxu0 0
    %6352 = vmatpush.bf16.msra.mxu0 0
    %6353 = vmatpush.bf16.msra.mxu0 0
    %6354 = vmatpush.bf16.msra.mxu0 %v6320
    %6355 = vmatpush.bf16.msra.mxu0 %v6299
    %6356 = vmatpush.bf16.msra.mxu0 %v6295
    %6357 = vmatpush.bf16.msra.mxu0 %v6291
    %6358 = vmatpush.bf16.msra.mxu0 %v6287
    %6359 = vmatmul.bf16.gmra.mxu0 %v6311
    %v6360 = vpop.f32.mrf.mxu0
    %v6361 = vadd.f32 %v6308, %v6360
    %v6362 = vpop.f32.mrf.mxu0
    %6363 = vdwg.mxu0
    %6364 = vmatpush.bf16.msra.mxu0 0
    %6365 = vmatpush.bf16.msra.mxu0 0
    %6366 = vmatpush.bf16.msra.mxu0 0
    %6367 = vmatpush.bf16.msra.mxu0 %v6323
    %6368 = vmatpush.bf16.msra.mxu0 %v6300
    %6369 = vmatpush.bf16.msra.mxu0 %v6296
    %6370 = vmatpush.bf16.msra.mxu0 %v6292
    %6371 = vmatpush.bf16.msra.mxu0 %v6288
    %6372 = vmatmul.bf16.gmra.mxu0 %v6311
    %v6373 = vpop.f32.mrf.mxu0
    %v6374 = vadd.f32 %v6308, %v6373
    %v6375 = vpop.f32.mrf.mxu0
    %6376 = vdwg.mxu0
    %v6377 = vmax.f32 %v6335, 0.0
    %v6378 = vmax.f32 %v6348, 0.0
    %v6379 = vmax.f32 %v6361, 0.0
    %v6380 = vmax.f32 %v6374, 0.0
    %v6381 = vld [vmem:[%s51] sm:$0xf]
    %v6382 = vld [vmem:[%s51 + $0x4] sm:$0xf]
    %v6383 = vld [vmem:[%s51 + $0x8] sm:$0xf]
    %v6384 = vld [vmem:[%s51 + $0xc] sm:$0xf]
    %v6385 = vld [vmem:[%s51 + $0x10] sm:$0xf]
    %v6386 = vld [vmem:[%s51 + $0x14] sm:$0xf]
    %v6387 = vld [vmem:[%s51 + $0x18] sm:$0xf]
    %v6388 = vld [vmem:[%s51 + $0x1c] sm:$0xf]
    %v6389 = vld [vmem:[%s51 + $0x20] sm:$0xf]
    %v6390 = vld [vmem:[%s51 + $0x24] sm:$0xf]
    %v6391 = vld [vmem:[%s51 + $0x28] sm:$0xf]
    %v6392 = vld [vmem:[%s51 + $0x2c] sm:$0xf]
    %v6393 = vld [vmem:[%s51 + $0x30] sm:$0xf]
    %v6394 = vpack.c.bf16 %v6377, %v6377
    %v6395 = vpack.c.bf16 %v6378, %v6378
    %v6396 = vpack.c.bf16 %v6379, %v6379
    %v6397 = vpack.c.bf16 %v6380, %v6380
    %v6398 = vld [vmem:[%s53] sm:$0xff]
    %v6399 = vld [vmem:[%s53 + $0x8] sm:$0xff]
    %v6400 = vld [vmem:[%s53 + $0x10] sm:$0xff]
    %v6401 = vld [vmem:[%s53 + $0x18] sm:$0xff]
    %v6402 = vld [vmem:[%s53 + $0x20] sm:$0xff]
    %v6403 = vld [vmem:[%s53 + $0x28] sm:$0xff]
    %v6404 = vld [vmem:[%s53 + $0x30] sm:$0xff]
    %v6405 = vld [vmem:[%s53 + $0x38] sm:$0xff]
    %v6406 = vld [vmem:[%s53 + $0x40] sm:$0xff]
    %v6407 = vld [vmem:[%s53 + $0x48] sm:$0xff]
    %v6408 = vld [vmem:[%s53 + $0x50] sm:$0xff]
    %v6409 = vld [vmem:[%s53 + $0x58] sm:$0xff]
    %v6410 = vld [vmem:[%s53 + $0x60] sm:$0xff]
    %6412 = vset.pattern.permute.xlu0 0
    %6413 = vperm.xlu0 %6412, %v6398
    %v6414 = vpop.permute.xlu0 %6413
    %6417 = vset.pattern.permute.xlu0 0
    %6418 = vperm.xlu0 %6417, %v6399
    %v6419 = vpop.permute.xlu0 %6418
    %6422 = vset.pattern.permute.xlu0 0
    %6423 = vperm.xlu0 %6422, %v6400
    %v6424 = vpop.permute.xlu0 %6423
    %6427 = vset.pattern.permute.xlu0 0
    %6428 = vperm.xlu0 %6427, %v6401
    %v6429 = vpop.permute.xlu0 %6428
    %6432 = vset.pattern.permute.xlu0 0
    %6433 = vperm.xlu0 %6432, %v6402
    %v6434 = vpop.permute.xlu0 %6433
    %6437 = vset.pattern.permute.xlu0 0
    %6438 = vperm.xlu0 %6437, %v6403
    %v6439 = vpop.permute.xlu0 %6438
    %6442 = vset.pattern.permute.xlu0 0
    %6443 = vperm.xlu0 %6442, %v6404
    %v6444 = vpop.permute.xlu0 %6443
    %6447 = vset.pattern.permute.xlu0 0
    %6448 = vperm.xlu0 %6447, %v6405
    %v6449 = vpop.permute.xlu0 %6448
    %6452 = vset.pattern.permute.xlu0 0
    %6453 = vperm.xlu0 %6452, %v6406
    %v6454 = vpop.permute.xlu0 %6453
    %6457 = vset.pattern.permute.xlu0 0
    %6458 = vperm.xlu0 %6457, %v6407
    %v6459 = vpop.permute.xlu0 %6458
    %6462 = vset.pattern.permute.xlu0 0
    %6463 = vperm.xlu0 %6462, %v6408
    %v6464 = vpop.permute.xlu0 %6463
    %6467 = vset.pattern.permute.xlu0 0
    %6468 = vperm.xlu0 %6467, %v6409
    %v6469 = vpop.permute.xlu0 %6468
    %6472 = vset.pattern.permute.xlu0 0
    %6473 = vperm.xlu0 %6472, %v6410
    %v6474 = vpop.permute.xlu0 %6473
    %v6489 = vunpack.c.l.b16 %v6381
    %v6490 = vunpack.c.l.b16 %v6382
    %v6491 = vunpack.c.l.b16 %v6383
    %v6492 = vunpack.c.l.b16 %v6384
    %v6493 = vunpack.c.l.b16 %v6385
    %v6494 = vunpack.c.l.b16 %v6386
    %v6495 = vunpack.c.l.b16 %v6387
    %v6496 = vunpack.c.l.b16 %v6388
    %v6497 = vunpack.c.l.b16 %v6389
    %v6498 = vunpack.c.l.b16 %v6390
    %v6499 = vunpack.c.l.b16 %v6391
    %v6500 = vunpack.c.l.b16 %v6392
    %v6501 = vunpack.c.l.b16 %v6393
    %v6502 = vpack.c.b16 %v6490, %v6489
    %v6503 = vpack.c.b16 %v6492, %v6491
    %v6504 = vpack.c.b16 %v6494, %v6493
    %v6505 = vpack.c.b16 %v6496, %v6495
    %v6506 = vpack.c.b16 %v6498, %v6497
    %v6507 = vpack.c.b16 %v6500, %v6499
    %v6508 = vpack.c.b16 %v6501, %v6501
    %vm6509 = vcmask 64512
    %v6511 = vsel %vm6509, %v6502, 0
    %v6514 = vsel %vm6509, %v6503, 0
    %v6517 = vsel %vm6509, %v6504, 0
    %v6520 = vsel %vm6509, %v6505, 0
    %v6523 = vsel %vm6509, %v6506, 0
    %v6526 = vsel %vm6509, %v6507, 0
    %v6529 = vsel %vm6509, %v6508, 0
    %v6532 = vsel %vm716, %v6394, 0
    %v6535 = vsel %vm716, %v6395, 0
    %v6538 = vsel %vm716, %v6396, 0
    %v6541 = vsel %vm716, %v6397, 0
    %6543 = vmatpush.bf16.msra.mxu0 0
    %6544 = vmatpush.bf16.msra.mxu0 0
    %6545 = vmatpush.bf16.msra.mxu0 0
    %6546 = vmatpush.bf16.msra.mxu0 0
    %6547 = vmatpush.bf16.msra.mxu0 0
    %6548 = vmatpush.bf16.msra.mxu0 0
    %6549 = vmatpush.bf16.msra.mxu0 0
    %6550 = vmatpush.bf16.msra.mxu0 %v6532
    %6551 = vmatmul.bf16.gmra.mxu0 %v6511
    %v6552 = vpop.f32.mrf.mxu0
    %v6553 = vadd.f32 %v6414, %v6552
    %v6554 = vpop.f32.mrf.mxu0
    %v6555 = vadd.f32 %v6419, %v6554
    %6556 = vmatmul.bf16.gmra.mxu0 %v6514
    %v6557 = vpop.f32.mrf.mxu0
    %v6558 = vadd.f32 %v6424, %v6557
    %v6559 = vpop.f32.mrf.mxu0
    %v6560 = vadd.f32 %v6429, %v6559
    %6561 = vmatmul.bf16.gmra.mxu0 %v6517
    %v6562 = vpop.f32.mrf.mxu0
    %v6563 = vadd.f32 %v6434, %v6562
    %v6564 = vpop.f32.mrf.mxu0
    %v6565 = vadd.f32 %v6439, %v6564
    %6566 = vmatmul.bf16.gmra.mxu0 %v6520
    %v6567 = vpop.f32.mrf.mxu0
    %v6568 = vadd.f32 %v6444, %v6567
    %v6569 = vpop.f32.mrf.mxu0
    %v6570 = vadd.f32 %v6449, %v6569
    %6571 = vmatmul.bf16.gmra.mxu0 %v6523
    %v6572 = vpop.f32.mrf.mxu0
    %v6573 = vadd.f32 %v6454, %v6572
    %v6574 = vpop.f32.mrf.mxu0
    %v6575 = vadd.f32 %v6459, %v6574
    %6576 = vmatmul.bf16.gmra.mxu0 %v6526
    %v6577 = vpop.f32.mrf.mxu0
    %v6578 = vadd.f32 %v6464, %v6577
    %v6579 = vpop.f32.mrf.mxu0
    %v6580 = vadd.f32 %v6469, %v6579
    %6581 = vmatmul.bf16.gmra.mxu0 %v6529
    %v6582 = vpop.f32.mrf.mxu0
    %v6583 = vadd.f32 %v6474, %v6582
    %v6584 = vpop.f32.mrf.mxu0
    %6585 = vdwg.mxu0
    %6586 = vmatpush.bf16.msra.mxu0 0
    %6587 = vmatpush.bf16.msra.mxu0 0
    %6588 = vmatpush.bf16.msra.mxu0 0
    %6589 = vmatpush.bf16.msra.mxu0 0
    %6590 = vmatpush.bf16.msra.mxu0 0
    %6591 = vmatpush.bf16.msra.mxu0 0
    %6592 = vmatpush.bf16.msra.mxu0 0
    %6593 = vmatpush.bf16.msra.mxu0 %v6535
    %6594 = vmatmul.bf16.gmra.mxu0 %v6511
    %v6595 = vpop.f32.mrf.mxu0
    %v6596 = vadd.f32 %v6414, %v6595
    %v6597 = vpop.f32.mrf.mxu0
    %v6598 = vadd.f32 %v6419, %v6597
    %6599 = vmatmul.bf16.gmra.mxu0 %v6514
    %v6600 = vpop.f32.mrf.mxu0
    %v6601 = vadd.f32 %v6424, %v6600
    %v6602 = vpop.f32.mrf.mxu0
    %v6603 = vadd.f32 %v6429, %v6602
    %6604 = vmatmul.bf16.gmra.mxu0 %v6517
    %v6605 = vpop.f32.mrf.mxu0
    %v6606 = vadd.f32 %v6434, %v6605
    %v6607 = vpop.f32.mrf.mxu0
    %v6608 = vadd.f32 %v6439, %v6607
    %6609 = vmatmul.bf16.gmra.mxu0 %v6520
    %v6610 = vpop.f32.mrf.mxu0
    %v6611 = vadd.f32 %v6444, %v6610
    %v6612 = vpop.f32.mrf.mxu0
    %v6613 = vadd.f32 %v6449, %v6612
    %6614 = vmatmul.bf16.gmra.mxu0 %v6523
    %v6615 = vpop.f32.mrf.mxu0
    %v6616 = vadd.f32 %v6454, %v6615
    %v6617 = vpop.f32.mrf.mxu0
    %v6618 = vadd.f32 %v6459, %v6617
    %6619 = vmatmul.bf16.gmra.mxu0 %v6526
    %v6620 = vpop.f32.mrf.mxu0
    %v6621 = vadd.f32 %v6464, %v6620
    %v6622 = vpop.f32.mrf.mxu0
    %v6623 = vadd.f32 %v6469, %v6622
    %6624 = vmatmul.bf16.gmra.mxu0 %v6529
    %v6625 = vpop.f32.mrf.mxu0
    %v6626 = vadd.f32 %v6474, %v6625
    %v6627 = vpop.f32.mrf.mxu0
    %6628 = vdwg.mxu0
    %6629 = vmatpush.bf16.msra.mxu0 0
    %6630 = vmatpush.bf16.msra.mxu0 0
    %6631 = vmatpush.bf16.msra.mxu0 0
    %6632 = vmatpush.bf16.msra.mxu0 0
    %6633 = vmatpush.bf16.msra.mxu0 0
    %6634 = vmatpush.bf16.msra.mxu0 0
    %6635 = vmatpush.bf16.msra.mxu0 0
    %6636 = vmatpush.bf16.msra.mxu0 %v6538
    %6637 = vmatmul.bf16.gmra.mxu0 %v6511
    %v6638 = vpop.f32.mrf.mxu0
    %v6639 = vadd.f32 %v6414, %v6638
    %v6640 = vpop.f32.mrf.mxu0
    %v6641 = vadd.f32 %v6419, %v6640
    %6642 = vmatmul.bf16.gmra.mxu0 %v6514
    %v6643 = vpop.f32.mrf.mxu0
    %v6644 = vadd.f32 %v6424, %v6643
    %v6645 = vpop.f32.mrf.mxu0
    %v6646 = vadd.f32 %v6429, %v6645
    %6647 = vmatmul.bf16.gmra.mxu0 %v6517
    %v6648 = vpop.f32.mrf.mxu0
    %v6649 = vadd.f32 %v6434, %v6648
    %v6650 = vpop.f32.mrf.mxu0
    %v6651 = vadd.f32 %v6439, %v6650
    %6652 = vmatmul.bf16.gmra.mxu0 %v6520
    %v6653 = vpop.f32.mrf.mxu0
    %v6654 = vadd.f32 %v6444, %v6653
    %v6655 = vpop.f32.mrf.mxu0
    %v6656 = vadd.f32 %v6449, %v6655
    %6657 = vmatmul.bf16.gmra.mxu0 %v6523
    %v6658 = vpop.f32.mrf.mxu0
    %v6659 = vadd.f32 %v6454, %v6658
    %v6660 = vpop.f32.mrf.mxu0
    %v6661 = vadd.f32 %v6459, %v6660
    %6662 = vmatmul.bf16.gmra.mxu0 %v6526
    %v6663 = vpop.f32.mrf.mxu0
    %v6664 = vadd.f32 %v6464, %v6663
    %v6665 = vpop.f32.mrf.mxu0
    %v6666 = vadd.f32 %v6469, %v6665
    %6667 = vmatmul.bf16.gmra.mxu0 %v6529
    %v6668 = vpop.f32.mrf.mxu0
    %v6669 = vadd.f32 %v6474, %v6668
    %v6670 = vpop.f32.mrf.mxu0
    %6671 = vdwg.mxu0
    %6672 = vmatpush.bf16.msra.mxu0 0
    %6673 = vmatpush.bf16.msra.mxu0 0
    %6674 = vmatpush.bf16.msra.mxu0 0
    %6675 = vmatpush.bf16.msra.mxu0 0
    %6676 = vmatpush.bf16.msra.mxu0 0
    %6677 = vmatpush.bf16.msra.mxu0 0
    %6678 = vmatpush.bf16.msra.mxu0 0
    %6679 = vmatpush.bf16.msra.mxu0 %v6541
    %6680 = vmatmul.bf16.gmra.mxu0 %v6511
    %v6681 = vpop.f32.mrf.mxu0
    %v6682 = vadd.f32 %v6414, %v6681
    %v6683 = vpop.f32.mrf.mxu0
    %v6684 = vadd.f32 %v6419, %v6683
    %6685 = vmatmul.bf16.gmra.mxu0 %v6514
    %v6686 = vpop.f32.mrf.mxu0
    %v6687 = vadd.f32 %v6424, %v6686
    %v6688 = vpop.f32.mrf.mxu0
    %v6689 = vadd.f32 %v6429, %v6688
    %6690 = vmatmul.bf16.gmra.mxu0 %v6517
    %v6691 = vpop.f32.mrf.mxu0
    %v6692 = vadd.f32 %v6434, %v6691
    %v6693 = vpop.f32.mrf.mxu0
    %v6694 = vadd.f32 %v6439, %v6693
    %6695 = vmatmul.bf16.gmra.mxu0 %v6520
    %v6696 = vpop.f32.mrf.mxu0
    %v6697 = vadd.f32 %v6444, %v6696
    %v6698 = vpop.f32.mrf.mxu0
    %v6699 = vadd.f32 %v6449, %v6698
    %6700 = vmatmul.bf16.gmra.mxu0 %v6523
    %v6701 = vpop.f32.mrf.mxu0
    %v6702 = vadd.f32 %v6454, %v6701
    %v6703 = vpop.f32.mrf.mxu0
    %v6704 = vadd.f32 %v6459, %v6703
    %6705 = vmatmul.bf16.gmra.mxu0 %v6526
    %v6706 = vpop.f32.mrf.mxu0
    %v6707 = vadd.f32 %v6464, %v6706
    %v6708 = vpop.f32.mrf.mxu0
    %v6709 = vadd.f32 %v6469, %v6708
    %6710 = vmatmul.bf16.gmra.mxu0 %v6529
    %v6711 = vpop.f32.mrf.mxu0
    %v6712 = vadd.f32 %v6474, %v6711
    %v6713 = vpop.f32.mrf.mxu0
    %6714 = vdwg.mxu0
    %6715 = vst [vmem:[%s63] sm:$0xff] %v6553
    %6716 = vst [vmem:[%s63 + $0x8] sm:$0xff] %v6596
    %6717 = vst [vmem:[%s63 + $0x10] sm:$0xff] %v6639
    %6718 = vst [vmem:[%s63 + $0x18] sm:$0xff] %v6682
    %6719 = vst [vmem:[%s63 + $0x20] sm:$0xff] %v6555
    %6720 = vst [vmem:[%s63 + $0x28] sm:$0xff] %v6598
    %6721 = vst [vmem:[%s63 + $0x30] sm:$0xff] %v6641
    %6722 = vst [vmem:[%s63 + $0x38] sm:$0xff] %v6684
    %6723 = vst [vmem:[%s63 + $0x40] sm:$0xff] %v6558
    %6724 = vst [vmem:[%s63 + $0x48] sm:$0xff] %v6601
    %6725 = vst [vmem:[%s63 + $0x50] sm:$0xff] %v6644
    %6726 = vst [vmem:[%s63 + $0x58] sm:$0xff] %v6687
    %6727 = vst [vmem:[%s63 + $0x60] sm:$0xff] %v6560
    %6728 = vst [vmem:[%s63 + $0x68] sm:$0xff] %v6603
    %6729 = vst [vmem:[%s63 + $0x70] sm:$0xff] %v6646
    %6730 = vst [vmem:[%s63 + $0x78] sm:$0xff] %v6689
    %6731 = vst [vmem:[%s63 + $0x80] sm:$0xff] %v6563
    %6732 = vst [vmem:[%s63 + $0x88] sm:$0xff] %v6606
    %6733 = vst [vmem:[%s63 + $0x90] sm:$0xff] %v6649
    %6734 = vst [vmem:[%s63 + $0x98] sm:$0xff] %v6692
    %6735 = vst [vmem:[%s63 + $0xa0] sm:$0xff] %v6565
    %6736 = vst [vmem:[%s63 + $0xa8] sm:$0xff] %v6608
    %6737 = vst [vmem:[%s63 + $0xb0] sm:$0xff] %v6651
    %6738 = vst [vmem:[%s63 + $0xb8] sm:$0xff] %v6694
    %6739 = vst [vmem:[%s63 + $0xc0] sm:$0xff] %v6568
    %6740 = vst [vmem:[%s63 + $0xc8] sm:$0xff] %v6611
    %6741 = vst [vmem:[%s63 + $0xd0] sm:$0xff] %v6654
    %6742 = vst [vmem:[%s63 + $0xd8] sm:$0xff] %v6697
    %6743 = vst [vmem:[%s63 + $0xe0] sm:$0xff] %v6570
    %6744 = vst [vmem:[%s63 + $0xe8] sm:$0xff] %v6613
    %6745 = vst [vmem:[%s63 + $0xf0] sm:$0xff] %v6656
    %6746 = vst [vmem:[%s63 + $0xf8] sm:$0xff] %v6699
    %6747 = vst [vmem:[%s63 + $0x100] sm:$0xff] %v6573
    %6748 = vst [vmem:[%s63 + $0x108] sm:$0xff] %v6616
    %6749 = vst [vmem:[%s63 + $0x110] sm:$0xff] %v6659
    %6750 = vst [vmem:[%s63 + $0x118] sm:$0xff] %v6702
    %6751 = vst [vmem:[%s63 + $0x120] sm:$0xff] %v6575
    %6752 = vst [vmem:[%s63 + $0x128] sm:$0xff] %v6618
    %6753 = vst [vmem:[%s63 + $0x130] sm:$0xff] %v6661
    %6754 = vst [vmem:[%s63 + $0x138] sm:$0xff] %v6704
    %6755 = vst [vmem:[%s63 + $0x140] sm:$0xff] %v6578
    %6756 = vst [vmem:[%s63 + $0x148] sm:$0xff] %v6621
    %6757 = vst [vmem:[%s63 + $0x150] sm:$0xff] %v6664
    %6758 = vst [vmem:[%s63 + $0x158] sm:$0xff] %v6707
    %6759 = vst [vmem:[%s63 + $0x160] sm:$0xff] %v6580
    %6760 = vst [vmem:[%s63 + $0x168] sm:$0xff] %v6623
    %6761 = vst [vmem:[%s63 + $0x170] sm:$0xff] %v6666
    %6762 = vst [vmem:[%s63 + $0x178] sm:$0xff] %v6709
    %6763 = vst [vmem:[%s63 + $0x180] sm:$0xff] %v6583
    %6764 = vst [vmem:[%s63 + $0x188] sm:$0xff] %v6626
    %6765 = vst [vmem:[%s63 + $0x190] sm:$0xff] %v6669
    %6766 = vst [vmem:[%s63 + $0x198] sm:$0xff] %v6712
    // Predicated region
    $region130: #{food_segmentation_forward.1} parent=1 // pred_check
      _
    $region131: #{food_segmentation_forward.1} parent=1 // pred_check_branch
      %6768 = sbr.rel (0) target = $region133
    $region132: #{food_segmentation_forward.1} parent=1 // pred_region
      _
    $region133: #{food_segmentation_forward.1} parent=1 // pred_fallthru
      _
    // Predicated region
    $region134: #{food_segmentation_forward.1} parent=1 // pred_check
      _
    $region135: #{food_segmentation_forward.1} parent=1 // pred_check_branch
      %6770 = sbr.rel (0) target = $region137
    $region136: #{food_segmentation_forward.1} parent=1 // pred_region
      _
    $region137: #{food_segmentation_forward.1} parent=1 // pred_fallthru
      _
    %6771 = vsyncpa [#allocation3], 1

</llo_original>
